<compile_context>
chip_gen: v7x
topology: tpu7x:2x2x1
jax: 0.10.0
libtpu: 0.0.40
codegen_flags: <defaults>
</compile_context>

<pallas_src>
import jax
import jax.numpy as jnp
from jax import lax
from jax.experimental import pallas as pl
from jax.experimental.pallas import tpu as pltpu

# ----- synthetic "cfg" values (small shapes) ---------------------------------
DIM_IN = 4            # input channels of ROI features
CONV_HEAD_DIM = 32    # cfg.FAST_RCNN.CONV_HEAD_DIM
NUM_STACKED_CONVS = 2 # cfg.FAST_RCNN.NUM_STACKED_CONVS
MLP_HEAD_DIM = 64     # cfg.FAST_RCNN.MLP_HEAD_DIM
ROI_RES = 8           # cfg.FAST_RCNN.ROI_XFORM_RESOLUTION
N_ROIS = 2            # batch of ROIs


# ----- fused Pallas kernel ----------------------------------------------------
def _make_fused_head_kernel(num_convs):
    """Fused [3x3 conv + ReLU] x num_convs  ->  flatten  ->  FC + ReLU kernel."""

    def kernel(*refs):
        x_ref = refs[0]                                  # (RB, H, W, Cin0) bf16
        conv_refs = refs[1:1 + 2 * num_convs]            # (w2d, bias) per layer
        wf_ref = refs[1 + 2 * num_convs]                 # (H*W*C, F) bf16
        bf_ref = refs[2 + 2 * num_convs]                 # (1, F)     f32
        o_ref = refs[3 + 2 * num_convs]                  # (RB, F)    f32
        scratch = refs[4 + 2 * num_convs:]               # pads/cols, act, flat

        RB, H, W, _ = x_ref.shape
        M = RB * H * W

        a = x_ref[...]                                   # (RB, H, W, Cin) bf16
        for li in range(num_convs):
            w_ref = conv_refs[2 * li]                    # (9*Cin, Cout) bf16
            b_ref = conv_refs[2 * li + 1]                # (1, Cout)     f32
            pad = scratch[2 * li]                        # (RB, H+2, W+2, Cin)
            col = scratch[2 * li + 1]                    # (M, 9*Cin)
            cin = pad.shape[-1]
            cout = b_ref.shape[-1]

            # In-kernel zero padding (pad=1) into VMEM scratch.
            pad[...] = jnp.zeros_like(pad)
            pad[:, 1:H + 1, 1:W + 1, :] = a.astype(pad.dtype)

            # im2col: 9 shifted windows laid out along lanes -> (M, 9*Cin).
            for tap in range(9):
                dy, dx = divmod(tap, 3)
                col[:, tap * cin:(tap + 1) * cin] = (
                    pad[:, dy:dy + H, dx:dx + W, :].reshape(M, cin))

            # One MXU matmul per conv layer (bf16 x bf16 -> f32 accumulate),
            # bias + ReLU in f32 on the VPU.
            z = jnp.dot(col[...], w_ref[...],
                        preferred_element_type=jnp.float32)
            z = jnp.maximum(z + b_ref[...], 0.0)         # (M, Cout) f32
            a = z.reshape(RB, H, W, cout)

        act = scratch[2 * num_convs]                     # (RB, H, W, C) bf16
        flat = scratch[2 * num_convs + 1]                # (RB, H*W*C)   bf16
        C = act.shape[-1]
        act[...] = a.astype(act.dtype)

        # Flatten to (RB, H*W*C) in NHWC order (VMEM-local copies only).  The
        # FC weight rows were pre-permuted to this ordering in the wrapper, so
        # this reproduces PyTorch's NCHW x.view(batch, -1) @ fc_w exactly.
        for p in range(H * W):
            hh, ww = divmod(p, W)
            flat[:, p * C:(p + 1) * C] = act[:, hh, ww, :]

        # FC + ReLU.
        y = jnp.dot(flat[...], wf_ref[...],
                    preferred_element_type=jnp.float32)
        o_ref[...] = jnp.maximum(y + bf_ref[...], 0.0).astype(o_ref.dtype)

    return kernel


# ----- wrapper ----------------------------------------------------------------
def roi_xconv1fc_head_forward(x_nchw, params, roi_block=None):
    """Forward pass of roi_Xconv1fc_head (post-roi_xform part), fully fused."""
    N, cin0, H, W = x_nchw.shape
    convs = params["convs"]
    num_convs = len(convs)
    C = convs[-1][0].shape[-1]
    Fdim = params["fc_w"].shape[-1]

    if roi_block is None:
        roi_block = N                  # all ROIs in one block at these shapes
    assert N % roi_block == 0
    RB = roi_block
    M = RB * H * W
    D = H * W * C

    # NCHW -> NHWC (channels on the fast lane axis) + bf16 for the MXU.
    x_nhwc = jnp.transpose(x_nchw, (0, 2, 3, 1)).astype(jnp.bfloat16)

    operands = [x_nhwc]
    in_specs = [pl.BlockSpec((RB, H, W, cin0), lambda i: (i, 0, 0, 0))]
    scratch_shapes = []

    cin = cin0
    for (w, b) in convs:               # w: (3,3,Cin,Cout) HWIO ; b: (Cout,)
        cout = w.shape[-1]
        operands += [w.reshape(9 * cin, cout).astype(jnp.bfloat16),
                     b.reshape(1, cout).astype(jnp.float32)]
        in_specs += [pl.BlockSpec((9 * cin, cout), lambda i: (0, 0)),
                     pl.BlockSpec((1, cout), lambda i: (0, 0))]
        scratch_shapes += [pltpu.VMEM((RB, H + 2, W + 2, cin), jnp.bfloat16),
                           pltpu.VMEM((M, 9 * cin), jnp.bfloat16)]
        cin = cout

    # Fold PyTorch's channel-major flatten (NCHW .view(N,-1)) into a one-time
    # row permutation of the FC weight: row c*H*W + h*W + w  ->  (h*W+w)*C + c.
    wf = jnp.transpose(params["fc_w"].reshape(C, H, W, Fdim),
                       (1, 2, 0, 3)).reshape(D, Fdim).astype(jnp.bfloat16)
    bf = params["fc_b"].reshape(1, Fdim).astype(jnp.float32)
    operands += [wf, bf]
    in_specs += [pl.BlockSpec((D, Fdim), lambda i: (0, 0)),
                 pl.BlockSpec((1, Fdim), lambda i: (0, 0))]
    scratch_shapes += [pltpu.VMEM((RB, H, W, C), jnp.bfloat16),
                       pltpu.VMEM((RB, D), jnp.bfloat16)]

    return pl.pallas_call(
        _make_fused_head_kernel(num_convs),
        out_shape=jax.ShapeDtypeStruct((N, Fdim), jnp.float32),
        grid_spec=pltpu.PrefetchScalarGridSpec(
            num_scalar_prefetch=0,
            grid=(N // RB,),
            in_specs=in_specs,
            out_specs=pl.BlockSpec((RB, Fdim), lambda i: (i, 0)),
            scratch_shapes=scratch_shapes),
        compiler_params=pltpu.CompilerParams(
            dimension_semantics=("parallel",)),
    )(*operands)


# ----- deterministic parameter init (PyTorch-equivalent layout) ---------------
def init_params(key):
    params = {"convs": []}
    dim_in = DIM_IN
    for _ in range(NUM_STACKED_CONVS):
        key, kw = jax.random.split(key)
        fan_out = 3 * 3 * CONV_HEAD_DIM
        std = (2.0 / fan_out) ** 0.5                       # MSRAFill
        w = std * jax.random.normal(kw, (3, 3, dim_in, CONV_HEAD_DIM),
                                    jnp.float32)           # HWIO
        b = jnp.zeros((CONV_HEAD_DIM,), jnp.float32)
        params["convs"].append((w, b))
        dim_in = CONV_HEAD_DIM
    D = dim_in * ROI_RES * ROI_RES
    key, kw = jax.random.split(key)
    scale = (1.0 / D) ** 0.5                               # XavierFill-ish
    params["fc_w"] = scale * jax.random.normal(kw, (D, MLP_HEAD_DIM),
                                               jnp.float32)
    params["fc_b"] = jnp.zeros((MLP_HEAD_DIM,), jnp.float32)
    return params


# ----- reference (pure JAX, f32) for verification ------------------------------
def reference_forward(x_nchw, params):
    x = x_nchw
    for (w, b) in params["convs"]:
        w_oihw = jnp.transpose(w, (3, 2, 0, 1))            # HWIO -> OIHW
        x = lax.conv_general_dilated(
            x, w_oihw, window_strides=(1, 1), padding=((1, 1), (1, 1)),
            dimension_numbers=("NCHW", "OIHW", "NCHW"))
        x = jnp.maximum(x + b[None, :, None, None], 0.0)
    N = x.shape[0]
    xf = x.reshape(N, -1)                                  # NCHW channel-major
    return jnp.maximum(xf @ params["fc_w"] + params["fc_b"][None, :], 0.0)


if __name__ == "__main__":
    key = jax.random.PRNGKey(0)
    key, kx = jax.random.split(key)
    # (N_rois, dim_in, roi_size, roi_size) -- ROI-pooled features (NCHW)
    x = jax.random.normal(kx, (N_ROIS, DIM_IN, ROI_RES, ROI_RES), jnp.float32)
    params = init_params(key)

    out = jax.jit(roi_xconv1fc_head_forward)(x, params)
    out = jax.block_until_ready(out)

    ref = reference_forward(x, params)
    assert out.shape == (N_ROIS, MLP_HEAD_DIM)
    # bf16 MXU operands (f32 accumulation) -> looser tolerance vs f32 reference.
    assert jnp.allclose(out, ref, atol=5e-2, rtol=5e-2), "mismatch vs reference"
    print("KERNEL_OK")
</pallas_src>

<mosaic_0001>
module attributes {stable_mosaic.version = 11 : i64} {
  func.func @kernel(%arg0: i32, %arg1: memref<2x8x8x4xbf16, #tpu.memory_space<vmem>>, %arg2: memref<36x32xbf16, #tpu.memory_space<vmem>>, %arg3: memref<1x32xf32, #tpu.memory_space<vmem>>, %arg4: memref<288x32xbf16, #tpu.memory_space<vmem>>, %arg5: memref<1x32xf32, #tpu.memory_space<vmem>>, %arg6: memref<2048x64xbf16, #tpu.memory_space<vmem>>, %arg7: memref<1x64xf32, #tpu.memory_space<vmem>>, %arg8: memref<2x64xf32, #tpu.memory_space<vmem>>, %arg9: memref<2x10x10x4xbf16, #tpu.memory_space<vmem>>, %arg10: memref<128x36xbf16, #tpu.memory_space<vmem>>, %arg11: memref<2x10x10x32xbf16, #tpu.memory_space<vmem>>, %arg12: memref<128x288xbf16, #tpu.memory_space<vmem>>, %arg13: memref<2x8x8x32xbf16, #tpu.memory_space<vmem>>, %arg14: memref<2x2048xbf16, #tpu.memory_space<vmem>>) attributes {dimension_semantics = [#tpu.dimension_semantics<parallel>], iteration_bounds = array<i64: 1>, scalar_prefetch = 0 : i64, scratch_operands = 6 : i64, tpu.core_type = #tpu.core_type<tc>, window_params = [{transform_indices = @transform_0, window_bounds = array<i64: 2, 8, 8, 4>}, {pipeline_mode = #tpu.pipeline_mode<synchronous>, transform_indices = @transform_1, window_bounds = array<i64: 36, 32>}, {pipeline_mode = #tpu.pipeline_mode<synchronous>, transform_indices = @transform_2, window_bounds = array<i64: 1, 32>}, {pipeline_mode = #tpu.pipeline_mode<synchronous>, transform_indices = @transform_3, window_bounds = array<i64: 288, 32>}, {pipeline_mode = #tpu.pipeline_mode<synchronous>, transform_indices = @transform_4, window_bounds = array<i64: 1, 32>}, {pipeline_mode = #tpu.pipeline_mode<synchronous>, transform_indices = @transform_5, window_bounds = array<i64: 2048, 64>}, {pipeline_mode = #tpu.pipeline_mode<synchronous>, transform_indices = @transform_6, window_bounds = array<i64: 1, 64>}, {transform_indices = @transform_7, window_bounds = array<i64: 2, 64>}]} {
    %c0 = arith.constant 0 : index
    %c0_0 = arith.constant 0 : index
    %c0_1 = arith.constant 0 : index
    %c0_2 = arith.constant 0 : index
    %0 = vector.load %arg1[%c0, %c0_0, %c0_1, %c0_2] : memref<2x8x8x4xbf16, #tpu.memory_space<vmem>>, vector<2x8x8x4xbf16>
    %cst = arith.constant 0.000000e+00 : bf16
    %1 = vector.broadcast %cst : bf16 to vector<2x10x10x4xbf16>
    %c0_3 = arith.constant 0 : index
    %c0_4 = arith.constant 0 : index
    %c0_5 = arith.constant 0 : index
    %c0_6 = arith.constant 0 : index
    %2 = vector.load %arg9[%c0_3, %c0_4, %c0_5, %c0_6] : memref<2x10x10x4xbf16, #tpu.memory_space<vmem>>, vector<2x10x10x4xbf16>
    tpu.vector_store %arg9[%c0_3, %c0_4, %c0_5, %c0_6], %1 {strides = array<i32>} : memref<2x10x10x4xbf16, #tpu.memory_space<vmem>>, vector<2x10x10x4xbf16>,
    %c0_7 = arith.constant 0 : index
    %c1 = arith.constant 1 : index
    %c1_8 = arith.constant 1 : index
    %c0_9 = arith.constant 0 : index
    %3 = vector.load %arg9[%c0_7, %c1, %c1_8, %c0_9] : memref<2x10x10x4xbf16, #tpu.memory_space<vmem>>, vector<2x8x8x4xbf16>
    tpu.vector_store %arg9[%c0_7, %c1, %c1_8, %c0_9], %0 {strides = array<i32>} : memref<2x10x10x4xbf16, #tpu.memory_space<vmem>>, vector<2x8x8x4xbf16>,
    %c0_10 = arith.constant 0 : index
    %c0_11 = arith.constant 0 : index
    %c0_12 = arith.constant 0 : index
    %c0_13 = arith.constant 0 : index
    %4 = vector.load %arg9[%c0_10, %c0_11, %c0_12, %c0_13] : memref<2x10x10x4xbf16, #tpu.memory_space<vmem>>, vector<2x8x8x4xbf16>
    %5 = vector.shape_cast %4 : vector<2x8x8x4xbf16> to vector<128x4xbf16>
    %c0_14 = arith.constant 0 : index
    %c0_15 = arith.constant 0 : index
    %6 = vector.load %arg10[%c0_14, %c0_15] : memref<128x36xbf16, #tpu.memory_space<vmem>>, vector<128x4xbf16>
    tpu.vector_store %arg10[%c0_14, %c0_15], %5 {strides = array<i32>} : memref<128x36xbf16, #tpu.memory_space<vmem>>, vector<128x4xbf16>,
    %c0_16 = arith.constant 0 : index
    %c0_17 = arith.constant 0 : index
    %c1_18 = arith.constant 1 : index
    %c0_19 = arith.constant 0 : index
    %7 = vector.load %arg9[%c0_16, %c0_17, %c1_18, %c0_19] : memref<2x10x10x4xbf16, #tpu.memory_space<vmem>>, vector<2x8x8x4xbf16>
    %8 = vector.shape_cast %7 : vector<2x8x8x4xbf16> to vector<128x4xbf16>
    %c0_20 = arith.constant 0 : index
    %c4 = arith.constant 4 : index
    %9 = vector.load %arg10[%c0_20, %c4] : memref<128x36xbf16, #tpu.memory_space<vmem>>, vector<128x4xbf16>
    tpu.vector_store %arg10[%c0_20, %c4], %8 {strides = array<i32>} : memref<128x36xbf16, #tpu.memory_space<vmem>>, vector<128x4xbf16>,
    %c0_21 = arith.constant 0 : index
    %c0_22 = arith.constant 0 : index
    %c2 = arith.constant 2 : index
    %c0_23 = arith.constant 0 : index
    %10 = vector.load %arg9[%c0_21, %c0_22, %c2, %c0_23] : memref<2x10x10x4xbf16, #tpu.memory_space<vmem>>, vector<2x8x8x4xbf16>
    %11 = vector.shape_cast %10 : vector<2x8x8x4xbf16> to vector<128x4xbf16>
    %c0_24 = arith.constant 0 : index
    %c8 = arith.constant 8 : index
    %12 = vector.load %arg10[%c0_24, %c8] : memref<128x36xbf16, #tpu.memory_space<vmem>>, vector<128x4xbf16>
    tpu.vector_store %arg10[%c0_24, %c8], %11 {strides = array<i32>} : memref<128x36xbf16, #tpu.memory_space<vmem>>, vector<128x4xbf16>,
    %c0_25 = arith.constant 0 : index
    %c1_26 = arith.constant 1 : index
    %c0_27 = arith.constant 0 : index
    %c0_28 = arith.constant 0 : index
    %13 = vector.load %arg9[%c0_25, %c1_26, %c0_27, %c0_28] : memref<2x10x10x4xbf16, #tpu.memory_space<vmem>>, vector<2x8x8x4xbf16>
    %14 = vector.shape_cast %13 : vector<2x8x8x4xbf16> to vector<128x4xbf16>
    %c0_29 = arith.constant 0 : index
    %c12 = arith.constant 12 : index
    %15 = vector.load %arg10[%c0_29, %c12] : memref<128x36xbf16, #tpu.memory_space<vmem>>, vector<128x4xbf16>
    tpu.vector_store %arg10[%c0_29, %c12], %14 {strides = array<i32>} : memref<128x36xbf16, #tpu.memory_space<vmem>>, vector<128x4xbf16>,
    %c0_30 = arith.constant 0 : index
    %c1_31 = arith.constant 1 : index
    %c1_32 = arith.constant 1 : index
    %c0_33 = arith.constant 0 : index
    %16 = vector.load %arg9[%c0_30, %c1_31, %c1_32, %c0_33] : memref<2x10x10x4xbf16, #tpu.memory_space<vmem>>, vector<2x8x8x4xbf16>
    %17 = vector.shape_cast %16 : vector<2x8x8x4xbf16> to vector<128x4xbf16>
    %c0_34 = arith.constant 0 : index
    %c16 = arith.constant 16 : index
    %18 = vector.load %arg10[%c0_34, %c16] : memref<128x36xbf16, #tpu.memory_space<vmem>>, vector<128x4xbf16>
    tpu.vector_store %arg10[%c0_34, %c16], %17 {strides = array<i32>} : memref<128x36xbf16, #tpu.memory_space<vmem>>, vector<128x4xbf16>,
    %c0_35 = arith.constant 0 : index
    %c1_36 = arith.constant 1 : index
    %c2_37 = arith.constant 2 : index
    %c0_38 = arith.constant 0 : index
    %19 = vector.load %arg9[%c0_35, %c1_36, %c2_37, %c0_38] : memref<2x10x10x4xbf16, #tpu.memory_space<vmem>>, vector<2x8x8x4xbf16>
    %20 = vector.shape_cast %19 : vector<2x8x8x4xbf16> to vector<128x4xbf16>
    %c0_39 = arith.constant 0 : index
    %c20 = arith.constant 20 : index
    %21 = vector.load %arg10[%c0_39, %c20] : memref<128x36xbf16, #tpu.memory_space<vmem>>, vector<128x4xbf16>
    tpu.vector_store %arg10[%c0_39, %c20], %20 {strides = array<i32>} : memref<128x36xbf16, #tpu.memory_space<vmem>>, vector<128x4xbf16>,
    %c0_40 = arith.constant 0 : index
    %c2_41 = arith.constant 2 : index
    %c0_42 = arith.constant 0 : index
    %c0_43 = arith.constant 0 : index
    %22 = vector.load %arg9[%c0_40, %c2_41, %c0_42, %c0_43] : memref<2x10x10x4xbf16, #tpu.memory_space<vmem>>, vector<2x8x8x4xbf16>
    %23 = vector.shape_cast %22 : vector<2x8x8x4xbf16> to vector<128x4xbf16>
    %c0_44 = arith.constant 0 : index
    %c24 = arith.constant 24 : index
    %24 = vector.load %arg10[%c0_44, %c24] : memref<128x36xbf16, #tpu.memory_space<vmem>>, vector<128x4xbf16>
    tpu.vector_store %arg10[%c0_44, %c24], %23 {strides = array<i32>} : memref<128x36xbf16, #tpu.memory_space<vmem>>, vector<128x4xbf16>,
    %c0_45 = arith.constant 0 : index
    %c2_46 = arith.constant 2 : index
    %c1_47 = arith.constant 1 : index
    %c0_48 = arith.constant 0 : index
    %25 = vector.load %arg9[%c0_45, %c2_46, %c1_47, %c0_48] : memref<2x10x10x4xbf16, #tpu.memory_space<vmem>>, vector<2x8x8x4xbf16>
    %26 = vector.shape_cast %25 : vector<2x8x8x4xbf16> to vector<128x4xbf16>
    %c0_49 = arith.constant 0 : index
    %c28 = arith.constant 28 : index
    %27 = vector.load %arg10[%c0_49, %c28] : memref<128x36xbf16, #tpu.memory_space<vmem>>, vector<128x4xbf16>
    tpu.vector_store %arg10[%c0_49, %c28], %26 {strides = array<i32>} : memref<128x36xbf16, #tpu.memory_space<vmem>>, vector<128x4xbf16>,
    %c0_50 = arith.constant 0 : index
    %c2_51 = arith.constant 2 : index
    %c2_52 = arith.constant 2 : index
    %c0_53 = arith.constant 0 : index
    %28 = vector.load %arg9[%c0_50, %c2_51, %c2_52, %c0_53] : memref<2x10x10x4xbf16, #tpu.memory_space<vmem>>, vector<2x8x8x4xbf16>
    %29 = vector.shape_cast %28 : vector<2x8x8x4xbf16> to vector<128x4xbf16>
    %c0_54 = arith.constant 0 : index
    %c32 = arith.constant 32 : index
    %30 = vector.load %arg10[%c0_54, %c32] : memref<128x36xbf16, #tpu.memory_space<vmem>>, vector<128x4xbf16>
    tpu.vector_store %arg10[%c0_54, %c32], %29 {strides = array<i32>} : memref<128x36xbf16, #tpu.memory_space<vmem>>, vector<128x4xbf16>,
    %c0_55 = arith.constant 0 : index
    %c0_56 = arith.constant 0 : index
    %31 = vector.load %arg10[%c0_55, %c0_56] : memref<128x36xbf16, #tpu.memory_space<vmem>>, vector<128x36xbf16>
    %c0_57 = arith.constant 0 : index
    %c0_58 = arith.constant 0 : index
    %32 = vector.load %arg2[%c0_57, %c0_58] : memref<36x32xbf16, #tpu.memory_space<vmem>>, vector<36x32xbf16>
    %cst_59 = arith.constant dense<0.000000e+00> : vector<128x32xf32>
    %33 = tpu.matmul %31, %32, %cst_59 {dimension_numbers = #tpu.dot_dimension_numbers<[1], [0], [0], [1], [0, 0, 1, 1], [], []>} : vector<128x36xbf16>, vector<36x32xbf16>, vector<128x32xf32> -> vector<128x32xf32>
    %c0_60 = arith.constant 0 : index
    %c0_61 = arith.constant 0 : index
    %34 = vector.load %arg3[%c0_60, %c0_61] : memref<1x32xf32, #tpu.memory_space<vmem>>, vector<1x32xf32>
    %35 = vector.broadcast %34 : vector<1x32xf32> to vector<128x32xf32>
    %36 = arith.addf %33, %35 : vector<128x32xf32>
    %cst_62 = arith.constant 0.000000e+00 : f32
    %37 = vector.broadcast %cst_62 : f32 to vector<128x32xf32>
    %38 = arith.maximumf %36, %37 : vector<128x32xf32>
    %39 = vector.shape_cast %38 : vector<128x32xf32> to vector<2x8x8x32xf32>
    %cst_63 = arith.constant 0.000000e+00 : bf16
    %40 = vector.broadcast %cst_63 : bf16 to vector<2x10x10x32xbf16>
    %c0_64 = arith.constant 0 : index
    %c0_65 = arith.constant 0 : index
    %c0_66 = arith.constant 0 : index
    %c0_67 = arith.constant 0 : index
    %41 = vector.load %arg11[%c0_64, %c0_65, %c0_66, %c0_67] : memref<2x10x10x32xbf16, #tpu.memory_space<vmem>>, vector<2x10x10x32xbf16>
    tpu.vector_store %arg11[%c0_64, %c0_65, %c0_66, %c0_67], %40 {strides = array<i32>} : memref<2x10x10x32xbf16, #tpu.memory_space<vmem>>, vector<2x10x10x32xbf16>,
    %42 = arith.truncf %39 : vector<2x8x8x32xf32> to vector<2x8x8x32xbf16>
    %c0_68 = arith.constant 0 : index
    %c1_69 = arith.constant 1 : index
    %c1_70 = arith.constant 1 : index
    %c0_71 = arith.constant 0 : index
    %43 = vector.load %arg11[%c0_68, %c1_69, %c1_70, %c0_71] : memref<2x10x10x32xbf16, #tpu.memory_space<vmem>>, vector<2x8x8x32xbf16>
    tpu.vector_store %arg11[%c0_68, %c1_69, %c1_70, %c0_71], %42 {strides = array<i32>} : memref<2x10x10x32xbf16, #tpu.memory_space<vmem>>, vector<2x8x8x32xbf16>,
    %c0_72 = arith.constant 0 : index
    %c0_73 = arith.constant 0 : index
    %c0_74 = arith.constant 0 : index
    %c0_75 = arith.constant 0 : index
    %44 = vector.load %arg11[%c0_72, %c0_73, %c0_74, %c0_75] : memref<2x10x10x32xbf16, #tpu.memory_space<vmem>>, vector<2x8x8x32xbf16>
    %45 = vector.shape_cast %44 : vector<2x8x8x32xbf16> to vector<128x32xbf16>
    %c0_76 = arith.constant 0 : index
    %c0_77 = arith.constant 0 : index
    %46 = vector.load %arg12[%c0_76, %c0_77] : memref<128x288xbf16, #tpu.memory_space<vmem>>, vector<128x32xbf16>
    tpu.vector_store %arg12[%c0_76, %c0_77], %45 {strides = array<i32>} : memref<128x288xbf16, #tpu.memory_space<vmem>>, vector<128x32xbf16>,
    %c0_78 = arith.constant 0 : index
    %c0_79 = arith.constant 0 : index
    %c1_80 = arith.constant 1 : index
    %c0_81 = arith.constant 0 : index
    %47 = vector.load %arg11[%c0_78, %c0_79, %c1_80, %c0_81] : memref<2x10x10x32xbf16, #tpu.memory_space<vmem>>, vector<2x8x8x32xbf16>
    %48 = vector.shape_cast %47 : vector<2x8x8x32xbf16> to vector<128x32xbf16>
    %c0_82 = arith.constant 0 : index
    %c32_83 = arith.constant 32 : index
    %49 = vector.load %arg12[%c0_82, %c32_83] : memref<128x288xbf16, #tpu.memory_space<vmem>>, vector<128x32xbf16>
    tpu.vector_store %arg12[%c0_82, %c32_83], %48 {strides = array<i32>} : memref<128x288xbf16, #tpu.memory_space<vmem>>, vector<128x32xbf16>,
    %c0_84 = arith.constant 0 : index
    %c0_85 = arith.constant 0 : index
    %c2_86 = arith.constant 2 : index
    %c0_87 = arith.constant 0 : index
    %50 = vector.load %arg11[%c0_84, %c0_85, %c2_86, %c0_87] : memref<2x10x10x32xbf16, #tpu.memory_space<vmem>>, vector<2x8x8x32xbf16>
    %51 = vector.shape_cast %50 : vector<2x8x8x32xbf16> to vector<128x32xbf16>
    %c0_88 = arith.constant 0 : index
    %c64 = arith.constant 64 : index
    %52 = vector.load %arg12[%c0_88, %c64] : memref<128x288xbf16, #tpu.memory_space<vmem>>, vector<128x32xbf16>
    tpu.vector_store %arg12[%c0_88, %c64], %51 {strides = array<i32>} : memref<128x288xbf16, #tpu.memory_space<vmem>>, vector<128x32xbf16>,
    %c0_89 = arith.constant 0 : index
    %c1_90 = arith.constant 1 : index
    %c0_91 = arith.constant 0 : index
    %c0_92 = arith.constant 0 : index
    %53 = vector.load %arg11[%c0_89, %c1_90, %c0_91, %c0_92] : memref<2x10x10x32xbf16, #tpu.memory_space<vmem>>, vector<2x8x8x32xbf16>
    %54 = vector.shape_cast %53 : vector<2x8x8x32xbf16> to vector<128x32xbf16>
    %c0_93 = arith.constant 0 : index
    %c96 = arith.constant 96 : index
    %55 = vector.load %arg12[%c0_93, %c96] : memref<128x288xbf16, #tpu.memory_space<vmem>>, vector<128x32xbf16>
    tpu.vector_store %arg12[%c0_93, %c96], %54 {strides = array<i32>} : memref<128x288xbf16, #tpu.memory_space<vmem>>, vector<128x32xbf16>,
    %c0_94 = arith.constant 0 : index
    %c1_95 = arith.constant 1 : index
    %c1_96 = arith.constant 1 : index
    %c0_97 = arith.constant 0 : index
    %56 = vector.load %arg11[%c0_94, %c1_95, %c1_96, %c0_97] : memref<2x10x10x32xbf16, #tpu.memory_space<vmem>>, vector<2x8x8x32xbf16>
    %57 = vector.shape_cast %56 : vector<2x8x8x32xbf16> to vector<128x32xbf16>
    %c0_98 = arith.constant 0 : index
    %c128 = arith.constant 128 : index
    %58 = vector.load %arg12[%c0_98, %c128] : memref<128x288xbf16, #tpu.memory_space<vmem>>, vector<128x32xbf16>
    tpu.vector_store %arg12[%c0_98, %c128], %57 {strides = array<i32>} : memref<128x288xbf16, #tpu.memory_space<vmem>>, vector<128x32xbf16>,
    %c0_99 = arith.constant 0 : index
    %c1_100 = arith.constant 1 : index
    %c2_101 = arith.constant 2 : index
    %c0_102 = arith.constant 0 : index
    %59 = vector.load %arg11[%c0_99, %c1_100, %c2_101, %c0_102] : memref<2x10x10x32xbf16, #tpu.memory_space<vmem>>, vector<2x8x8x32xbf16>
    %60 = vector.shape_cast %59 : vector<2x8x8x32xbf16> to vector<128x32xbf16>
    %c0_103 = arith.constant 0 : index
    %c160 = arith.constant 160 : index
    %61 = vector.load %arg12[%c0_103, %c160] : memref<128x288xbf16, #tpu.memory_space<vmem>>, vector<128x32xbf16>
    tpu.vector_store %arg12[%c0_103, %c160], %60 {strides = array<i32>} : memref<128x288xbf16, #tpu.memory_space<vmem>>, vector<128x32xbf16>,
    %c0_104 = arith.constant 0 : index
    %c2_105 = arith.constant 2 : index
    %c0_106 = arith.constant 0 : index
    %c0_107 = arith.constant 0 : index
    %62 = vector.load %arg11[%c0_104, %c2_105, %c0_106, %c0_107] : memref<2x10x10x32xbf16, #tpu.memory_space<vmem>>, vector<2x8x8x32xbf16>
    %63 = vector.shape_cast %62 : vector<2x8x8x32xbf16> to vector<128x32xbf16>
    %c0_108 = arith.constant 0 : index
    %c192 = arith.constant 192 : index
    %64 = vector.load %arg12[%c0_108, %c192] : memref<128x288xbf16, #tpu.memory_space<vmem>>, vector<128x32xbf16>
    tpu.vector_store %arg12[%c0_108, %c192], %63 {strides = array<i32>} : memref<128x288xbf16, #tpu.memory_space<vmem>>, vector<128x32xbf16>,
    %c0_109 = arith.constant 0 : index
    %c2_110 = arith.constant 2 : index
    %c1_111 = arith.constant 1 : index
    %c0_112 = arith.constant 0 : index
    %65 = vector.load %arg11[%c0_109, %c2_110, %c1_111, %c0_112] : memref<2x10x10x32xbf16, #tpu.memory_space<vmem>>, vector<2x8x8x32xbf16>
    %66 = vector.shape_cast %65 : vector<2x8x8x32xbf16> to vector<128x32xbf16>
    %c0_113 = arith.constant 0 : index
    %c224 = arith.constant 224 : index
    %67 = vector.load %arg12[%c0_113, %c224] : memref<128x288xbf16, #tpu.memory_space<vmem>>, vector<128x32xbf16>
    tpu.vector_store %arg12[%c0_113, %c224], %66 {strides = array<i32>} : memref<128x288xbf16, #tpu.memory_space<vmem>>, vector<128x32xbf16>,
    %c0_114 = arith.constant 0 : index
    %c2_115 = arith.constant 2 : index
    %c2_116 = arith.constant 2 : index
    %c0_117 = arith.constant 0 : index
    %68 = vector.load %arg11[%c0_114, %c2_115, %c2_116, %c0_117] : memref<2x10x10x32xbf16, #tpu.memory_space<vmem>>, vector<2x8x8x32xbf16>
    %69 = vector.shape_cast %68 : vector<2x8x8x32xbf16> to vector<128x32xbf16>
    %c0_118 = arith.constant 0 : index
    %c256 = arith.constant 256 : index
    %70 = vector.load %arg12[%c0_118, %c256] : memref<128x288xbf16, #tpu.memory_space<vmem>>, vector<128x32xbf16>
    tpu.vector_store %arg12[%c0_118, %c256], %69 {strides = array<i32>} : memref<128x288xbf16, #tpu.memory_space<vmem>>, vector<128x32xbf16>,
    %c0_119 = arith.constant 0 : index
    %c0_120 = arith.constant 0 : index
    %71 = vector.load %arg12[%c0_119, %c0_120] : memref<128x288xbf16, #tpu.memory_space<vmem>>, vector<128x288xbf16>
    %c0_121 = arith.constant 0 : index
    %c0_122 = arith.constant 0 : index
    %72 = vector.load %arg4[%c0_121, %c0_122] : memref<288x32xbf16, #tpu.memory_space<vmem>>, vector<288x32xbf16>
    %cst_123 = arith.constant dense<0.000000e+00> : vector<128x32xf32>
    %73 = tpu.matmul %71, %72, %cst_123 {dimension_numbers = #tpu.dot_dimension_numbers<[1], [0], [0], [1], [0, 0, 1, 1], [], []>} : vector<128x288xbf16>, vector<288x32xbf16>, vector<128x32xf32> -> vector<128x32xf32>
    %c0_124 = arith.constant 0 : index
    %c0_125 = arith.constant 0 : index
    %74 = vector.load %arg5[%c0_124, %c0_125] : memref<1x32xf32, #tpu.memory_space<vmem>>, vector<1x32xf32>
    %75 = vector.broadcast %74 : vector<1x32xf32> to vector<128x32xf32>
    %76 = arith.addf %73, %75 : vector<128x32xf32>
    %cst_126 = arith.constant 0.000000e+00 : f32
    %77 = vector.broadcast %cst_126 : f32 to vector<128x32xf32>
    %78 = arith.maximumf %76, %77 : vector<128x32xf32>
    %79 = vector.shape_cast %78 : vector<128x32xf32> to vector<2x8x8x32xf32>
    %80 = arith.truncf %79 : vector<2x8x8x32xf32> to vector<2x8x8x32xbf16>
    %c0_127 = arith.constant 0 : index
    %c0_128 = arith.constant 0 : index
    %c0_129 = arith.constant 0 : index
    %c0_130 = arith.constant 0 : index
    %81 = vector.load %arg13[%c0_127, %c0_128, %c0_129, %c0_130] : memref<2x8x8x32xbf16, #tpu.memory_space<vmem>>, vector<2x8x8x32xbf16>
    tpu.vector_store %arg13[%c0_127, %c0_128, %c0_129, %c0_130], %80 {strides = array<i32>} : memref<2x8x8x32xbf16, #tpu.memory_space<vmem>>, vector<2x8x8x32xbf16>,
    %c0_131 = arith.constant 0 : index
    %c0_132 = arith.constant 0 : index
    %c0_133 = arith.constant 0 : index
    %c0_134 = arith.constant 0 : index
    %82 = vector.load %arg13[%c0_131, %c0_132, %c0_133, %c0_134] : memref<2x8x8x32xbf16, #tpu.memory_space<vmem>>, vector<2x1x1x32xbf16>
    %83 = vector.shape_cast %82 : vector<2x1x1x32xbf16> to vector<2x32xbf16>
    %c0_135 = arith.constant 0 : index
    %c0_136 = arith.constant 0 : index
    %84 = vector.load %arg14[%c0_135, %c0_136] : memref<2x2048xbf16, #tpu.memory_space<vmem>>, vector<2x32xbf16>
    tpu.vector_store %arg14[%c0_135, %c0_136], %83 {strides = array<i32>} : memref<2x2048xbf16, #tpu.memory_space<vmem>>, vector<2x32xbf16>,
    %c0_137 = arith.constant 0 : index
    %c0_138 = arith.constant 0 : index
    %c1_139 = arith.constant 1 : index
    %c0_140 = arith.constant 0 : index
    %85 = vector.load %arg13[%c0_137, %c0_138, %c1_139, %c0_140] : memref<2x8x8x32xbf16, #tpu.memory_space<vmem>>, vector<2x1x1x32xbf16>
    %86 = vector.shape_cast %85 : vector<2x1x1x32xbf16> to vector<2x32xbf16>
    %c0_141 = arith.constant 0 : index
    %c32_142 = arith.constant 32 : index
    %87 = vector.load %arg14[%c0_141, %c32_142] : memref<2x2048xbf16, #tpu.memory_space<vmem>>, vector<2x32xbf16>
    tpu.vector_store %arg14[%c0_141, %c32_142], %86 {strides = array<i32>} : memref<2x2048xbf16, #tpu.memory_space<vmem>>, vector<2x32xbf16>,
    %c0_143 = arith.constant 0 : index
    %c0_144 = arith.constant 0 : index
    %c2_145 = arith.constant 2 : index
    %c0_146 = arith.constant 0 : index
    %88 = vector.load %arg13[%c0_143, %c0_144, %c2_145, %c0_146] : memref<2x8x8x32xbf16, #tpu.memory_space<vmem>>, vector<2x1x1x32xbf16>
    %89 = vector.shape_cast %88 : vector<2x1x1x32xbf16> to vector<2x32xbf16>
    %c0_147 = arith.constant 0 : index
    %c64_148 = arith.constant 64 : index
    %90 = vector.load %arg14[%c0_147, %c64_148] : memref<2x2048xbf16, #tpu.memory_space<vmem>>, vector<2x32xbf16>
    tpu.vector_store %arg14[%c0_147, %c64_148], %89 {strides = array<i32>} : memref<2x2048xbf16, #tpu.memory_space<vmem>>, vector<2x32xbf16>,
    %c0_149 = arith.constant 0 : index
    %c0_150 = arith.constant 0 : index
    %c3 = arith.constant 3 : index
    %c0_151 = arith.constant 0 : index
    %91 = vector.load %arg13[%c0_149, %c0_150, %c3, %c0_151] : memref<2x8x8x32xbf16, #tpu.memory_space<vmem>>, vector<2x1x1x32xbf16>
    %92 = vector.shape_cast %91 : vector<2x1x1x32xbf16> to vector<2x32xbf16>
    %c0_152 = arith.constant 0 : index
    %c96_153 = arith.constant 96 : index
    %93 = vector.load %arg14[%c0_152, %c96_153] : memref<2x2048xbf16, #tpu.memory_space<vmem>>, vector<2x32xbf16>
    tpu.vector_store %arg14[%c0_152, %c96_153], %92 {strides = array<i32>} : memref<2x2048xbf16, #tpu.memory_space<vmem>>, vector<2x32xbf16>,
    %c0_154 = arith.constant 0 : index
    %c0_155 = arith.constant 0 : index
    %c4_156 = arith.constant 4 : index
    %c0_157 = arith.constant 0 : index
    %94 = vector.load %arg13[%c0_154, %c0_155, %c4_156, %c0_157] : memref<2x8x8x32xbf16, #tpu.memory_space<vmem>>, vector<2x1x1x32xbf16>
    %95 = vector.shape_cast %94 : vector<2x1x1x32xbf16> to vector<2x32xbf16>
    %c0_158 = arith.constant 0 : index
    %c128_159 = arith.constant 128 : index
    %96 = vector.load %arg14[%c0_158, %c128_159] : memref<2x2048xbf16, #tpu.memory_space<vmem>>, vector<2x32xbf16>
    tpu.vector_store %arg14[%c0_158, %c128_159], %95 {strides = array<i32>} : memref<2x2048xbf16, #tpu.memory_space<vmem>>, vector<2x32xbf16>,
    %c0_160 = arith.constant 0 : index
    %c0_161 = arith.constant 0 : index
    %c5 = arith.constant 5 : index
    %c0_162 = arith.constant 0 : index
    %97 = vector.load %arg13[%c0_160, %c0_161, %c5, %c0_162] : memref<2x8x8x32xbf16, #tpu.memory_space<vmem>>, vector<2x1x1x32xbf16>
    %98 = vector.shape_cast %97 : vector<2x1x1x32xbf16> to vector<2x32xbf16>
    %c0_163 = arith.constant 0 : index
    %c160_164 = arith.constant 160 : index
    %99 = vector.load %arg14[%c0_163, %c160_164] : memref<2x2048xbf16, #tpu.memory_space<vmem>>, vector<2x32xbf16>
    tpu.vector_store %arg14[%c0_163, %c160_164], %98 {strides = array<i32>} : memref<2x2048xbf16, #tpu.memory_space<vmem>>, vector<2x32xbf16>,
    %c0_165 = arith.constant 0 : index
    %c0_166 = arith.constant 0 : index
    %c6 = arith.constant 6 : index
    %c0_167 = arith.constant 0 : index
    %100 = vector.load %arg13[%c0_165, %c0_166, %c6, %c0_167] : memref<2x8x8x32xbf16, #tpu.memory_space<vmem>>, vector<2x1x1x32xbf16>
    %101 = vector.shape_cast %100 : vector<2x1x1x32xbf16> to vector<2x32xbf16>
    %c0_168 = arith.constant 0 : index
    %c192_169 = arith.constant 192 : index
    %102 = vector.load %arg14[%c0_168, %c192_169] : memref<2x2048xbf16, #tpu.memory_space<vmem>>, vector<2x32xbf16>
    tpu.vector_store %arg14[%c0_168, %c192_169], %101 {strides = array<i32>} : memref<2x2048xbf16, #tpu.memory_space<vmem>>, vector<2x32xbf16>,
    %c0_170 = arith.constant 0 : index
    %c0_171 = arith.constant 0 : index
    %c7 = arith.constant 7 : index
    %c0_172 = arith.constant 0 : index
    %103 = vector.load %arg13[%c0_170, %c0_171, %c7, %c0_172] : memref<2x8x8x32xbf16, #tpu.memory_space<vmem>>, vector<2x1x1x32xbf16>
    %104 = vector.shape_cast %103 : vector<2x1x1x32xbf16> to vector<2x32xbf16>
    %c0_173 = arith.constant 0 : index
    %c224_174 = arith.constant 224 : index
    %105 = vector.load %arg14[%c0_173, %c224_174] : memref<2x2048xbf16, #tpu.memory_space<vmem>>, vector<2x32xbf16>
    tpu.vector_store %arg14[%c0_173, %c224_174], %104 {strides = array<i32>} : memref<2x2048xbf16, #tpu.memory_space<vmem>>, vector<2x32xbf16>,
    %c0_175 = arith.constant 0 : index
    %c1_176 = arith.constant 1 : index
    %c0_177 = arith.constant 0 : index
    %c0_178 = arith.constant 0 : index
    %106 = vector.load %arg13[%c0_175, %c1_176, %c0_177, %c0_178] : memref<2x8x8x32xbf16, #tpu.memory_space<vmem>>, vector<2x1x1x32xbf16>
    %107 = vector.shape_cast %106 : vector<2x1x1x32xbf16> to vector<2x32xbf16>
    %c0_179 = arith.constant 0 : index
    %c256_180 = arith.constant 256 : index
    %108 = vector.load %arg14[%c0_179, %c256_180] : memref<2x2048xbf16, #tpu.memory_space<vmem>>, vector<2x32xbf16>
    tpu.vector_store %arg14[%c0_179, %c256_180], %107 {strides = array<i32>} : memref<2x2048xbf16, #tpu.memory_space<vmem>>, vector<2x32xbf16>,
    %c0_181 = arith.constant 0 : index
    %c1_182 = arith.constant 1 : index
    %c1_183 = arith.constant 1 : index
    %c0_184 = arith.constant 0 : index
    %109 = vector.load %arg13[%c0_181, %c1_182, %c1_183, %c0_184] : memref<2x8x8x32xbf16, #tpu.memory_space<vmem>>, vector<2x1x1x32xbf16>
    %110 = vector.shape_cast %109 : vector<2x1x1x32xbf16> to vector<2x32xbf16>
    %c0_185 = arith.constant 0 : index
    %c288 = arith.constant 288 : index
    %111 = vector.load %arg14[%c0_185, %c288] : memref<2x2048xbf16, #tpu.memory_space<vmem>>, vector<2x32xbf16>
    tpu.vector_store %arg14[%c0_185, %c288], %110 {strides = array<i32>} : memref<2x2048xbf16, #tpu.memory_space<vmem>>, vector<2x32xbf16>,
    %c0_186 = arith.constant 0 : index
    %c1_187 = arith.constant 1 : index
    %c2_188 = arith.constant 2 : index
    %c0_189 = arith.constant 0 : index
    %112 = vector.load %arg13[%c0_186, %c1_187, %c2_188, %c0_189] : memref<2x8x8x32xbf16, #tpu.memory_space<vmem>>, vector<2x1x1x32xbf16>
    %113 = vector.shape_cast %112 : vector<2x1x1x32xbf16> to vector<2x32xbf16>
    %c0_190 = arith.constant 0 : index
    %c320 = arith.constant 320 : index
    %114 = vector.load %arg14[%c0_190, %c320] : memref<2x2048xbf16, #tpu.memory_space<vmem>>, vector<2x32xbf16>
    tpu.vector_store %arg14[%c0_190, %c320], %113 {strides = array<i32>} : memref<2x2048xbf16, #tpu.memory_space<vmem>>, vector<2x32xbf16>,
    %c0_191 = arith.constant 0 : index
    %c1_192 = arith.constant 1 : index
    %c3_193 = arith.constant 3 : index
    %c0_194 = arith.constant 0 : index
    %115 = vector.load %arg13[%c0_191, %c1_192, %c3_193, %c0_194] : memref<2x8x8x32xbf16, #tpu.memory_space<vmem>>, vector<2x1x1x32xbf16>
    %116 = vector.shape_cast %115 : vector<2x1x1x32xbf16> to vector<2x32xbf16>
    %c0_195 = arith.constant 0 : index
    %c352 = arith.constant 352 : index
    %117 = vector.load %arg14[%c0_195, %c352] : memref<2x2048xbf16, #tpu.memory_space<vmem>>, vector<2x32xbf16>
    tpu.vector_store %arg14[%c0_195, %c352], %116 {strides = array<i32>} : memref<2x2048xbf16, #tpu.memory_space<vmem>>, vector<2x32xbf16>,
    %c0_196 = arith.constant 0 : index
    %c1_197 = arith.constant 1 : index
    %c4_198 = arith.constant 4 : index
    %c0_199 = arith.constant 0 : index
    %118 = vector.load %arg13[%c0_196, %c1_197, %c4_198, %c0_199] : memref<2x8x8x32xbf16, #tpu.memory_space<vmem>>, vector<2x1x1x32xbf16>
    %119 = vector.shape_cast %118 : vector<2x1x1x32xbf16> to vector<2x32xbf16>
    %c0_200 = arith.constant 0 : index
    %c384 = arith.constant 384 : index
    %120 = vector.load %arg14[%c0_200, %c384] : memref<2x2048xbf16, #tpu.memory_space<vmem>>, vector<2x32xbf16>
    tpu.vector_store %arg14[%c0_200, %c384], %119 {strides = array<i32>} : memref<2x2048xbf16, #tpu.memory_space<vmem>>, vector<2x32xbf16>,
    %c0_201 = arith.constant 0 : index
    %c1_202 = arith.constant 1 : index
    %c5_203 = arith.constant 5 : index
    %c0_204 = arith.constant 0 : index
    %121 = vector.load %arg13[%c0_201, %c1_202, %c5_203, %c0_204] : memref<2x8x8x32xbf16, #tpu.memory_space<vmem>>, vector<2x1x1x32xbf16>
    %122 = vector.shape_cast %121 : vector<2x1x1x32xbf16> to vector<2x32xbf16>
    %c0_205 = arith.constant 0 : index
    %c416 = arith.constant 416 : index
    %123 = vector.load %arg14[%c0_205, %c416] : memref<2x2048xbf16, #tpu.memory_space<vmem>>, vector<2x32xbf16>
    tpu.vector_store %arg14[%c0_205, %c416], %122 {strides = array<i32>} : memref<2x2048xbf16, #tpu.memory_space<vmem>>, vector<2x32xbf16>,
    %c0_206 = arith.constant 0 : index
    %c1_207 = arith.constant 1 : index
    %c6_208 = arith.constant 6 : index
    %c0_209 = arith.constant 0 : index
    %124 = vector.load %arg13[%c0_206, %c1_207, %c6_208, %c0_209] : memref<2x8x8x32xbf16, #tpu.memory_space<vmem>>, vector<2x1x1x32xbf16>
    %125 = vector.shape_cast %124 : vector<2x1x1x32xbf16> to vector<2x32xbf16>
    %c0_210 = arith.constant 0 : index
    %c448 = arith.constant 448 : index
    %126 = vector.load %arg14[%c0_210, %c448] : memref<2x2048xbf16, #tpu.memory_space<vmem>>, vector<2x32xbf16>
    tpu.vector_store %arg14[%c0_210, %c448], %125 {strides = array<i32>} : memref<2x2048xbf16, #tpu.memory_space<vmem>>, vector<2x32xbf16>,
    %c0_211 = arith.constant 0 : index
    %c1_212 = arith.constant 1 : index
    %c7_213 = arith.constant 7 : index
    %c0_214 = arith.constant 0 : index
    %127 = vector.load %arg13[%c0_211, %c1_212, %c7_213, %c0_214] : memref<2x8x8x32xbf16, #tpu.memory_space<vmem>>, vector<2x1x1x32xbf16>
    %128 = vector.shape_cast %127 : vector<2x1x1x32xbf16> to vector<2x32xbf16>
    %c0_215 = arith.constant 0 : index
    %c480 = arith.constant 480 : index
    %129 = vector.load %arg14[%c0_215, %c480] : memref<2x2048xbf16, #tpu.memory_space<vmem>>, vector<2x32xbf16>
    tpu.vector_store %arg14[%c0_215, %c480], %128 {strides = array<i32>} : memref<2x2048xbf16, #tpu.memory_space<vmem>>, vector<2x32xbf16>,
    %c0_216 = arith.constant 0 : index
    %c2_217 = arith.constant 2 : index
    %c0_218 = arith.constant 0 : index
    %c0_219 = arith.constant 0 : index
    %130 = vector.load %arg13[%c0_216, %c2_217, %c0_218, %c0_219] : memref<2x8x8x32xbf16, #tpu.memory_space<vmem>>, vector<2x1x1x32xbf16>
    %131 = vector.shape_cast %130 : vector<2x1x1x32xbf16> to vector<2x32xbf16>
    %c0_220 = arith.constant 0 : index
    %c512 = arith.constant 512 : index
    %132 = vector.load %arg14[%c0_220, %c512] : memref<2x2048xbf16, #tpu.memory_space<vmem>>, vector<2x32xbf16>
    tpu.vector_store %arg14[%c0_220, %c512], %131 {strides = array<i32>} : memref<2x2048xbf16, #tpu.memory_space<vmem>>, vector<2x32xbf16>,
    %c0_221 = arith.constant 0 : index
    %c2_222 = arith.constant 2 : index
    %c1_223 = arith.constant 1 : index
    %c0_224 = arith.constant 0 : index
    %133 = vector.load %arg13[%c0_221, %c2_222, %c1_223, %c0_224] : memref<2x8x8x32xbf16, #tpu.memory_space<vmem>>, vector<2x1x1x32xbf16>
    %134 = vector.shape_cast %133 : vector<2x1x1x32xbf16> to vector<2x32xbf16>
    %c0_225 = arith.constant 0 : index
    %c544 = arith.constant 544 : index
    %135 = vector.load %arg14[%c0_225, %c544] : memref<2x2048xbf16, #tpu.memory_space<vmem>>, vector<2x32xbf16>
    tpu.vector_store %arg14[%c0_225, %c544], %134 {strides = array<i32>} : memref<2x2048xbf16, #tpu.memory_space<vmem>>, vector<2x32xbf16>,
    %c0_226 = arith.constant 0 : index
    %c2_227 = arith.constant 2 : index
    %c2_228 = arith.constant 2 : index
    %c0_229 = arith.constant 0 : index
    %136 = vector.load %arg13[%c0_226, %c2_227, %c2_228, %c0_229] : memref<2x8x8x32xbf16, #tpu.memory_space<vmem>>, vector<2x1x1x32xbf16>
    %137 = vector.shape_cast %136 : vector<2x1x1x32xbf16> to vector<2x32xbf16>
    %c0_230 = arith.constant 0 : index
    %c576 = arith.constant 576 : index
    %138 = vector.load %arg14[%c0_230, %c576] : memref<2x2048xbf16, #tpu.memory_space<vmem>>, vector<2x32xbf16>
    tpu.vector_store %arg14[%c0_230, %c576], %137 {strides = array<i32>} : memref<2x2048xbf16, #tpu.memory_space<vmem>>, vector<2x32xbf16>,
    %c0_231 = arith.constant 0 : index
    %c2_232 = arith.constant 2 : index
    %c3_233 = arith.constant 3 : index
    %c0_234 = arith.constant 0 : index
    %139 = vector.load %arg13[%c0_231, %c2_232, %c3_233, %c0_234] : memref<2x8x8x32xbf16, #tpu.memory_space<vmem>>, vector<2x1x1x32xbf16>
    %140 = vector.shape_cast %139 : vector<2x1x1x32xbf16> to vector<2x32xbf16>
    %c0_235 = arith.constant 0 : index
    %c608 = arith.constant 608 : index
    %141 = vector.load %arg14[%c0_235, %c608] : memref<2x2048xbf16, #tpu.memory_space<vmem>>, vector<2x32xbf16>
    tpu.vector_store %arg14[%c0_235, %c608], %140 {strides = array<i32>} : memref<2x2048xbf16, #tpu.memory_space<vmem>>, vector<2x32xbf16>,
    %c0_236 = arith.constant 0 : index
    %c2_237 = arith.constant 2 : index
    %c4_238 = arith.constant 4 : index
    %c0_239 = arith.constant 0 : index
    %142 = vector.load %arg13[%c0_236, %c2_237, %c4_238, %c0_239] : memref<2x8x8x32xbf16, #tpu.memory_space<vmem>>, vector<2x1x1x32xbf16>
    %143 = vector.shape_cast %142 : vector<2x1x1x32xbf16> to vector<2x32xbf16>
    %c0_240 = arith.constant 0 : index
    %c640 = arith.constant 640 : index
    %144 = vector.load %arg14[%c0_240, %c640] : memref<2x2048xbf16, #tpu.memory_space<vmem>>, vector<2x32xbf16>
    tpu.vector_store %arg14[%c0_240, %c640], %143 {strides = array<i32>} : memref<2x2048xbf16, #tpu.memory_space<vmem>>, vector<2x32xbf16>,
    %c0_241 = arith.constant 0 : index
    %c2_242 = arith.constant 2 : index
    %c5_243 = arith.constant 5 : index
    %c0_244 = arith.constant 0 : index
    %145 = vector.load %arg13[%c0_241, %c2_242, %c5_243, %c0_244] : memref<2x8x8x32xbf16, #tpu.memory_space<vmem>>, vector<2x1x1x32xbf16>
    %146 = vector.shape_cast %145 : vector<2x1x1x32xbf16> to vector<2x32xbf16>
    %c0_245 = arith.constant 0 : index
    %c672 = arith.constant 672 : index
    %147 = vector.load %arg14[%c0_245, %c672] : memref<2x2048xbf16, #tpu.memory_space<vmem>>, vector<2x32xbf16>
    tpu.vector_store %arg14[%c0_245, %c672], %146 {strides = array<i32>} : memref<2x2048xbf16, #tpu.memory_space<vmem>>, vector<2x32xbf16>,
    %c0_246 = arith.constant 0 : index
    %c2_247 = arith.constant 2 : index
    %c6_248 = arith.constant 6 : index
    %c0_249 = arith.constant 0 : index
    %148 = vector.load %arg13[%c0_246, %c2_247, %c6_248, %c0_249] : memref<2x8x8x32xbf16, #tpu.memory_space<vmem>>, vector<2x1x1x32xbf16>
    %149 = vector.shape_cast %148 : vector<2x1x1x32xbf16> to vector<2x32xbf16>
    %c0_250 = arith.constant 0 : index
    %c704 = arith.constant 704 : index
    %150 = vector.load %arg14[%c0_250, %c704] : memref<2x2048xbf16, #tpu.memory_space<vmem>>, vector<2x32xbf16>
    tpu.vector_store %arg14[%c0_250, %c704], %149 {strides = array<i32>} : memref<2x2048xbf16, #tpu.memory_space<vmem>>, vector<2x32xbf16>,
    %c0_251 = arith.constant 0 : index
    %c2_252 = arith.constant 2 : index
    %c7_253 = arith.constant 7 : index
    %c0_254 = arith.constant 0 : index
    %151 = vector.load %arg13[%c0_251, %c2_252, %c7_253, %c0_254] : memref<2x8x8x32xbf16, #tpu.memory_space<vmem>>, vector<2x1x1x32xbf16>
    %152 = vector.shape_cast %151 : vector<2x1x1x32xbf16> to vector<2x32xbf16>
    %c0_255 = arith.constant 0 : index
    %c736 = arith.constant 736 : index
    %153 = vector.load %arg14[%c0_255, %c736] : memref<2x2048xbf16, #tpu.memory_space<vmem>>, vector<2x32xbf16>
    tpu.vector_store %arg14[%c0_255, %c736], %152 {strides = array<i32>} : memref<2x2048xbf16, #tpu.memory_space<vmem>>, vector<2x32xbf16>,
    %c0_256 = arith.constant 0 : index
    %c3_257 = arith.constant 3 : index
    %c0_258 = arith.constant 0 : index
    %c0_259 = arith.constant 0 : index
    %154 = vector.load %arg13[%c0_256, %c3_257, %c0_258, %c0_259] : memref<2x8x8x32xbf16, #tpu.memory_space<vmem>>, vector<2x1x1x32xbf16>
    %155 = vector.shape_cast %154 : vector<2x1x1x32xbf16> to vector<2x32xbf16>
    %c0_260 = arith.constant 0 : index
    %c768 = arith.constant 768 : index
    %156 = vector.load %arg14[%c0_260, %c768] : memref<2x2048xbf16, #tpu.memory_space<vmem>>, vector<2x32xbf16>
    tpu.vector_store %arg14[%c0_260, %c768], %155 {strides = array<i32>} : memref<2x2048xbf16, #tpu.memory_space<vmem>>, vector<2x32xbf16>,
    %c0_261 = arith.constant 0 : index
    %c3_262 = arith.constant 3 : index
    %c1_263 = arith.constant 1 : index
    %c0_264 = arith.constant 0 : index
    %157 = vector.load %arg13[%c0_261, %c3_262, %c1_263, %c0_264] : memref<2x8x8x32xbf16, #tpu.memory_space<vmem>>, vector<2x1x1x32xbf16>
    %158 = vector.shape_cast %157 : vector<2x1x1x32xbf16> to vector<2x32xbf16>
    %c0_265 = arith.constant 0 : index
    %c800 = arith.constant 800 : index
    %159 = vector.load %arg14[%c0_265, %c800] : memref<2x2048xbf16, #tpu.memory_space<vmem>>, vector<2x32xbf16>
    tpu.vector_store %arg14[%c0_265, %c800], %158 {strides = array<i32>} : memref<2x2048xbf16, #tpu.memory_space<vmem>>, vector<2x32xbf16>,
    %c0_266 = arith.constant 0 : index
    %c3_267 = arith.constant 3 : index
    %c2_268 = arith.constant 2 : index
    %c0_269 = arith.constant 0 : index
    %160 = vector.load %arg13[%c0_266, %c3_267, %c2_268, %c0_269] : memref<2x8x8x32xbf16, #tpu.memory_space<vmem>>, vector<2x1x1x32xbf16>
    %161 = vector.shape_cast %160 : vector<2x1x1x32xbf16> to vector<2x32xbf16>
    %c0_270 = arith.constant 0 : index
    %c832 = arith.constant 832 : index
    %162 = vector.load %arg14[%c0_270, %c832] : memref<2x2048xbf16, #tpu.memory_space<vmem>>, vector<2x32xbf16>
    tpu.vector_store %arg14[%c0_270, %c832], %161 {strides = array<i32>} : memref<2x2048xbf16, #tpu.memory_space<vmem>>, vector<2x32xbf16>,
    %c0_271 = arith.constant 0 : index
    %c3_272 = arith.constant 3 : index
    %c3_273 = arith.constant 3 : index
    %c0_274 = arith.constant 0 : index
    %163 = vector.load %arg13[%c0_271, %c3_272, %c3_273, %c0_274] : memref<2x8x8x32xbf16, #tpu.memory_space<vmem>>, vector<2x1x1x32xbf16>
    %164 = vector.shape_cast %163 : vector<2x1x1x32xbf16> to vector<2x32xbf16>
    %c0_275 = arith.constant 0 : index
    %c864 = arith.constant 864 : index
    %165 = vector.load %arg14[%c0_275, %c864] : memref<2x2048xbf16, #tpu.memory_space<vmem>>, vector<2x32xbf16>
    tpu.vector_store %arg14[%c0_275, %c864], %164 {strides = array<i32>} : memref<2x2048xbf16, #tpu.memory_space<vmem>>, vector<2x32xbf16>,
    %c0_276 = arith.constant 0 : index
    %c3_277 = arith.constant 3 : index
    %c4_278 = arith.constant 4 : index
    %c0_279 = arith.constant 0 : index
    %166 = vector.load %arg13[%c0_276, %c3_277, %c4_278, %c0_279] : memref<2x8x8x32xbf16, #tpu.memory_space<vmem>>, vector<2x1x1x32xbf16>
    %167 = vector.shape_cast %166 : vector<2x1x1x32xbf16> to vector<2x32xbf16>
    %c0_280 = arith.constant 0 : index
    %c896 = arith.constant 896 : index
    %168 = vector.load %arg14[%c0_280, %c896] : memref<2x2048xbf16, #tpu.memory_space<vmem>>, vector<2x32xbf16>
    tpu.vector_store %arg14[%c0_280, %c896], %167 {strides = array<i32>} : memref<2x2048xbf16, #tpu.memory_space<vmem>>, vector<2x32xbf16>,
    %c0_281 = arith.constant 0 : index
    %c3_282 = arith.constant 3 : index
    %c5_283 = arith.constant 5 : index
    %c0_284 = arith.constant 0 : index
    %169 = vector.load %arg13[%c0_281, %c3_282, %c5_283, %c0_284] : memref<2x8x8x32xbf16, #tpu.memory_space<vmem>>, vector<2x1x1x32xbf16>
    %170 = vector.shape_cast %169 : vector<2x1x1x32xbf16> to vector<2x32xbf16>
    %c0_285 = arith.constant 0 : index
    %c928 = arith.constant 928 : index
    %171 = vector.load %arg14[%c0_285, %c928] : memref<2x2048xbf16, #tpu.memory_space<vmem>>, vector<2x32xbf16>
    tpu.vector_store %arg14[%c0_285, %c928], %170 {strides = array<i32>} : memref<2x2048xbf16, #tpu.memory_space<vmem>>, vector<2x32xbf16>,
    %c0_286 = arith.constant 0 : index
    %c3_287 = arith.constant 3 : index
    %c6_288 = arith.constant 6 : index
    %c0_289 = arith.constant 0 : index
    %172 = vector.load %arg13[%c0_286, %c3_287, %c6_288, %c0_289] : memref<2x8x8x32xbf16, #tpu.memory_space<vmem>>, vector<2x1x1x32xbf16>
    %173 = vector.shape_cast %172 : vector<2x1x1x32xbf16> to vector<2x32xbf16>
    %c0_290 = arith.constant 0 : index
    %c960 = arith.constant 960 : index
    %174 = vector.load %arg14[%c0_290, %c960] : memref<2x2048xbf16, #tpu.memory_space<vmem>>, vector<2x32xbf16>
    tpu.vector_store %arg14[%c0_290, %c960], %173 {strides = array<i32>} : memref<2x2048xbf16, #tpu.memory_space<vmem>>, vector<2x32xbf16>,
    %c0_291 = arith.constant 0 : index
    %c3_292 = arith.constant 3 : index
    %c7_293 = arith.constant 7 : index
    %c0_294 = arith.constant 0 : index
    %175 = vector.load %arg13[%c0_291, %c3_292, %c7_293, %c0_294] : memref<2x8x8x32xbf16, #tpu.memory_space<vmem>>, vector<2x1x1x32xbf16>
    %176 = vector.shape_cast %175 : vector<2x1x1x32xbf16> to vector<2x32xbf16>
    %c0_295 = arith.constant 0 : index
    %c992 = arith.constant 992 : index
    %177 = vector.load %arg14[%c0_295, %c992] : memref<2x2048xbf16, #tpu.memory_space<vmem>>, vector<2x32xbf16>
    tpu.vector_store %arg14[%c0_295, %c992], %176 {strides = array<i32>} : memref<2x2048xbf16, #tpu.memory_space<vmem>>, vector<2x32xbf16>,
    %c0_296 = arith.constant 0 : index
    %c4_297 = arith.constant 4 : index
    %c0_298 = arith.constant 0 : index
    %c0_299 = arith.constant 0 : index
    %178 = vector.load %arg13[%c0_296, %c4_297, %c0_298, %c0_299] : memref<2x8x8x32xbf16, #tpu.memory_space<vmem>>, vector<2x1x1x32xbf16>
    %179 = vector.shape_cast %178 : vector<2x1x1x32xbf16> to vector<2x32xbf16>
    %c0_300 = arith.constant 0 : index
    %c1024 = arith.constant 1024 : index
    %180 = vector.load %arg14[%c0_300, %c1024] : memref<2x2048xbf16, #tpu.memory_space<vmem>>, vector<2x32xbf16>
    tpu.vector_store %arg14[%c0_300, %c1024], %179 {strides = array<i32>} : memref<2x2048xbf16, #tpu.memory_space<vmem>>, vector<2x32xbf16>,
    %c0_301 = arith.constant 0 : index
    %c4_302 = arith.constant 4 : index
    %c1_303 = arith.constant 1 : index
    %c0_304 = arith.constant 0 : index
    %181 = vector.load %arg13[%c0_301, %c4_302, %c1_303, %c0_304] : memref<2x8x8x32xbf16, #tpu.memory_space<vmem>>, vector<2x1x1x32xbf16>
    %182 = vector.shape_cast %181 : vector<2x1x1x32xbf16> to vector<2x32xbf16>
    %c0_305 = arith.constant 0 : index
    %c1056 = arith.constant 1056 : index
    %183 = vector.load %arg14[%c0_305, %c1056] : memref<2x2048xbf16, #tpu.memory_space<vmem>>, vector<2x32xbf16>
    tpu.vector_store %arg14[%c0_305, %c1056], %182 {strides = array<i32>} : memref<2x2048xbf16, #tpu.memory_space<vmem>>, vector<2x32xbf16>,
    %c0_306 = arith.constant 0 : index
    %c4_307 = arith.constant 4 : index
    %c2_308 = arith.constant 2 : index
    %c0_309 = arith.constant 0 : index
    %184 = vector.load %arg13[%c0_306, %c4_307, %c2_308, %c0_309] : memref<2x8x8x32xbf16, #tpu.memory_space<vmem>>, vector<2x1x1x32xbf16>
    %185 = vector.shape_cast %184 : vector<2x1x1x32xbf16> to vector<2x32xbf16>
    %c0_310 = arith.constant 0 : index
    %c1088 = arith.constant 1088 : index
    %186 = vector.load %arg14[%c0_310, %c1088] : memref<2x2048xbf16, #tpu.memory_space<vmem>>, vector<2x32xbf16>
    tpu.vector_store %arg14[%c0_310, %c1088], %185 {strides = array<i32>} : memref<2x2048xbf16, #tpu.memory_space<vmem>>, vector<2x32xbf16>,
    %c0_311 = arith.constant 0 : index
    %c4_312 = arith.constant 4 : index
    %c3_313 = arith.constant 3 : index
    %c0_314 = arith.constant 0 : index
    %187 = vector.load %arg13[%c0_311, %c4_312, %c3_313, %c0_314] : memref<2x8x8x32xbf16, #tpu.memory_space<vmem>>, vector<2x1x1x32xbf16>
    %188 = vector.shape_cast %187 : vector<2x1x1x32xbf16> to vector<2x32xbf16>
    %c0_315 = arith.constant 0 : index
    %c1120 = arith.constant 1120 : index
    %189 = vector.load %arg14[%c0_315, %c1120] : memref<2x2048xbf16, #tpu.memory_space<vmem>>, vector<2x32xbf16>
    tpu.vector_store %arg14[%c0_315, %c1120], %188 {strides = array<i32>} : memref<2x2048xbf16, #tpu.memory_space<vmem>>, vector<2x32xbf16>,
    %c0_316 = arith.constant 0 : index
    %c4_317 = arith.constant 4 : index
    %c4_318 = arith.constant 4 : index
    %c0_319 = arith.constant 0 : index
    %190 = vector.load %arg13[%c0_316, %c4_317, %c4_318, %c0_319] : memref<2x8x8x32xbf16, #tpu.memory_space<vmem>>, vector<2x1x1x32xbf16>
    %191 = vector.shape_cast %190 : vector<2x1x1x32xbf16> to vector<2x32xbf16>
    %c0_320 = arith.constant 0 : index
    %c1152 = arith.constant 1152 : index
    %192 = vector.load %arg14[%c0_320, %c1152] : memref<2x2048xbf16, #tpu.memory_space<vmem>>, vector<2x32xbf16>
    tpu.vector_store %arg14[%c0_320, %c1152], %191 {strides = array<i32>} : memref<2x2048xbf16, #tpu.memory_space<vmem>>, vector<2x32xbf16>,
    %c0_321 = arith.constant 0 : index
    %c4_322 = arith.constant 4 : index
    %c5_323 = arith.constant 5 : index
    %c0_324 = arith.constant 0 : index
    %193 = vector.load %arg13[%c0_321, %c4_322, %c5_323, %c0_324] : memref<2x8x8x32xbf16, #tpu.memory_space<vmem>>, vector<2x1x1x32xbf16>
    %194 = vector.shape_cast %193 : vector<2x1x1x32xbf16> to vector<2x32xbf16>
    %c0_325 = arith.constant 0 : index
    %c1184 = arith.constant 1184 : index
    %195 = vector.load %arg14[%c0_325, %c1184] : memref<2x2048xbf16, #tpu.memory_space<vmem>>, vector<2x32xbf16>
    tpu.vector_store %arg14[%c0_325, %c1184], %194 {strides = array<i32>} : memref<2x2048xbf16, #tpu.memory_space<vmem>>, vector<2x32xbf16>,
    %c0_326 = arith.constant 0 : index
    %c4_327 = arith.constant 4 : index
    %c6_328 = arith.constant 6 : index
    %c0_329 = arith.constant 0 : index
    %196 = vector.load %arg13[%c0_326, %c4_327, %c6_328, %c0_329] : memref<2x8x8x32xbf16, #tpu.memory_space<vmem>>, vector<2x1x1x32xbf16>
    %197 = vector.shape_cast %196 : vector<2x1x1x32xbf16> to vector<2x32xbf16>
    %c0_330 = arith.constant 0 : index
    %c1216 = arith.constant 1216 : index
    %198 = vector.load %arg14[%c0_330, %c1216] : memref<2x2048xbf16, #tpu.memory_space<vmem>>, vector<2x32xbf16>
    tpu.vector_store %arg14[%c0_330, %c1216], %197 {strides = array<i32>} : memref<2x2048xbf16, #tpu.memory_space<vmem>>, vector<2x32xbf16>,
    %c0_331 = arith.constant 0 : index
    %c4_332 = arith.constant 4 : index
    %c7_333 = arith.constant 7 : index
    %c0_334 = arith.constant 0 : index
    %199 = vector.load %arg13[%c0_331, %c4_332, %c7_333, %c0_334] : memref<2x8x8x32xbf16, #tpu.memory_space<vmem>>, vector<2x1x1x32xbf16>
    %200 = vector.shape_cast %199 : vector<2x1x1x32xbf16> to vector<2x32xbf16>
    %c0_335 = arith.constant 0 : index
    %c1248 = arith.constant 1248 : index
    %201 = vector.load %arg14[%c0_335, %c1248] : memref<2x2048xbf16, #tpu.memory_space<vmem>>, vector<2x32xbf16>
    tpu.vector_store %arg14[%c0_335, %c1248], %200 {strides = array<i32>} : memref<2x2048xbf16, #tpu.memory_space<vmem>>, vector<2x32xbf16>,
    %c0_336 = arith.constant 0 : index
    %c5_337 = arith.constant 5 : index
    %c0_338 = arith.constant 0 : index
    %c0_339 = arith.constant 0 : index
    %202 = vector.load %arg13[%c0_336, %c5_337, %c0_338, %c0_339] : memref<2x8x8x32xbf16, #tpu.memory_space<vmem>>, vector<2x1x1x32xbf16>
    %203 = vector.shape_cast %202 : vector<2x1x1x32xbf16> to vector<2x32xbf16>
    %c0_340 = arith.constant 0 : index
    %c1280 = arith.constant 1280 : index
    %204 = vector.load %arg14[%c0_340, %c1280] : memref<2x2048xbf16, #tpu.memory_space<vmem>>, vector<2x32xbf16>
    tpu.vector_store %arg14[%c0_340, %c1280], %203 {strides = array<i32>} : memref<2x2048xbf16, #tpu.memory_space<vmem>>, vector<2x32xbf16>,
    %c0_341 = arith.constant 0 : index
    %c5_342 = arith.constant 5 : index
    %c1_343 = arith.constant 1 : index
    %c0_344 = arith.constant 0 : index
    %205 = vector.load %arg13[%c0_341, %c5_342, %c1_343, %c0_344] : memref<2x8x8x32xbf16, #tpu.memory_space<vmem>>, vector<2x1x1x32xbf16>
    %206 = vector.shape_cast %205 : vector<2x1x1x32xbf16> to vector<2x32xbf16>
    %c0_345 = arith.constant 0 : index
    %c1312 = arith.constant 1312 : index
    %207 = vector.load %arg14[%c0_345, %c1312] : memref<2x2048xbf16, #tpu.memory_space<vmem>>, vector<2x32xbf16>
    tpu.vector_store %arg14[%c0_345, %c1312], %206 {strides = array<i32>} : memref<2x2048xbf16, #tpu.memory_space<vmem>>, vector<2x32xbf16>,
    %c0_346 = arith.constant 0 : index
    %c5_347 = arith.constant 5 : index
    %c2_348 = arith.constant 2 : index
    %c0_349 = arith.constant 0 : index
    %208 = vector.load %arg13[%c0_346, %c5_347, %c2_348, %c0_349] : memref<2x8x8x32xbf16, #tpu.memory_space<vmem>>, vector<2x1x1x32xbf16>
    %209 = vector.shape_cast %208 : vector<2x1x1x32xbf16> to vector<2x32xbf16>
    %c0_350 = arith.constant 0 : index
    %c1344 = arith.constant 1344 : index
    %210 = vector.load %arg14[%c0_350, %c1344] : memref<2x2048xbf16, #tpu.memory_space<vmem>>, vector<2x32xbf16>
    tpu.vector_store %arg14[%c0_350, %c1344], %209 {strides = array<i32>} : memref<2x2048xbf16, #tpu.memory_space<vmem>>, vector<2x32xbf16>,
    %c0_351 = arith.constant 0 : index
    %c5_352 = arith.constant 5 : index
    %c3_353 = arith.constant 3 : index
    %c0_354 = arith.constant 0 : index
    %211 = vector.load %arg13[%c0_351, %c5_352, %c3_353, %c0_354] : memref<2x8x8x32xbf16, #tpu.memory_space<vmem>>, vector<2x1x1x32xbf16>
    %212 = vector.shape_cast %211 : vector<2x1x1x32xbf16> to vector<2x32xbf16>
    %c0_355 = arith.constant 0 : index
    %c1376 = arith.constant 1376 : index
    %213 = vector.load %arg14[%c0_355, %c1376] : memref<2x2048xbf16, #tpu.memory_space<vmem>>, vector<2x32xbf16>
    tpu.vector_store %arg14[%c0_355, %c1376], %212 {strides = array<i32>} : memref<2x2048xbf16, #tpu.memory_space<vmem>>, vector<2x32xbf16>,
    %c0_356 = arith.constant 0 : index
    %c5_357 = arith.constant 5 : index
    %c4_358 = arith.constant 4 : index
    %c0_359 = arith.constant 0 : index
    %214 = vector.load %arg13[%c0_356, %c5_357, %c4_358, %c0_359] : memref<2x8x8x32xbf16, #tpu.memory_space<vmem>>, vector<2x1x1x32xbf16>
    %215 = vector.shape_cast %214 : vector<2x1x1x32xbf16> to vector<2x32xbf16>
    %c0_360 = arith.constant 0 : index
    %c1408 = arith.constant 1408 : index
    %216 = vector.load %arg14[%c0_360, %c1408] : memref<2x2048xbf16, #tpu.memory_space<vmem>>, vector<2x32xbf16>
    tpu.vector_store %arg14[%c0_360, %c1408], %215 {strides = array<i32>} : memref<2x2048xbf16, #tpu.memory_space<vmem>>, vector<2x32xbf16>,
    %c0_361 = arith.constant 0 : index
    %c5_362 = arith.constant 5 : index
    %c5_363 = arith.constant 5 : index
    %c0_364 = arith.constant 0 : index
    %217 = vector.load %arg13[%c0_361, %c5_362, %c5_363, %c0_364] : memref<2x8x8x32xbf16, #tpu.memory_space<vmem>>, vector<2x1x1x32xbf16>
    %218 = vector.shape_cast %217 : vector<2x1x1x32xbf16> to vector<2x32xbf16>
    %c0_365 = arith.constant 0 : index
    %c1440 = arith.constant 1440 : index
    %219 = vector.load %arg14[%c0_365, %c1440] : memref<2x2048xbf16, #tpu.memory_space<vmem>>, vector<2x32xbf16>
    tpu.vector_store %arg14[%c0_365, %c1440], %218 {strides = array<i32>} : memref<2x2048xbf16, #tpu.memory_space<vmem>>, vector<2x32xbf16>,
    %c0_366 = arith.constant 0 : index
    %c5_367 = arith.constant 5 : index
    %c6_368 = arith.constant 6 : index
    %c0_369 = arith.constant 0 : index
    %220 = vector.load %arg13[%c0_366, %c5_367, %c6_368, %c0_369] : memref<2x8x8x32xbf16, #tpu.memory_space<vmem>>, vector<2x1x1x32xbf16>
    %221 = vector.shape_cast %220 : vector<2x1x1x32xbf16> to vector<2x32xbf16>
    %c0_370 = arith.constant 0 : index
    %c1472 = arith.constant 1472 : index
    %222 = vector.load %arg14[%c0_370, %c1472] : memref<2x2048xbf16, #tpu.memory_space<vmem>>, vector<2x32xbf16>
    tpu.vector_store %arg14[%c0_370, %c1472], %221 {strides = array<i32>} : memref<2x2048xbf16, #tpu.memory_space<vmem>>, vector<2x32xbf16>,
    %c0_371 = arith.constant 0 : index
    %c5_372 = arith.constant 5 : index
    %c7_373 = arith.constant 7 : index
    %c0_374 = arith.constant 0 : index
    %223 = vector.load %arg13[%c0_371, %c5_372, %c7_373, %c0_374] : memref<2x8x8x32xbf16, #tpu.memory_space<vmem>>, vector<2x1x1x32xbf16>
    %224 = vector.shape_cast %223 : vector<2x1x1x32xbf16> to vector<2x32xbf16>
    %c0_375 = arith.constant 0 : index
    %c1504 = arith.constant 1504 : index
    %225 = vector.load %arg14[%c0_375, %c1504] : memref<2x2048xbf16, #tpu.memory_space<vmem>>, vector<2x32xbf16>
    tpu.vector_store %arg14[%c0_375, %c1504], %224 {strides = array<i32>} : memref<2x2048xbf16, #tpu.memory_space<vmem>>, vector<2x32xbf16>,
    %c0_376 = arith.constant 0 : index
    %c6_377 = arith.constant 6 : index
    %c0_378 = arith.constant 0 : index
    %c0_379 = arith.constant 0 : index
    %226 = vector.load %arg13[%c0_376, %c6_377, %c0_378, %c0_379] : memref<2x8x8x32xbf16, #tpu.memory_space<vmem>>, vector<2x1x1x32xbf16>
    %227 = vector.shape_cast %226 : vector<2x1x1x32xbf16> to vector<2x32xbf16>
    %c0_380 = arith.constant 0 : index
    %c1536 = arith.constant 1536 : index
    %228 = vector.load %arg14[%c0_380, %c1536] : memref<2x2048xbf16, #tpu.memory_space<vmem>>, vector<2x32xbf16>
    tpu.vector_store %arg14[%c0_380, %c1536], %227 {strides = array<i32>} : memref<2x2048xbf16, #tpu.memory_space<vmem>>, vector<2x32xbf16>,
    %c0_381 = arith.constant 0 : index
    %c6_382 = arith.constant 6 : index
    %c1_383 = arith.constant 1 : index
    %c0_384 = arith.constant 0 : index
    %229 = vector.load %arg13[%c0_381, %c6_382, %c1_383, %c0_384] : memref<2x8x8x32xbf16, #tpu.memory_space<vmem>>, vector<2x1x1x32xbf16>
    %230 = vector.shape_cast %229 : vector<2x1x1x32xbf16> to vector<2x32xbf16>
    %c0_385 = arith.constant 0 : index
    %c1568 = arith.constant 1568 : index
    %231 = vector.load %arg14[%c0_385, %c1568] : memref<2x2048xbf16, #tpu.memory_space<vmem>>, vector<2x32xbf16>
    tpu.vector_store %arg14[%c0_385, %c1568], %230 {strides = array<i32>} : memref<2x2048xbf16, #tpu.memory_space<vmem>>, vector<2x32xbf16>,
    %c0_386 = arith.constant 0 : index
    %c6_387 = arith.constant 6 : index
    %c2_388 = arith.constant 2 : index
    %c0_389 = arith.constant 0 : index
    %232 = vector.load %arg13[%c0_386, %c6_387, %c2_388, %c0_389] : memref<2x8x8x32xbf16, #tpu.memory_space<vmem>>, vector<2x1x1x32xbf16>
    %233 = vector.shape_cast %232 : vector<2x1x1x32xbf16> to vector<2x32xbf16>
    %c0_390 = arith.constant 0 : index
    %c1600 = arith.constant 1600 : index
    %234 = vector.load %arg14[%c0_390, %c1600] : memref<2x2048xbf16, #tpu.memory_space<vmem>>, vector<2x32xbf16>
    tpu.vector_store %arg14[%c0_390, %c1600], %233 {strides = array<i32>} : memref<2x2048xbf16, #tpu.memory_space<vmem>>, vector<2x32xbf16>,
    %c0_391 = arith.constant 0 : index
    %c6_392 = arith.constant 6 : index
    %c3_393 = arith.constant 3 : index
    %c0_394 = arith.constant 0 : index
    %235 = vector.load %arg13[%c0_391, %c6_392, %c3_393, %c0_394] : memref<2x8x8x32xbf16, #tpu.memory_space<vmem>>, vector<2x1x1x32xbf16>
    %236 = vector.shape_cast %235 : vector<2x1x1x32xbf16> to vector<2x32xbf16>
    %c0_395 = arith.constant 0 : index
    %c1632 = arith.constant 1632 : index
    %237 = vector.load %arg14[%c0_395, %c1632] : memref<2x2048xbf16, #tpu.memory_space<vmem>>, vector<2x32xbf16>
    tpu.vector_store %arg14[%c0_395, %c1632], %236 {strides = array<i32>} : memref<2x2048xbf16, #tpu.memory_space<vmem>>, vector<2x32xbf16>,
    %c0_396 = arith.constant 0 : index
    %c6_397 = arith.constant 6 : index
    %c4_398 = arith.constant 4 : index
    %c0_399 = arith.constant 0 : index
    %238 = vector.load %arg13[%c0_396, %c6_397, %c4_398, %c0_399] : memref<2x8x8x32xbf16, #tpu.memory_space<vmem>>, vector<2x1x1x32xbf16>
    %239 = vector.shape_cast %238 : vector<2x1x1x32xbf16> to vector<2x32xbf16>
    %c0_400 = arith.constant 0 : index
    %c1664 = arith.constant 1664 : index
    %240 = vector.load %arg14[%c0_400, %c1664] : memref<2x2048xbf16, #tpu.memory_space<vmem>>, vector<2x32xbf16>
    tpu.vector_store %arg14[%c0_400, %c1664], %239 {strides = array<i32>} : memref<2x2048xbf16, #tpu.memory_space<vmem>>, vector<2x32xbf16>,
    %c0_401 = arith.constant 0 : index
    %c6_402 = arith.constant 6 : index
    %c5_403 = arith.constant 5 : index
    %c0_404 = arith.constant 0 : index
    %241 = vector.load %arg13[%c0_401, %c6_402, %c5_403, %c0_404] : memref<2x8x8x32xbf16, #tpu.memory_space<vmem>>, vector<2x1x1x32xbf16>
    %242 = vector.shape_cast %241 : vector<2x1x1x32xbf16> to vector<2x32xbf16>
    %c0_405 = arith.constant 0 : index
    %c1696 = arith.constant 1696 : index
    %243 = vector.load %arg14[%c0_405, %c1696] : memref<2x2048xbf16, #tpu.memory_space<vmem>>, vector<2x32xbf16>
    tpu.vector_store %arg14[%c0_405, %c1696], %242 {strides = array<i32>} : memref<2x2048xbf16, #tpu.memory_space<vmem>>, vector<2x32xbf16>,
    %c0_406 = arith.constant 0 : index
    %c6_407 = arith.constant 6 : index
    %c6_408 = arith.constant 6 : index
    %c0_409 = arith.constant 0 : index
    %244 = vector.load %arg13[%c0_406, %c6_407, %c6_408, %c0_409] : memref<2x8x8x32xbf16, #tpu.memory_space<vmem>>, vector<2x1x1x32xbf16>
    %245 = vector.shape_cast %244 : vector<2x1x1x32xbf16> to vector<2x32xbf16>
    %c0_410 = arith.constant 0 : index
    %c1728 = arith.constant 1728 : index
    %246 = vector.load %arg14[%c0_410, %c1728] : memref<2x2048xbf16, #tpu.memory_space<vmem>>, vector<2x32xbf16>
    tpu.vector_store %arg14[%c0_410, %c1728], %245 {strides = array<i32>} : memref<2x2048xbf16, #tpu.memory_space<vmem>>, vector<2x32xbf16>,
    %c0_411 = arith.constant 0 : index
    %c6_412 = arith.constant 6 : index
    %c7_413 = arith.constant 7 : index
    %c0_414 = arith.constant 0 : index
    %247 = vector.load %arg13[%c0_411, %c6_412, %c7_413, %c0_414] : memref<2x8x8x32xbf16, #tpu.memory_space<vmem>>, vector<2x1x1x32xbf16>
    %248 = vector.shape_cast %247 : vector<2x1x1x32xbf16> to vector<2x32xbf16>
    %c0_415 = arith.constant 0 : index
    %c1760 = arith.constant 1760 : index
    %249 = vector.load %arg14[%c0_415, %c1760] : memref<2x2048xbf16, #tpu.memory_space<vmem>>, vector<2x32xbf16>
    tpu.vector_store %arg14[%c0_415, %c1760], %248 {strides = array<i32>} : memref<2x2048xbf16, #tpu.memory_space<vmem>>, vector<2x32xbf16>,
    %c0_416 = arith.constant 0 : index
    %c7_417 = arith.constant 7 : index
    %c0_418 = arith.constant 0 : index
    %c0_419 = arith.constant 0 : index
    %250 = vector.load %arg13[%c0_416, %c7_417, %c0_418, %c0_419] : memref<2x8x8x32xbf16, #tpu.memory_space<vmem>>, vector<2x1x1x32xbf16>
    %251 = vector.shape_cast %250 : vector<2x1x1x32xbf16> to vector<2x32xbf16>
    %c0_420 = arith.constant 0 : index
    %c1792 = arith.constant 1792 : index
    %252 = vector.load %arg14[%c0_420, %c1792] : memref<2x2048xbf16, #tpu.memory_space<vmem>>, vector<2x32xbf16>
    tpu.vector_store %arg14[%c0_420, %c1792], %251 {strides = array<i32>} : memref<2x2048xbf16, #tpu.memory_space<vmem>>, vector<2x32xbf16>,
    %c0_421 = arith.constant 0 : index
    %c7_422 = arith.constant 7 : index
    %c1_423 = arith.constant 1 : index
    %c0_424 = arith.constant 0 : index
    %253 = vector.load %arg13[%c0_421, %c7_422, %c1_423, %c0_424] : memref<2x8x8x32xbf16, #tpu.memory_space<vmem>>, vector<2x1x1x32xbf16>
    %254 = vector.shape_cast %253 : vector<2x1x1x32xbf16> to vector<2x32xbf16>
    %c0_425 = arith.constant 0 : index
    %c1824 = arith.constant 1824 : index
    %255 = vector.load %arg14[%c0_425, %c1824] : memref<2x2048xbf16, #tpu.memory_space<vmem>>, vector<2x32xbf16>
    tpu.vector_store %arg14[%c0_425, %c1824], %254 {strides = array<i32>} : memref<2x2048xbf16, #tpu.memory_space<vmem>>, vector<2x32xbf16>,
    %c0_426 = arith.constant 0 : index
    %c7_427 = arith.constant 7 : index
    %c2_428 = arith.constant 2 : index
    %c0_429 = arith.constant 0 : index
    %256 = vector.load %arg13[%c0_426, %c7_427, %c2_428, %c0_429] : memref<2x8x8x32xbf16, #tpu.memory_space<vmem>>, vector<2x1x1x32xbf16>
    %257 = vector.shape_cast %256 : vector<2x1x1x32xbf16> to vector<2x32xbf16>
    %c0_430 = arith.constant 0 : index
    %c1856 = arith.constant 1856 : index
    %258 = vector.load %arg14[%c0_430, %c1856] : memref<2x2048xbf16, #tpu.memory_space<vmem>>, vector<2x32xbf16>
    tpu.vector_store %arg14[%c0_430, %c1856], %257 {strides = array<i32>} : memref<2x2048xbf16, #tpu.memory_space<vmem>>, vector<2x32xbf16>,
    %c0_431 = arith.constant 0 : index
    %c7_432 = arith.constant 7 : index
    %c3_433 = arith.constant 3 : index
    %c0_434 = arith.constant 0 : index
    %259 = vector.load %arg13[%c0_431, %c7_432, %c3_433, %c0_434] : memref<2x8x8x32xbf16, #tpu.memory_space<vmem>>, vector<2x1x1x32xbf16>
    %260 = vector.shape_cast %259 : vector<2x1x1x32xbf16> to vector<2x32xbf16>
    %c0_435 = arith.constant 0 : index
    %c1888 = arith.constant 1888 : index
    %261 = vector.load %arg14[%c0_435, %c1888] : memref<2x2048xbf16, #tpu.memory_space<vmem>>, vector<2x32xbf16>
    tpu.vector_store %arg14[%c0_435, %c1888], %260 {strides = array<i32>} : memref<2x2048xbf16, #tpu.memory_space<vmem>>, vector<2x32xbf16>,
    %c0_436 = arith.constant 0 : index
    %c7_437 = arith.constant 7 : index
    %c4_438 = arith.constant 4 : index
    %c0_439 = arith.constant 0 : index
    %262 = vector.load %arg13[%c0_436, %c7_437, %c4_438, %c0_439] : memref<2x8x8x32xbf16, #tpu.memory_space<vmem>>, vector<2x1x1x32xbf16>
    %263 = vector.shape_cast %262 : vector<2x1x1x32xbf16> to vector<2x32xbf16>
    %c0_440 = arith.constant 0 : index
    %c1920 = arith.constant 1920 : index
    %264 = vector.load %arg14[%c0_440, %c1920] : memref<2x2048xbf16, #tpu.memory_space<vmem>>, vector<2x32xbf16>
    tpu.vector_store %arg14[%c0_440, %c1920], %263 {strides = array<i32>} : memref<2x2048xbf16, #tpu.memory_space<vmem>>, vector<2x32xbf16>,
    %c0_441 = arith.constant 0 : index
    %c7_442 = arith.constant 7 : index
    %c5_443 = arith.constant 5 : index
    %c0_444 = arith.constant 0 : index
    %265 = vector.load %arg13[%c0_441, %c7_442, %c5_443, %c0_444] : memref<2x8x8x32xbf16, #tpu.memory_space<vmem>>, vector<2x1x1x32xbf16>
    %266 = vector.shape_cast %265 : vector<2x1x1x32xbf16> to vector<2x32xbf16>
    %c0_445 = arith.constant 0 : index
    %c1952 = arith.constant 1952 : index
    %267 = vector.load %arg14[%c0_445, %c1952] : memref<2x2048xbf16, #tpu.memory_space<vmem>>, vector<2x32xbf16>
    tpu.vector_store %arg14[%c0_445, %c1952], %266 {strides = array<i32>} : memref<2x2048xbf16, #tpu.memory_space<vmem>>, vector<2x32xbf16>,
    %c0_446 = arith.constant 0 : index
    %c7_447 = arith.constant 7 : index
    %c6_448 = arith.constant 6 : index
    %c0_449 = arith.constant 0 : index
    %268 = vector.load %arg13[%c0_446, %c7_447, %c6_448, %c0_449] : memref<2x8x8x32xbf16, #tpu.memory_space<vmem>>, vector<2x1x1x32xbf16>
    %269 = vector.shape_cast %268 : vector<2x1x1x32xbf16> to vector<2x32xbf16>
    %c0_450 = arith.constant 0 : index
    %c1984 = arith.constant 1984 : index
    %270 = vector.load %arg14[%c0_450, %c1984] : memref<2x2048xbf16, #tpu.memory_space<vmem>>, vector<2x32xbf16>
    tpu.vector_store %arg14[%c0_450, %c1984], %269 {strides = array<i32>} : memref<2x2048xbf16, #tpu.memory_space<vmem>>, vector<2x32xbf16>,
    %c0_451 = arith.constant 0 : index
    %c7_452 = arith.constant 7 : index
    %c7_453 = arith.constant 7 : index
    %c0_454 = arith.constant 0 : index
    %271 = vector.load %arg13[%c0_451, %c7_452, %c7_453, %c0_454] : memref<2x8x8x32xbf16, #tpu.memory_space<vmem>>, vector<2x1x1x32xbf16>
    %272 = vector.shape_cast %271 : vector<2x1x1x32xbf16> to vector<2x32xbf16>
    %c0_455 = arith.constant 0 : index
    %c2016 = arith.constant 2016 : index
    %273 = vector.load %arg14[%c0_455, %c2016] : memref<2x2048xbf16, #tpu.memory_space<vmem>>, vector<2x32xbf16>
    tpu.vector_store %arg14[%c0_455, %c2016], %272 {strides = array<i32>} : memref<2x2048xbf16, #tpu.memory_space<vmem>>, vector<2x32xbf16>,
    %c0_456 = arith.constant 0 : index
    %c0_457 = arith.constant 0 : index
    %274 = vector.load %arg14[%c0_456, %c0_457] : memref<2x2048xbf16, #tpu.memory_space<vmem>>, vector<2x2048xbf16>
    %c0_458 = arith.constant 0 : index
    %c0_459 = arith.constant 0 : index
    %275 = vector.load %arg6[%c0_458, %c0_459] : memref<2048x64xbf16, #tpu.memory_space<vmem>>, vector<2048x64xbf16>
    %cst_460 = arith.constant dense<0.000000e+00> : vector<2x64xf32>
    %276 = tpu.matmul %274, %275, %cst_460 {dimension_numbers = #tpu.dot_dimension_numbers<[1], [0], [0], [1], [0, 0, 1, 1], [], []>} : vector<2x2048xbf16>, vector<2048x64xbf16>, vector<2x64xf32> -> vector<2x64xf32>
    %c0_461 = arith.constant 0 : index
    %c0_462 = arith.constant 0 : index
    %277 = vector.load %arg7[%c0_461, %c0_462] : memref<1x64xf32, #tpu.memory_space<vmem>>, vector<1x64xf32>
    %278 = vector.broadcast %277 : vector<1x64xf32> to vector<2x64xf32>
    %279 = arith.addf %276, %278 : vector<2x64xf32>
    %cst_463 = arith.constant 0.000000e+00 : f32
    %280 = vector.broadcast %cst_463 : f32 to vector<2x64xf32>
    %281 = arith.maximumf %279, %280 : vector<2x64xf32>
    %c0_464 = arith.constant 0 : index
    %c0_465 = arith.constant 0 : index
    %282 = vector.load %arg8[%c0_464, %c0_465] : memref<2x64xf32, #tpu.memory_space<vmem>>, vector<2x64xf32>
    tpu.vector_store %arg8[%c0_464, %c0_465], %281 {strides = array<i32>} : memref<2x64xf32, #tpu.memory_space<vmem>>, vector<2x64xf32>,
    return
  }
  func.func @transform_0(%arg0: i32) -> (i32, i32, i32, i32) {
    %c0_i32 = arith.constant 0 : i32
    %c0_i32_0 = arith.constant 0 : i32
    %c0_i32_1 = arith.constant 0 : i32
    %c0_i32_2 = arith.constant 0 : i32
    return %arg0, %c0_i32, %c0_i32_0, %c0_i32_1 : i32, i32, i32, i32
  }
  func.func @transform_1(%arg0: i32) -> (i32, i32) {
    %c0_i32 = arith.constant 0 : i32
    %c0_i32_0 = arith.constant 0 : i32
    %c0_i32_1 = arith.constant 0 : i32
    return %c0_i32, %c0_i32_0 : i32, i32
  }
  func.func @transform_2(%arg0: i32) -> (i32, i32) {
    %c0_i32 = arith.constant 0 : i32
    %c0_i32_0 = arith.constant 0 : i32
    %c0_i32_1 = arith.constant 0 : i32
    return %c0_i32, %c0_i32_0 : i32, i32
  }
  func.func @transform_3(%arg0: i32) -> (i32, i32) {
    %c0_i32 = arith.constant 0 : i32
    %c0_i32_0 = arith.constant 0 : i32
    %c0_i32_1 = arith.constant 0 : i32
    return %c0_i32, %c0_i32_0 : i32, i32
  }
  func.func @transform_4(%arg0: i32) -> (i32, i32) {
    %c0_i32 = arith.constant 0 : i32
    %c0_i32_0 = arith.constant 0 : i32
    %c0_i32_1 = arith.constant 0 : i32
    return %c0_i32, %c0_i32_0 : i32, i32
  }
  func.func @transform_5(%arg0: i32) -> (i32, i32) {
    %c0_i32 = arith.constant 0 : i32
    %c0_i32_0 = arith.constant 0 : i32
    %c0_i32_1 = arith.constant 0 : i32
    return %c0_i32, %c0_i32_0 : i32, i32
  }
  func.func @transform_6(%arg0: i32) -> (i32, i32) {
    %c0_i32 = arith.constant 0 : i32
    %c0_i32_0 = arith.constant 0 : i32
    %c0_i32_1 = arith.constant 0 : i32
    return %c0_i32, %c0_i32_0 : i32, i32
  }
  func.func @transform_7(%arg0: i32) -> (i32, i32) {
    %c0_i32 = arith.constant 0 : i32
    %c0_i32_0 = arith.constant 0 : i32
    return %arg0, %c0_i32 : i32, i32
  }
}

</mosaic_0001>

<llo_original>
// kernel: roi_xconv1fc_head_forward.1
$region0: #{roi_xconv1fc_head_forward.1}
  #allocation0 [shape = 'u32[]', space=smem, size = 0x4, offset = 0x4, fixed_abs, tag = 'smem constant byte address 0x4 - core index']
  #allocation1 [shape = 'u32[144,128]{1,0:T(1,128)}', space=vmem, size = 0x12000, scoped, tag = 'internal scratch']
  #allocation2 [shape = 'bf16[2,10,10,4]{3,2,1,0:T(8,128)(2,1)}', space=vmem, size = 0x14000, scoped, tag = 'scratch operand']
  #allocation3 [shape = 'bf16[128,36]{1,0:T(16,128)(2,1)}', space=vmem, size = 0x8000, scoped, tag = 'scratch operand']
  #allocation4 [shape = 'bf16[2,10,10,32]{3,2,1,0:T(8,128)(2,1)}', space=vmem, size = 0x14000, scoped, tag = 'scratch operand']
  #allocation5 [shape = 'bf16[128,288]{1,0:T(16,128)(2,1)}', space=vmem, size = 0x18000, scoped, tag = 'scratch operand']
  #allocation6 [shape = 'bf16[2,8,8,32]{3,2,1,0:T(8,128)(2,1)}', space=vmem, size = 0x8000, scoped, tag = 'scratch operand']
  #allocation7 [shape = 'bf16[2,2048]{1,0:T(2,128)(2,1)}', space=vmem, size = 0x2000, scoped, tag = 'scratch operand']
  %s0 = inlined_call_operand.vmem [shape: bf16[2,8,8,4], index: 0, kind: input, shape index: {}]
  %s1 = inlined_call_operand.vmem [shape: bf16[36,32], index: 1, kind: input, shape index: {}]
  %s2 = inlined_call_operand.vmem [shape: f32[1,32], index: 2, kind: input, shape index: {}]
  %s3 = inlined_call_operand.vmem [shape: bf16[288,32], index: 3, kind: input, shape index: {}]
  %s4 = inlined_call_operand.vmem [shape: f32[1,32], index: 4, kind: input, shape index: {}]
  %s5 = inlined_call_operand.vmem [shape: bf16[2048,64], index: 5, kind: input, shape index: {}]
  %s6 = inlined_call_operand.vmem [shape: f32[1,64], index: 6, kind: input, shape index: {}]
  %s7 = inlined_call_operand.hbm [shape: f32[2,64], index: 7, kind: output, shape index: {}]
  %s8 = sld [smem:[#allocation0]]
  $region38: #{roi_xconv1fc_head_forward.1} parent=0
    _
  %s10 = ssub.s32 1, %s8
  %s11 = scalar_select 0, %s10, %s8
  $region1: #{roi_xconv1fc_head_forward.1} parent=0
    #allocation8 [shape = 'u8[1024]{0}', space=vmem, size = 0x400, scoped, tag = 'output window, operand 0, single buffered']
    #allocation9 [shape = 's32[1]{0}', space=sflag, size = 0x4, scoped, tag = 'scoped memory for roi_xconv1fc_head_forward.1']
    %12 = vsyncpa [#allocation9], 0
    // Predicated region
    $region2: #{roi_xconv1fc_head_forward.1} parent=1 // pred_check
      _
    $region3: #{roi_xconv1fc_head_forward.1} parent=1 // pred_check_branch
      %14 = sbr.rel (0) target = $region5
    $region4: #{roi_xconv1fc_head_forward.1} parent=1 // pred_region
      _
    $region5: #{roi_xconv1fc_head_forward.1} parent=1 // pred_fallthru
      _
    // Predicated region
    $region6: #{roi_xconv1fc_head_forward.1} parent=1 // pred_check
      _
    $region7: #{roi_xconv1fc_head_forward.1} parent=1 // pred_check_branch
      %16 = sbr.rel (0) target = $region9
    $region8: #{roi_xconv1fc_head_forward.1} parent=1 // pred_region
      _
    $region9: #{roi_xconv1fc_head_forward.1} parent=1 // pred_fallthru
      _
    // Predicated region
    $region10: #{roi_xconv1fc_head_forward.1} parent=1 // pred_check
      _
    $region11: #{roi_xconv1fc_head_forward.1} parent=1 // pred_check_branch
      %18 = sbr.rel (0) target = $region13
    $region12: #{roi_xconv1fc_head_forward.1} parent=1 // pred_region
      _
    $region13: #{roi_xconv1fc_head_forward.1} parent=1 // pred_fallthru
      _
    // Predicated region
    $region14: #{roi_xconv1fc_head_forward.1} parent=1 // pred_check
      _
    $region15: #{roi_xconv1fc_head_forward.1} parent=1 // pred_check_branch
      %20 = sbr.rel (0) target = $region17
    $region16: #{roi_xconv1fc_head_forward.1} parent=1 // pred_region
      _
    $region17: #{roi_xconv1fc_head_forward.1} parent=1 // pred_fallthru
      _
    // Predicated region
    $region18: #{roi_xconv1fc_head_forward.1} parent=1 // pred_check
      _
    $region19: #{roi_xconv1fc_head_forward.1} parent=1 // pred_check_branch
      %22 = sbr.rel (0) target = $region21
    $region20: #{roi_xconv1fc_head_forward.1} parent=1 // pred_region
      _
    $region21: #{roi_xconv1fc_head_forward.1} parent=1 // pred_fallthru
      _
    // Predicated region
    $region22: #{roi_xconv1fc_head_forward.1} parent=1 // pred_check
      _
    $region23: #{roi_xconv1fc_head_forward.1} parent=1 // pred_check_branch
      %24 = sbr.rel (0) target = $region25
    $region24: #{roi_xconv1fc_head_forward.1} parent=1 // pred_region
      _
    $region25: #{roi_xconv1fc_head_forward.1} parent=1 // pred_fallthru
      _
    // Predicated region
    $region26: #{roi_xconv1fc_head_forward.1} parent=1 // pred_check
      _
    $region27: #{roi_xconv1fc_head_forward.1} parent=1 // pred_check_branch
      %26 = sbr.rel (0) target = $region29
    $region28: #{roi_xconv1fc_head_forward.1} parent=1 // pred_region
      _
    $region29: #{roi_xconv1fc_head_forward.1} parent=1 // pred_fallthru
      _
    %v28 = vld [vmem:[%s0] sm:$0xf]
    %v29 = vld [vmem:[%s0 + $0x4] sm:$0xf]
    %v30 = vld [vmem:[%s0 + $0x8] sm:$0xf]
    %v31 = vld [vmem:[%s0 + $0xc] sm:$0xf]
    %v32 = vld [vmem:[%s0 + $0x10] sm:$0xf]
    %v33 = vld [vmem:[%s0 + $0x14] sm:$0xf]
    %v34 = vld [vmem:[%s0 + $0x18] sm:$0xf]
    %v35 = vld [vmem:[%s0 + $0x1c] sm:$0xf]
    %v36 = vld [vmem:[%s0 + $0x20] sm:$0xf]
    %v37 = vld [vmem:[%s0 + $0x24] sm:$0xf]
    %v38 = vld [vmem:[%s0 + $0x28] sm:$0xf]
    %v39 = vld [vmem:[%s0 + $0x2c] sm:$0xf]
    %v40 = vld [vmem:[%s0 + $0x30] sm:$0xf]
    %v41 = vld [vmem:[%s0 + $0x34] sm:$0xf]
    %v42 = vld [vmem:[%s0 + $0x38] sm:$0xf]
    %v43 = vld [vmem:[%s0 + $0x3c] sm:$0xf]
    %vm44 = vcmask 27648
    %45 = vst.msk [vmem:[#allocation2] sm:$0xf] %vm44, 0
    %vm46 = vcmask 24576
    %47 = vst.msk [vmem:[#allocation2 + $0x4] sm:$0x1] %vm46, 0
    %48 = vst.msk [vmem:[#allocation2 + $0x8] sm:$0xf] %vm44, 0
    %49 = vst.msk [vmem:[#allocation2 + $0xc] sm:$0x1] %vm46, 0
    %50 = vst.msk [vmem:[#allocation2 + $0x10] sm:$0xf] %vm44, 0
    %51 = vst.msk [vmem:[#allocation2 + $0x14] sm:$0x1] %vm46, 0
    %52 = vst.msk [vmem:[#allocation2 + $0x18] sm:$0xf] %vm44, 0
    %53 = vst.msk [vmem:[#allocation2 + $0x1c] sm:$0x1] %vm46, 0
    %54 = vst.msk [vmem:[#allocation2 + $0x20] sm:$0xf] %vm44, 0
    %55 = vst.msk [vmem:[#allocation2 + $0x24] sm:$0x1] %vm46, 0
    %56 = vst.msk [vmem:[#allocation2 + $0x28] sm:$0xf] %vm44, 0
    %57 = vst.msk [vmem:[#allocation2 + $0x2c] sm:$0x1] %vm46, 0
    %58 = vst.msk [vmem:[#allocation2 + $0x30] sm:$0xf] %vm44, 0
    %59 = vst.msk [vmem:[#allocation2 + $0x34] sm:$0x1] %vm46, 0
    %60 = vst.msk [vmem:[#allocation2 + $0x38] sm:$0xf] %vm44, 0
    %61 = vst.msk [vmem:[#allocation2 + $0x3c] sm:$0x1] %vm46, 0
    %62 = vst.msk [vmem:[#allocation2 + $0x40] sm:$0xf] %vm44, 0
    %63 = vst.msk [vmem:[#allocation2 + $0x44] sm:$0x1] %vm46, 0
    %64 = vst.msk [vmem:[#allocation2 + $0x48] sm:$0xf] %vm44, 0
    %65 = vst.msk [vmem:[#allocation2 + $0x4c] sm:$0x1] %vm46, 0
    %66 = vst.msk [vmem:[#allocation2 + $0x50] sm:$0xf] %vm44, 0
    %67 = vst.msk [vmem:[#allocation2 + $0x54] sm:$0x1] %vm46, 0
    %68 = vst.msk [vmem:[#allocation2 + $0x58] sm:$0xf] %vm44, 0
    %69 = vst.msk [vmem:[#allocation2 + $0x5c] sm:$0x1] %vm46, 0
    %70 = vst.msk [vmem:[#allocation2 + $0x60] sm:$0xf] %vm44, 0
    %71 = vst.msk [vmem:[#allocation2 + $0x64] sm:$0x1] %vm46, 0
    %72 = vst.msk [vmem:[#allocation2 + $0x68] sm:$0xf] %vm44, 0
    %73 = vst.msk [vmem:[#allocation2 + $0x6c] sm:$0x1] %vm46, 0
    %74 = vst.msk [vmem:[#allocation2 + $0x70] sm:$0xf] %vm44, 0
    %75 = vst.msk [vmem:[#allocation2 + $0x74] sm:$0x1] %vm46, 0
    %76 = vst.msk [vmem:[#allocation2 + $0x78] sm:$0xf] %vm44, 0
    %77 = vst.msk [vmem:[#allocation2 + $0x7c] sm:$0x1] %vm46, 0
    %78 = vst.msk [vmem:[#allocation2 + $0x80] sm:$0xf] %vm44, 0
    %79 = vst.msk [vmem:[#allocation2 + $0x84] sm:$0x1] %vm46, 0
    %80 = vst.msk [vmem:[#allocation2 + $0x88] sm:$0xf] %vm44, 0
    %81 = vst.msk [vmem:[#allocation2 + $0x8c] sm:$0x1] %vm46, 0
    %82 = vst.msk [vmem:[#allocation2 + $0x90] sm:$0xf] %vm44, 0
    %83 = vst.msk [vmem:[#allocation2 + $0x94] sm:$0x1] %vm46, 0
    %84 = vst.msk [vmem:[#allocation2 + $0x98] sm:$0xf] %vm44, 0
    %85 = vst.msk [vmem:[#allocation2 + $0x9c] sm:$0x1] %vm46, 0
    %v87 = vshrl.u32 %v28, 16
    %v89 = vrot.slane %v87, 7
    %v90 = vshll.u32 %v28, 16
    %v92 = vor.u32 %v89, %v90
    %v93 = vrot.slane %v89, 4
    %v95 = vshrl.u32 %v29, 16
    %v97 = vrot.slane %v95, 7
    %v98 = vshll.u32 %v29, 16
    %v100 = vor.u32 %v97, %v98
    %v101 = vrot.slane %v97, 4
    %v103 = vshrl.u32 %v30, 16
    %v105 = vrot.slane %v103, 7
    %v106 = vshll.u32 %v30, 16
    %v108 = vor.u32 %v105, %v106
    %v109 = vrot.slane %v105, 4
    %v111 = vshrl.u32 %v31, 16
    %v113 = vrot.slane %v111, 7
    %v114 = vshll.u32 %v31, 16
    %v116 = vor.u32 %v113, %v114
    %v117 = vrot.slane %v113, 4
    %v119 = vshrl.u32 %v32, 16
    %v121 = vrot.slane %v119, 7
    %v122 = vshll.u32 %v32, 16
    %v124 = vor.u32 %v121, %v122
    %v125 = vrot.slane %v121, 4
    %v127 = vshrl.u32 %v33, 16
    %v129 = vrot.slane %v127, 7
    %v130 = vshll.u32 %v33, 16
    %v132 = vor.u32 %v129, %v130
    %v133 = vrot.slane %v129, 4
    %v135 = vshrl.u32 %v34, 16
    %v137 = vrot.slane %v135, 7
    %v138 = vshll.u32 %v34, 16
    %v140 = vor.u32 %v137, %v138
    %v141 = vrot.slane %v137, 4
    %v143 = vshrl.u32 %v35, 16
    %v145 = vrot.slane %v143, 7
    %v146 = vshll.u32 %v35, 16
    %v148 = vor.u32 %v145, %v146
    %v149 = vrot.slane %v145, 4
    %v151 = vshrl.u32 %v36, 16
    %v153 = vrot.slane %v151, 7
    %v154 = vshll.u32 %v36, 16
    %v156 = vor.u32 %v153, %v154
    %v157 = vrot.slane %v153, 4
    %v159 = vshrl.u32 %v37, 16
    %v161 = vrot.slane %v159, 7
    %v162 = vshll.u32 %v37, 16
    %v164 = vor.u32 %v161, %v162
    %v165 = vrot.slane %v161, 4
    %v167 = vshrl.u32 %v38, 16
    %v169 = vrot.slane %v167, 7
    %v170 = vshll.u32 %v38, 16
    %v172 = vor.u32 %v169, %v170
    %v173 = vrot.slane %v169, 4
    %v175 = vshrl.u32 %v39, 16
    %v177 = vrot.slane %v175, 7
    %v178 = vshll.u32 %v39, 16
    %v180 = vor.u32 %v177, %v178
    %v181 = vrot.slane %v177, 4
    %v183 = vshrl.u32 %v40, 16
    %v185 = vrot.slane %v183, 7
    %v186 = vshll.u32 %v40, 16
    %v188 = vor.u32 %v185, %v186
    %v189 = vrot.slane %v185, 4
    %v191 = vshrl.u32 %v41, 16
    %v193 = vrot.slane %v191, 7
    %v194 = vshll.u32 %v41, 16
    %v196 = vor.u32 %v193, %v194
    %v197 = vrot.slane %v193, 4
    %v199 = vshrl.u32 %v42, 16
    %v201 = vrot.slane %v199, 7
    %v202 = vshll.u32 %v42, 16
    %v204 = vor.u32 %v201, %v202
    %v205 = vrot.slane %v201, 4
    %v207 = vshrl.u32 %v43, 16
    %v209 = vrot.slane %v207, 7
    %v210 = vshll.u32 %v43, 16
    %v212 = vor.u32 %v209, %v210
    %v213 = vrot.slane %v209, 4
    %s246 = scalar_lea.vmem [#allocation2], 8
    %vm247 = vcmask 27648
    %vm248 = vsmask.f32 7938
    %vm249 = vmand %vm247, %vm248
    %v250 = vld [vmem:[%s246] sm:$0xf]
    %v251 = vsel %vm249, %v92, %v250
    %252 = vst [vmem:[%s246] sm:$0xf] %v251
    %vm253 = vcmask 24576
    %vm254 = vsmask.f32 256
    %vm255 = vmand %vm253, %vm254
    %v256 = vld [vmem:[%s246 + $0x4] sm:$0x1]
    %v257 = vsel %vm255, %v93, %v256
    %258 = vst [vmem:[%s246 + $0x4] sm:$0x1] %v257
    %v259 = vld [vmem:[%s246 + $0x8] sm:$0xf]
    %v260 = vsel %vm249, %v100, %v259
    %261 = vst [vmem:[%s246 + $0x8] sm:$0xf] %v260
    %v262 = vld [vmem:[%s246 + $0xc] sm:$0x1]
    %v263 = vsel %vm255, %v101, %v262
    %264 = vst [vmem:[%s246 + $0xc] sm:$0x1] %v263
    %v265 = vld [vmem:[%s246 + $0x10] sm:$0xf]
    %v266 = vsel %vm249, %v108, %v265
    %267 = vst [vmem:[%s246 + $0x10] sm:$0xf] %v266
    %v268 = vld [vmem:[%s246 + $0x14] sm:$0x1]
    %v269 = vsel %vm255, %v109, %v268
    %270 = vst [vmem:[%s246 + $0x14] sm:$0x1] %v269
    %v271 = vld [vmem:[%s246 + $0x18] sm:$0xf]
    %v272 = vsel %vm249, %v116, %v271
    %273 = vst [vmem:[%s246 + $0x18] sm:$0xf] %v272
    %v274 = vld [vmem:[%s246 + $0x1c] sm:$0x1]
    %v275 = vsel %vm255, %v117, %v274
    %276 = vst [vmem:[%s246 + $0x1c] sm:$0x1] %v275
    %v277 = vld [vmem:[%s246 + $0x20] sm:$0xf]
    %v278 = vsel %vm249, %v124, %v277
    %279 = vst [vmem:[%s246 + $0x20] sm:$0xf] %v278
    %v280 = vld [vmem:[%s246 + $0x24] sm:$0x1]
    %v281 = vsel %vm255, %v125, %v280
    %282 = vst [vmem:[%s246 + $0x24] sm:$0x1] %v281
    %v283 = vld [vmem:[%s246 + $0x28] sm:$0xf]
    %v284 = vsel %vm249, %v132, %v283
    %285 = vst [vmem:[%s246 + $0x28] sm:$0xf] %v284
    %v286 = vld [vmem:[%s246 + $0x2c] sm:$0x1]
    %v287 = vsel %vm255, %v133, %v286
    %288 = vst [vmem:[%s246 + $0x2c] sm:$0x1] %v287
    %v289 = vld [vmem:[%s246 + $0x30] sm:$0xf]
    %v290 = vsel %vm249, %v140, %v289
    %291 = vst [vmem:[%s246 + $0x30] sm:$0xf] %v290
    %v292 = vld [vmem:[%s246 + $0x34] sm:$0x1]
    %v293 = vsel %vm255, %v141, %v292
    %294 = vst [vmem:[%s246 + $0x34] sm:$0x1] %v293
    %v295 = vld [vmem:[%s246 + $0x38] sm:$0xf]
    %v296 = vsel %vm249, %v148, %v295
    %297 = vst [vmem:[%s246 + $0x38] sm:$0xf] %v296
    %v298 = vld [vmem:[%s246 + $0x3c] sm:$0x1]
    %v299 = vsel %vm255, %v149, %v298
    %300 = vst [vmem:[%s246 + $0x3c] sm:$0x1] %v299
    %v301 = vld [vmem:[%s246 + $0x50] sm:$0xf]
    %v302 = vsel %vm249, %v156, %v301
    %303 = vst [vmem:[%s246 + $0x50] sm:$0xf] %v302
    %v304 = vld [vmem:[%s246 + $0x54] sm:$0x1]
    %v305 = vsel %vm255, %v157, %v304
    %306 = vst [vmem:[%s246 + $0x54] sm:$0x1] %v305
    %v307 = vld [vmem:[%s246 + $0x58] sm:$0xf]
    %v308 = vsel %vm249, %v164, %v307
    %309 = vst [vmem:[%s246 + $0x58] sm:$0xf] %v308
    %v310 = vld [vmem:[%s246 + $0x5c] sm:$0x1]
    %v311 = vsel %vm255, %v165, %v310
    %312 = vst [vmem:[%s246 + $0x5c] sm:$0x1] %v311
    %v313 = vld [vmem:[%s246 + $0x60] sm:$0xf]
    %v314 = vsel %vm249, %v172, %v313
    %315 = vst [vmem:[%s246 + $0x60] sm:$0xf] %v314
    %v316 = vld [vmem:[%s246 + $0x64] sm:$0x1]
    %v317 = vsel %vm255, %v173, %v316
    %318 = vst [vmem:[%s246 + $0x64] sm:$0x1] %v317
    %v319 = vld [vmem:[%s246 + $0x68] sm:$0xf]
    %v320 = vsel %vm249, %v180, %v319
    %321 = vst [vmem:[%s246 + $0x68] sm:$0xf] %v320
    %v322 = vld [vmem:[%s246 + $0x6c] sm:$0x1]
    %v323 = vsel %vm255, %v181, %v322
    %324 = vst [vmem:[%s246 + $0x6c] sm:$0x1] %v323
    %v325 = vld [vmem:[%s246 + $0x70] sm:$0xf]
    %v326 = vsel %vm249, %v188, %v325
    %327 = vst [vmem:[%s246 + $0x70] sm:$0xf] %v326
    %v328 = vld [vmem:[%s246 + $0x74] sm:$0x1]
    %v329 = vsel %vm255, %v189, %v328
    %330 = vst [vmem:[%s246 + $0x74] sm:$0x1] %v329
    %v331 = vld [vmem:[%s246 + $0x78] sm:$0xf]
    %v332 = vsel %vm249, %v196, %v331
    %333 = vst [vmem:[%s246 + $0x78] sm:$0xf] %v332
    %v334 = vld [vmem:[%s246 + $0x7c] sm:$0x1]
    %v335 = vsel %vm255, %v197, %v334
    %336 = vst [vmem:[%s246 + $0x7c] sm:$0x1] %v335
    %v337 = vld [vmem:[%s246 + $0x80] sm:$0xf]
    %v338 = vsel %vm249, %v204, %v337
    %339 = vst [vmem:[%s246 + $0x80] sm:$0xf] %v338
    %v340 = vld [vmem:[%s246 + $0x84] sm:$0x1]
    %v341 = vsel %vm255, %v205, %v340
    %342 = vst [vmem:[%s246 + $0x84] sm:$0x1] %v341
    %v343 = vld [vmem:[%s246 + $0x88] sm:$0xf]
    %v344 = vsel %vm249, %v212, %v343
    %345 = vst [vmem:[%s246 + $0x88] sm:$0xf] %v344
    %v346 = vld [vmem:[%s246 + $0x8c] sm:$0x1]
    %v347 = vsel %vm255, %v213, %v346
    %348 = vst [vmem:[%s246 + $0x8c] sm:$0x1] %v347
    %v349 = vld [vmem:[#allocation2] sm:$0xf]
    %v350 = vld [vmem:[#allocation2 + $0x8] sm:$0xf]
    %v351 = vld [vmem:[#allocation2 + $0x10] sm:$0xf]
    %v352 = vld [vmem:[#allocation2 + $0x18] sm:$0xf]
    %v353 = vld [vmem:[#allocation2 + $0x20] sm:$0xf]
    %v354 = vld [vmem:[#allocation2 + $0x28] sm:$0xf]
    %v355 = vld [vmem:[#allocation2 + $0x30] sm:$0xf]
    %v356 = vld [vmem:[#allocation2 + $0x38] sm:$0xf]
    %v357 = vld [vmem:[#allocation2 + $0x50] sm:$0xf]
    %v358 = vld [vmem:[#allocation2 + $0x58] sm:$0xf]
    %v359 = vld [vmem:[#allocation2 + $0x60] sm:$0xf]
    %v360 = vld [vmem:[#allocation2 + $0x68] sm:$0xf]
    %v361 = vld [vmem:[#allocation2 + $0x70] sm:$0xf]
    %v362 = vld [vmem:[#allocation2 + $0x78] sm:$0xf]
    %v363 = vld [vmem:[#allocation2 + $0x80] sm:$0xf]
    %v364 = vld [vmem:[#allocation2 + $0x88] sm:$0xf]
    %v381 = vunpack.c.l.b16 %v349
    %v382 = vunpack.c.l.b16 %v350
    %v383 = vunpack.c.l.b16 %v351
    %v384 = vunpack.c.l.b16 %v352
    %v385 = vunpack.c.l.b16 %v353
    %v386 = vunpack.c.l.b16 %v354
    %v387 = vunpack.c.l.b16 %v355
    %v388 = vunpack.c.l.b16 %v356
    %v389 = vunpack.c.l.b16 %v357
    %v390 = vunpack.c.l.b16 %v358
    %v391 = vunpack.c.l.b16 %v359
    %v392 = vunpack.c.l.b16 %v360
    %v393 = vunpack.c.l.b16 %v361
    %v394 = vunpack.c.l.b16 %v362
    %v395 = vunpack.c.l.b16 %v363
    %v396 = vunpack.c.l.b16 %v364
    %v397 = vpack.c.b16 %v382, %v381
    %v398 = vpack.c.b16 %v384, %v383
    %v399 = vpack.c.b16 %v386, %v385
    %v400 = vpack.c.b16 %v388, %v387
    %v401 = vpack.c.b16 %v390, %v389
    %v402 = vpack.c.b16 %v392, %v391
    %v403 = vpack.c.b16 %v394, %v393
    %v404 = vpack.c.b16 %v396, %v395
    %vm413 = vcmask 31744
    %414 = vst.msk [vmem:[#allocation3] sm:$0xff] %vm413, %v397
    %415 = vst.msk [vmem:[#allocation3 + $0x8] sm:$0xff] %vm413, %v398
    %416 = vst.msk [vmem:[#allocation3 + $0x10] sm:$0xff] %vm413, %v399
    %417 = vst.msk [vmem:[#allocation3 + $0x18] sm:$0xff] %vm413, %v400
    %418 = vst.msk [vmem:[#allocation3 + $0x20] sm:$0xff] %vm413, %v401
    %419 = vst.msk [vmem:[#allocation3 + $0x28] sm:$0xff] %vm413, %v402
    %420 = vst.msk [vmem:[#allocation3 + $0x30] sm:$0xff] %vm413, %v403
    %421 = vst.msk [vmem:[#allocation3 + $0x38] sm:$0xff] %vm413, %v404
    %v422 = vld [vmem:[#allocation2] sm:$0xf]
    %v423 = vld [vmem:[#allocation2 + $0x4] sm:$0x1]
    %v424 = vld [vmem:[#allocation2 + $0x8] sm:$0xf]
    %v425 = vld [vmem:[#allocation2 + $0xc] sm:$0x1]
    %v426 = vld [vmem:[#allocation2 + $0x10] sm:$0xf]
    %v427 = vld [vmem:[#allocation2 + $0x14] sm:$0x1]
    %v428 = vld [vmem:[#allocation2 + $0x18] sm:$0xf]
    %v429 = vld [vmem:[#allocation2 + $0x1c] sm:$0x1]
    %v430 = vld [vmem:[#allocation2 + $0x20] sm:$0xf]
    %v431 = vld [vmem:[#allocation2 + $0x24] sm:$0x1]
    %v432 = vld [vmem:[#allocation2 + $0x28] sm:$0xf]
    %v433 = vld [vmem:[#allocation2 + $0x2c] sm:$0x1]
    %v434 = vld [vmem:[#allocation2 + $0x30] sm:$0xf]
    %v435 = vld [vmem:[#allocation2 + $0x34] sm:$0x1]
    %v436 = vld [vmem:[#allocation2 + $0x38] sm:$0xf]
    %v437 = vld [vmem:[#allocation2 + $0x3c] sm:$0x1]
    %v438 = vld [vmem:[#allocation2 + $0x50] sm:$0xf]
    %v439 = vld [vmem:[#allocation2 + $0x54] sm:$0x1]
    %v440 = vld [vmem:[#allocation2 + $0x58] sm:$0xf]
    %v441 = vld [vmem:[#allocation2 + $0x5c] sm:$0x1]
    %v442 = vld [vmem:[#allocation2 + $0x60] sm:$0xf]
    %v443 = vld [vmem:[#allocation2 + $0x64] sm:$0x1]
    %v444 = vld [vmem:[#allocation2 + $0x68] sm:$0xf]
    %v445 = vld [vmem:[#allocation2 + $0x6c] sm:$0x1]
    %v446 = vld [vmem:[#allocation2 + $0x70] sm:$0xf]
    %v447 = vld [vmem:[#allocation2 + $0x74] sm:$0x1]
    %v448 = vld [vmem:[#allocation2 + $0x78] sm:$0xf]
    %v449 = vld [vmem:[#allocation2 + $0x7c] sm:$0x1]
    %v450 = vld [vmem:[#allocation2 + $0x80] sm:$0xf]
    %v451 = vld [vmem:[#allocation2 + $0x84] sm:$0x1]
    %v452 = vld [vmem:[#allocation2 + $0x88] sm:$0xf]
    %v453 = vld [vmem:[#allocation2 + $0x8c] sm:$0x1]
    %vm454 = vsmask.f32 3328
    %vm455 = vsmask.f32 7440
    %vm456 = vmor %vm454, %vm455
    %v458 = vshrl.u32 %v422, 16
    %v460 = vrot.slane %v458, 4
    %v461 = vshll.u32 %v422, 16
    %v463 = vrot.slane %v461, 5
    %v464 = vor.u32 %v460, %v463
    %v465 = vrot.slane %v464, 4
    %v467 = vshll.u32 %v423, 16
    %v469 = vrot.slane %v467, 5
    %v470 = vsel %vm456, %v465, %v469
    %v472 = vshrl.u32 %v424, 16
    %v474 = vrot.slane %v472, 4
    %v475 = vshll.u32 %v424, 16
    %v477 = vrot.slane %v475, 5
    %v478 = vor.u32 %v474, %v477
    %v479 = vrot.slane %v478, 4
    %v481 = vshll.u32 %v425, 16
    %v483 = vrot.slane %v481, 5
    %v484 = vsel %vm456, %v479, %v483
    %v486 = vshrl.u32 %v426, 16
    %v488 = vrot.slane %v486, 4
    %v489 = vshll.u32 %v426, 16
    %v491 = vrot.slane %v489, 5
    %v492 = vor.u32 %v488, %v491
    %v493 = vrot.slane %v492, 4
    %v495 = vshll.u32 %v427, 16
    %v497 = vrot.slane %v495, 5
    %v498 = vsel %vm456, %v493, %v497
    %v500 = vshrl.u32 %v428, 16
    %v502 = vrot.slane %v500, 4
    %v503 = vshll.u32 %v428, 16
    %v505 = vrot.slane %v503, 5
    %v506 = vor.u32 %v502, %v505
    %v507 = vrot.slane %v506, 4
    %v509 = vshll.u32 %v429, 16
    %v511 = vrot.slane %v509, 5
    %v512 = vsel %vm456, %v507, %v511
    %v514 = vshrl.u32 %v430, 16
    %v516 = vrot.slane %v514, 4
    %v517 = vshll.u32 %v430, 16
    %v519 = vrot.slane %v517, 5
    %v520 = vor.u32 %v516, %v519
    %v521 = vrot.slane %v520, 4
    %v523 = vshll.u32 %v431, 16
    %v525 = vrot.slane %v523, 5
    %v526 = vsel %vm456, %v521, %v525
    %v528 = vshrl.u32 %v432, 16
    %v530 = vrot.slane %v528, 4
    %v531 = vshll.u32 %v432, 16
    %v533 = vrot.slane %v531, 5
    %v534 = vor.u32 %v530, %v533
    %v535 = vrot.slane %v534, 4
    %v537 = vshll.u32 %v433, 16
    %v539 = vrot.slane %v537, 5
    %v540 = vsel %vm456, %v535, %v539
    %v542 = vshrl.u32 %v434, 16
    %v544 = vrot.slane %v542, 4
    %v545 = vshll.u32 %v434, 16
    %v547 = vrot.slane %v545, 5
    %v548 = vor.u32 %v544, %v547
    %v549 = vrot.slane %v548, 4
    %v551 = vshll.u32 %v435, 16
    %v553 = vrot.slane %v551, 5
    %v554 = vsel %vm456, %v549, %v553
    %v556 = vshrl.u32 %v436, 16
    %v558 = vrot.slane %v556, 4
    %v559 = vshll.u32 %v436, 16
    %v561 = vrot.slane %v559, 5
    %v562 = vor.u32 %v558, %v561
    %v563 = vrot.slane %v562, 4
    %v565 = vshll.u32 %v437, 16
    %v567 = vrot.slane %v565, 5
    %v568 = vsel %vm456, %v563, %v567
    %v570 = vshrl.u32 %v438, 16
    %v572 = vrot.slane %v570, 4
    %v573 = vshll.u32 %v438, 16
    %v575 = vrot.slane %v573, 5
    %v576 = vor.u32 %v572, %v575
    %v577 = vrot.slane %v576, 4
    %v579 = vshll.u32 %v439, 16
    %v581 = vrot.slane %v579, 5
    %v582 = vsel %vm456, %v577, %v581
    %v584 = vshrl.u32 %v440, 16
    %v586 = vrot.slane %v584, 4
    %v587 = vshll.u32 %v440, 16
    %v589 = vrot.slane %v587, 5
    %v590 = vor.u32 %v586, %v589
    %v591 = vrot.slane %v590, 4
    %v593 = vshll.u32 %v441, 16
    %v595 = vrot.slane %v593, 5
    %v596 = vsel %vm456, %v591, %v595
    %v598 = vshrl.u32 %v442, 16
    %v600 = vrot.slane %v598, 4
    %v601 = vshll.u32 %v442, 16
    %v603 = vrot.slane %v601, 5
    %v604 = vor.u32 %v600, %v603
    %v605 = vrot.slane %v604, 4
    %v607 = vshll.u32 %v443, 16
    %v609 = vrot.slane %v607, 5
    %v610 = vsel %vm456, %v605, %v609
    %v612 = vshrl.u32 %v444, 16
    %v614 = vrot.slane %v612, 4
    %v615 = vshll.u32 %v444, 16
    %v617 = vrot.slane %v615, 5
    %v618 = vor.u32 %v614, %v617
    %v619 = vrot.slane %v618, 4
    %v621 = vshll.u32 %v445, 16
    %v623 = vrot.slane %v621, 5
    %v624 = vsel %vm456, %v619, %v623
    %v626 = vshrl.u32 %v446, 16
    %v628 = vrot.slane %v626, 4
    %v629 = vshll.u32 %v446, 16
    %v631 = vrot.slane %v629, 5
    %v632 = vor.u32 %v628, %v631
    %v633 = vrot.slane %v632, 4
    %v635 = vshll.u32 %v447, 16
    %v637 = vrot.slane %v635, 5
    %v638 = vsel %vm456, %v633, %v637
    %v640 = vshrl.u32 %v448, 16
    %v642 = vrot.slane %v640, 4
    %v643 = vshll.u32 %v448, 16
    %v645 = vrot.slane %v643, 5
    %v646 = vor.u32 %v642, %v645
    %v647 = vrot.slane %v646, 4
    %v649 = vshll.u32 %v449, 16
    %v651 = vrot.slane %v649, 5
    %v652 = vsel %vm456, %v647, %v651
    %v654 = vshrl.u32 %v450, 16
    %v656 = vrot.slane %v654, 4
    %v657 = vshll.u32 %v450, 16
    %v659 = vrot.slane %v657, 5
    %v660 = vor.u32 %v656, %v659
    %v661 = vrot.slane %v660, 4
    %v663 = vshll.u32 %v451, 16
    %v665 = vrot.slane %v663, 5
    %v666 = vsel %vm456, %v661, %v665
    %v668 = vshrl.u32 %v452, 16
    %v670 = vrot.slane %v668, 4
    %v671 = vshll.u32 %v452, 16
    %v673 = vrot.slane %v671, 5
    %v674 = vor.u32 %v670, %v673
    %v675 = vrot.slane %v674, 4
    %v677 = vshll.u32 %v453, 16
    %v679 = vrot.slane %v677, 5
    %v680 = vsel %vm456, %v675, %v679
    %v681 = vunpack.c.l.b16 %v470
    %v682 = vunpack.c.l.b16 %v484
    %v683 = vunpack.c.l.b16 %v498
    %v684 = vunpack.c.l.b16 %v512
    %v685 = vunpack.c.l.b16 %v526
    %v686 = vunpack.c.l.b16 %v540
    %v687 = vunpack.c.l.b16 %v554
    %v688 = vunpack.c.l.b16 %v568
    %v689 = vunpack.c.l.b16 %v582
    %v690 = vunpack.c.l.b16 %v596
    %v691 = vunpack.c.l.b16 %v610
    %v692 = vunpack.c.l.b16 %v624
    %v693 = vunpack.c.l.b16 %v638
    %v694 = vunpack.c.l.b16 %v652
    %v695 = vunpack.c.l.b16 %v666
    %v696 = vunpack.c.l.b16 %v680
    %v697 = vpack.c.b16 %v682, %v681
    %v698 = vpack.c.b16 %v684, %v683
    %v699 = vpack.c.b16 %v686, %v685
    %v700 = vpack.c.b16 %v688, %v687
    %v701 = vpack.c.b16 %v690, %v689
    %v702 = vpack.c.b16 %v692, %v691
    %v703 = vpack.c.b16 %v694, %v693
    %v704 = vpack.c.b16 %v696, %v695
    %705 = vrot.lane.b32.xlu0 %v697, 4
    %v706 = vpop.permute.xlu0 %705
    %707 = vrot.lane.b32.xlu0 %v698, 4
    %v708 = vpop.permute.xlu0 %707
    %709 = vrot.lane.b32.xlu0 %v699, 4
    %v710 = vpop.permute.xlu0 %709
    %711 = vrot.lane.b32.xlu0 %v700, 4
    %v712 = vpop.permute.xlu0 %711
    %713 = vrot.lane.b32.xlu0 %v701, 4
    %v714 = vpop.permute.xlu0 %713
    %715 = vrot.lane.b32.xlu0 %v702, 4
    %v716 = vpop.permute.xlu0 %715
    %717 = vrot.lane.b32.xlu0 %v703, 4
    %v718 = vpop.permute.xlu0 %717
    %719 = vrot.lane.b32.xlu0 %v704, 4
    %v720 = vpop.permute.xlu0 %719
    %vm729 = vcmask 64544
    %730 = vst.msk [vmem:[#allocation3] sm:$0xff] %vm729, %v706
    %731 = vst.msk [vmem:[#allocation3 + $0x8] sm:$0xff] %vm729, %v708
    %732 = vst.msk [vmem:[#allocation3 + $0x10] sm:$0xff] %vm729, %v710
    %733 = vst.msk [vmem:[#allocation3 + $0x18] sm:$0xff] %vm729, %v712
    %734 = vst.msk [vmem:[#allocation3 + $0x20] sm:$0xff] %vm729, %v714
    %735 = vst.msk [vmem:[#allocation3 + $0x28] sm:$0xff] %vm729, %v716
    %736 = vst.msk [vmem:[#allocation3 + $0x30] sm:$0xff] %vm729, %v718
    %737 = vst.msk [vmem:[#allocation3 + $0x38] sm:$0xff] %vm729, %v720
    %v738 = vld [vmem:[#allocation2] sm:$0xe]
    %v739 = vld [vmem:[#allocation2 + $0x4] sm:$0x1]
    %v740 = vld [vmem:[#allocation2 + $0x8] sm:$0xe]
    %v741 = vld [vmem:[#allocation2 + $0xc] sm:$0x1]
    %v742 = vld [vmem:[#allocation2 + $0x10] sm:$0xe]
    %v743 = vld [vmem:[#allocation2 + $0x14] sm:$0x1]
    %v744 = vld [vmem:[#allocation2 + $0x18] sm:$0xe]
    %v745 = vld [vmem:[#allocation2 + $0x1c] sm:$0x1]
    %v746 = vld [vmem:[#allocation2 + $0x20] sm:$0xe]
    %v747 = vld [vmem:[#allocation2 + $0x24] sm:$0x1]
    %v748 = vld [vmem:[#allocation2 + $0x28] sm:$0xe]
    %v749 = vld [vmem:[#allocation2 + $0x2c] sm:$0x1]
    %v750 = vld [vmem:[#allocation2 + $0x30] sm:$0xe]
    %v751 = vld [vmem:[#allocation2 + $0x34] sm:$0x1]
    %v752 = vld [vmem:[#allocation2 + $0x38] sm:$0xe]
    %v753 = vld [vmem:[#allocation2 + $0x3c] sm:$0x1]
    %v754 = vld [vmem:[#allocation2 + $0x50] sm:$0xe]
    %v755 = vld [vmem:[#allocation2 + $0x54] sm:$0x1]
    %v756 = vld [vmem:[#allocation2 + $0x58] sm:$0xe]
    %v757 = vld [vmem:[#allocation2 + $0x5c] sm:$0x1]
    %v758 = vld [vmem:[#allocation2 + $0x60] sm:$0xe]
    %v759 = vld [vmem:[#allocation2 + $0x64] sm:$0x1]
    %v760 = vld [vmem:[#allocation2 + $0x68] sm:$0xe]
    %v761 = vld [vmem:[#allocation2 + $0x6c] sm:$0x1]
    %v762 = vld [vmem:[#allocation2 + $0x70] sm:$0xe]
    %v763 = vld [vmem:[#allocation2 + $0x74] sm:$0x1]
    %v764 = vld [vmem:[#allocation2 + $0x78] sm:$0xe]
    %v765 = vld [vmem:[#allocation2 + $0x7c] sm:$0x1]
    %v766 = vld [vmem:[#allocation2 + $0x80] sm:$0xe]
    %v767 = vld [vmem:[#allocation2 + $0x84] sm:$0x1]
    %v768 = vld [vmem:[#allocation2 + $0x88] sm:$0xe]
    %v769 = vld [vmem:[#allocation2 + $0x8c] sm:$0x1]
    %vm802 = vcmask 1042432
    %vm803 = vcmask 1046532
    %vm804 = vmor %vm802, %vm803
    %v805 = vrot.slane %v738, 5
    %v806 = vrot.slane %v805, 4
    %v807 = vrot.slane %v739, 5
    %v808 = vsel %vm804, %v806, %v807
    %v809 = vrot.slane %v740, 5
    %v810 = vrot.slane %v809, 4
    %v811 = vrot.slane %v741, 5
    %v812 = vsel %vm804, %v810, %v811
    %v813 = vrot.slane %v742, 5
    %v814 = vrot.slane %v813, 4
    %v815 = vrot.slane %v743, 5
    %v816 = vsel %vm804, %v814, %v815
    %v817 = vrot.slane %v744, 5
    %v818 = vrot.slane %v817, 4
    %v819 = vrot.slane %v745, 5
    %v820 = vsel %vm804, %v818, %v819
    %v821 = vrot.slane %v746, 5
    %v822 = vrot.slane %v821, 4
    %v823 = vrot.slane %v747, 5
    %v824 = vsel %vm804, %v822, %v823
    %v825 = vrot.slane %v748, 5
    %v826 = vrot.slane %v825, 4
    %v827 = vrot.slane %v749, 5
    %v828 = vsel %vm804, %v826, %v827
    %v829 = vrot.slane %v750, 5
    %v830 = vrot.slane %v829, 4
    %v831 = vrot.slane %v751, 5
    %v832 = vsel %vm804, %v830, %v831
    %v833 = vrot.slane %v752, 5
    %v834 = vrot.slane %v833, 4
    %v835 = vrot.slane %v753, 5
    %v836 = vsel %vm804, %v834, %v835
    %v837 = vrot.slane %v754, 5
    %v838 = vrot.slane %v837, 4
    %v839 = vrot.slane %v755, 5
    %v840 = vsel %vm804, %v838, %v839
    %v841 = vrot.slane %v756, 5
    %v842 = vrot.slane %v841, 4
    %v843 = vrot.slane %v757, 5
    %v844 = vsel %vm804, %v842, %v843
    %v845 = vrot.slane %v758, 5
    %v846 = vrot.slane %v845, 4
    %v847 = vrot.slane %v759, 5
    %v848 = vsel %vm804, %v846, %v847
    %v849 = vrot.slane %v760, 5
    %v850 = vrot.slane %v849, 4
    %v851 = vrot.slane %v761, 5
    %v852 = vsel %vm804, %v850, %v851
    %v853 = vrot.slane %v762, 5
    %v854 = vrot.slane %v853, 4
    %v855 = vrot.slane %v763, 5
    %v856 = vsel %vm804, %v854, %v855
    %v857 = vrot.slane %v764, 5
    %v858 = vrot.slane %v857, 4
    %v859 = vrot.slane %v765, 5
    %v860 = vsel %vm804, %v858, %v859
    %v861 = vrot.slane %v766, 5
    %v862 = vrot.slane %v861, 4
    %v863 = vrot.slane %v767, 5
    %v864 = vsel %vm804, %v862, %v863
    %v865 = vrot.slane %v768, 5
    %v866 = vrot.slane %v865, 4
    %v867 = vrot.slane %v769, 5
    %v868 = vsel %vm804, %v866, %v867
    %v869 = vunpack.c.l.b16 %v808
    %v870 = vunpack.c.l.b16 %v812
    %v871 = vunpack.c.l.b16 %v816
    %v872 = vunpack.c.l.b16 %v820
    %v873 = vunpack.c.l.b16 %v824
    %v874 = vunpack.c.l.b16 %v828
    %v875 = vunpack.c.l.b16 %v832
    %v876 = vunpack.c.l.b16 %v836
    %v877 = vunpack.c.l.b16 %v840
    %v878 = vunpack.c.l.b16 %v844
    %v879 = vunpack.c.l.b16 %v848
    %v880 = vunpack.c.l.b16 %v852
    %v881 = vunpack.c.l.b16 %v856
    %v882 = vunpack.c.l.b16 %v860
    %v883 = vunpack.c.l.b16 %v864
    %v884 = vunpack.c.l.b16 %v868
    %v885 = vpack.c.b16 %v870, %v869
    %v886 = vpack.c.b16 %v872, %v871
    %v887 = vpack.c.b16 %v874, %v873
    %v888 = vpack.c.b16 %v876, %v875
    %v889 = vpack.c.b16 %v878, %v877
    %v890 = vpack.c.b16 %v880, %v879
    %v891 = vpack.c.b16 %v882, %v881
    %v892 = vpack.c.b16 %v884, %v883
    %893 = vrot.lane.b32.xlu0 %v885, 8
    %v894 = vpop.permute.xlu0 %893
    %895 = vrot.lane.b32.xlu0 %v886, 8
    %v896 = vpop.permute.xlu0 %895
    %897 = vrot.lane.b32.xlu0 %v887, 8
    %v898 = vpop.permute.xlu0 %897
    %899 = vrot.lane.b32.xlu0 %v888, 8
    %v900 = vpop.permute.xlu0 %899
    %901 = vrot.lane.b32.xlu0 %v889, 8
    %v902 = vpop.permute.xlu0 %901
    %903 = vrot.lane.b32.xlu0 %v890, 8
    %v904 = vpop.permute.xlu0 %903
    %905 = vrot.lane.b32.xlu0 %v891, 8
    %v906 = vpop.permute.xlu0 %905
    %907 = vrot.lane.b32.xlu0 %v892, 8
    %v908 = vpop.permute.xlu0 %907
    %vm917 = vcmask 97344
    %918 = vst.msk [vmem:[#allocation3] sm:$0xff] %vm917, %v894
    %919 = vst.msk [vmem:[#allocation3 + $0x8] sm:$0xff] %vm917, %v896
    %920 = vst.msk [vmem:[#allocation3 + $0x10] sm:$0xff] %vm917, %v898
    %921 = vst.msk [vmem:[#allocation3 + $0x18] sm:$0xff] %vm917, %v900
    %922 = vst.msk [vmem:[#allocation3 + $0x20] sm:$0xff] %vm917, %v902
    %923 = vst.msk [vmem:[#allocation3 + $0x28] sm:$0xff] %vm917, %v904
    %924 = vst.msk [vmem:[#allocation3 + $0x30] sm:$0xff] %vm917, %v906
    %925 = vst.msk [vmem:[#allocation3 + $0x38] sm:$0xff] %vm917, %v908
    %v926 = vld [vmem:[%s246] sm:$0xf]
    %v927 = vld [vmem:[%s246 + $0x8] sm:$0xf]
    %v928 = vld [vmem:[%s246 + $0x10] sm:$0xf]
    %v929 = vld [vmem:[%s246 + $0x18] sm:$0xf]
    %v930 = vld [vmem:[%s246 + $0x20] sm:$0xf]
    %v931 = vld [vmem:[%s246 + $0x28] sm:$0xf]
    %v932 = vld [vmem:[%s246 + $0x30] sm:$0xf]
    %v933 = vld [vmem:[%s246 + $0x38] sm:$0xf]
    %v934 = vld [vmem:[%s246 + $0x50] sm:$0xf]
    %v935 = vld [vmem:[%s246 + $0x58] sm:$0xf]
    %v936 = vld [vmem:[%s246 + $0x60] sm:$0xf]
    %v937 = vld [vmem:[%s246 + $0x68] sm:$0xf]
    %v938 = vld [vmem:[%s246 + $0x70] sm:$0xf]
    %v939 = vld [vmem:[%s246 + $0x78] sm:$0xf]
    %v940 = vld [vmem:[%s246 + $0x80] sm:$0xf]
    %v941 = vld [vmem:[%s246 + $0x88] sm:$0xf]
    %v958 = vunpack.c.l.b16 %v926
    %v959 = vunpack.c.l.b16 %v927
    %v960 = vunpack.c.l.b16 %v928
    %v961 = vunpack.c.l.b16 %v929
    %v962 = vunpack.c.l.b16 %v930
    %v963 = vunpack.c.l.b16 %v931
    %v964 = vunpack.c.l.b16 %v932
    %v965 = vunpack.c.l.b16 %v933
    %v966 = vunpack.c.l.b16 %v934
    %v967 = vunpack.c.l.b16 %v935
    %v968 = vunpack.c.l.b16 %v936
    %v969 = vunpack.c.l.b16 %v937
    %v970 = vunpack.c.l.b16 %v938
    %v971 = vunpack.c.l.b16 %v939
    %v972 = vunpack.c.l.b16 %v940
    %v973 = vunpack.c.l.b16 %v941
    %v974 = vpack.c.b16 %v959, %v958
    %v975 = vpack.c.b16 %v961, %v960
    %v976 = vpack.c.b16 %v963, %v962
    %v977 = vpack.c.b16 %v965, %v964
    %v978 = vpack.c.b16 %v967, %v966
    %v979 = vpack.c.b16 %v969, %v968
    %v980 = vpack.c.b16 %v971, %v970
    %v981 = vpack.c.b16 %v973, %v972
    %982 = vrot.lane.b32.xlu0 %v974, 12
    %v983 = vpop.permute.xlu0 %982
    %984 = vrot.lane.b32.xlu0 %v975, 12
    %v985 = vpop.permute.xlu0 %984
    %986 = vrot.lane.b32.xlu0 %v976, 12
    %v987 = vpop.permute.xlu0 %986
    %988 = vrot.lane.b32.xlu0 %v977, 12
    %v989 = vpop.permute.xlu0 %988
    %990 = vrot.lane.b32.xlu0 %v978, 12
    %v991 = vpop.permute.xlu0 %990
    %992 = vrot.lane.b32.xlu0 %v979, 12
    %v993 = vpop.permute.xlu0 %992
    %994 = vrot.lane.b32.xlu0 %v980, 12
    %v995 = vpop.permute.xlu0 %994
    %996 = vrot.lane.b32.xlu0 %v981, 12
    %v997 = vpop.permute.xlu0 %996
    %vm1006 = vcmask 130144
    %1007 = vst.msk [vmem:[#allocation3] sm:$0xff] %vm1006, %v983
    %1008 = vst.msk [vmem:[#allocation3 + $0x8] sm:$0xff] %vm1006, %v985
    %1009 = vst.msk [vmem:[#allocation3 + $0x10] sm:$0xff] %vm1006, %v987
    %1010 = vst.msk [vmem:[#allocation3 + $0x18] sm:$0xff] %vm1006, %v989
    %1011 = vst.msk [vmem:[#allocation3 + $0x20] sm:$0xff] %vm1006, %v991
    %1012 = vst.msk [vmem:[#allocation3 + $0x28] sm:$0xff] %vm1006, %v993
    %1013 = vst.msk [vmem:[#allocation3 + $0x30] sm:$0xff] %vm1006, %v995
    %1014 = vst.msk [vmem:[#allocation3 + $0x38] sm:$0xff] %vm1006, %v997
    %v1015 = vld [vmem:[%s246] sm:$0xf]
    %v1016 = vld [vmem:[%s246 + $0x4] sm:$0x1]
    %v1017 = vld [vmem:[%s246 + $0x8] sm:$0xf]
    %v1018 = vld [vmem:[%s246 + $0xc] sm:$0x1]
    %v1019 = vld [vmem:[%s246 + $0x10] sm:$0xf]
    %v1020 = vld [vmem:[%s246 + $0x14] sm:$0x1]
    %v1021 = vld [vmem:[%s246 + $0x18] sm:$0xf]
    %v1022 = vld [vmem:[%s246 + $0x1c] sm:$0x1]
    %v1023 = vld [vmem:[%s246 + $0x20] sm:$0xf]
    %v1024 = vld [vmem:[%s246 + $0x24] sm:$0x1]
    %v1025 = vld [vmem:[%s246 + $0x28] sm:$0xf]
    %v1026 = vld [vmem:[%s246 + $0x2c] sm:$0x1]
    %v1027 = vld [vmem:[%s246 + $0x30] sm:$0xf]
    %v1028 = vld [vmem:[%s246 + $0x34] sm:$0x1]
    %v1029 = vld [vmem:[%s246 + $0x38] sm:$0xf]
    %v1030 = vld [vmem:[%s246 + $0x3c] sm:$0x1]
    %v1031 = vld [vmem:[%s246 + $0x50] sm:$0xf]
    %v1032 = vld [vmem:[%s246 + $0x54] sm:$0x1]
    %v1033 = vld [vmem:[%s246 + $0x58] sm:$0xf]
    %v1034 = vld [vmem:[%s246 + $0x5c] sm:$0x1]
    %v1035 = vld [vmem:[%s246 + $0x60] sm:$0xf]
    %v1036 = vld [vmem:[%s246 + $0x64] sm:$0x1]
    %v1037 = vld [vmem:[%s246 + $0x68] sm:$0xf]
    %v1038 = vld [vmem:[%s246 + $0x6c] sm:$0x1]
    %v1039 = vld [vmem:[%s246 + $0x70] sm:$0xf]
    %v1040 = vld [vmem:[%s246 + $0x74] sm:$0x1]
    %v1041 = vld [vmem:[%s246 + $0x78] sm:$0xf]
    %v1042 = vld [vmem:[%s246 + $0x7c] sm:$0x1]
    %v1043 = vld [vmem:[%s246 + $0x80] sm:$0xf]
    %v1044 = vld [vmem:[%s246 + $0x84] sm:$0x1]
    %v1045 = vld [vmem:[%s246 + $0x88] sm:$0xf]
    %v1046 = vld [vmem:[%s246 + $0x8c] sm:$0x1]
    %v1048 = vshrl.u32 %v1015, 16
    %v1050 = vrot.slane %v1048, 4
    %v1051 = vshll.u32 %v1015, 16
    %v1053 = vrot.slane %v1051, 5
    %v1054 = vor.u32 %v1050, %v1053
    %v1055 = vrot.slane %v1054, 4
    %v1057 = vshll.u32 %v1016, 16
    %v1059 = vrot.slane %v1057, 5
    %v1060 = vsel %vm456, %v1055, %v1059
    %v1062 = vshrl.u32 %v1017, 16
    %v1064 = vrot.slane %v1062, 4
    %v1065 = vshll.u32 %v1017, 16
    %v1067 = vrot.slane %v1065, 5
    %v1068 = vor.u32 %v1064, %v1067
    %v1069 = vrot.slane %v1068, 4
    %v1071 = vshll.u32 %v1018, 16
    %v1073 = vrot.slane %v1071, 5
    %v1074 = vsel %vm456, %v1069, %v1073
    %v1076 = vshrl.u32 %v1019, 16
    %v1078 = vrot.slane %v1076, 4
    %v1079 = vshll.u32 %v1019, 16
    %v1081 = vrot.slane %v1079, 5
    %v1082 = vor.u32 %v1078, %v1081
    %v1083 = vrot.slane %v1082, 4
    %v1085 = vshll.u32 %v1020, 16
    %v1087 = vrot.slane %v1085, 5
    %v1088 = vsel %vm456, %v1083, %v1087
    %v1090 = vshrl.u32 %v1021, 16
    %v1092 = vrot.slane %v1090, 4
    %v1093 = vshll.u32 %v1021, 16
    %v1095 = vrot.slane %v1093, 5
    %v1096 = vor.u32 %v1092, %v1095
    %v1097 = vrot.slane %v1096, 4
    %v1099 = vshll.u32 %v1022, 16
    %v1101 = vrot.slane %v1099, 5
    %v1102 = vsel %vm456, %v1097, %v1101
    %v1104 = vshrl.u32 %v1023, 16
    %v1106 = vrot.slane %v1104, 4
    %v1107 = vshll.u32 %v1023, 16
    %v1109 = vrot.slane %v1107, 5
    %v1110 = vor.u32 %v1106, %v1109
    %v1111 = vrot.slane %v1110, 4
    %v1113 = vshll.u32 %v1024, 16
    %v1115 = vrot.slane %v1113, 5
    %v1116 = vsel %vm456, %v1111, %v1115
    %v1118 = vshrl.u32 %v1025, 16
    %v1120 = vrot.slane %v1118, 4
    %v1121 = vshll.u32 %v1025, 16
    %v1123 = vrot.slane %v1121, 5
    %v1124 = vor.u32 %v1120, %v1123
    %v1125 = vrot.slane %v1124, 4
    %v1127 = vshll.u32 %v1026, 16
    %v1129 = vrot.slane %v1127, 5
    %v1130 = vsel %vm456, %v1125, %v1129
    %v1132 = vshrl.u32 %v1027, 16
    %v1134 = vrot.slane %v1132, 4
    %v1135 = vshll.u32 %v1027, 16
    %v1137 = vrot.slane %v1135, 5
    %v1138 = vor.u32 %v1134, %v1137
    %v1139 = vrot.slane %v1138, 4
    %v1141 = vshll.u32 %v1028, 16
    %v1143 = vrot.slane %v1141, 5
    %v1144 = vsel %vm456, %v1139, %v1143
    %v1146 = vshrl.u32 %v1029, 16
    %v1148 = vrot.slane %v1146, 4
    %v1149 = vshll.u32 %v1029, 16
    %v1151 = vrot.slane %v1149, 5
    %v1152 = vor.u32 %v1148, %v1151
    %v1153 = vrot.slane %v1152, 4
    %v1155 = vshll.u32 %v1030, 16
    %v1157 = vrot.slane %v1155, 5
    %v1158 = vsel %vm456, %v1153, %v1157
    %v1160 = vshrl.u32 %v1031, 16
    %v1162 = vrot.slane %v1160, 4
    %v1163 = vshll.u32 %v1031, 16
    %v1165 = vrot.slane %v1163, 5
    %v1166 = vor.u32 %v1162, %v1165
    %v1167 = vrot.slane %v1166, 4
    %v1169 = vshll.u32 %v1032, 16
    %v1171 = vrot.slane %v1169, 5
    %v1172 = vsel %vm456, %v1167, %v1171
    %v1174 = vshrl.u32 %v1033, 16
    %v1176 = vrot.slane %v1174, 4
    %v1177 = vshll.u32 %v1033, 16
    %v1179 = vrot.slane %v1177, 5
    %v1180 = vor.u32 %v1176, %v1179
    %v1181 = vrot.slane %v1180, 4
    %v1183 = vshll.u32 %v1034, 16
    %v1185 = vrot.slane %v1183, 5
    %v1186 = vsel %vm456, %v1181, %v1185
    %v1188 = vshrl.u32 %v1035, 16
    %v1190 = vrot.slane %v1188, 4
    %v1191 = vshll.u32 %v1035, 16
    %v1193 = vrot.slane %v1191, 5
    %v1194 = vor.u32 %v1190, %v1193
    %v1195 = vrot.slane %v1194, 4
    %v1197 = vshll.u32 %v1036, 16
    %v1199 = vrot.slane %v1197, 5
    %v1200 = vsel %vm456, %v1195, %v1199
    %v1202 = vshrl.u32 %v1037, 16
    %v1204 = vrot.slane %v1202, 4
    %v1205 = vshll.u32 %v1037, 16
    %v1207 = vrot.slane %v1205, 5
    %v1208 = vor.u32 %v1204, %v1207
    %v1209 = vrot.slane %v1208, 4
    %v1211 = vshll.u32 %v1038, 16
    %v1213 = vrot.slane %v1211, 5
    %v1214 = vsel %vm456, %v1209, %v1213
    %v1216 = vshrl.u32 %v1039, 16
    %v1218 = vrot.slane %v1216, 4
    %v1219 = vshll.u32 %v1039, 16
    %v1221 = vrot.slane %v1219, 5
    %v1222 = vor.u32 %v1218, %v1221
    %v1223 = vrot.slane %v1222, 4
    %v1225 = vshll.u32 %v1040, 16
    %v1227 = vrot.slane %v1225, 5
    %v1228 = vsel %vm456, %v1223, %v1227
    %v1230 = vshrl.u32 %v1041, 16
    %v1232 = vrot.slane %v1230, 4
    %v1233 = vshll.u32 %v1041, 16
    %v1235 = vrot.slane %v1233, 5
    %v1236 = vor.u32 %v1232, %v1235
    %v1237 = vrot.slane %v1236, 4
    %v1239 = vshll.u32 %v1042, 16
    %v1241 = vrot.slane %v1239, 5
    %v1242 = vsel %vm456, %v1237, %v1241
    %v1244 = vshrl.u32 %v1043, 16
    %v1246 = vrot.slane %v1244, 4
    %v1247 = vshll.u32 %v1043, 16
    %v1249 = vrot.slane %v1247, 5
    %v1250 = vor.u32 %v1246, %v1249
    %v1251 = vrot.slane %v1250, 4
    %v1253 = vshll.u32 %v1044, 16
    %v1255 = vrot.slane %v1253, 5
    %v1256 = vsel %vm456, %v1251, %v1255
    %v1258 = vshrl.u32 %v1045, 16
    %v1260 = vrot.slane %v1258, 4
    %v1261 = vshll.u32 %v1045, 16
    %v1263 = vrot.slane %v1261, 5
    %v1264 = vor.u32 %v1260, %v1263
    %v1265 = vrot.slane %v1264, 4
    %v1267 = vshll.u32 %v1046, 16
    %v1269 = vrot.slane %v1267, 5
    %v1270 = vsel %vm456, %v1265, %v1269
    %v1271 = vunpack.c.l.b16 %v1060
    %v1272 = vunpack.c.l.b16 %v1074
    %v1273 = vunpack.c.l.b16 %v1088
    %v1274 = vunpack.c.l.b16 %v1102
    %v1275 = vunpack.c.l.b16 %v1116
    %v1276 = vunpack.c.l.b16 %v1130
    %v1277 = vunpack.c.l.b16 %v1144
    %v1278 = vunpack.c.l.b16 %v1158
    %v1279 = vunpack.c.l.b16 %v1172
    %v1280 = vunpack.c.l.b16 %v1186
    %v1281 = vunpack.c.l.b16 %v1200
    %v1282 = vunpack.c.l.b16 %v1214
    %v1283 = vunpack.c.l.b16 %v1228
    %v1284 = vunpack.c.l.b16 %v1242
    %v1285 = vunpack.c.l.b16 %v1256
    %v1286 = vunpack.c.l.b16 %v1270
    %v1287 = vpack.c.b16 %v1272, %v1271
    %v1288 = vpack.c.b16 %v1274, %v1273
    %v1289 = vpack.c.b16 %v1276, %v1275
    %v1290 = vpack.c.b16 %v1278, %v1277
    %v1291 = vpack.c.b16 %v1280, %v1279
    %v1292 = vpack.c.b16 %v1282, %v1281
    %v1293 = vpack.c.b16 %v1284, %v1283
    %v1294 = vpack.c.b16 %v1286, %v1285
    %1295 = vrot.lane.b32.xlu0 %v1287, 16
    %v1296 = vpop.permute.xlu0 %1295
    %1297 = vrot.lane.b32.xlu0 %v1288, 16
    %v1298 = vpop.permute.xlu0 %1297
    %1299 = vrot.lane.b32.xlu0 %v1289, 16
    %v1300 = vpop.permute.xlu0 %1299
    %1301 = vrot.lane.b32.xlu0 %v1290, 16
    %v1302 = vpop.permute.xlu0 %1301
    %1303 = vrot.lane.b32.xlu0 %v1291, 16
    %v1304 = vpop.permute.xlu0 %1303
    %1305 = vrot.lane.b32.xlu0 %v1292, 16
    %v1306 = vpop.permute.xlu0 %1305
    %1307 = vrot.lane.b32.xlu0 %v1293, 16
    %v1308 = vpop.permute.xlu0 %1307
    %1309 = vrot.lane.b32.xlu0 %v1294, 16
    %v1310 = vpop.permute.xlu0 %1309
    %vm1319 = vcmask 162944
    %1320 = vst.msk [vmem:[#allocation3] sm:$0xff] %vm1319, %v1296
    %1321 = vst.msk [vmem:[#allocation3 + $0x8] sm:$0xff] %vm1319, %v1298
    %1322 = vst.msk [vmem:[#allocation3 + $0x10] sm:$0xff] %vm1319, %v1300
    %1323 = vst.msk [vmem:[#allocation3 + $0x18] sm:$0xff] %vm1319, %v1302
    %1324 = vst.msk [vmem:[#allocation3 + $0x20] sm:$0xff] %vm1319, %v1304
    %1325 = vst.msk [vmem:[#allocation3 + $0x28] sm:$0xff] %vm1319, %v1306
    %1326 = vst.msk [vmem:[#allocation3 + $0x30] sm:$0xff] %vm1319, %v1308
    %1327 = vst.msk [vmem:[#allocation3 + $0x38] sm:$0xff] %vm1319, %v1310
    %v1328 = vld [vmem:[%s246] sm:$0xe]
    %v1329 = vld [vmem:[%s246 + $0x4] sm:$0x1]
    %v1330 = vld [vmem:[%s246 + $0x8] sm:$0xe]
    %v1331 = vld [vmem:[%s246 + $0xc] sm:$0x1]
    %v1332 = vld [vmem:[%s246 + $0x10] sm:$0xe]
    %v1333 = vld [vmem:[%s246 + $0x14] sm:$0x1]
    %v1334 = vld [vmem:[%s246 + $0x18] sm:$0xe]
    %v1335 = vld [vmem:[%s246 + $0x1c] sm:$0x1]
    %v1336 = vld [vmem:[%s246 + $0x20] sm:$0xe]
    %v1337 = vld [vmem:[%s246 + $0x24] sm:$0x1]
    %v1338 = vld [vmem:[%s246 + $0x28] sm:$0xe]
    %v1339 = vld [vmem:[%s246 + $0x2c] sm:$0x1]
    %v1340 = vld [vmem:[%s246 + $0x30] sm:$0xe]
    %v1341 = vld [vmem:[%s246 + $0x34] sm:$0x1]
    %v1342 = vld [vmem:[%s246 + $0x38] sm:$0xe]
    %v1343 = vld [vmem:[%s246 + $0x3c] sm:$0x1]
    %v1344 = vld [vmem:[%s246 + $0x50] sm:$0xe]
    %v1345 = vld [vmem:[%s246 + $0x54] sm:$0x1]
    %v1346 = vld [vmem:[%s246 + $0x58] sm:$0xe]
    %v1347 = vld [vmem:[%s246 + $0x5c] sm:$0x1]
    %v1348 = vld [vmem:[%s246 + $0x60] sm:$0xe]
    %v1349 = vld [vmem:[%s246 + $0x64] sm:$0x1]
    %v1350 = vld [vmem:[%s246 + $0x68] sm:$0xe]
    %v1351 = vld [vmem:[%s246 + $0x6c] sm:$0x1]
    %v1352 = vld [vmem:[%s246 + $0x70] sm:$0xe]
    %v1353 = vld [vmem:[%s246 + $0x74] sm:$0x1]
    %v1354 = vld [vmem:[%s246 + $0x78] sm:$0xe]
    %v1355 = vld [vmem:[%s246 + $0x7c] sm:$0x1]
    %v1356 = vld [vmem:[%s246 + $0x80] sm:$0xe]
    %v1357 = vld [vmem:[%s246 + $0x84] sm:$0x1]
    %v1358 = vld [vmem:[%s246 + $0x88] sm:$0xe]
    %v1359 = vld [vmem:[%s246 + $0x8c] sm:$0x1]
    %v1392 = vrot.slane %v1328, 5
    %v1393 = vrot.slane %v1392, 4
    %v1394 = vrot.slane %v1329, 5
    %v1395 = vsel %vm804, %v1393, %v1394
    %v1396 = vrot.slane %v1330, 5
    %v1397 = vrot.slane %v1396, 4
    %v1398 = vrot.slane %v1331, 5
    %v1399 = vsel %vm804, %v1397, %v1398
    %v1400 = vrot.slane %v1332, 5
    %v1401 = vrot.slane %v1400, 4
    %v1402 = vrot.slane %v1333, 5
    %v1403 = vsel %vm804, %v1401, %v1402
    %v1404 = vrot.slane %v1334, 5
    %v1405 = vrot.slane %v1404, 4
    %v1406 = vrot.slane %v1335, 5
    %v1407 = vsel %vm804, %v1405, %v1406
    %v1408 = vrot.slane %v1336, 5
    %v1409 = vrot.slane %v1408, 4
    %v1410 = vrot.slane %v1337, 5
    %v1411 = vsel %vm804, %v1409, %v1410
    %v1412 = vrot.slane %v1338, 5
    %v1413 = vrot.slane %v1412, 4
    %v1414 = vrot.slane %v1339, 5
    %v1415 = vsel %vm804, %v1413, %v1414
    %v1416 = vrot.slane %v1340, 5
    %v1417 = vrot.slane %v1416, 4
    %v1418 = vrot.slane %v1341, 5
    %v1419 = vsel %vm804, %v1417, %v1418
    %v1420 = vrot.slane %v1342, 5
    %v1421 = vrot.slane %v1420, 4
    %v1422 = vrot.slane %v1343, 5
    %v1423 = vsel %vm804, %v1421, %v1422
    %v1424 = vrot.slane %v1344, 5
    %v1425 = vrot.slane %v1424, 4
    %v1426 = vrot.slane %v1345, 5
    %v1427 = vsel %vm804, %v1425, %v1426
    %v1428 = vrot.slane %v1346, 5
    %v1429 = vrot.slane %v1428, 4
    %v1430 = vrot.slane %v1347, 5
    %v1431 = vsel %vm804, %v1429, %v1430
    %v1432 = vrot.slane %v1348, 5
    %v1433 = vrot.slane %v1432, 4
    %v1434 = vrot.slane %v1349, 5
    %v1435 = vsel %vm804, %v1433, %v1434
    %v1436 = vrot.slane %v1350, 5
    %v1437 = vrot.slane %v1436, 4
    %v1438 = vrot.slane %v1351, 5
    %v1439 = vsel %vm804, %v1437, %v1438
    %v1440 = vrot.slane %v1352, 5
    %v1441 = vrot.slane %v1440, 4
    %v1442 = vrot.slane %v1353, 5
    %v1443 = vsel %vm804, %v1441, %v1442
    %v1444 = vrot.slane %v1354, 5
    %v1445 = vrot.slane %v1444, 4
    %v1446 = vrot.slane %v1355, 5
    %v1447 = vsel %vm804, %v1445, %v1446
    %v1448 = vrot.slane %v1356, 5
    %v1449 = vrot.slane %v1448, 4
    %v1450 = vrot.slane %v1357, 5
    %v1451 = vsel %vm804, %v1449, %v1450
    %v1452 = vrot.slane %v1358, 5
    %v1453 = vrot.slane %v1452, 4
    %v1454 = vrot.slane %v1359, 5
    %v1455 = vsel %vm804, %v1453, %v1454
    %v1456 = vunpack.c.l.b16 %v1395
    %v1457 = vunpack.c.l.b16 %v1399
    %v1458 = vunpack.c.l.b16 %v1403
    %v1459 = vunpack.c.l.b16 %v1407
    %v1460 = vunpack.c.l.b16 %v1411
    %v1461 = vunpack.c.l.b16 %v1415
    %v1462 = vunpack.c.l.b16 %v1419
    %v1463 = vunpack.c.l.b16 %v1423
    %v1464 = vunpack.c.l.b16 %v1427
    %v1465 = vunpack.c.l.b16 %v1431
    %v1466 = vunpack.c.l.b16 %v1435
    %v1467 = vunpack.c.l.b16 %v1439
    %v1468 = vunpack.c.l.b16 %v1443
    %v1469 = vunpack.c.l.b16 %v1447
    %v1470 = vunpack.c.l.b16 %v1451
    %v1471 = vunpack.c.l.b16 %v1455
    %v1472 = vpack.c.b16 %v1457, %v1456
    %v1473 = vpack.c.b16 %v1459, %v1458
    %v1474 = vpack.c.b16 %v1461, %v1460
    %v1475 = vpack.c.b16 %v1463, %v1462
    %v1476 = vpack.c.b16 %v1465, %v1464
    %v1477 = vpack.c.b16 %v1467, %v1466
    %v1478 = vpack.c.b16 %v1469, %v1468
    %v1479 = vpack.c.b16 %v1471, %v1470
    %1480 = vrot.lane.b32.xlu0 %v1472, 20
    %v1481 = vpop.permute.xlu0 %1480
    %1482 = vrot.lane.b32.xlu0 %v1473, 20
    %v1483 = vpop.permute.xlu0 %1482
    %1484 = vrot.lane.b32.xlu0 %v1474, 20
    %v1485 = vpop.permute.xlu0 %1484
    %1486 = vrot.lane.b32.xlu0 %v1475, 20
    %v1487 = vpop.permute.xlu0 %1486
    %1488 = vrot.lane.b32.xlu0 %v1476, 20
    %v1489 = vpop.permute.xlu0 %1488
    %1490 = vrot.lane.b32.xlu0 %v1477, 20
    %v1491 = vpop.permute.xlu0 %1490
    %1492 = vrot.lane.b32.xlu0 %v1478, 20
    %v1493 = vpop.permute.xlu0 %1492
    %1494 = vrot.lane.b32.xlu0 %v1479, 20
    %v1495 = vpop.permute.xlu0 %1494
    %vm1504 = vcmask 195744
    %1505 = vst.msk [vmem:[#allocation3] sm:$0xff] %vm1504, %v1481
    %1506 = vst.msk [vmem:[#allocation3 + $0x8] sm:$0xff] %vm1504, %v1483
    %1507 = vst.msk [vmem:[#allocation3 + $0x10] sm:$0xff] %vm1504, %v1485
    %1508 = vst.msk [vmem:[#allocation3 + $0x18] sm:$0xff] %vm1504, %v1487
    %1509 = vst.msk [vmem:[#allocation3 + $0x20] sm:$0xff] %vm1504, %v1489
    %1510 = vst.msk [vmem:[#allocation3 + $0x28] sm:$0xff] %vm1504, %v1491
    %1511 = vst.msk [vmem:[#allocation3 + $0x30] sm:$0xff] %vm1504, %v1493
    %1512 = vst.msk [vmem:[#allocation3 + $0x38] sm:$0xff] %vm1504, %v1495
    %s1513 = scalar_lea.vmem [#allocation2], 16
    %v1514 = vld [vmem:[%s1513] sm:$0xf]
    %v1515 = vld [vmem:[%s1513 + $0x8] sm:$0xf]
    %v1516 = vld [vmem:[%s1513 + $0x10] sm:$0xf]
    %v1517 = vld [vmem:[%s1513 + $0x18] sm:$0xf]
    %v1518 = vld [vmem:[%s1513 + $0x20] sm:$0xf]
    %v1519 = vld [vmem:[%s1513 + $0x28] sm:$0xf]
    %v1520 = vld [vmem:[%s1513 + $0x30] sm:$0xf]
    %v1521 = vld [vmem:[%s1513 + $0x38] sm:$0xf]
    %v1522 = vld [vmem:[%s1513 + $0x50] sm:$0xf]
    %v1523 = vld [vmem:[%s1513 + $0x58] sm:$0xf]
    %v1524 = vld [vmem:[%s1513 + $0x60] sm:$0xf]
    %v1525 = vld [vmem:[%s1513 + $0x68] sm:$0xf]
    %v1526 = vld [vmem:[%s1513 + $0x70] sm:$0xf]
    %v1527 = vld [vmem:[%s1513 + $0x78] sm:$0xf]
    %v1528 = vld [vmem:[%s1513 + $0x80] sm:$0xf]
    %v1529 = vld [vmem:[%s1513 + $0x88] sm:$0xf]
    %v1546 = vunpack.c.l.b16 %v1514
    %v1547 = vunpack.c.l.b16 %v1515
    %v1548 = vunpack.c.l.b16 %v1516
    %v1549 = vunpack.c.l.b16 %v1517
    %v1550 = vunpack.c.l.b16 %v1518
    %v1551 = vunpack.c.l.b16 %v1519
    %v1552 = vunpack.c.l.b16 %v1520
    %v1553 = vunpack.c.l.b16 %v1521
    %v1554 = vunpack.c.l.b16 %v1522
    %v1555 = vunpack.c.l.b16 %v1523
    %v1556 = vunpack.c.l.b16 %v1524
    %v1557 = vunpack.c.l.b16 %v1525
    %v1558 = vunpack.c.l.b16 %v1526
    %v1559 = vunpack.c.l.b16 %v1527
    %v1560 = vunpack.c.l.b16 %v1528
    %v1561 = vunpack.c.l.b16 %v1529
    %v1562 = vpack.c.b16 %v1547, %v1546
    %v1563 = vpack.c.b16 %v1549, %v1548
    %v1564 = vpack.c.b16 %v1551, %v1550
    %v1565 = vpack.c.b16 %v1553, %v1552
    %v1566 = vpack.c.b16 %v1555, %v1554
    %v1567 = vpack.c.b16 %v1557, %v1556
    %v1568 = vpack.c.b16 %v1559, %v1558
    %v1569 = vpack.c.b16 %v1561, %v1560
    %1570 = vrot.lane.b32.xlu0 %v1562, 24
    %v1571 = vpop.permute.xlu0 %1570
    %1572 = vrot.lane.b32.xlu0 %v1563, 24
    %v1573 = vpop.permute.xlu0 %1572
    %1574 = vrot.lane.b32.xlu0 %v1564, 24
    %v1575 = vpop.permute.xlu0 %1574
    %1576 = vrot.lane.b32.xlu0 %v1565, 24
    %v1577 = vpop.permute.xlu0 %1576
    %1578 = vrot.lane.b32.xlu0 %v1566, 24
    %v1579 = vpop.permute.xlu0 %1578
    %1580 = vrot.lane.b32.xlu0 %v1567, 24
    %v1581 = vpop.permute.xlu0 %1580
    %1582 = vrot.lane.b32.xlu0 %v1568, 24
    %v1583 = vpop.permute.xlu0 %1582
    %1584 = vrot.lane.b32.xlu0 %v1569, 24
    %v1585 = vpop.permute.xlu0 %1584
    %vm1594 = vcmask 228544
    %1595 = vst.msk [vmem:[#allocation3] sm:$0xff] %vm1594, %v1571
    %1596 = vst.msk [vmem:[#allocation3 + $0x8] sm:$0xff] %vm1594, %v1573
    %1597 = vst.msk [vmem:[#allocation3 + $0x10] sm:$0xff] %vm1594, %v1575
    %1598 = vst.msk [vmem:[#allocation3 + $0x18] sm:$0xff] %vm1594, %v1577
    %1599 = vst.msk [vmem:[#allocation3 + $0x20] sm:$0xff] %vm1594, %v1579
    %1600 = vst.msk [vmem:[#allocation3 + $0x28] sm:$0xff] %vm1594, %v1581
    %1601 = vst.msk [vmem:[#allocation3 + $0x30] sm:$0xff] %vm1594, %v1583
    %1602 = vst.msk [vmem:[#allocation3 + $0x38] sm:$0xff] %vm1594, %v1585
    %v1603 = vld [vmem:[%s1513] sm:$0xf]
    %v1604 = vld [vmem:[%s1513 + $0x4] sm:$0x1]
    %v1605 = vld [vmem:[%s1513 + $0x8] sm:$0xf]
    %v1606 = vld [vmem:[%s1513 + $0xc] sm:$0x1]
    %v1607 = vld [vmem:[%s1513 + $0x10] sm:$0xf]
    %v1608 = vld [vmem:[%s1513 + $0x14] sm:$0x1]
    %v1609 = vld [vmem:[%s1513 + $0x18] sm:$0xf]
    %v1610 = vld [vmem:[%s1513 + $0x1c] sm:$0x1]
    %v1611 = vld [vmem:[%s1513 + $0x20] sm:$0xf]
    %v1612 = vld [vmem:[%s1513 + $0x24] sm:$0x1]
    %v1613 = vld [vmem:[%s1513 + $0x28] sm:$0xf]
    %v1614 = vld [vmem:[%s1513 + $0x2c] sm:$0x1]
    %v1615 = vld [vmem:[%s1513 + $0x30] sm:$0xf]
    %v1616 = vld [vmem:[%s1513 + $0x34] sm:$0x1]
    %v1617 = vld [vmem:[%s1513 + $0x38] sm:$0xf]
    %v1618 = vld [vmem:[%s1513 + $0x3c] sm:$0x1]
    %v1619 = vld [vmem:[%s1513 + $0x50] sm:$0xf]
    %v1620 = vld [vmem:[%s1513 + $0x54] sm:$0x1]
    %v1621 = vld [vmem:[%s1513 + $0x58] sm:$0xf]
    %v1622 = vld [vmem:[%s1513 + $0x5c] sm:$0x1]
    %v1623 = vld [vmem:[%s1513 + $0x60] sm:$0xf]
    %v1624 = vld [vmem:[%s1513 + $0x64] sm:$0x1]
    %v1625 = vld [vmem:[%s1513 + $0x68] sm:$0xf]
    %v1626 = vld [vmem:[%s1513 + $0x6c] sm:$0x1]
    %v1627 = vld [vmem:[%s1513 + $0x70] sm:$0xf]
    %v1628 = vld [vmem:[%s1513 + $0x74] sm:$0x1]
    %v1629 = vld [vmem:[%s1513 + $0x78] sm:$0xf]
    %v1630 = vld [vmem:[%s1513 + $0x7c] sm:$0x1]
    %v1631 = vld [vmem:[%s1513 + $0x80] sm:$0xf]
    %v1632 = vld [vmem:[%s1513 + $0x84] sm:$0x1]
    %v1633 = vld [vmem:[%s1513 + $0x88] sm:$0xf]
    %v1634 = vld [vmem:[%s1513 + $0x8c] sm:$0x1]
    %v1636 = vshrl.u32 %v1603, 16
    %v1638 = vrot.slane %v1636, 4
    %v1639 = vshll.u32 %v1603, 16
    %v1641 = vrot.slane %v1639, 5
    %v1642 = vor.u32 %v1638, %v1641
    %v1643 = vrot.slane %v1642, 4
    %v1645 = vshll.u32 %v1604, 16
    %v1647 = vrot.slane %v1645, 5
    %v1648 = vsel %vm456, %v1643, %v1647
    %v1650 = vshrl.u32 %v1605, 16
    %v1652 = vrot.slane %v1650, 4
    %v1653 = vshll.u32 %v1605, 16
    %v1655 = vrot.slane %v1653, 5
    %v1656 = vor.u32 %v1652, %v1655
    %v1657 = vrot.slane %v1656, 4
    %v1659 = vshll.u32 %v1606, 16
    %v1661 = vrot.slane %v1659, 5
    %v1662 = vsel %vm456, %v1657, %v1661
    %v1664 = vshrl.u32 %v1607, 16
    %v1666 = vrot.slane %v1664, 4
    %v1667 = vshll.u32 %v1607, 16
    %v1669 = vrot.slane %v1667, 5
    %v1670 = vor.u32 %v1666, %v1669
    %v1671 = vrot.slane %v1670, 4
    %v1673 = vshll.u32 %v1608, 16
    %v1675 = vrot.slane %v1673, 5
    %v1676 = vsel %vm456, %v1671, %v1675
    %v1678 = vshrl.u32 %v1609, 16
    %v1680 = vrot.slane %v1678, 4
    %v1681 = vshll.u32 %v1609, 16
    %v1683 = vrot.slane %v1681, 5
    %v1684 = vor.u32 %v1680, %v1683
    %v1685 = vrot.slane %v1684, 4
    %v1687 = vshll.u32 %v1610, 16
    %v1689 = vrot.slane %v1687, 5
    %v1690 = vsel %vm456, %v1685, %v1689
    %v1692 = vshrl.u32 %v1611, 16
    %v1694 = vrot.slane %v1692, 4
    %v1695 = vshll.u32 %v1611, 16
    %v1697 = vrot.slane %v1695, 5
    %v1698 = vor.u32 %v1694, %v1697
    %v1699 = vrot.slane %v1698, 4
    %v1701 = vshll.u32 %v1612, 16
    %v1703 = vrot.slane %v1701, 5
    %v1704 = vsel %vm456, %v1699, %v1703
    %v1706 = vshrl.u32 %v1613, 16
    %v1708 = vrot.slane %v1706, 4
    %v1709 = vshll.u32 %v1613, 16
    %v1711 = vrot.slane %v1709, 5
    %v1712 = vor.u32 %v1708, %v1711
    %v1713 = vrot.slane %v1712, 4
    %v1715 = vshll.u32 %v1614, 16
    %v1717 = vrot.slane %v1715, 5
    %v1718 = vsel %vm456, %v1713, %v1717
    %v1720 = vshrl.u32 %v1615, 16
    %v1722 = vrot.slane %v1720, 4
    %v1723 = vshll.u32 %v1615, 16
    %v1725 = vrot.slane %v1723, 5
    %v1726 = vor.u32 %v1722, %v1725
    %v1727 = vrot.slane %v1726, 4
    %v1729 = vshll.u32 %v1616, 16
    %v1731 = vrot.slane %v1729, 5
    %v1732 = vsel %vm456, %v1727, %v1731
    %v1734 = vshrl.u32 %v1617, 16
    %v1736 = vrot.slane %v1734, 4
    %v1737 = vshll.u32 %v1617, 16
    %v1739 = vrot.slane %v1737, 5
    %v1740 = vor.u32 %v1736, %v1739
    %v1741 = vrot.slane %v1740, 4
    %v1743 = vshll.u32 %v1618, 16
    %v1745 = vrot.slane %v1743, 5
    %v1746 = vsel %vm456, %v1741, %v1745
    %v1748 = vshrl.u32 %v1619, 16
    %v1750 = vrot.slane %v1748, 4
    %v1751 = vshll.u32 %v1619, 16
    %v1753 = vrot.slane %v1751, 5
    %v1754 = vor.u32 %v1750, %v1753
    %v1755 = vrot.slane %v1754, 4
    %v1757 = vshll.u32 %v1620, 16
    %v1759 = vrot.slane %v1757, 5
    %v1760 = vsel %vm456, %v1755, %v1759
    %v1762 = vshrl.u32 %v1621, 16
    %v1764 = vrot.slane %v1762, 4
    %v1765 = vshll.u32 %v1621, 16
    %v1767 = vrot.slane %v1765, 5
    %v1768 = vor.u32 %v1764, %v1767
    %v1769 = vrot.slane %v1768, 4
    %v1771 = vshll.u32 %v1622, 16
    %v1773 = vrot.slane %v1771, 5
    %v1774 = vsel %vm456, %v1769, %v1773
    %v1776 = vshrl.u32 %v1623, 16
    %v1778 = vrot.slane %v1776, 4
    %v1779 = vshll.u32 %v1623, 16
    %v1781 = vrot.slane %v1779, 5
    %v1782 = vor.u32 %v1778, %v1781
    %v1783 = vrot.slane %v1782, 4
    %v1785 = vshll.u32 %v1624, 16
    %v1787 = vrot.slane %v1785, 5
    %v1788 = vsel %vm456, %v1783, %v1787
    %v1790 = vshrl.u32 %v1625, 16
    %v1792 = vrot.slane %v1790, 4
    %v1793 = vshll.u32 %v1625, 16
    %v1795 = vrot.slane %v1793, 5
    %v1796 = vor.u32 %v1792, %v1795
    %v1797 = vrot.slane %v1796, 4
    %v1799 = vshll.u32 %v1626, 16
    %v1801 = vrot.slane %v1799, 5
    %v1802 = vsel %vm456, %v1797, %v1801
    %v1804 = vshrl.u32 %v1627, 16
    %v1806 = vrot.slane %v1804, 4
    %v1807 = vshll.u32 %v1627, 16
    %v1809 = vrot.slane %v1807, 5
    %v1810 = vor.u32 %v1806, %v1809
    %v1811 = vrot.slane %v1810, 4
    %v1813 = vshll.u32 %v1628, 16
    %v1815 = vrot.slane %v1813, 5
    %v1816 = vsel %vm456, %v1811, %v1815
    %v1818 = vshrl.u32 %v1629, 16
    %v1820 = vrot.slane %v1818, 4
    %v1821 = vshll.u32 %v1629, 16
    %v1823 = vrot.slane %v1821, 5
    %v1824 = vor.u32 %v1820, %v1823
    %v1825 = vrot.slane %v1824, 4
    %v1827 = vshll.u32 %v1630, 16
    %v1829 = vrot.slane %v1827, 5
    %v1830 = vsel %vm456, %v1825, %v1829
    %v1832 = vshrl.u32 %v1631, 16
    %v1834 = vrot.slane %v1832, 4
    %v1835 = vshll.u32 %v1631, 16
    %v1837 = vrot.slane %v1835, 5
    %v1838 = vor.u32 %v1834, %v1837
    %v1839 = vrot.slane %v1838, 4
    %v1841 = vshll.u32 %v1632, 16
    %v1843 = vrot.slane %v1841, 5
    %v1844 = vsel %vm456, %v1839, %v1843
    %v1846 = vshrl.u32 %v1633, 16
    %v1848 = vrot.slane %v1846, 4
    %v1849 = vshll.u32 %v1633, 16
    %v1851 = vrot.slane %v1849, 5
    %v1852 = vor.u32 %v1848, %v1851
    %v1853 = vrot.slane %v1852, 4
    %v1855 = vshll.u32 %v1634, 16
    %v1857 = vrot.slane %v1855, 5
    %v1858 = vsel %vm456, %v1853, %v1857
    %v1859 = vunpack.c.l.b16 %v1648
    %v1860 = vunpack.c.l.b16 %v1662
    %v1861 = vunpack.c.l.b16 %v1676
    %v1862 = vunpack.c.l.b16 %v1690
    %v1863 = vunpack.c.l.b16 %v1704
    %v1864 = vunpack.c.l.b16 %v1718
    %v1865 = vunpack.c.l.b16 %v1732
    %v1866 = vunpack.c.l.b16 %v1746
    %v1867 = vunpack.c.l.b16 %v1760
    %v1868 = vunpack.c.l.b16 %v1774
    %v1869 = vunpack.c.l.b16 %v1788
    %v1870 = vunpack.c.l.b16 %v1802
    %v1871 = vunpack.c.l.b16 %v1816
    %v1872 = vunpack.c.l.b16 %v1830
    %v1873 = vunpack.c.l.b16 %v1844
    %v1874 = vunpack.c.l.b16 %v1858
    %v1875 = vpack.c.b16 %v1860, %v1859
    %v1876 = vpack.c.b16 %v1862, %v1861
    %v1877 = vpack.c.b16 %v1864, %v1863
    %v1878 = vpack.c.b16 %v1866, %v1865
    %v1879 = vpack.c.b16 %v1868, %v1867
    %v1880 = vpack.c.b16 %v1870, %v1869
    %v1881 = vpack.c.b16 %v1872, %v1871
    %v1882 = vpack.c.b16 %v1874, %v1873
    %1883 = vrot.lane.b32.xlu0 %v1875, 28
    %v1884 = vpop.permute.xlu0 %1883
    %1885 = vrot.lane.b32.xlu0 %v1876, 28
    %v1886 = vpop.permute.xlu0 %1885
    %1887 = vrot.lane.b32.xlu0 %v1877, 28
    %v1888 = vpop.permute.xlu0 %1887
    %1889 = vrot.lane.b32.xlu0 %v1878, 28
    %v1890 = vpop.permute.xlu0 %1889
    %1891 = vrot.lane.b32.xlu0 %v1879, 28
    %v1892 = vpop.permute.xlu0 %1891
    %1893 = vrot.lane.b32.xlu0 %v1880, 28
    %v1894 = vpop.permute.xlu0 %1893
    %1895 = vrot.lane.b32.xlu0 %v1881, 28
    %v1896 = vpop.permute.xlu0 %1895
    %1897 = vrot.lane.b32.xlu0 %v1882, 28
    %v1898 = vpop.permute.xlu0 %1897
    %vm1907 = vcmask 261344
    %1908 = vst.msk [vmem:[#allocation3] sm:$0xff] %vm1907, %v1884
    %1909 = vst.msk [vmem:[#allocation3 + $0x8] sm:$0xff] %vm1907, %v1886
    %1910 = vst.msk [vmem:[#allocation3 + $0x10] sm:$0xff] %vm1907, %v1888
    %1911 = vst.msk [vmem:[#allocation3 + $0x18] sm:$0xff] %vm1907, %v1890
    %1912 = vst.msk [vmem:[#allocation3 + $0x20] sm:$0xff] %vm1907, %v1892
    %1913 = vst.msk [vmem:[#allocation3 + $0x28] sm:$0xff] %vm1907, %v1894
    %1914 = vst.msk [vmem:[#allocation3 + $0x30] sm:$0xff] %vm1907, %v1896
    %1915 = vst.msk [vmem:[#allocation3 + $0x38] sm:$0xff] %vm1907, %v1898
    %v1916 = vld [vmem:[%s1513] sm:$0xe]
    %v1917 = vld [vmem:[%s1513 + $0x4] sm:$0x1]
    %v1918 = vld [vmem:[%s1513 + $0x8] sm:$0xe]
    %v1919 = vld [vmem:[%s1513 + $0xc] sm:$0x1]
    %v1920 = vld [vmem:[%s1513 + $0x10] sm:$0xe]
    %v1921 = vld [vmem:[%s1513 + $0x14] sm:$0x1]
    %v1922 = vld [vmem:[%s1513 + $0x18] sm:$0xe]
    %v1923 = vld [vmem:[%s1513 + $0x1c] sm:$0x1]
    %v1924 = vld [vmem:[%s1513 + $0x20] sm:$0xe]
    %v1925 = vld [vmem:[%s1513 + $0x24] sm:$0x1]
    %v1926 = vld [vmem:[%s1513 + $0x28] sm:$0xe]
    %v1927 = vld [vmem:[%s1513 + $0x2c] sm:$0x1]
    %v1928 = vld [vmem:[%s1513 + $0x30] sm:$0xe]
    %v1929 = vld [vmem:[%s1513 + $0x34] sm:$0x1]
    %v1930 = vld [vmem:[%s1513 + $0x38] sm:$0xe]
    %v1931 = vld [vmem:[%s1513 + $0x3c] sm:$0x1]
    %v1932 = vld [vmem:[%s1513 + $0x50] sm:$0xe]
    %v1933 = vld [vmem:[%s1513 + $0x54] sm:$0x1]
    %v1934 = vld [vmem:[%s1513 + $0x58] sm:$0xe]
    %v1935 = vld [vmem:[%s1513 + $0x5c] sm:$0x1]
    %v1936 = vld [vmem:[%s1513 + $0x60] sm:$0xe]
    %v1937 = vld [vmem:[%s1513 + $0x64] sm:$0x1]
    %v1938 = vld [vmem:[%s1513 + $0x68] sm:$0xe]
    %v1939 = vld [vmem:[%s1513 + $0x6c] sm:$0x1]
    %v1940 = vld [vmem:[%s1513 + $0x70] sm:$0xe]
    %v1941 = vld [vmem:[%s1513 + $0x74] sm:$0x1]
    %v1942 = vld [vmem:[%s1513 + $0x78] sm:$0xe]
    %v1943 = vld [vmem:[%s1513 + $0x7c] sm:$0x1]
    %v1944 = vld [vmem:[%s1513 + $0x80] sm:$0xe]
    %v1945 = vld [vmem:[%s1513 + $0x84] sm:$0x1]
    %v1946 = vld [vmem:[%s1513 + $0x88] sm:$0xe]
    %v1947 = vld [vmem:[%s1513 + $0x8c] sm:$0x1]
    %v1980 = vrot.slane %v1916, 5
    %v1981 = vrot.slane %v1980, 4
    %v1982 = vrot.slane %v1917, 5
    %v1983 = vsel %vm804, %v1981, %v1982
    %v1984 = vrot.slane %v1918, 5
    %v1985 = vrot.slane %v1984, 4
    %v1986 = vrot.slane %v1919, 5
    %v1987 = vsel %vm804, %v1985, %v1986
    %v1988 = vrot.slane %v1920, 5
    %v1989 = vrot.slane %v1988, 4
    %v1990 = vrot.slane %v1921, 5
    %v1991 = vsel %vm804, %v1989, %v1990
    %v1992 = vrot.slane %v1922, 5
    %v1993 = vrot.slane %v1992, 4
    %v1994 = vrot.slane %v1923, 5
    %v1995 = vsel %vm804, %v1993, %v1994
    %v1996 = vrot.slane %v1924, 5
    %v1997 = vrot.slane %v1996, 4
    %v1998 = vrot.slane %v1925, 5
    %v1999 = vsel %vm804, %v1997, %v1998
    %v2000 = vrot.slane %v1926, 5
    %v2001 = vrot.slane %v2000, 4
    %v2002 = vrot.slane %v1927, 5
    %v2003 = vsel %vm804, %v2001, %v2002
    %v2004 = vrot.slane %v1928, 5
    %v2005 = vrot.slane %v2004, 4
    %v2006 = vrot.slane %v1929, 5
    %v2007 = vsel %vm804, %v2005, %v2006
    %v2008 = vrot.slane %v1930, 5
    %v2009 = vrot.slane %v2008, 4
    %v2010 = vrot.slane %v1931, 5
    %v2011 = vsel %vm804, %v2009, %v2010
    %v2012 = vrot.slane %v1932, 5
    %v2013 = vrot.slane %v2012, 4
    %v2014 = vrot.slane %v1933, 5
    %v2015 = vsel %vm804, %v2013, %v2014
    %v2016 = vrot.slane %v1934, 5
    %v2017 = vrot.slane %v2016, 4
    %v2018 = vrot.slane %v1935, 5
    %v2019 = vsel %vm804, %v2017, %v2018
    %v2020 = vrot.slane %v1936, 5
    %v2021 = vrot.slane %v2020, 4
    %v2022 = vrot.slane %v1937, 5
    %v2023 = vsel %vm804, %v2021, %v2022
    %v2024 = vrot.slane %v1938, 5
    %v2025 = vrot.slane %v2024, 4
    %v2026 = vrot.slane %v1939, 5
    %v2027 = vsel %vm804, %v2025, %v2026
    %v2028 = vrot.slane %v1940, 5
    %v2029 = vrot.slane %v2028, 4
    %v2030 = vrot.slane %v1941, 5
    %v2031 = vsel %vm804, %v2029, %v2030
    %v2032 = vrot.slane %v1942, 5
    %v2033 = vrot.slane %v2032, 4
    %v2034 = vrot.slane %v1943, 5
    %v2035 = vsel %vm804, %v2033, %v2034
    %v2036 = vrot.slane %v1944, 5
    %v2037 = vrot.slane %v2036, 4
    %v2038 = vrot.slane %v1945, 5
    %v2039 = vsel %vm804, %v2037, %v2038
    %v2040 = vrot.slane %v1946, 5
    %v2041 = vrot.slane %v2040, 4
    %v2042 = vrot.slane %v1947, 5
    %v2043 = vsel %vm804, %v2041, %v2042
    %v2044 = vunpack.c.l.b16 %v1983
    %v2045 = vunpack.c.l.b16 %v1987
    %v2046 = vunpack.c.l.b16 %v1991
    %v2047 = vunpack.c.l.b16 %v1995
    %v2048 = vunpack.c.l.b16 %v1999
    %v2049 = vunpack.c.l.b16 %v2003
    %v2050 = vunpack.c.l.b16 %v2007
    %v2051 = vunpack.c.l.b16 %v2011
    %v2052 = vunpack.c.l.b16 %v2015
    %v2053 = vunpack.c.l.b16 %v2019
    %v2054 = vunpack.c.l.b16 %v2023
    %v2055 = vunpack.c.l.b16 %v2027
    %v2056 = vunpack.c.l.b16 %v2031
    %v2057 = vunpack.c.l.b16 %v2035
    %v2058 = vunpack.c.l.b16 %v2039
    %v2059 = vunpack.c.l.b16 %v2043
    %v2060 = vpack.c.b16 %v2045, %v2044
    %v2061 = vpack.c.b16 %v2047, %v2046
    %v2062 = vpack.c.b16 %v2049, %v2048
    %v2063 = vpack.c.b16 %v2051, %v2050
    %v2064 = vpack.c.b16 %v2053, %v2052
    %v2065 = vpack.c.b16 %v2055, %v2054
    %v2066 = vpack.c.b16 %v2057, %v2056
    %v2067 = vpack.c.b16 %v2059, %v2058
    %2068 = vrot.lane.b32.xlu0 %v2060, 32
    %v2069 = vpop.permute.xlu0 %2068
    %2070 = vrot.lane.b32.xlu0 %v2061, 32
    %v2071 = vpop.permute.xlu0 %2070
    %2072 = vrot.lane.b32.xlu0 %v2062, 32
    %v2073 = vpop.permute.xlu0 %2072
    %2074 = vrot.lane.b32.xlu0 %v2063, 32
    %v2075 = vpop.permute.xlu0 %2074
    %2076 = vrot.lane.b32.xlu0 %v2064, 32
    %v2077 = vpop.permute.xlu0 %2076
    %2078 = vrot.lane.b32.xlu0 %v2065, 32
    %v2079 = vpop.permute.xlu0 %2078
    %2080 = vrot.lane.b32.xlu0 %v2066, 32
    %v2081 = vpop.permute.xlu0 %2080
    %2082 = vrot.lane.b32.xlu0 %v2067, 32
    %v2083 = vpop.permute.xlu0 %2082
    %vm2092 = vcmask 294144
    %2093 = vst.msk [vmem:[#allocation3] sm:$0xff] %vm2092, %v2069
    %2094 = vst.msk [vmem:[#allocation3 + $0x8] sm:$0xff] %vm2092, %v2071
    %2095 = vst.msk [vmem:[#allocation3 + $0x10] sm:$0xff] %vm2092, %v2073
    %2096 = vst.msk [vmem:[#allocation3 + $0x18] sm:$0xff] %vm2092, %v2075
    %2097 = vst.msk [vmem:[#allocation3 + $0x20] sm:$0xff] %vm2092, %v2077
    %2098 = vst.msk [vmem:[#allocation3 + $0x28] sm:$0xff] %vm2092, %v2079
    %2099 = vst.msk [vmem:[#allocation3 + $0x30] sm:$0xff] %vm2092, %v2081
    %2100 = vst.msk [vmem:[#allocation3 + $0x38] sm:$0xff] %vm2092, %v2083
    %v2101 = vld [vmem:[#allocation3] sm:$0xff]
    %v2102 = vld [vmem:[#allocation3 + $0x8] sm:$0xff]
    %v2103 = vld [vmem:[#allocation3 + $0x10] sm:$0xff]
    %v2104 = vld [vmem:[#allocation3 + $0x18] sm:$0xff]
    %v2105 = vld [vmem:[#allocation3 + $0x20] sm:$0xff]
    %v2106 = vld [vmem:[#allocation3 + $0x28] sm:$0xff]
    %v2107 = vld [vmem:[#allocation3 + $0x30] sm:$0xff]
    %v2108 = vld [vmem:[#allocation3 + $0x38] sm:$0xff]
    %v2109 = vld [vmem:[%s1] sm:$0xf]
    %v2110 = vld [vmem:[%s1 + $0x4] sm:$0xf]
    %v2111 = vld [vmem:[%s1 + $0x8] sm:$0xf]
    %v2112 = vld [vmem:[%s1 + $0xc] sm:$0xf]
    %v2113 = vld [vmem:[%s1 + $0x10] sm:$0x3]
    %v2114 = vld [vmem:[%s2] sm:$0x1]
    %v2116 = vlaneseq
    %v2117 = vshrl.u32 %v2116, 7
    %v2118 = vsub.s32 0, %v2117
    %v2119 = vrot.slane %v2114, %v2118
    %v2126 = vunpack.c.l.b16 %v2109
    %v2127 = vunpack.c.l.b16 %v2110
    %v2128 = vunpack.c.l.b16 %v2111
    %v2129 = vunpack.c.l.b16 %v2112
    %v2130 = vunpack.c.l.b16 %v2113
    %v2131 = vpack.c.b16 %v2127, %v2126
    %v2132 = vpack.c.b16 %v2129, %v2128
    %v2133 = vpack.c.b16 %v2130, %v2130
    %vm2136 = vcmask 293888
    %v2138 = vsel %vm2136, %v2101, 0
    %v2141 = vsel %vm2136, %v2102, 0
    %v2144 = vsel %vm2136, %v2103, 0
    %v2147 = vsel %vm2136, %v2104, 0
    %v2150 = vsel %vm2136, %v2105, 0
    %v2153 = vsel %vm2136, %v2106, 0
    %v2156 = vsel %vm2136, %v2107, 0
    %v2159 = vsel %vm2136, %v2108, 0
    %vm2161 = vcmask 1041408
    %v2163 = vsel %vm2161, %v2133, 0
    %2165 = vmatprep.subr.bf16.mxu0 0
    %2166 = vmatpush1.bf16.msra.mxu0 %v2131
    %2167 = vmatprep.subr.bf16.mxu0 0
    %2168 = vmatpush1.bf16.msra.mxu0 %v2132
    %2169 = vmatprep.subr.bf16.mxu0 0
    %2170 = vmatpush1.bf16.msra.mxu0 %v2163
    %2171 = vmatprep.subr.bf16.mxu0 0
    %2172 = vmatpush1.bf16.msra.mxu0 0
    %2173 = vmatprep.subr.bf16.mxu0 0
    %2174 = vmatpush1.bf16.msra.mxu0 0
    %2175 = vmatprep.subr.bf16.mxu0 0
    %2176 = vmatpush1.bf16.msra.mxu0 0
    %2177 = vmatprep.subr.bf16.mxu0 0
    %2178 = vmatpush1.bf16.msra.mxu0 0
    %2179 = vmatprep.subr.bf16.mxu0 0
    %2180 = vmatpush1.bf16.msra.mxu0 0
    %2181 = vmatprep.subr.bf16.mxu0 0
    %2182 = vmatpush1.bf16.msra.mxu0 0
    %2183 = vmatprep.subr.bf16.mxu0 0
    %2184 = vmatpush1.bf16.msra.mxu0 0
    %2185 = vmatprep.subr.bf16.mxu0 0
    %2186 = vmatpush1.bf16.msra.mxu0 0
    %2187 = vmatprep.subr.bf16.mxu0 0
    %2188 = vmatpush1.bf16.msra.mxu0 0
    %2189 = vmatprep.subr.bf16.mxu0 0
    %2190 = vmatpush1.bf16.msra.mxu0 0
    %2191 = vmatprep.subr.bf16.mxu0 0
    %2192 = vmatpush1.bf16.msra.mxu0 0
    %2193 = vmatprep.subr.bf16.mxu0 0
    %2194 = vmatpush1.bf16.msra.mxu0 0
    %2195 = vmatprep.subr.bf16.mxu0 0
    %2196 = vmatpush1.bf16.msra.mxu0 0
    %2197 = vmatprep.mubr.bf16.mxu0 0
    %2198 = vmatmul.mubr.bf16.gmra.mrb[0].mxu0 %v2138
    %v2199 = vpop.f32.mrb[0].mxu0
    %v2200 = vadd.f32 %v2119, %v2199
    %v2201 = vpop.f32.mrb[0].mxu0
    %v2202 = vpop.f32.mrb[0].mxu0
    %v2203 = vadd.f32 %v2119, %v2202
    %v2204 = vpop.f32.mrb[0].mxu0
    %2205 = vmatprep.mubr.bf16.mxu0 0
    %2206 = vmatmul.mubr.bf16.gmra.mrb[0].mxu0 %v2141
    %v2207 = vpop.f32.mrb[0].mxu0
    %v2208 = vadd.f32 %v2119, %v2207
    %v2209 = vpop.f32.mrb[0].mxu0
    %v2210 = vpop.f32.mrb[0].mxu0
    %v2211 = vadd.f32 %v2119, %v2210
    %v2212 = vpop.f32.mrb[0].mxu0
    %2213 = vmatprep.mubr.bf16.mxu0 0
    %2214 = vmatmul.mubr.bf16.gmra.mrb[0].mxu0 %v2144
    %v2215 = vpop.f32.mrb[0].mxu0
    %v2216 = vadd.f32 %v2119, %v2215
    %v2217 = vpop.f32.mrb[0].mxu0
    %v2218 = vpop.f32.mrb[0].mxu0
    %v2219 = vadd.f32 %v2119, %v2218
    %v2220 = vpop.f32.mrb[0].mxu0
    %2221 = vmatprep.mubr.bf16.mxu0 0
    %2222 = vmatmul.mubr.bf16.gmra.mrb[0].mxu0 %v2147
    %v2223 = vpop.f32.mrb[0].mxu0
    %v2224 = vadd.f32 %v2119, %v2223
    %v2225 = vpop.f32.mrb[0].mxu0
    %v2226 = vpop.f32.mrb[0].mxu0
    %v2227 = vadd.f32 %v2119, %v2226
    %v2228 = vpop.f32.mrb[0].mxu0
    %2229 = vmatprep.mubr.bf16.mxu0 0
    %2230 = vmatmul.mubr.bf16.gmra.mrb[0].mxu0 %v2150
    %v2231 = vpop.f32.mrb[0].mxu0
    %v2232 = vadd.f32 %v2119, %v2231
    %v2233 = vpop.f32.mrb[0].mxu0
    %v2234 = vpop.f32.mrb[0].mxu0
    %v2235 = vadd.f32 %v2119, %v2234
    %v2236 = vpop.f32.mrb[0].mxu0
    %2237 = vmatprep.mubr.bf16.mxu0 0
    %2238 = vmatmul.mubr.bf16.gmra.mrb[0].mxu0 %v2153
    %v2239 = vpop.f32.mrb[0].mxu0
    %v2240 = vadd.f32 %v2119, %v2239
    %v2241 = vpop.f32.mrb[0].mxu0
    %v2242 = vpop.f32.mrb[0].mxu0
    %v2243 = vadd.f32 %v2119, %v2242
    %v2244 = vpop.f32.mrb[0].mxu0
    %2245 = vmatprep.mubr.bf16.mxu0 0
    %2246 = vmatmul.mubr.bf16.gmra.mrb[0].mxu0 %v2156
    %v2247 = vpop.f32.mrb[0].mxu0
    %v2248 = vadd.f32 %v2119, %v2247
    %v2249 = vpop.f32.mrb[0].mxu0
    %v2250 = vpop.f32.mrb[0].mxu0
    %v2251 = vadd.f32 %v2119, %v2250
    %v2252 = vpop.f32.mrb[0].mxu0
    %2253 = vmatprep.mubr.bf16.mxu0 0
    %2254 = vmatmul.mubr.bf16.gmra.mrb[0].mxu0 %v2159
    %v2255 = vpop.f32.mrb[0].mxu0
    %v2256 = vadd.f32 %v2119, %v2255
    %v2257 = vpop.f32.mrb[0].mxu0
    %v2258 = vpop.f32.mrb[0].mxu0
    %v2259 = vadd.f32 %v2119, %v2258
    %v2260 = vpop.f32.mrb[0].mxu0
    %2261 = vdwg.mxu0
    %v2262 = vmax.f32 %v2200, 0.0
    %v2263 = vmax.f32 %v2203, 0.0
    %v2264 = vmax.f32 %v2208, 0.0
    %v2265 = vmax.f32 %v2211, 0.0
    %v2266 = vmax.f32 %v2216, 0.0
    %v2267 = vmax.f32 %v2219, 0.0
    %v2268 = vmax.f32 %v2224, 0.0
    %v2269 = vmax.f32 %v2227, 0.0
    %v2270 = vmax.f32 %v2232, 0.0
    %v2271 = vmax.f32 %v2235, 0.0
    %v2272 = vmax.f32 %v2240, 0.0
    %v2273 = vmax.f32 %v2243, 0.0
    %v2274 = vmax.f32 %v2248, 0.0
    %v2275 = vmax.f32 %v2251, 0.0
    %v2276 = vmax.f32 %v2256, 0.0
    %v2277 = vmax.f32 %v2259, 0.0
    %vm2278 = vcmask 257024
    %2279 = vst.msk [vmem:[#allocation4] sm:$0xf] %vm2278, 0
    %vm2280 = vcmask 253952
    %2281 = vst.msk [vmem:[#allocation4 + $0x4] sm:$0x1] %vm2280, 0
    %2282 = vst.msk [vmem:[#allocation4 + $0x8] sm:$0xf] %vm2278, 0
    %2283 = vst.msk [vmem:[#allocation4 + $0xc] sm:$0x1] %vm2280, 0
    %2284 = vst.msk [vmem:[#allocation4 + $0x10] sm:$0xf] %vm2278, 0
    %2285 = vst.msk [vmem:[#allocation4 + $0x14] sm:$0x1] %vm2280, 0
    %2286 = vst.msk [vmem:[#allocation4 + $0x18] sm:$0xf] %vm2278, 0
    %2287 = vst.msk [vmem:[#allocation4 + $0x1c] sm:$0x1] %vm2280, 0
    %2288 = vst.msk [vmem:[#allocation4 + $0x20] sm:$0xf] %vm2278, 0
    %2289 = vst.msk [vmem:[#allocation4 + $0x24] sm:$0x1] %vm2280, 0
    %2290 = vst.msk [vmem:[#allocation4 + $0x28] sm:$0xf] %vm2278, 0
    %2291 = vst.msk [vmem:[#allocation4 + $0x2c] sm:$0x1] %vm2280, 0
    %2292 = vst.msk [vmem:[#allocation4 + $0x30] sm:$0xf] %vm2278, 0
    %2293 = vst.msk [vmem:[#allocation4 + $0x34] sm:$0x1] %vm2280, 0
    %2294 = vst.msk [vmem:[#allocation4 + $0x38] sm:$0xf] %vm2278, 0
    %2295 = vst.msk [vmem:[#allocation4 + $0x3c] sm:$0x1] %vm2280, 0
    %2296 = vst.msk [vmem:[#allocation4 + $0x40] sm:$0xf] %vm2278, 0
    %2297 = vst.msk [vmem:[#allocation4 + $0x44] sm:$0x1] %vm2280, 0
    %2298 = vst.msk [vmem:[#allocation4 + $0x48] sm:$0xf] %vm2278, 0
    %2299 = vst.msk [vmem:[#allocation4 + $0x4c] sm:$0x1] %vm2280, 0
    %2300 = vst.msk [vmem:[#allocation4 + $0x50] sm:$0xf] %vm2278, 0
    %2301 = vst.msk [vmem:[#allocation4 + $0x54] sm:$0x1] %vm2280, 0
    %2302 = vst.msk [vmem:[#allocation4 + $0x58] sm:$0xf] %vm2278, 0
    %2303 = vst.msk [vmem:[#allocation4 + $0x5c] sm:$0x1] %vm2280, 0
    %2304 = vst.msk [vmem:[#allocation4 + $0x60] sm:$0xf] %vm2278, 0
    %2305 = vst.msk [vmem:[#allocation4 + $0x64] sm:$0x1] %vm2280, 0
    %2306 = vst.msk [vmem:[#allocation4 + $0x68] sm:$0xf] %vm2278, 0
    %2307 = vst.msk [vmem:[#allocation4 + $0x6c] sm:$0x1] %vm2280, 0
    %2308 = vst.msk [vmem:[#allocation4 + $0x70] sm:$0xf] %vm2278, 0
    %2309 = vst.msk [vmem:[#allocation4 + $0x74] sm:$0x1] %vm2280, 0
    %2310 = vst.msk [vmem:[#allocation4 + $0x78] sm:$0xf] %vm2278, 0
    %2311 = vst.msk [vmem:[#allocation4 + $0x7c] sm:$0x1] %vm2280, 0
    %2312 = vst.msk [vmem:[#allocation4 + $0x80] sm:$0xf] %vm2278, 0
    %2313 = vst.msk [vmem:[#allocation4 + $0x84] sm:$0x1] %vm2280, 0
    %2314 = vst.msk [vmem:[#allocation4 + $0x88] sm:$0xf] %vm2278, 0
    %2315 = vst.msk [vmem:[#allocation4 + $0x8c] sm:$0x1] %vm2280, 0
    %2316 = vst.msk [vmem:[#allocation4 + $0x90] sm:$0xf] %vm2278, 0
    %2317 = vst.msk [vmem:[#allocation4 + $0x94] sm:$0x1] %vm2280, 0
    %2318 = vst.msk [vmem:[#allocation4 + $0x98] sm:$0xf] %vm2278, 0
    %2319 = vst.msk [vmem:[#allocation4 + $0x9c] sm:$0x1] %vm2280, 0
    %v2320 = vpack.c.bf16 %v2262, %v2262
    %v2321 = vpack.c.bf16 %v2263, %v2263
    %v2322 = vpack.c.bf16 %v2264, %v2264
    %v2323 = vpack.c.bf16 %v2265, %v2265
    %v2324 = vpack.c.bf16 %v2266, %v2266
    %v2325 = vpack.c.bf16 %v2267, %v2267
    %v2326 = vpack.c.bf16 %v2268, %v2268
    %v2327 = vpack.c.bf16 %v2269, %v2269
    %v2328 = vpack.c.bf16 %v2270, %v2270
    %v2329 = vpack.c.bf16 %v2271, %v2271
    %v2330 = vpack.c.bf16 %v2272, %v2272
    %v2331 = vpack.c.bf16 %v2273, %v2273
    %v2332 = vpack.c.bf16 %v2274, %v2274
    %v2333 = vpack.c.bf16 %v2275, %v2275
    %v2334 = vpack.c.bf16 %v2276, %v2276
    %v2335 = vpack.c.bf16 %v2277, %v2277
    %v2352 = vunpack.c.l.b16 %v2320
    %v2353 = vunpack.c.l.b16 %v2321
    %v2354 = vunpack.c.l.b16 %v2322
    %v2355 = vunpack.c.l.b16 %v2323
    %v2356 = vunpack.c.l.b16 %v2324
    %v2357 = vunpack.c.l.b16 %v2325
    %v2358 = vunpack.c.l.b16 %v2326
    %v2359 = vunpack.c.l.b16 %v2327
    %v2360 = vunpack.c.l.b16 %v2328
    %v2361 = vunpack.c.l.b16 %v2329
    %v2362 = vunpack.c.l.b16 %v2330
    %v2363 = vunpack.c.l.b16 %v2331
    %v2364 = vunpack.c.l.b16 %v2332
    %v2365 = vunpack.c.l.b16 %v2333
    %v2366 = vunpack.c.l.b16 %v2334
    %v2367 = vunpack.c.l.b16 %v2335
    %v2368 = vpack.c.b16 %v2352, %v2352
    %v2369 = vpack.c.b16 %v2353, %v2353
    %v2370 = vpack.c.b16 %v2354, %v2354
    %v2371 = vpack.c.b16 %v2355, %v2355
    %v2372 = vpack.c.b16 %v2356, %v2356
    %v2373 = vpack.c.b16 %v2357, %v2357
    %v2374 = vpack.c.b16 %v2358, %v2358
    %v2375 = vpack.c.b16 %v2359, %v2359
    %v2376 = vpack.c.b16 %v2360, %v2360
    %v2377 = vpack.c.b16 %v2361, %v2361
    %v2378 = vpack.c.b16 %v2362, %v2362
    %v2379 = vpack.c.b16 %v2363, %v2363
    %v2380 = vpack.c.b16 %v2364, %v2364
    %v2381 = vpack.c.b16 %v2365, %v2365
    %v2382 = vpack.c.b16 %v2366, %v2366
    %v2383 = vpack.c.b16 %v2367, %v2367
    %v2385 = vshrl.u32 %v2368, 16
    %v2387 = vrot.slane %v2385, 7
    %v2388 = vshll.u32 %v2368, 16
    %v2390 = vor.u32 %v2387, %v2388
    %v2391 = vrot.slane %v2387, 4
    %v2393 = vshrl.u32 %v2369, 16
    %v2395 = vrot.slane %v2393, 7
    %v2396 = vshll.u32 %v2369, 16
    %v2398 = vor.u32 %v2395, %v2396
    %v2399 = vrot.slane %v2395, 4
    %v2401 = vshrl.u32 %v2370, 16
    %v2403 = vrot.slane %v2401, 7
    %v2404 = vshll.u32 %v2370, 16
    %v2406 = vor.u32 %v2403, %v2404
    %v2407 = vrot.slane %v2403, 4
    %v2409 = vshrl.u32 %v2371, 16
    %v2411 = vrot.slane %v2409, 7
    %v2412 = vshll.u32 %v2371, 16
    %v2414 = vor.u32 %v2411, %v2412
    %v2415 = vrot.slane %v2411, 4
    %v2417 = vshrl.u32 %v2372, 16
    %v2419 = vrot.slane %v2417, 7
    %v2420 = vshll.u32 %v2372, 16
    %v2422 = vor.u32 %v2419, %v2420
    %v2423 = vrot.slane %v2419, 4
    %v2425 = vshrl.u32 %v2373, 16
    %v2427 = vrot.slane %v2425, 7
    %v2428 = vshll.u32 %v2373, 16
    %v2430 = vor.u32 %v2427, %v2428
    %v2431 = vrot.slane %v2427, 4
    %v2433 = vshrl.u32 %v2374, 16
    %v2435 = vrot.slane %v2433, 7
    %v2436 = vshll.u32 %v2374, 16
    %v2438 = vor.u32 %v2435, %v2436
    %v2439 = vrot.slane %v2435, 4
    %v2441 = vshrl.u32 %v2375, 16
    %v2443 = vrot.slane %v2441, 7
    %v2444 = vshll.u32 %v2375, 16
    %v2446 = vor.u32 %v2443, %v2444
    %v2447 = vrot.slane %v2443, 4
    %v2449 = vshrl.u32 %v2376, 16
    %v2451 = vrot.slane %v2449, 7
    %v2452 = vshll.u32 %v2376, 16
    %v2454 = vor.u32 %v2451, %v2452
    %v2455 = vrot.slane %v2451, 4
    %v2457 = vshrl.u32 %v2377, 16
    %v2459 = vrot.slane %v2457, 7
    %v2460 = vshll.u32 %v2377, 16
    %v2462 = vor.u32 %v2459, %v2460
    %v2463 = vrot.slane %v2459, 4
    %v2465 = vshrl.u32 %v2378, 16
    %v2467 = vrot.slane %v2465, 7
    %v2468 = vshll.u32 %v2378, 16
    %v2470 = vor.u32 %v2467, %v2468
    %v2471 = vrot.slane %v2467, 4
    %v2473 = vshrl.u32 %v2379, 16
    %v2475 = vrot.slane %v2473, 7
    %v2476 = vshll.u32 %v2379, 16
    %v2478 = vor.u32 %v2475, %v2476
    %v2479 = vrot.slane %v2475, 4
    %v2481 = vshrl.u32 %v2380, 16
    %v2483 = vrot.slane %v2481, 7
    %v2484 = vshll.u32 %v2380, 16
    %v2486 = vor.u32 %v2483, %v2484
    %v2487 = vrot.slane %v2483, 4
    %v2489 = vshrl.u32 %v2381, 16
    %v2491 = vrot.slane %v2489, 7
    %v2492 = vshll.u32 %v2381, 16
    %v2494 = vor.u32 %v2491, %v2492
    %v2495 = vrot.slane %v2491, 4
    %v2497 = vshrl.u32 %v2382, 16
    %v2499 = vrot.slane %v2497, 7
    %v2500 = vshll.u32 %v2382, 16
    %v2502 = vor.u32 %v2499, %v2500
    %v2503 = vrot.slane %v2499, 4
    %v2505 = vshrl.u32 %v2383, 16
    %v2507 = vrot.slane %v2505, 7
    %v2508 = vshll.u32 %v2383, 16
    %v2510 = vor.u32 %v2507, %v2508
    %v2511 = vrot.slane %v2507, 4
    %s2544 = scalar_lea.vmem [#allocation4], 8
    %vm2545 = vcmask 257024
    %vm2546 = vmand %vm2545, %vm248
    %v2547 = vld [vmem:[%s2544] sm:$0xf]
    %v2548 = vsel %vm2546, %v2390, %v2547
    %2549 = vst [vmem:[%s2544] sm:$0xf] %v2548
    %vm2550 = vcmask 253952
    %vm2551 = vmand %vm2550, %vm254
    %v2552 = vld [vmem:[%s2544 + $0x4] sm:$0x1]
    %v2553 = vsel %vm2551, %v2391, %v2552
    %2554 = vst [vmem:[%s2544 + $0x4] sm:$0x1] %v2553
    %v2555 = vld [vmem:[%s2544 + $0x8] sm:$0xf]
    %v2556 = vsel %vm2546, %v2398, %v2555
    %2557 = vst [vmem:[%s2544 + $0x8] sm:$0xf] %v2556
    %v2558 = vld [vmem:[%s2544 + $0xc] sm:$0x1]
    %v2559 = vsel %vm2551, %v2399, %v2558
    %2560 = vst [vmem:[%s2544 + $0xc] sm:$0x1] %v2559
    %v2561 = vld [vmem:[%s2544 + $0x10] sm:$0xf]
    %v2562 = vsel %vm2546, %v2406, %v2561
    %2563 = vst [vmem:[%s2544 + $0x10] sm:$0xf] %v2562
    %v2564 = vld [vmem:[%s2544 + $0x14] sm:$0x1]
    %v2565 = vsel %vm2551, %v2407, %v2564
    %2566 = vst [vmem:[%s2544 + $0x14] sm:$0x1] %v2565
    %v2567 = vld [vmem:[%s2544 + $0x18] sm:$0xf]
    %v2568 = vsel %vm2546, %v2414, %v2567
    %2569 = vst [vmem:[%s2544 + $0x18] sm:$0xf] %v2568
    %v2570 = vld [vmem:[%s2544 + $0x1c] sm:$0x1]
    %v2571 = vsel %vm2551, %v2415, %v2570
    %2572 = vst [vmem:[%s2544 + $0x1c] sm:$0x1] %v2571
    %v2573 = vld [vmem:[%s2544 + $0x20] sm:$0xf]
    %v2574 = vsel %vm2546, %v2422, %v2573
    %2575 = vst [vmem:[%s2544 + $0x20] sm:$0xf] %v2574
    %v2576 = vld [vmem:[%s2544 + $0x24] sm:$0x1]
    %v2577 = vsel %vm2551, %v2423, %v2576
    %2578 = vst [vmem:[%s2544 + $0x24] sm:$0x1] %v2577
    %v2579 = vld [vmem:[%s2544 + $0x28] sm:$0xf]
    %v2580 = vsel %vm2546, %v2430, %v2579
    %2581 = vst [vmem:[%s2544 + $0x28] sm:$0xf] %v2580
    %v2582 = vld [vmem:[%s2544 + $0x2c] sm:$0x1]
    %v2583 = vsel %vm2551, %v2431, %v2582
    %2584 = vst [vmem:[%s2544 + $0x2c] sm:$0x1] %v2583
    %v2585 = vld [vmem:[%s2544 + $0x30] sm:$0xf]
    %v2586 = vsel %vm2546, %v2438, %v2585
    %2587 = vst [vmem:[%s2544 + $0x30] sm:$0xf] %v2586
    %v2588 = vld [vmem:[%s2544 + $0x34] sm:$0x1]
    %v2589 = vsel %vm2551, %v2439, %v2588
    %2590 = vst [vmem:[%s2544 + $0x34] sm:$0x1] %v2589
    %v2591 = vld [vmem:[%s2544 + $0x38] sm:$0xf]
    %v2592 = vsel %vm2546, %v2446, %v2591
    %2593 = vst [vmem:[%s2544 + $0x38] sm:$0xf] %v2592
    %v2594 = vld [vmem:[%s2544 + $0x3c] sm:$0x1]
    %v2595 = vsel %vm2551, %v2447, %v2594
    %2596 = vst [vmem:[%s2544 + $0x3c] sm:$0x1] %v2595
    %v2597 = vld [vmem:[%s2544 + $0x50] sm:$0xf]
    %v2598 = vsel %vm2546, %v2454, %v2597
    %2599 = vst [vmem:[%s2544 + $0x50] sm:$0xf] %v2598
    %v2600 = vld [vmem:[%s2544 + $0x54] sm:$0x1]
    %v2601 = vsel %vm2551, %v2455, %v2600
    %2602 = vst [vmem:[%s2544 + $0x54] sm:$0x1] %v2601
    %v2603 = vld [vmem:[%s2544 + $0x58] sm:$0xf]
    %v2604 = vsel %vm2546, %v2462, %v2603
    %2605 = vst [vmem:[%s2544 + $0x58] sm:$0xf] %v2604
    %v2606 = vld [vmem:[%s2544 + $0x5c] sm:$0x1]
    %v2607 = vsel %vm2551, %v2463, %v2606
    %2608 = vst [vmem:[%s2544 + $0x5c] sm:$0x1] %v2607
    %v2609 = vld [vmem:[%s2544 + $0x60] sm:$0xf]
    %v2610 = vsel %vm2546, %v2470, %v2609
    %2611 = vst [vmem:[%s2544 + $0x60] sm:$0xf] %v2610
    %v2612 = vld [vmem:[%s2544 + $0x64] sm:$0x1]
    %v2613 = vsel %vm2551, %v2471, %v2612
    %2614 = vst [vmem:[%s2544 + $0x64] sm:$0x1] %v2613
    %v2615 = vld [vmem:[%s2544 + $0x68] sm:$0xf]
    %v2616 = vsel %vm2546, %v2478, %v2615
    %2617 = vst [vmem:[%s2544 + $0x68] sm:$0xf] %v2616
    %v2618 = vld [vmem:[%s2544 + $0x6c] sm:$0x1]
    %v2619 = vsel %vm2551, %v2479, %v2618
    %2620 = vst [vmem:[%s2544 + $0x6c] sm:$0x1] %v2619
    %v2621 = vld [vmem:[%s2544 + $0x70] sm:$0xf]
    %v2622 = vsel %vm2546, %v2486, %v2621
    %2623 = vst [vmem:[%s2544 + $0x70] sm:$0xf] %v2622
    %v2624 = vld [vmem:[%s2544 + $0x74] sm:$0x1]
    %v2625 = vsel %vm2551, %v2487, %v2624
    %2626 = vst [vmem:[%s2544 + $0x74] sm:$0x1] %v2625
    %v2627 = vld [vmem:[%s2544 + $0x78] sm:$0xf]
    %v2628 = vsel %vm2546, %v2494, %v2627
    %2629 = vst [vmem:[%s2544 + $0x78] sm:$0xf] %v2628
    %v2630 = vld [vmem:[%s2544 + $0x7c] sm:$0x1]
    %v2631 = vsel %vm2551, %v2495, %v2630
    %2632 = vst [vmem:[%s2544 + $0x7c] sm:$0x1] %v2631
    %v2633 = vld [vmem:[%s2544 + $0x80] sm:$0xf]
    %v2634 = vsel %vm2546, %v2502, %v2633
    %2635 = vst [vmem:[%s2544 + $0x80] sm:$0xf] %v2634
    %v2636 = vld [vmem:[%s2544 + $0x84] sm:$0x1]
    %v2637 = vsel %vm2551, %v2503, %v2636
    %2638 = vst [vmem:[%s2544 + $0x84] sm:$0x1] %v2637
    %v2639 = vld [vmem:[%s2544 + $0x88] sm:$0xf]
    %v2640 = vsel %vm2546, %v2510, %v2639
    %2641 = vst [vmem:[%s2544 + $0x88] sm:$0xf] %v2640
    %v2642 = vld [vmem:[%s2544 + $0x8c] sm:$0x1]
    %v2643 = vsel %vm2551, %v2511, %v2642
    %2644 = vst [vmem:[%s2544 + $0x8c] sm:$0x1] %v2643
    %v2645 = vld [vmem:[#allocation4] sm:$0xf]
    %v2646 = vld [vmem:[#allocation4 + $0x8] sm:$0xf]
    %v2647 = vld [vmem:[#allocation4 + $0x10] sm:$0xf]
    %v2648 = vld [vmem:[#allocation4 + $0x18] sm:$0xf]
    %v2649 = vld [vmem:[#allocation4 + $0x20] sm:$0xf]
    %v2650 = vld [vmem:[#allocation4 + $0x28] sm:$0xf]
    %v2651 = vld [vmem:[#allocation4 + $0x30] sm:$0xf]
    %v2652 = vld [vmem:[#allocation4 + $0x38] sm:$0xf]
    %v2653 = vld [vmem:[#allocation4 + $0x50] sm:$0xf]
    %v2654 = vld [vmem:[#allocation4 + $0x58] sm:$0xf]
    %v2655 = vld [vmem:[#allocation4 + $0x60] sm:$0xf]
    %v2656 = vld [vmem:[#allocation4 + $0x68] sm:$0xf]
    %v2657 = vld [vmem:[#allocation4 + $0x70] sm:$0xf]
    %v2658 = vld [vmem:[#allocation4 + $0x78] sm:$0xf]
    %v2659 = vld [vmem:[#allocation4 + $0x80] sm:$0xf]
    %v2660 = vld [vmem:[#allocation4 + $0x88] sm:$0xf]
    %v2677 = vunpack.c.l.b16 %v2645
    %v2678 = vunpack.c.l.b16 %v2646
    %v2679 = vunpack.c.l.b16 %v2647
    %v2680 = vunpack.c.l.b16 %v2648
    %v2681 = vunpack.c.l.b16 %v2649
    %v2682 = vunpack.c.l.b16 %v2650
    %v2683 = vunpack.c.l.b16 %v2651
    %v2684 = vunpack.c.l.b16 %v2652
    %v2685 = vunpack.c.l.b16 %v2653
    %v2686 = vunpack.c.l.b16 %v2654
    %v2687 = vunpack.c.l.b16 %v2655
    %v2688 = vunpack.c.l.b16 %v2656
    %v2689 = vunpack.c.l.b16 %v2657
    %v2690 = vunpack.c.l.b16 %v2658
    %v2691 = vunpack.c.l.b16 %v2659
    %v2692 = vunpack.c.l.b16 %v2660
    %v2693 = vpack.c.b16 %v2678, %v2677
    %v2694 = vpack.c.b16 %v2680, %v2679
    %v2695 = vpack.c.b16 %v2682, %v2681
    %v2696 = vpack.c.b16 %v2684, %v2683
    %v2697 = vpack.c.b16 %v2686, %v2685
    %v2698 = vpack.c.b16 %v2688, %v2687
    %v2699 = vpack.c.b16 %v2690, %v2689
    %v2700 = vpack.c.b16 %v2692, %v2691
    %vm2709 = vcmask 261120
    %2710 = vst.msk [vmem:[#allocation5] sm:$0xff] %vm2709, %v2693
    %2711 = vst.msk [vmem:[#allocation5 + $0x18] sm:$0xff] %vm2709, %v2694
    %2712 = vst.msk [vmem:[#allocation5 + $0x30] sm:$0xff] %vm2709, %v2695
    %2713 = vst.msk [vmem:[#allocation5 + $0x48] sm:$0xff] %vm2709, %v2696
    %2714 = vst.msk [vmem:[#allocation5 + $0x60] sm:$0xff] %vm2709, %v2697
    %2715 = vst.msk [vmem:[#allocation5 + $0x78] sm:$0xff] %vm2709, %v2698
    %2716 = vst.msk [vmem:[#allocation5 + $0x90] sm:$0xff] %vm2709, %v2699
    %2717 = vst.msk [vmem:[#allocation5 + $0xa8] sm:$0xff] %vm2709, %v2700
    %v2718 = vld [vmem:[#allocation4] sm:$0xf]
    %v2719 = vld [vmem:[#allocation4 + $0x4] sm:$0x1]
    %v2720 = vld [vmem:[#allocation4 + $0x8] sm:$0xf]
    %v2721 = vld [vmem:[#allocation4 + $0xc] sm:$0x1]
    %v2722 = vld [vmem:[#allocation4 + $0x10] sm:$0xf]
    %v2723 = vld [vmem:[#allocation4 + $0x14] sm:$0x1]
    %v2724 = vld [vmem:[#allocation4 + $0x18] sm:$0xf]
    %v2725 = vld [vmem:[#allocation4 + $0x1c] sm:$0x1]
    %v2726 = vld [vmem:[#allocation4 + $0x20] sm:$0xf]
    %v2727 = vld [vmem:[#allocation4 + $0x24] sm:$0x1]
    %v2728 = vld [vmem:[#allocation4 + $0x28] sm:$0xf]
    %v2729 = vld [vmem:[#allocation4 + $0x2c] sm:$0x1]
    %v2730 = vld [vmem:[#allocation4 + $0x30] sm:$0xf]
    %v2731 = vld [vmem:[#allocation4 + $0x34] sm:$0x1]
    %v2732 = vld [vmem:[#allocation4 + $0x38] sm:$0xf]
    %v2733 = vld [vmem:[#allocation4 + $0x3c] sm:$0x1]
    %v2734 = vld [vmem:[#allocation4 + $0x50] sm:$0xf]
    %v2735 = vld [vmem:[#allocation4 + $0x54] sm:$0x1]
    %v2736 = vld [vmem:[#allocation4 + $0x58] sm:$0xf]
    %v2737 = vld [vmem:[#allocation4 + $0x5c] sm:$0x1]
    %v2738 = vld [vmem:[#allocation4 + $0x60] sm:$0xf]
    %v2739 = vld [vmem:[#allocation4 + $0x64] sm:$0x1]
    %v2740 = vld [vmem:[#allocation4 + $0x68] sm:$0xf]
    %v2741 = vld [vmem:[#allocation4 + $0x6c] sm:$0x1]
    %v2742 = vld [vmem:[#allocation4 + $0x70] sm:$0xf]
    %v2743 = vld [vmem:[#allocation4 + $0x74] sm:$0x1]
    %v2744 = vld [vmem:[#allocation4 + $0x78] sm:$0xf]
    %v2745 = vld [vmem:[#allocation4 + $0x7c] sm:$0x1]
    %v2746 = vld [vmem:[#allocation4 + $0x80] sm:$0xf]
    %v2747 = vld [vmem:[#allocation4 + $0x84] sm:$0x1]
    %v2748 = vld [vmem:[#allocation4 + $0x88] sm:$0xf]
    %v2749 = vld [vmem:[#allocation4 + $0x8c] sm:$0x1]
    %v2751 = vshrl.u32 %v2718, 16
    %v2753 = vrot.slane %v2751, 4
    %v2754 = vshll.u32 %v2718, 16
    %v2756 = vrot.slane %v2754, 5
    %v2757 = vor.u32 %v2753, %v2756
    %v2758 = vrot.slane %v2757, 4
    %v2760 = vshll.u32 %v2719, 16
    %v2762 = vrot.slane %v2760, 5
    %v2763 = vsel %vm456, %v2758, %v2762
    %v2765 = vshrl.u32 %v2720, 16
    %v2767 = vrot.slane %v2765, 4
    %v2768 = vshll.u32 %v2720, 16
    %v2770 = vrot.slane %v2768, 5
    %v2771 = vor.u32 %v2767, %v2770
    %v2772 = vrot.slane %v2771, 4
    %v2774 = vshll.u32 %v2721, 16
    %v2776 = vrot.slane %v2774, 5
    %v2777 = vsel %vm456, %v2772, %v2776
    %v2779 = vshrl.u32 %v2722, 16
    %v2781 = vrot.slane %v2779, 4
    %v2782 = vshll.u32 %v2722, 16
    %v2784 = vrot.slane %v2782, 5
    %v2785 = vor.u32 %v2781, %v2784
    %v2786 = vrot.slane %v2785, 4
    %v2788 = vshll.u32 %v2723, 16
    %v2790 = vrot.slane %v2788, 5
    %v2791 = vsel %vm456, %v2786, %v2790
    %v2793 = vshrl.u32 %v2724, 16
    %v2795 = vrot.slane %v2793, 4
    %v2796 = vshll.u32 %v2724, 16
    %v2798 = vrot.slane %v2796, 5
    %v2799 = vor.u32 %v2795, %v2798
    %v2800 = vrot.slane %v2799, 4
    %v2802 = vshll.u32 %v2725, 16
    %v2804 = vrot.slane %v2802, 5
    %v2805 = vsel %vm456, %v2800, %v2804
    %v2807 = vshrl.u32 %v2726, 16
    %v2809 = vrot.slane %v2807, 4
    %v2810 = vshll.u32 %v2726, 16
    %v2812 = vrot.slane %v2810, 5
    %v2813 = vor.u32 %v2809, %v2812
    %v2814 = vrot.slane %v2813, 4
    %v2816 = vshll.u32 %v2727, 16
    %v2818 = vrot.slane %v2816, 5
    %v2819 = vsel %vm456, %v2814, %v2818
    %v2821 = vshrl.u32 %v2728, 16
    %v2823 = vrot.slane %v2821, 4
    %v2824 = vshll.u32 %v2728, 16
    %v2826 = vrot.slane %v2824, 5
    %v2827 = vor.u32 %v2823, %v2826
    %v2828 = vrot.slane %v2827, 4
    %v2830 = vshll.u32 %v2729, 16
    %v2832 = vrot.slane %v2830, 5
    %v2833 = vsel %vm456, %v2828, %v2832
    %v2835 = vshrl.u32 %v2730, 16
    %v2837 = vrot.slane %v2835, 4
    %v2838 = vshll.u32 %v2730, 16
    %v2840 = vrot.slane %v2838, 5
    %v2841 = vor.u32 %v2837, %v2840
    %v2842 = vrot.slane %v2841, 4
    %v2844 = vshll.u32 %v2731, 16
    %v2846 = vrot.slane %v2844, 5
    %v2847 = vsel %vm456, %v2842, %v2846
    %v2849 = vshrl.u32 %v2732, 16
    %v2851 = vrot.slane %v2849, 4
    %v2852 = vshll.u32 %v2732, 16
    %v2854 = vrot.slane %v2852, 5
    %v2855 = vor.u32 %v2851, %v2854
    %v2856 = vrot.slane %v2855, 4
    %v2858 = vshll.u32 %v2733, 16
    %v2860 = vrot.slane %v2858, 5
    %v2861 = vsel %vm456, %v2856, %v2860
    %v2863 = vshrl.u32 %v2734, 16
    %v2865 = vrot.slane %v2863, 4
    %v2866 = vshll.u32 %v2734, 16
    %v2868 = vrot.slane %v2866, 5
    %v2869 = vor.u32 %v2865, %v2868
    %v2870 = vrot.slane %v2869, 4
    %v2872 = vshll.u32 %v2735, 16
    %v2874 = vrot.slane %v2872, 5
    %v2875 = vsel %vm456, %v2870, %v2874
    %v2877 = vshrl.u32 %v2736, 16
    %v2879 = vrot.slane %v2877, 4
    %v2880 = vshll.u32 %v2736, 16
    %v2882 = vrot.slane %v2880, 5
    %v2883 = vor.u32 %v2879, %v2882
    %v2884 = vrot.slane %v2883, 4
    %v2886 = vshll.u32 %v2737, 16
    %v2888 = vrot.slane %v2886, 5
    %v2889 = vsel %vm456, %v2884, %v2888
    %v2891 = vshrl.u32 %v2738, 16
    %v2893 = vrot.slane %v2891, 4
    %v2894 = vshll.u32 %v2738, 16
    %v2896 = vrot.slane %v2894, 5
    %v2897 = vor.u32 %v2893, %v2896
    %v2898 = vrot.slane %v2897, 4
    %v2900 = vshll.u32 %v2739, 16
    %v2902 = vrot.slane %v2900, 5
    %v2903 = vsel %vm456, %v2898, %v2902
    %v2905 = vshrl.u32 %v2740, 16
    %v2907 = vrot.slane %v2905, 4
    %v2908 = vshll.u32 %v2740, 16
    %v2910 = vrot.slane %v2908, 5
    %v2911 = vor.u32 %v2907, %v2910
    %v2912 = vrot.slane %v2911, 4
    %v2914 = vshll.u32 %v2741, 16
    %v2916 = vrot.slane %v2914, 5
    %v2917 = vsel %vm456, %v2912, %v2916
    %v2919 = vshrl.u32 %v2742, 16
    %v2921 = vrot.slane %v2919, 4
    %v2922 = vshll.u32 %v2742, 16
    %v2924 = vrot.slane %v2922, 5
    %v2925 = vor.u32 %v2921, %v2924
    %v2926 = vrot.slane %v2925, 4
    %v2928 = vshll.u32 %v2743, 16
    %v2930 = vrot.slane %v2928, 5
    %v2931 = vsel %vm456, %v2926, %v2930
    %v2933 = vshrl.u32 %v2744, 16
    %v2935 = vrot.slane %v2933, 4
    %v2936 = vshll.u32 %v2744, 16
    %v2938 = vrot.slane %v2936, 5
    %v2939 = vor.u32 %v2935, %v2938
    %v2940 = vrot.slane %v2939, 4
    %v2942 = vshll.u32 %v2745, 16
    %v2944 = vrot.slane %v2942, 5
    %v2945 = vsel %vm456, %v2940, %v2944
    %v2947 = vshrl.u32 %v2746, 16
    %v2949 = vrot.slane %v2947, 4
    %v2950 = vshll.u32 %v2746, 16
    %v2952 = vrot.slane %v2950, 5
    %v2953 = vor.u32 %v2949, %v2952
    %v2954 = vrot.slane %v2953, 4
    %v2956 = vshll.u32 %v2747, 16
    %v2958 = vrot.slane %v2956, 5
    %v2959 = vsel %vm456, %v2954, %v2958
    %v2961 = vshrl.u32 %v2748, 16
    %v2963 = vrot.slane %v2961, 4
    %v2964 = vshll.u32 %v2748, 16
    %v2966 = vrot.slane %v2964, 5
    %v2967 = vor.u32 %v2963, %v2966
    %v2968 = vrot.slane %v2967, 4
    %v2970 = vshll.u32 %v2749, 16
    %v2972 = vrot.slane %v2970, 5
    %v2973 = vsel %vm456, %v2968, %v2972
    %v2974 = vunpack.c.l.b16 %v2763
    %v2975 = vunpack.c.l.b16 %v2777
    %v2976 = vunpack.c.l.b16 %v2791
    %v2977 = vunpack.c.l.b16 %v2805
    %v2978 = vunpack.c.l.b16 %v2819
    %v2979 = vunpack.c.l.b16 %v2833
    %v2980 = vunpack.c.l.b16 %v2847
    %v2981 = vunpack.c.l.b16 %v2861
    %v2982 = vunpack.c.l.b16 %v2875
    %v2983 = vunpack.c.l.b16 %v2889
    %v2984 = vunpack.c.l.b16 %v2903
    %v2985 = vunpack.c.l.b16 %v2917
    %v2986 = vunpack.c.l.b16 %v2931
    %v2987 = vunpack.c.l.b16 %v2945
    %v2988 = vunpack.c.l.b16 %v2959
    %v2989 = vunpack.c.l.b16 %v2973
    %v2990 = vpack.c.b16 %v2975, %v2974
    %v2991 = vpack.c.b16 %v2977, %v2976
    %v2992 = vpack.c.b16 %v2979, %v2978
    %v2993 = vpack.c.b16 %v2981, %v2980
    %v2994 = vpack.c.b16 %v2983, %v2982
    %v2995 = vpack.c.b16 %v2985, %v2984
    %v2996 = vpack.c.b16 %v2987, %v2986
    %v2997 = vpack.c.b16 %v2989, %v2988
    %2998 = vrot.lane.b32.xlu0 %v2990, 32
    %v2999 = vpop.permute.xlu0 %2998
    %3000 = vrot.lane.b32.xlu0 %v2991, 32
    %v3001 = vpop.permute.xlu0 %3000
    %3002 = vrot.lane.b32.xlu0 %v2992, 32
    %v3003 = vpop.permute.xlu0 %3002
    %3004 = vrot.lane.b32.xlu0 %v2993, 32
    %v3005 = vpop.permute.xlu0 %3004
    %3006 = vrot.lane.b32.xlu0 %v2994, 32
    %v3007 = vpop.permute.xlu0 %3006
    %3008 = vrot.lane.b32.xlu0 %v2995, 32
    %v3009 = vpop.permute.xlu0 %3008
    %3010 = vrot.lane.b32.xlu0 %v2996, 32
    %v3011 = vpop.permute.xlu0 %3010
    %3012 = vrot.lane.b32.xlu0 %v2997, 32
    %v3013 = vpop.permute.xlu0 %3012
    %vm3022 = vcmask 523520
    %3023 = vst.msk [vmem:[#allocation5] sm:$0xff] %vm3022, %v2999
    %3024 = vst.msk [vmem:[#allocation5 + $0x18] sm:$0xff] %vm3022, %v3001
    %3025 = vst.msk [vmem:[#allocation5 + $0x30] sm:$0xff] %vm3022, %v3003
    %3026 = vst.msk [vmem:[#allocation5 + $0x48] sm:$0xff] %vm3022, %v3005
    %3027 = vst.msk [vmem:[#allocation5 + $0x60] sm:$0xff] %vm3022, %v3007
    %3028 = vst.msk [vmem:[#allocation5 + $0x78] sm:$0xff] %vm3022, %v3009
    %3029 = vst.msk [vmem:[#allocation5 + $0x90] sm:$0xff] %vm3022, %v3011
    %3030 = vst.msk [vmem:[#allocation5 + $0xa8] sm:$0xff] %vm3022, %v3013
    %v3031 = vld [vmem:[#allocation4] sm:$0xe]
    %v3032 = vld [vmem:[#allocation4 + $0x4] sm:$0x1]
    %v3033 = vld [vmem:[#allocation4 + $0x8] sm:$0xe]
    %v3034 = vld [vmem:[#allocation4 + $0xc] sm:$0x1]
    %v3035 = vld [vmem:[#allocation4 + $0x10] sm:$0xe]
    %v3036 = vld [vmem:[#allocation4 + $0x14] sm:$0x1]
    %v3037 = vld [vmem:[#allocation4 + $0x18] sm:$0xe]
    %v3038 = vld [vmem:[#allocation4 + $0x1c] sm:$0x1]
    %v3039 = vld [vmem:[#allocation4 + $0x20] sm:$0xe]
    %v3040 = vld [vmem:[#allocation4 + $0x24] sm:$0x1]
    %v3041 = vld [vmem:[#allocation4 + $0x28] sm:$0xe]
    %v3042 = vld [vmem:[#allocation4 + $0x2c] sm:$0x1]
    %v3043 = vld [vmem:[#allocation4 + $0x30] sm:$0xe]
    %v3044 = vld [vmem:[#allocation4 + $0x34] sm:$0x1]
    %v3045 = vld [vmem:[#allocation4 + $0x38] sm:$0xe]
    %v3046 = vld [vmem:[#allocation4 + $0x3c] sm:$0x1]
    %v3047 = vld [vmem:[#allocation4 + $0x50] sm:$0xe]
    %v3048 = vld [vmem:[#allocation4 + $0x54] sm:$0x1]
    %v3049 = vld [vmem:[#allocation4 + $0x58] sm:$0xe]
    %v3050 = vld [vmem:[#allocation4 + $0x5c] sm:$0x1]
    %v3051 = vld [vmem:[#allocation4 + $0x60] sm:$0xe]
    %v3052 = vld [vmem:[#allocation4 + $0x64] sm:$0x1]
    %v3053 = vld [vmem:[#allocation4 + $0x68] sm:$0xe]
    %v3054 = vld [vmem:[#allocation4 + $0x6c] sm:$0x1]
    %v3055 = vld [vmem:[#allocation4 + $0x70] sm:$0xe]
    %v3056 = vld [vmem:[#allocation4 + $0x74] sm:$0x1]
    %v3057 = vld [vmem:[#allocation4 + $0x78] sm:$0xe]
    %v3058 = vld [vmem:[#allocation4 + $0x7c] sm:$0x1]
    %v3059 = vld [vmem:[#allocation4 + $0x80] sm:$0xe]
    %v3060 = vld [vmem:[#allocation4 + $0x84] sm:$0x1]
    %v3061 = vld [vmem:[#allocation4 + $0x88] sm:$0xe]
    %v3062 = vld [vmem:[#allocation4 + $0x8c] sm:$0x1]
    %v3095 = vrot.slane %v3031, 5
    %v3096 = vrot.slane %v3095, 4
    %v3097 = vrot.slane %v3032, 5
    %v3098 = vsel %vm804, %v3096, %v3097
    %v3099 = vrot.slane %v3033, 5
    %v3100 = vrot.slane %v3099, 4
    %v3101 = vrot.slane %v3034, 5
    %v3102 = vsel %vm804, %v3100, %v3101
    %v3103 = vrot.slane %v3035, 5
    %v3104 = vrot.slane %v3103, 4
    %v3105 = vrot.slane %v3036, 5
    %v3106 = vsel %vm804, %v3104, %v3105
    %v3107 = vrot.slane %v3037, 5
    %v3108 = vrot.slane %v3107, 4
    %v3109 = vrot.slane %v3038, 5
    %v3110 = vsel %vm804, %v3108, %v3109
    %v3111 = vrot.slane %v3039, 5
    %v3112 = vrot.slane %v3111, 4
    %v3113 = vrot.slane %v3040, 5
    %v3114 = vsel %vm804, %v3112, %v3113
    %v3115 = vrot.slane %v3041, 5
    %v3116 = vrot.slane %v3115, 4
    %v3117 = vrot.slane %v3042, 5
    %v3118 = vsel %vm804, %v3116, %v3117
    %v3119 = vrot.slane %v3043, 5
    %v3120 = vrot.slane %v3119, 4
    %v3121 = vrot.slane %v3044, 5
    %v3122 = vsel %vm804, %v3120, %v3121
    %v3123 = vrot.slane %v3045, 5
    %v3124 = vrot.slane %v3123, 4
    %v3125 = vrot.slane %v3046, 5
    %v3126 = vsel %vm804, %v3124, %v3125
    %v3127 = vrot.slane %v3047, 5
    %v3128 = vrot.slane %v3127, 4
    %v3129 = vrot.slane %v3048, 5
    %v3130 = vsel %vm804, %v3128, %v3129
    %v3131 = vrot.slane %v3049, 5
    %v3132 = vrot.slane %v3131, 4
    %v3133 = vrot.slane %v3050, 5
    %v3134 = vsel %vm804, %v3132, %v3133
    %v3135 = vrot.slane %v3051, 5
    %v3136 = vrot.slane %v3135, 4
    %v3137 = vrot.slane %v3052, 5
    %v3138 = vsel %vm804, %v3136, %v3137
    %v3139 = vrot.slane %v3053, 5
    %v3140 = vrot.slane %v3139, 4
    %v3141 = vrot.slane %v3054, 5
    %v3142 = vsel %vm804, %v3140, %v3141
    %v3143 = vrot.slane %v3055, 5
    %v3144 = vrot.slane %v3143, 4
    %v3145 = vrot.slane %v3056, 5
    %v3146 = vsel %vm804, %v3144, %v3145
    %v3147 = vrot.slane %v3057, 5
    %v3148 = vrot.slane %v3147, 4
    %v3149 = vrot.slane %v3058, 5
    %v3150 = vsel %vm804, %v3148, %v3149
    %v3151 = vrot.slane %v3059, 5
    %v3152 = vrot.slane %v3151, 4
    %v3153 = vrot.slane %v3060, 5
    %v3154 = vsel %vm804, %v3152, %v3153
    %v3155 = vrot.slane %v3061, 5
    %v3156 = vrot.slane %v3155, 4
    %v3157 = vrot.slane %v3062, 5
    %v3158 = vsel %vm804, %v3156, %v3157
    %v3159 = vunpack.c.l.b16 %v3098
    %v3160 = vunpack.c.l.b16 %v3102
    %v3161 = vunpack.c.l.b16 %v3106
    %v3162 = vunpack.c.l.b16 %v3110
    %v3163 = vunpack.c.l.b16 %v3114
    %v3164 = vunpack.c.l.b16 %v3118
    %v3165 = vunpack.c.l.b16 %v3122
    %v3166 = vunpack.c.l.b16 %v3126
    %v3167 = vunpack.c.l.b16 %v3130
    %v3168 = vunpack.c.l.b16 %v3134
    %v3169 = vunpack.c.l.b16 %v3138
    %v3170 = vunpack.c.l.b16 %v3142
    %v3171 = vunpack.c.l.b16 %v3146
    %v3172 = vunpack.c.l.b16 %v3150
    %v3173 = vunpack.c.l.b16 %v3154
    %v3174 = vunpack.c.l.b16 %v3158
    %v3175 = vpack.c.b16 %v3160, %v3159
    %v3176 = vpack.c.b16 %v3162, %v3161
    %v3177 = vpack.c.b16 %v3164, %v3163
    %v3178 = vpack.c.b16 %v3166, %v3165
    %v3179 = vpack.c.b16 %v3168, %v3167
    %v3180 = vpack.c.b16 %v3170, %v3169
    %v3181 = vpack.c.b16 %v3172, %v3171
    %v3182 = vpack.c.b16 %v3174, %v3173
    %3183 = vrot.lane.b32.xlu0 %v3175, 64
    %v3184 = vpop.permute.xlu0 %3183
    %3185 = vrot.lane.b32.xlu0 %v3176, 64
    %v3186 = vpop.permute.xlu0 %3185
    %3187 = vrot.lane.b32.xlu0 %v3177, 64
    %v3188 = vpop.permute.xlu0 %3187
    %3189 = vrot.lane.b32.xlu0 %v3178, 64
    %v3190 = vpop.permute.xlu0 %3189
    %3191 = vrot.lane.b32.xlu0 %v3179, 64
    %v3192 = vpop.permute.xlu0 %3191
    %3193 = vrot.lane.b32.xlu0 %v3180, 64
    %v3194 = vpop.permute.xlu0 %3193
    %3195 = vrot.lane.b32.xlu0 %v3181, 64
    %v3196 = vpop.permute.xlu0 %3195
    %3197 = vrot.lane.b32.xlu0 %v3182, 64
    %v3198 = vpop.permute.xlu0 %3197
    %vm3207 = vcmask 785920
    %3208 = vst.msk [vmem:[#allocation5] sm:$0xff] %vm3207, %v3184
    %3209 = vst.msk [vmem:[#allocation5 + $0x18] sm:$0xff] %vm3207, %v3186
    %3210 = vst.msk [vmem:[#allocation5 + $0x30] sm:$0xff] %vm3207, %v3188
    %3211 = vst.msk [vmem:[#allocation5 + $0x48] sm:$0xff] %vm3207, %v3190
    %3212 = vst.msk [vmem:[#allocation5 + $0x60] sm:$0xff] %vm3207, %v3192
    %3213 = vst.msk [vmem:[#allocation5 + $0x78] sm:$0xff] %vm3207, %v3194
    %3214 = vst.msk [vmem:[#allocation5 + $0x90] sm:$0xff] %vm3207, %v3196
    %3215 = vst.msk [vmem:[#allocation5 + $0xa8] sm:$0xff] %vm3207, %v3198
    %v3216 = vld [vmem:[%s2544] sm:$0xf]
    %v3217 = vld [vmem:[%s2544 + $0x8] sm:$0xf]
    %v3218 = vld [vmem:[%s2544 + $0x10] sm:$0xf]
    %v3219 = vld [vmem:[%s2544 + $0x18] sm:$0xf]
    %v3220 = vld [vmem:[%s2544 + $0x20] sm:$0xf]
    %v3221 = vld [vmem:[%s2544 + $0x28] sm:$0xf]
    %v3222 = vld [vmem:[%s2544 + $0x30] sm:$0xf]
    %v3223 = vld [vmem:[%s2544 + $0x38] sm:$0xf]
    %v3224 = vld [vmem:[%s2544 + $0x50] sm:$0xf]
    %v3225 = vld [vmem:[%s2544 + $0x58] sm:$0xf]
    %v3226 = vld [vmem:[%s2544 + $0x60] sm:$0xf]
    %v3227 = vld [vmem:[%s2544 + $0x68] sm:$0xf]
    %v3228 = vld [vmem:[%s2544 + $0x70] sm:$0xf]
    %v3229 = vld [vmem:[%s2544 + $0x78] sm:$0xf]
    %v3230 = vld [vmem:[%s2544 + $0x80] sm:$0xf]
    %v3231 = vld [vmem:[%s2544 + $0x88] sm:$0xf]
    %v3248 = vunpack.c.l.b16 %v3216
    %v3249 = vunpack.c.l.b16 %v3217
    %v3250 = vunpack.c.l.b16 %v3218
    %v3251 = vunpack.c.l.b16 %v3219
    %v3252 = vunpack.c.l.b16 %v3220
    %v3253 = vunpack.c.l.b16 %v3221
    %v3254 = vunpack.c.l.b16 %v3222
    %v3255 = vunpack.c.l.b16 %v3223
    %v3256 = vunpack.c.l.b16 %v3224
    %v3257 = vunpack.c.l.b16 %v3225
    %v3258 = vunpack.c.l.b16 %v3226
    %v3259 = vunpack.c.l.b16 %v3227
    %v3260 = vunpack.c.l.b16 %v3228
    %v3261 = vunpack.c.l.b16 %v3229
    %v3262 = vunpack.c.l.b16 %v3230
    %v3263 = vunpack.c.l.b16 %v3231
    %v3264 = vpack.c.b16 %v3249, %v3248
    %v3265 = vpack.c.b16 %v3251, %v3250
    %v3266 = vpack.c.b16 %v3253, %v3252
    %v3267 = vpack.c.b16 %v3255, %v3254
    %v3268 = vpack.c.b16 %v3257, %v3256
    %v3269 = vpack.c.b16 %v3259, %v3258
    %v3270 = vpack.c.b16 %v3261, %v3260
    %v3271 = vpack.c.b16 %v3263, %v3262
    %3272 = vrot.lane.b32.xlu0 %v3264, 96
    %v3273 = vpop.permute.xlu0 %3272
    %3274 = vrot.lane.b32.xlu0 %v3265, 96
    %v3275 = vpop.permute.xlu0 %3274
    %3276 = vrot.lane.b32.xlu0 %v3266, 96
    %v3277 = vpop.permute.xlu0 %3276
    %3278 = vrot.lane.b32.xlu0 %v3267, 96
    %v3279 = vpop.permute.xlu0 %3278
    %3280 = vrot.lane.b32.xlu0 %v3268, 96
    %v3281 = vpop.permute.xlu0 %3280
    %3282 = vrot.lane.b32.xlu0 %v3269, 96
    %v3283 = vpop.permute.xlu0 %3282
    %3284 = vrot.lane.b32.xlu0 %v3270, 96
    %v3285 = vpop.permute.xlu0 %3284
    %3286 = vrot.lane.b32.xlu0 %v3271, 96
    %v3287 = vpop.permute.xlu0 %3286
    %vm3296 = vcmask 1048320
    %3297 = vst.msk [vmem:[#allocation5] sm:$0xff] %vm3296, %v3273
    %3298 = vst.msk [vmem:[#allocation5 + $0x18] sm:$0xff] %vm3296, %v3275
    %3299 = vst.msk [vmem:[#allocation5 + $0x30] sm:$0xff] %vm3296, %v3277
    %3300 = vst.msk [vmem:[#allocation5 + $0x48] sm:$0xff] %vm3296, %v3279
    %3301 = vst.msk [vmem:[#allocation5 + $0x60] sm:$0xff] %vm3296, %v3281
    %3302 = vst.msk [vmem:[#allocation5 + $0x78] sm:$0xff] %vm3296, %v3283
    %3303 = vst.msk [vmem:[#allocation5 + $0x90] sm:$0xff] %vm3296, %v3285
    %3304 = vst.msk [vmem:[#allocation5 + $0xa8] sm:$0xff] %vm3296, %v3287
    %v3305 = vld [vmem:[%s2544] sm:$0xf]
    %v3306 = vld [vmem:[%s2544 + $0x4] sm:$0x1]
    %v3307 = vld [vmem:[%s2544 + $0x8] sm:$0xf]
    %v3308 = vld [vmem:[%s2544 + $0xc] sm:$0x1]
    %v3309 = vld [vmem:[%s2544 + $0x10] sm:$0xf]
    %v3310 = vld [vmem:[%s2544 + $0x14] sm:$0x1]
    %v3311 = vld [vmem:[%s2544 + $0x18] sm:$0xf]
    %v3312 = vld [vmem:[%s2544 + $0x1c] sm:$0x1]
    %v3313 = vld [vmem:[%s2544 + $0x20] sm:$0xf]
    %v3314 = vld [vmem:[%s2544 + $0x24] sm:$0x1]
    %v3315 = vld [vmem:[%s2544 + $0x28] sm:$0xf]
    %v3316 = vld [vmem:[%s2544 + $0x2c] sm:$0x1]
    %v3317 = vld [vmem:[%s2544 + $0x30] sm:$0xf]
    %v3318 = vld [vmem:[%s2544 + $0x34] sm:$0x1]
    %v3319 = vld [vmem:[%s2544 + $0x38] sm:$0xf]
    %v3320 = vld [vmem:[%s2544 + $0x3c] sm:$0x1]
    %v3321 = vld [vmem:[%s2544 + $0x50] sm:$0xf]
    %v3322 = vld [vmem:[%s2544 + $0x54] sm:$0x1]
    %v3323 = vld [vmem:[%s2544 + $0x58] sm:$0xf]
    %v3324 = vld [vmem:[%s2544 + $0x5c] sm:$0x1]
    %v3325 = vld [vmem:[%s2544 + $0x60] sm:$0xf]
    %v3326 = vld [vmem:[%s2544 + $0x64] sm:$0x1]
    %v3327 = vld [vmem:[%s2544 + $0x68] sm:$0xf]
    %v3328 = vld [vmem:[%s2544 + $0x6c] sm:$0x1]
    %v3329 = vld [vmem:[%s2544 + $0x70] sm:$0xf]
    %v3330 = vld [vmem:[%s2544 + $0x74] sm:$0x1]
    %v3331 = vld [vmem:[%s2544 + $0x78] sm:$0xf]
    %v3332 = vld [vmem:[%s2544 + $0x7c] sm:$0x1]
    %v3333 = vld [vmem:[%s2544 + $0x80] sm:$0xf]
    %v3334 = vld [vmem:[%s2544 + $0x84] sm:$0x1]
    %v3335 = vld [vmem:[%s2544 + $0x88] sm:$0xf]
    %v3336 = vld [vmem:[%s2544 + $0x8c] sm:$0x1]
    %v3338 = vshrl.u32 %v3305, 16
    %v3340 = vrot.slane %v3338, 4
    %v3341 = vshll.u32 %v3305, 16
    %v3343 = vrot.slane %v3341, 5
    %v3344 = vor.u32 %v3340, %v3343
    %v3345 = vrot.slane %v3344, 4
    %v3347 = vshll.u32 %v3306, 16
    %v3349 = vrot.slane %v3347, 5
    %v3350 = vsel %vm456, %v3345, %v3349
    %v3352 = vshrl.u32 %v3307, 16
    %v3354 = vrot.slane %v3352, 4
    %v3355 = vshll.u32 %v3307, 16
    %v3357 = vrot.slane %v3355, 5
    %v3358 = vor.u32 %v3354, %v3357
    %v3359 = vrot.slane %v3358, 4
    %v3361 = vshll.u32 %v3308, 16
    %v3363 = vrot.slane %v3361, 5
    %v3364 = vsel %vm456, %v3359, %v3363
    %v3366 = vshrl.u32 %v3309, 16
    %v3368 = vrot.slane %v3366, 4
    %v3369 = vshll.u32 %v3309, 16
    %v3371 = vrot.slane %v3369, 5
    %v3372 = vor.u32 %v3368, %v3371
    %v3373 = vrot.slane %v3372, 4
    %v3375 = vshll.u32 %v3310, 16
    %v3377 = vrot.slane %v3375, 5
    %v3378 = vsel %vm456, %v3373, %v3377
    %v3380 = vshrl.u32 %v3311, 16
    %v3382 = vrot.slane %v3380, 4
    %v3383 = vshll.u32 %v3311, 16
    %v3385 = vrot.slane %v3383, 5
    %v3386 = vor.u32 %v3382, %v3385
    %v3387 = vrot.slane %v3386, 4
    %v3389 = vshll.u32 %v3312, 16
    %v3391 = vrot.slane %v3389, 5
    %v3392 = vsel %vm456, %v3387, %v3391
    %v3394 = vshrl.u32 %v3313, 16
    %v3396 = vrot.slane %v3394, 4
    %v3397 = vshll.u32 %v3313, 16
    %v3399 = vrot.slane %v3397, 5
    %v3400 = vor.u32 %v3396, %v3399
    %v3401 = vrot.slane %v3400, 4
    %v3403 = vshll.u32 %v3314, 16
    %v3405 = vrot.slane %v3403, 5
    %v3406 = vsel %vm456, %v3401, %v3405
    %v3408 = vshrl.u32 %v3315, 16
    %v3410 = vrot.slane %v3408, 4
    %v3411 = vshll.u32 %v3315, 16
    %v3413 = vrot.slane %v3411, 5
    %v3414 = vor.u32 %v3410, %v3413
    %v3415 = vrot.slane %v3414, 4
    %v3417 = vshll.u32 %v3316, 16
    %v3419 = vrot.slane %v3417, 5
    %v3420 = vsel %vm456, %v3415, %v3419
    %v3422 = vshrl.u32 %v3317, 16
    %v3424 = vrot.slane %v3422, 4
    %v3425 = vshll.u32 %v3317, 16
    %v3427 = vrot.slane %v3425, 5
    %v3428 = vor.u32 %v3424, %v3427
    %v3429 = vrot.slane %v3428, 4
    %v3431 = vshll.u32 %v3318, 16
    %v3433 = vrot.slane %v3431, 5
    %v3434 = vsel %vm456, %v3429, %v3433
    %v3436 = vshrl.u32 %v3319, 16
    %v3438 = vrot.slane %v3436, 4
    %v3439 = vshll.u32 %v3319, 16
    %v3441 = vrot.slane %v3439, 5
    %v3442 = vor.u32 %v3438, %v3441
    %v3443 = vrot.slane %v3442, 4
    %v3445 = vshll.u32 %v3320, 16
    %v3447 = vrot.slane %v3445, 5
    %v3448 = vsel %vm456, %v3443, %v3447
    %v3450 = vshrl.u32 %v3321, 16
    %v3452 = vrot.slane %v3450, 4
    %v3453 = vshll.u32 %v3321, 16
    %v3455 = vrot.slane %v3453, 5
    %v3456 = vor.u32 %v3452, %v3455
    %v3457 = vrot.slane %v3456, 4
    %v3459 = vshll.u32 %v3322, 16
    %v3461 = vrot.slane %v3459, 5
    %v3462 = vsel %vm456, %v3457, %v3461
    %v3464 = vshrl.u32 %v3323, 16
    %v3466 = vrot.slane %v3464, 4
    %v3467 = vshll.u32 %v3323, 16
    %v3469 = vrot.slane %v3467, 5
    %v3470 = vor.u32 %v3466, %v3469
    %v3471 = vrot.slane %v3470, 4
    %v3473 = vshll.u32 %v3324, 16
    %v3475 = vrot.slane %v3473, 5
    %v3476 = vsel %vm456, %v3471, %v3475
    %v3478 = vshrl.u32 %v3325, 16
    %v3480 = vrot.slane %v3478, 4
    %v3481 = vshll.u32 %v3325, 16
    %v3483 = vrot.slane %v3481, 5
    %v3484 = vor.u32 %v3480, %v3483
    %v3485 = vrot.slane %v3484, 4
    %v3487 = vshll.u32 %v3326, 16
    %v3489 = vrot.slane %v3487, 5
    %v3490 = vsel %vm456, %v3485, %v3489
    %v3492 = vshrl.u32 %v3327, 16
    %v3494 = vrot.slane %v3492, 4
    %v3495 = vshll.u32 %v3327, 16
    %v3497 = vrot.slane %v3495, 5
    %v3498 = vor.u32 %v3494, %v3497
    %v3499 = vrot.slane %v3498, 4
    %v3501 = vshll.u32 %v3328, 16
    %v3503 = vrot.slane %v3501, 5
    %v3504 = vsel %vm456, %v3499, %v3503
    %v3506 = vshrl.u32 %v3329, 16
    %v3508 = vrot.slane %v3506, 4
    %v3509 = vshll.u32 %v3329, 16
    %v3511 = vrot.slane %v3509, 5
    %v3512 = vor.u32 %v3508, %v3511
    %v3513 = vrot.slane %v3512, 4
    %v3515 = vshll.u32 %v3330, 16
    %v3517 = vrot.slane %v3515, 5
    %v3518 = vsel %vm456, %v3513, %v3517
    %v3520 = vshrl.u32 %v3331, 16
    %v3522 = vrot.slane %v3520, 4
    %v3523 = vshll.u32 %v3331, 16
    %v3525 = vrot.slane %v3523, 5
    %v3526 = vor.u32 %v3522, %v3525
    %v3527 = vrot.slane %v3526, 4
    %v3529 = vshll.u32 %v3332, 16
    %v3531 = vrot.slane %v3529, 5
    %v3532 = vsel %vm456, %v3527, %v3531
    %v3534 = vshrl.u32 %v3333, 16
    %v3536 = vrot.slane %v3534, 4
    %v3537 = vshll.u32 %v3333, 16
    %v3539 = vrot.slane %v3537, 5
    %v3540 = vor.u32 %v3536, %v3539
    %v3541 = vrot.slane %v3540, 4
    %v3543 = vshll.u32 %v3334, 16
    %v3545 = vrot.slane %v3543, 5
    %v3546 = vsel %vm456, %v3541, %v3545
    %v3548 = vshrl.u32 %v3335, 16
    %v3550 = vrot.slane %v3548, 4
    %v3551 = vshll.u32 %v3335, 16
    %v3553 = vrot.slane %v3551, 5
    %v3554 = vor.u32 %v3550, %v3553
    %v3555 = vrot.slane %v3554, 4
    %v3557 = vshll.u32 %v3336, 16
    %v3559 = vrot.slane %v3557, 5
    %v3560 = vsel %vm456, %v3555, %v3559
    %v3561 = vunpack.c.l.b16 %v3350
    %v3562 = vunpack.c.l.b16 %v3364
    %v3563 = vunpack.c.l.b16 %v3378
    %v3564 = vunpack.c.l.b16 %v3392
    %v3565 = vunpack.c.l.b16 %v3406
    %v3566 = vunpack.c.l.b16 %v3420
    %v3567 = vunpack.c.l.b16 %v3434
    %v3568 = vunpack.c.l.b16 %v3448
    %v3569 = vunpack.c.l.b16 %v3462
    %v3570 = vunpack.c.l.b16 %v3476
    %v3571 = vunpack.c.l.b16 %v3490
    %v3572 = vunpack.c.l.b16 %v3504
    %v3573 = vunpack.c.l.b16 %v3518
    %v3574 = vunpack.c.l.b16 %v3532
    %v3575 = vunpack.c.l.b16 %v3546
    %v3576 = vunpack.c.l.b16 %v3560
    %v3577 = vpack.c.b16 %v3562, %v3561
    %v3578 = vpack.c.b16 %v3564, %v3563
    %v3579 = vpack.c.b16 %v3566, %v3565
    %v3580 = vpack.c.b16 %v3568, %v3567
    %v3581 = vpack.c.b16 %v3570, %v3569
    %v3582 = vpack.c.b16 %v3572, %v3571
    %v3583 = vpack.c.b16 %v3574, %v3573
    %v3584 = vpack.c.b16 %v3576, %v3575
    %3593 = vst.msk [vmem:[#allocation5 + $0x8] sm:$0xff] %vm2709, %v3577
    %3594 = vst.msk [vmem:[#allocation5 + $0x20] sm:$0xff] %vm2709, %v3578
    %3595 = vst.msk [vmem:[#allocation5 + $0x38] sm:$0xff] %vm2709, %v3579
    %3596 = vst.msk [vmem:[#allocation5 + $0x50] sm:$0xff] %vm2709, %v3580
    %3597 = vst.msk [vmem:[#allocation5 + $0x68] sm:$0xff] %vm2709, %v3581
    %3598 = vst.msk [vmem:[#allocation5 + $0x80] sm:$0xff] %vm2709, %v3582
    %3599 = vst.msk [vmem:[#allocation5 + $0x98] sm:$0xff] %vm2709, %v3583
    %3600 = vst.msk [vmem:[#allocation5 + $0xb0] sm:$0xff] %vm2709, %v3584
    %v3601 = vld [vmem:[%s2544] sm:$0xe]
    %v3602 = vld [vmem:[%s2544 + $0x4] sm:$0x1]
    %v3603 = vld [vmem:[%s2544 + $0x8] sm:$0xe]
    %v3604 = vld [vmem:[%s2544 + $0xc] sm:$0x1]
    %v3605 = vld [vmem:[%s2544 + $0x10] sm:$0xe]
    %v3606 = vld [vmem:[%s2544 + $0x14] sm:$0x1]
    %v3607 = vld [vmem:[%s2544 + $0x18] sm:$0xe]
    %v3608 = vld [vmem:[%s2544 + $0x1c] sm:$0x1]
    %v3609 = vld [vmem:[%s2544 + $0x20] sm:$0xe]
    %v3610 = vld [vmem:[%s2544 + $0x24] sm:$0x1]
    %v3611 = vld [vmem:[%s2544 + $0x28] sm:$0xe]
    %v3612 = vld [vmem:[%s2544 + $0x2c] sm:$0x1]
    %v3613 = vld [vmem:[%s2544 + $0x30] sm:$0xe]
    %v3614 = vld [vmem:[%s2544 + $0x34] sm:$0x1]
    %v3615 = vld [vmem:[%s2544 + $0x38] sm:$0xe]
    %v3616 = vld [vmem:[%s2544 + $0x3c] sm:$0x1]
    %v3617 = vld [vmem:[%s2544 + $0x50] sm:$0xe]
    %v3618 = vld [vmem:[%s2544 + $0x54] sm:$0x1]
    %v3619 = vld [vmem:[%s2544 + $0x58] sm:$0xe]
    %v3620 = vld [vmem:[%s2544 + $0x5c] sm:$0x1]
    %v3621 = vld [vmem:[%s2544 + $0x60] sm:$0xe]
    %v3622 = vld [vmem:[%s2544 + $0x64] sm:$0x1]
    %v3623 = vld [vmem:[%s2544 + $0x68] sm:$0xe]
    %v3624 = vld [vmem:[%s2544 + $0x6c] sm:$0x1]
    %v3625 = vld [vmem:[%s2544 + $0x70] sm:$0xe]
    %v3626 = vld [vmem:[%s2544 + $0x74] sm:$0x1]
    %v3627 = vld [vmem:[%s2544 + $0x78] sm:$0xe]
    %v3628 = vld [vmem:[%s2544 + $0x7c] sm:$0x1]
    %v3629 = vld [vmem:[%s2544 + $0x80] sm:$0xe]
    %v3630 = vld [vmem:[%s2544 + $0x84] sm:$0x1]
    %v3631 = vld [vmem:[%s2544 + $0x88] sm:$0xe]
    %v3632 = vld [vmem:[%s2544 + $0x8c] sm:$0x1]
    %v3665 = vrot.slane %v3601, 5
    %v3666 = vrot.slane %v3665, 4
    %v3667 = vrot.slane %v3602, 5
    %v3668 = vsel %vm804, %v3666, %v3667
    %v3669 = vrot.slane %v3603, 5
    %v3670 = vrot.slane %v3669, 4
    %v3671 = vrot.slane %v3604, 5
    %v3672 = vsel %vm804, %v3670, %v3671
    %v3673 = vrot.slane %v3605, 5
    %v3674 = vrot.slane %v3673, 4
    %v3675 = vrot.slane %v3606, 5
    %v3676 = vsel %vm804, %v3674, %v3675
    %v3677 = vrot.slane %v3607, 5
    %v3678 = vrot.slane %v3677, 4
    %v3679 = vrot.slane %v3608, 5
    %v3680 = vsel %vm804, %v3678, %v3679
    %v3681 = vrot.slane %v3609, 5
    %v3682 = vrot.slane %v3681, 4
    %v3683 = vrot.slane %v3610, 5
    %v3684 = vsel %vm804, %v3682, %v3683
    %v3685 = vrot.slane %v3611, 5
    %v3686 = vrot.slane %v3685, 4
    %v3687 = vrot.slane %v3612, 5
    %v3688 = vsel %vm804, %v3686, %v3687
    %v3689 = vrot.slane %v3613, 5
    %v3690 = vrot.slane %v3689, 4
    %v3691 = vrot.slane %v3614, 5
    %v3692 = vsel %vm804, %v3690, %v3691
    %v3693 = vrot.slane %v3615, 5
    %v3694 = vrot.slane %v3693, 4
    %v3695 = vrot.slane %v3616, 5
    %v3696 = vsel %vm804, %v3694, %v3695
    %v3697 = vrot.slane %v3617, 5
    %v3698 = vrot.slane %v3697, 4
    %v3699 = vrot.slane %v3618, 5
    %v3700 = vsel %vm804, %v3698, %v3699
    %v3701 = vrot.slane %v3619, 5
    %v3702 = vrot.slane %v3701, 4
    %v3703 = vrot.slane %v3620, 5
    %v3704 = vsel %vm804, %v3702, %v3703
    %v3705 = vrot.slane %v3621, 5
    %v3706 = vrot.slane %v3705, 4
    %v3707 = vrot.slane %v3622, 5
    %v3708 = vsel %vm804, %v3706, %v3707
    %v3709 = vrot.slane %v3623, 5
    %v3710 = vrot.slane %v3709, 4
    %v3711 = vrot.slane %v3624, 5
    %v3712 = vsel %vm804, %v3710, %v3711
    %v3713 = vrot.slane %v3625, 5
    %v3714 = vrot.slane %v3713, 4
    %v3715 = vrot.slane %v3626, 5
    %v3716 = vsel %vm804, %v3714, %v3715
    %v3717 = vrot.slane %v3627, 5
    %v3718 = vrot.slane %v3717, 4
    %v3719 = vrot.slane %v3628, 5
    %v3720 = vsel %vm804, %v3718, %v3719
    %v3721 = vrot.slane %v3629, 5
    %v3722 = vrot.slane %v3721, 4
    %v3723 = vrot.slane %v3630, 5
    %v3724 = vsel %vm804, %v3722, %v3723
    %v3725 = vrot.slane %v3631, 5
    %v3726 = vrot.slane %v3725, 4
    %v3727 = vrot.slane %v3632, 5
    %v3728 = vsel %vm804, %v3726, %v3727
    %v3729 = vunpack.c.l.b16 %v3668
    %v3730 = vunpack.c.l.b16 %v3672
    %v3731 = vunpack.c.l.b16 %v3676
    %v3732 = vunpack.c.l.b16 %v3680
    %v3733 = vunpack.c.l.b16 %v3684
    %v3734 = vunpack.c.l.b16 %v3688
    %v3735 = vunpack.c.l.b16 %v3692
    %v3736 = vunpack.c.l.b16 %v3696
    %v3737 = vunpack.c.l.b16 %v3700
    %v3738 = vunpack.c.l.b16 %v3704
    %v3739 = vunpack.c.l.b16 %v3708
    %v3740 = vunpack.c.l.b16 %v3712
    %v3741 = vunpack.c.l.b16 %v3716
    %v3742 = vunpack.c.l.b16 %v3720
    %v3743 = vunpack.c.l.b16 %v3724
    %v3744 = vunpack.c.l.b16 %v3728
    %v3745 = vpack.c.b16 %v3730, %v3729
    %v3746 = vpack.c.b16 %v3732, %v3731
    %v3747 = vpack.c.b16 %v3734, %v3733
    %v3748 = vpack.c.b16 %v3736, %v3735
    %v3749 = vpack.c.b16 %v3738, %v3737
    %v3750 = vpack.c.b16 %v3740, %v3739
    %v3751 = vpack.c.b16 %v3742, %v3741
    %v3752 = vpack.c.b16 %v3744, %v3743
    %3753 = vrot.lane.b32.xlu0 %v3745, 32
    %v3754 = vpop.permute.xlu0 %3753
    %3755 = vrot.lane.b32.xlu0 %v3746, 32
    %v3756 = vpop.permute.xlu0 %3755
    %3757 = vrot.lane.b32.xlu0 %v3747, 32
    %v3758 = vpop.permute.xlu0 %3757
    %3759 = vrot.lane.b32.xlu0 %v3748, 32
    %v3760 = vpop.permute.xlu0 %3759
    %3761 = vrot.lane.b32.xlu0 %v3749, 32
    %v3762 = vpop.permute.xlu0 %3761
    %3763 = vrot.lane.b32.xlu0 %v3750, 32
    %v3764 = vpop.permute.xlu0 %3763
    %3765 = vrot.lane.b32.xlu0 %v3751, 32
    %v3766 = vpop.permute.xlu0 %3765
    %3767 = vrot.lane.b32.xlu0 %v3752, 32
    %v3768 = vpop.permute.xlu0 %3767
    %3777 = vst.msk [vmem:[#allocation5 + $0x8] sm:$0xff] %vm3022, %v3754
    %3778 = vst.msk [vmem:[#allocation5 + $0x20] sm:$0xff] %vm3022, %v3756
    %3779 = vst.msk [vmem:[#allocation5 + $0x38] sm:$0xff] %vm3022, %v3758
    %3780 = vst.msk [vmem:[#allocation5 + $0x50] sm:$0xff] %vm3022, %v3760
    %3781 = vst.msk [vmem:[#allocation5 + $0x68] sm:$0xff] %vm3022, %v3762
    %3782 = vst.msk [vmem:[#allocation5 + $0x80] sm:$0xff] %vm3022, %v3764
    %3783 = vst.msk [vmem:[#allocation5 + $0x98] sm:$0xff] %vm3022, %v3766
    %3784 = vst.msk [vmem:[#allocation5 + $0xb0] sm:$0xff] %vm3022, %v3768
    %s3785 = scalar_lea.vmem [#allocation4], 16
    %v3786 = vld [vmem:[%s3785] sm:$0xf]
    %v3787 = vld [vmem:[%s3785 + $0x8] sm:$0xf]
    %v3788 = vld [vmem:[%s3785 + $0x10] sm:$0xf]
    %v3789 = vld [vmem:[%s3785 + $0x18] sm:$0xf]
    %v3790 = vld [vmem:[%s3785 + $0x20] sm:$0xf]
    %v3791 = vld [vmem:[%s3785 + $0x28] sm:$0xf]
    %v3792 = vld [vmem:[%s3785 + $0x30] sm:$0xf]
    %v3793 = vld [vmem:[%s3785 + $0x38] sm:$0xf]
    %v3794 = vld [vmem:[%s3785 + $0x50] sm:$0xf]
    %v3795 = vld [vmem:[%s3785 + $0x58] sm:$0xf]
    %v3796 = vld [vmem:[%s3785 + $0x60] sm:$0xf]
    %v3797 = vld [vmem:[%s3785 + $0x68] sm:$0xf]
    %v3798 = vld [vmem:[%s3785 + $0x70] sm:$0xf]
    %v3799 = vld [vmem:[%s3785 + $0x78] sm:$0xf]
    %v3800 = vld [vmem:[%s3785 + $0x80] sm:$0xf]
    %v3801 = vld [vmem:[%s3785 + $0x88] sm:$0xf]
    %v3818 = vunpack.c.l.b16 %v3786
    %v3819 = vunpack.c.l.b16 %v3787
    %v3820 = vunpack.c.l.b16 %v3788
    %v3821 = vunpack.c.l.b16 %v3789
    %v3822 = vunpack.c.l.b16 %v3790
    %v3823 = vunpack.c.l.b16 %v3791
    %v3824 = vunpack.c.l.b16 %v3792
    %v3825 = vunpack.c.l.b16 %v3793
    %v3826 = vunpack.c.l.b16 %v3794
    %v3827 = vunpack.c.l.b16 %v3795
    %v3828 = vunpack.c.l.b16 %v3796
    %v3829 = vunpack.c.l.b16 %v3797
    %v3830 = vunpack.c.l.b16 %v3798
    %v3831 = vunpack.c.l.b16 %v3799
    %v3832 = vunpack.c.l.b16 %v3800
    %v3833 = vunpack.c.l.b16 %v3801
    %v3834 = vpack.c.b16 %v3819, %v3818
    %v3835 = vpack.c.b16 %v3821, %v3820
    %v3836 = vpack.c.b16 %v3823, %v3822
    %v3837 = vpack.c.b16 %v3825, %v3824
    %v3838 = vpack.c.b16 %v3827, %v3826
    %v3839 = vpack.c.b16 %v3829, %v3828
    %v3840 = vpack.c.b16 %v3831, %v3830
    %v3841 = vpack.c.b16 %v3833, %v3832
    %3842 = vrot.lane.b32.xlu0 %v3834, 64
    %v3843 = vpop.permute.xlu0 %3842
    %3844 = vrot.lane.b32.xlu0 %v3835, 64
    %v3845 = vpop.permute.xlu0 %3844
    %3846 = vrot.lane.b32.xlu0 %v3836, 64
    %v3847 = vpop.permute.xlu0 %3846
    %3848 = vrot.lane.b32.xlu0 %v3837, 64
    %v3849 = vpop.permute.xlu0 %3848
    %3850 = vrot.lane.b32.xlu0 %v3838, 64
    %v3851 = vpop.permute.xlu0 %3850
    %3852 = vrot.lane.b32.xlu0 %v3839, 64
    %v3853 = vpop.permute.xlu0 %3852
    %3854 = vrot.lane.b32.xlu0 %v3840, 64
    %v3855 = vpop.permute.xlu0 %3854
    %3856 = vrot.lane.b32.xlu0 %v3841, 64
    %v3857 = vpop.permute.xlu0 %3856
    %3866 = vst.msk [vmem:[#allocation5 + $0x8] sm:$0xff] %vm3207, %v3843
    %3867 = vst.msk [vmem:[#allocation5 + $0x20] sm:$0xff] %vm3207, %v3845
    %3868 = vst.msk [vmem:[#allocation5 + $0x38] sm:$0xff] %vm3207, %v3847
    %3869 = vst.msk [vmem:[#allocation5 + $0x50] sm:$0xff] %vm3207, %v3849
    %3870 = vst.msk [vmem:[#allocation5 + $0x68] sm:$0xff] %vm3207, %v3851
    %3871 = vst.msk [vmem:[#allocation5 + $0x80] sm:$0xff] %vm3207, %v3853
    %3872 = vst.msk [vmem:[#allocation5 + $0x98] sm:$0xff] %vm3207, %v3855
    %3873 = vst.msk [vmem:[#allocation5 + $0xb0] sm:$0xff] %vm3207, %v3857
    %v3874 = vld [vmem:[%s3785] sm:$0xf]
    %v3875 = vld [vmem:[%s3785 + $0x4] sm:$0x1]
    %v3876 = vld [vmem:[%s3785 + $0x8] sm:$0xf]
    %v3877 = vld [vmem:[%s3785 + $0xc] sm:$0x1]
    %v3878 = vld [vmem:[%s3785 + $0x10] sm:$0xf]
    %v3879 = vld [vmem:[%s3785 + $0x14] sm:$0x1]
    %v3880 = vld [vmem:[%s3785 + $0x18] sm:$0xf]
    %v3881 = vld [vmem:[%s3785 + $0x1c] sm:$0x1]
    %v3882 = vld [vmem:[%s3785 + $0x20] sm:$0xf]
    %v3883 = vld [vmem:[%s3785 + $0x24] sm:$0x1]
    %v3884 = vld [vmem:[%s3785 + $0x28] sm:$0xf]
    %v3885 = vld [vmem:[%s3785 + $0x2c] sm:$0x1]
    %v3886 = vld [vmem:[%s3785 + $0x30] sm:$0xf]
    %v3887 = vld [vmem:[%s3785 + $0x34] sm:$0x1]
    %v3888 = vld [vmem:[%s3785 + $0x38] sm:$0xf]
    %v3889 = vld [vmem:[%s3785 + $0x3c] sm:$0x1]
    %v3890 = vld [vmem:[%s3785 + $0x50] sm:$0xf]
    %v3891 = vld [vmem:[%s3785 + $0x54] sm:$0x1]
    %v3892 = vld [vmem:[%s3785 + $0x58] sm:$0xf]
    %v3893 = vld [vmem:[%s3785 + $0x5c] sm:$0x1]
    %v3894 = vld [vmem:[%s3785 + $0x60] sm:$0xf]
    %v3895 = vld [vmem:[%s3785 + $0x64] sm:$0x1]
    %v3896 = vld [vmem:[%s3785 + $0x68] sm:$0xf]
    %v3897 = vld [vmem:[%s3785 + $0x6c] sm:$0x1]
    %v3898 = vld [vmem:[%s3785 + $0x70] sm:$0xf]
    %v3899 = vld [vmem:[%s3785 + $0x74] sm:$0x1]
    %v3900 = vld [vmem:[%s3785 + $0x78] sm:$0xf]
    %v3901 = vld [vmem:[%s3785 + $0x7c] sm:$0x1]
    %v3902 = vld [vmem:[%s3785 + $0x80] sm:$0xf]
    %v3903 = vld [vmem:[%s3785 + $0x84] sm:$0x1]
    %v3904 = vld [vmem:[%s3785 + $0x88] sm:$0xf]
    %v3905 = vld [vmem:[%s3785 + $0x8c] sm:$0x1]
    %v3907 = vshrl.u32 %v3874, 16
    %v3909 = vrot.slane %v3907, 4
    %v3910 = vshll.u32 %v3874, 16
    %v3912 = vrot.slane %v3910, 5
    %v3913 = vor.u32 %v3909, %v3912
    %v3914 = vrot.slane %v3913, 4
    %v3916 = vshll.u32 %v3875, 16
    %v3918 = vrot.slane %v3916, 5
    %v3919 = vsel %vm456, %v3914, %v3918
    %v3921 = vshrl.u32 %v3876, 16
    %v3923 = vrot.slane %v3921, 4
    %v3924 = vshll.u32 %v3876, 16
    %v3926 = vrot.slane %v3924, 5
    %v3927 = vor.u32 %v3923, %v3926
    %v3928 = vrot.slane %v3927, 4
    %v3930 = vshll.u32 %v3877, 16
    %v3932 = vrot.slane %v3930, 5
    %v3933 = vsel %vm456, %v3928, %v3932
    %v3935 = vshrl.u32 %v3878, 16
    %v3937 = vrot.slane %v3935, 4
    %v3938 = vshll.u32 %v3878, 16
    %v3940 = vrot.slane %v3938, 5
    %v3941 = vor.u32 %v3937, %v3940
    %v3942 = vrot.slane %v3941, 4
    %v3944 = vshll.u32 %v3879, 16
    %v3946 = vrot.slane %v3944, 5
    %v3947 = vsel %vm456, %v3942, %v3946
    %v3949 = vshrl.u32 %v3880, 16
    %v3951 = vrot.slane %v3949, 4
    %v3952 = vshll.u32 %v3880, 16
    %v3954 = vrot.slane %v3952, 5
    %v3955 = vor.u32 %v3951, %v3954
    %v3956 = vrot.slane %v3955, 4
    %v3958 = vshll.u32 %v3881, 16
    %v3960 = vrot.slane %v3958, 5
    %v3961 = vsel %vm456, %v3956, %v3960
    %v3963 = vshrl.u32 %v3882, 16
    %v3965 = vrot.slane %v3963, 4
    %v3966 = vshll.u32 %v3882, 16
    %v3968 = vrot.slane %v3966, 5
    %v3969 = vor.u32 %v3965, %v3968
    %v3970 = vrot.slane %v3969, 4
    %v3972 = vshll.u32 %v3883, 16
    %v3974 = vrot.slane %v3972, 5
    %v3975 = vsel %vm456, %v3970, %v3974
    %v3977 = vshrl.u32 %v3884, 16
    %v3979 = vrot.slane %v3977, 4
    %v3980 = vshll.u32 %v3884, 16
    %v3982 = vrot.slane %v3980, 5
    %v3983 = vor.u32 %v3979, %v3982
    %v3984 = vrot.slane %v3983, 4
    %v3986 = vshll.u32 %v3885, 16
    %v3988 = vrot.slane %v3986, 5
    %v3989 = vsel %vm456, %v3984, %v3988
    %v3991 = vshrl.u32 %v3886, 16
    %v3993 = vrot.slane %v3991, 4
    %v3994 = vshll.u32 %v3886, 16
    %v3996 = vrot.slane %v3994, 5
    %v3997 = vor.u32 %v3993, %v3996
    %v3998 = vrot.slane %v3997, 4
    %v4000 = vshll.u32 %v3887, 16
    %v4002 = vrot.slane %v4000, 5
    %v4003 = vsel %vm456, %v3998, %v4002
    %v4005 = vshrl.u32 %v3888, 16
    %v4007 = vrot.slane %v4005, 4
    %v4008 = vshll.u32 %v3888, 16
    %v4010 = vrot.slane %v4008, 5
    %v4011 = vor.u32 %v4007, %v4010
    %v4012 = vrot.slane %v4011, 4
    %v4014 = vshll.u32 %v3889, 16
    %v4016 = vrot.slane %v4014, 5
    %v4017 = vsel %vm456, %v4012, %v4016
    %v4019 = vshrl.u32 %v3890, 16
    %v4021 = vrot.slane %v4019, 4
    %v4022 = vshll.u32 %v3890, 16
    %v4024 = vrot.slane %v4022, 5
    %v4025 = vor.u32 %v4021, %v4024
    %v4026 = vrot.slane %v4025, 4
    %v4028 = vshll.u32 %v3891, 16
    %v4030 = vrot.slane %v4028, 5
    %v4031 = vsel %vm456, %v4026, %v4030
    %v4033 = vshrl.u32 %v3892, 16
    %v4035 = vrot.slane %v4033, 4
    %v4036 = vshll.u32 %v3892, 16
    %v4038 = vrot.slane %v4036, 5
    %v4039 = vor.u32 %v4035, %v4038
    %v4040 = vrot.slane %v4039, 4
    %v4042 = vshll.u32 %v3893, 16
    %v4044 = vrot.slane %v4042, 5
    %v4045 = vsel %vm456, %v4040, %v4044
    %v4047 = vshrl.u32 %v3894, 16
    %v4049 = vrot.slane %v4047, 4
    %v4050 = vshll.u32 %v3894, 16
    %v4052 = vrot.slane %v4050, 5
    %v4053 = vor.u32 %v4049, %v4052
    %v4054 = vrot.slane %v4053, 4
    %v4056 = vshll.u32 %v3895, 16
    %v4058 = vrot.slane %v4056, 5
    %v4059 = vsel %vm456, %v4054, %v4058
    %v4061 = vshrl.u32 %v3896, 16
    %v4063 = vrot.slane %v4061, 4
    %v4064 = vshll.u32 %v3896, 16
    %v4066 = vrot.slane %v4064, 5
    %v4067 = vor.u32 %v4063, %v4066
    %v4068 = vrot.slane %v4067, 4
    %v4070 = vshll.u32 %v3897, 16
    %v4072 = vrot.slane %v4070, 5
    %v4073 = vsel %vm456, %v4068, %v4072
    %v4075 = vshrl.u32 %v3898, 16
    %v4077 = vrot.slane %v4075, 4
    %v4078 = vshll.u32 %v3898, 16
    %v4080 = vrot.slane %v4078, 5
    %v4081 = vor.u32 %v4077, %v4080
    %v4082 = vrot.slane %v4081, 4
    %v4084 = vshll.u32 %v3899, 16
    %v4086 = vrot.slane %v4084, 5
    %v4087 = vsel %vm456, %v4082, %v4086
    %v4089 = vshrl.u32 %v3900, 16
    %v4091 = vrot.slane %v4089, 4
    %v4092 = vshll.u32 %v3900, 16
    %v4094 = vrot.slane %v4092, 5
    %v4095 = vor.u32 %v4091, %v4094
    %v4096 = vrot.slane %v4095, 4
    %v4098 = vshll.u32 %v3901, 16
    %v4100 = vrot.slane %v4098, 5
    %v4101 = vsel %vm456, %v4096, %v4100
    %v4103 = vshrl.u32 %v3902, 16
    %v4105 = vrot.slane %v4103, 4
    %v4106 = vshll.u32 %v3902, 16
    %v4108 = vrot.slane %v4106, 5
    %v4109 = vor.u32 %v4105, %v4108
    %v4110 = vrot.slane %v4109, 4
    %v4112 = vshll.u32 %v3903, 16
    %v4114 = vrot.slane %v4112, 5
    %v4115 = vsel %vm456, %v4110, %v4114
    %v4117 = vshrl.u32 %v3904, 16
    %v4119 = vrot.slane %v4117, 4
    %v4120 = vshll.u32 %v3904, 16
    %v4122 = vrot.slane %v4120, 5
    %v4123 = vor.u32 %v4119, %v4122
    %v4124 = vrot.slane %v4123, 4
    %v4126 = vshll.u32 %v3905, 16
    %v4128 = vrot.slane %v4126, 5
    %v4129 = vsel %vm456, %v4124, %v4128
    %v4130 = vunpack.c.l.b16 %v3919
    %v4131 = vunpack.c.l.b16 %v3933
    %v4132 = vunpack.c.l.b16 %v3947
    %v4133 = vunpack.c.l.b16 %v3961
    %v4134 = vunpack.c.l.b16 %v3975
    %v4135 = vunpack.c.l.b16 %v3989
    %v4136 = vunpack.c.l.b16 %v4003
    %v4137 = vunpack.c.l.b16 %v4017
    %v4138 = vunpack.c.l.b16 %v4031
    %v4139 = vunpack.c.l.b16 %v4045
    %v4140 = vunpack.c.l.b16 %v4059
    %v4141 = vunpack.c.l.b16 %v4073
    %v4142 = vunpack.c.l.b16 %v4087
    %v4143 = vunpack.c.l.b16 %v4101
    %v4144 = vunpack.c.l.b16 %v4115
    %v4145 = vunpack.c.l.b16 %v4129
    %v4146 = vpack.c.b16 %v4131, %v4130
    %v4147 = vpack.c.b16 %v4133, %v4132
    %v4148 = vpack.c.b16 %v4135, %v4134
    %v4149 = vpack.c.b16 %v4137, %v4136
    %v4150 = vpack.c.b16 %v4139, %v4138
    %v4151 = vpack.c.b16 %v4141, %v4140
    %v4152 = vpack.c.b16 %v4143, %v4142
    %v4153 = vpack.c.b16 %v4145, %v4144
    %4154 = vrot.lane.b32.xlu0 %v4146, 96
    %v4155 = vpop.permute.xlu0 %4154
    %4156 = vrot.lane.b32.xlu0 %v4147, 96
    %v4157 = vpop.permute.xlu0 %4156
    %4158 = vrot.lane.b32.xlu0 %v4148, 96
    %v4159 = vpop.permute.xlu0 %4158
    %4160 = vrot.lane.b32.xlu0 %v4149, 96
    %v4161 = vpop.permute.xlu0 %4160
    %4162 = vrot.lane.b32.xlu0 %v4150, 96
    %v4163 = vpop.permute.xlu0 %4162
    %4164 = vrot.lane.b32.xlu0 %v4151, 96
    %v4165 = vpop.permute.xlu0 %4164
    %4166 = vrot.lane.b32.xlu0 %v4152, 96
    %v4167 = vpop.permute.xlu0 %4166
    %4168 = vrot.lane.b32.xlu0 %v4153, 96
    %v4169 = vpop.permute.xlu0 %4168
    %4178 = vst.msk [vmem:[#allocation5 + $0x8] sm:$0xff] %vm3296, %v4155
    %4179 = vst.msk [vmem:[#allocation5 + $0x20] sm:$0xff] %vm3296, %v4157
    %4180 = vst.msk [vmem:[#allocation5 + $0x38] sm:$0xff] %vm3296, %v4159
    %4181 = vst.msk [vmem:[#allocation5 + $0x50] sm:$0xff] %vm3296, %v4161
    %4182 = vst.msk [vmem:[#allocation5 + $0x68] sm:$0xff] %vm3296, %v4163
    %4183 = vst.msk [vmem:[#allocation5 + $0x80] sm:$0xff] %vm3296, %v4165
    %4184 = vst.msk [vmem:[#allocation5 + $0x98] sm:$0xff] %vm3296, %v4167
    %4185 = vst.msk [vmem:[#allocation5 + $0xb0] sm:$0xff] %vm3296, %v4169
    %v4186 = vld [vmem:[%s3785] sm:$0xe]
    %v4187 = vld [vmem:[%s3785 + $0x4] sm:$0x1]
    %v4188 = vld [vmem:[%s3785 + $0x8] sm:$0xe]
    %v4189 = vld [vmem:[%s3785 + $0xc] sm:$0x1]
    %v4190 = vld [vmem:[%s3785 + $0x10] sm:$0xe]
    %v4191 = vld [vmem:[%s3785 + $0x14] sm:$0x1]
    %v4192 = vld [vmem:[%s3785 + $0x18] sm:$0xe]
    %v4193 = vld [vmem:[%s3785 + $0x1c] sm:$0x1]
    %v4194 = vld [vmem:[%s3785 + $0x20] sm:$0xe]
    %v4195 = vld [vmem:[%s3785 + $0x24] sm:$0x1]
    %v4196 = vld [vmem:[%s3785 + $0x28] sm:$0xe]
    %v4197 = vld [vmem:[%s3785 + $0x2c] sm:$0x1]
    %v4198 = vld [vmem:[%s3785 + $0x30] sm:$0xe]
    %v4199 = vld [vmem:[%s3785 + $0x34] sm:$0x1]
    %v4200 = vld [vmem:[%s3785 + $0x38] sm:$0xe]
    %v4201 = vld [vmem:[%s3785 + $0x3c] sm:$0x1]
    %v4202 = vld [vmem:[%s3785 + $0x50] sm:$0xe]
    %v4203 = vld [vmem:[%s3785 + $0x54] sm:$0x1]
    %v4204 = vld [vmem:[%s3785 + $0x58] sm:$0xe]
    %v4205 = vld [vmem:[%s3785 + $0x5c] sm:$0x1]
    %v4206 = vld [vmem:[%s3785 + $0x60] sm:$0xe]
    %v4207 = vld [vmem:[%s3785 + $0x64] sm:$0x1]
    %v4208 = vld [vmem:[%s3785 + $0x68] sm:$0xe]
    %v4209 = vld [vmem:[%s3785 + $0x6c] sm:$0x1]
    %v4210 = vld [vmem:[%s3785 + $0x70] sm:$0xe]
    %v4211 = vld [vmem:[%s3785 + $0x74] sm:$0x1]
    %v4212 = vld [vmem:[%s3785 + $0x78] sm:$0xe]
    %v4213 = vld [vmem:[%s3785 + $0x7c] sm:$0x1]
    %v4214 = vld [vmem:[%s3785 + $0x80] sm:$0xe]
    %v4215 = vld [vmem:[%s3785 + $0x84] sm:$0x1]
    %v4216 = vld [vmem:[%s3785 + $0x88] sm:$0xe]
    %v4217 = vld [vmem:[%s3785 + $0x8c] sm:$0x1]
    %v4250 = vrot.slane %v4186, 5
    %v4251 = vrot.slane %v4250, 4
    %v4252 = vrot.slane %v4187, 5
    %v4253 = vsel %vm804, %v4251, %v4252
    %v4254 = vrot.slane %v4188, 5
    %v4255 = vrot.slane %v4254, 4
    %v4256 = vrot.slane %v4189, 5
    %v4257 = vsel %vm804, %v4255, %v4256
    %v4258 = vrot.slane %v4190, 5
    %v4259 = vrot.slane %v4258, 4
    %v4260 = vrot.slane %v4191, 5
    %v4261 = vsel %vm804, %v4259, %v4260
    %v4262 = vrot.slane %v4192, 5
    %v4263 = vrot.slane %v4262, 4
    %v4264 = vrot.slane %v4193, 5
    %v4265 = vsel %vm804, %v4263, %v4264
    %v4266 = vrot.slane %v4194, 5
    %v4267 = vrot.slane %v4266, 4
    %v4268 = vrot.slane %v4195, 5
    %v4269 = vsel %vm804, %v4267, %v4268
    %v4270 = vrot.slane %v4196, 5
    %v4271 = vrot.slane %v4270, 4
    %v4272 = vrot.slane %v4197, 5
    %v4273 = vsel %vm804, %v4271, %v4272
    %v4274 = vrot.slane %v4198, 5
    %v4275 = vrot.slane %v4274, 4
    %v4276 = vrot.slane %v4199, 5
    %v4277 = vsel %vm804, %v4275, %v4276
    %v4278 = vrot.slane %v4200, 5
    %v4279 = vrot.slane %v4278, 4
    %v4280 = vrot.slane %v4201, 5
    %v4281 = vsel %vm804, %v4279, %v4280
    %v4282 = vrot.slane %v4202, 5
    %v4283 = vrot.slane %v4282, 4
    %v4284 = vrot.slane %v4203, 5
    %v4285 = vsel %vm804, %v4283, %v4284
    %v4286 = vrot.slane %v4204, 5
    %v4287 = vrot.slane %v4286, 4
    %v4288 = vrot.slane %v4205, 5
    %v4289 = vsel %vm804, %v4287, %v4288
    %v4290 = vrot.slane %v4206, 5
    %v4291 = vrot.slane %v4290, 4
    %v4292 = vrot.slane %v4207, 5
    %v4293 = vsel %vm804, %v4291, %v4292
    %v4294 = vrot.slane %v4208, 5
    %v4295 = vrot.slane %v4294, 4
    %v4296 = vrot.slane %v4209, 5
    %v4297 = vsel %vm804, %v4295, %v4296
    %v4298 = vrot.slane %v4210, 5
    %v4299 = vrot.slane %v4298, 4
    %v4300 = vrot.slane %v4211, 5
    %v4301 = vsel %vm804, %v4299, %v4300
    %v4302 = vrot.slane %v4212, 5
    %v4303 = vrot.slane %v4302, 4
    %v4304 = vrot.slane %v4213, 5
    %v4305 = vsel %vm804, %v4303, %v4304
    %v4306 = vrot.slane %v4214, 5
    %v4307 = vrot.slane %v4306, 4
    %v4308 = vrot.slane %v4215, 5
    %v4309 = vsel %vm804, %v4307, %v4308
    %v4310 = vrot.slane %v4216, 5
    %v4311 = vrot.slane %v4310, 4
    %v4312 = vrot.slane %v4217, 5
    %v4313 = vsel %vm804, %v4311, %v4312
    %v4314 = vunpack.c.l.b16 %v4253
    %v4315 = vunpack.c.l.b16 %v4257
    %v4316 = vunpack.c.l.b16 %v4261
    %v4317 = vunpack.c.l.b16 %v4265
    %v4318 = vunpack.c.l.b16 %v4269
    %v4319 = vunpack.c.l.b16 %v4273
    %v4320 = vunpack.c.l.b16 %v4277
    %v4321 = vunpack.c.l.b16 %v4281
    %v4322 = vunpack.c.l.b16 %v4285
    %v4323 = vunpack.c.l.b16 %v4289
    %v4324 = vunpack.c.l.b16 %v4293
    %v4325 = vunpack.c.l.b16 %v4297
    %v4326 = vunpack.c.l.b16 %v4301
    %v4327 = vunpack.c.l.b16 %v4305
    %v4328 = vunpack.c.l.b16 %v4309
    %v4329 = vunpack.c.l.b16 %v4313
    %v4330 = vpack.c.b16 %v4315, %v4314
    %v4331 = vpack.c.b16 %v4317, %v4316
    %v4332 = vpack.c.b16 %v4319, %v4318
    %v4333 = vpack.c.b16 %v4321, %v4320
    %v4334 = vpack.c.b16 %v4323, %v4322
    %v4335 = vpack.c.b16 %v4325, %v4324
    %v4336 = vpack.c.b16 %v4327, %v4326
    %v4337 = vpack.c.b16 %v4329, %v4328
    %4346 = vst.msk [vmem:[#allocation5 + $0x10] sm:$0xff] %vm2709, %v4330
    %4347 = vst.msk [vmem:[#allocation5 + $0x28] sm:$0xff] %vm2709, %v4331
    %4348 = vst.msk [vmem:[#allocation5 + $0x40] sm:$0xff] %vm2709, %v4332
    %4349 = vst.msk [vmem:[#allocation5 + $0x58] sm:$0xff] %vm2709, %v4333
    %4350 = vst.msk [vmem:[#allocation5 + $0x70] sm:$0xff] %vm2709, %v4334
    %4351 = vst.msk [vmem:[#allocation5 + $0x88] sm:$0xff] %vm2709, %v4335
    %4352 = vst.msk [vmem:[#allocation5 + $0xa0] sm:$0xff] %vm2709, %v4336
    %4353 = vst.msk [vmem:[#allocation5 + $0xb8] sm:$0xff] %vm2709, %v4337
    %v4354 = vld [vmem:[#allocation5] sm:$0xff]
    %v4355 = vld [vmem:[#allocation5 + $0x8] sm:$0xff]
    %v4356 = vld [vmem:[#allocation5 + $0x10] sm:$0xff]
    %v4357 = vld [vmem:[#allocation5 + $0x18] sm:$0xff]
    %v4358 = vld [vmem:[#allocation5 + $0x20] sm:$0xff]
    %v4359 = vld [vmem:[#allocation5 + $0x28] sm:$0xff]
    %v4360 = vld [vmem:[#allocation5 + $0x30] sm:$0xff]
    %v4361 = vld [vmem:[#allocation5 + $0x38] sm:$0xff]
    %v4362 = vld [vmem:[#allocation5 + $0x40] sm:$0xff]
    %v4363 = vld [vmem:[#allocation5 + $0x48] sm:$0xff]
    %v4364 = vld [vmem:[#allocation5 + $0x50] sm:$0xff]
    %v4365 = vld [vmem:[#allocation5 + $0x58] sm:$0xff]
    %v4366 = vld [vmem:[#allocation5 + $0x60] sm:$0xff]
    %v4367 = vld [vmem:[#allocation5 + $0x68] sm:$0xff]
    %v4368 = vld [vmem:[#allocation5 + $0x70] sm:$0xff]
    %v4369 = vld [vmem:[#allocation5 + $0x78] sm:$0xff]
    %v4370 = vld [vmem:[#allocation5 + $0x80] sm:$0xff]
    %v4371 = vld [vmem:[#allocation5 + $0x88] sm:$0xff]
    %v4372 = vld [vmem:[#allocation5 + $0x90] sm:$0xff]
    %v4373 = vld [vmem:[#allocation5 + $0x98] sm:$0xff]
    %v4374 = vld [vmem:[#allocation5 + $0xa0] sm:$0xff]
    %v4375 = vld [vmem:[#allocation5 + $0xa8] sm:$0xff]
    %v4376 = vld [vmem:[#allocation5 + $0xb0] sm:$0xff]
    %v4377 = vld [vmem:[#allocation5 + $0xb8] sm:$0xff]
    %v4378 = vld [vmem:[%s3] sm:$0xf]
    %v4379 = vld [vmem:[%s3 + $0x4] sm:$0xf]
    %v4380 = vld [vmem:[%s3 + $0x8] sm:$0xf]
    %v4381 = vld [vmem:[%s3 + $0xc] sm:$0xf]
    %v4382 = vld [vmem:[%s3 + $0x10] sm:$0xf]
    %v4383 = vld [vmem:[%s3 + $0x14] sm:$0xf]
    %v4384 = vld [vmem:[%s3 + $0x18] sm:$0xf]
    %v4385 = vld [vmem:[%s3 + $0x1c] sm:$0xf]
    %v4386 = vld [vmem:[%s3 + $0x20] sm:$0xf]
    %v4387 = vld [vmem:[%s3 + $0x24] sm:$0xf]
    %v4388 = vld [vmem:[%s3 + $0x28] sm:$0xf]
    %v4389 = vld [vmem:[%s3 + $0x2c] sm:$0xf]
    %v4390 = vld [vmem:[%s3 + $0x30] sm:$0xf]
    %v4391 = vld [vmem:[%s3 + $0x34] sm:$0xf]
    %v4392 = vld [vmem:[%s3 + $0x38] sm:$0xf]
    %v4393 = vld [vmem:[%s3 + $0x3c] sm:$0xf]
    %v4394 = vld [vmem:[%s3 + $0x40] sm:$0xf]
    %v4395 = vld [vmem:[%s3 + $0x44] sm:$0xf]
    %v4396 = vld [vmem:[%s3 + $0x48] sm:$0xf]
    %v4397 = vld [vmem:[%s3 + $0x4c] sm:$0xf]
    %v4398 = vld [vmem:[%s3 + $0x50] sm:$0xf]
    %v4399 = vld [vmem:[%s3 + $0x54] sm:$0xf]
    %v4400 = vld [vmem:[%s3 + $0x58] sm:$0xf]
    %v4401 = vld [vmem:[%s3 + $0x5c] sm:$0xf]
    %v4402 = vld [vmem:[%s3 + $0x60] sm:$0xf]
    %v4403 = vld [vmem:[%s3 + $0x64] sm:$0xf]
    %v4404 = vld [vmem:[%s3 + $0x68] sm:$0xf]
    %v4405 = vld [vmem:[%s3 + $0x6c] sm:$0xf]
    %v4406 = vld [vmem:[%s3 + $0x70] sm:$0xf]
    %v4407 = vld [vmem:[%s3 + $0x74] sm:$0xf]
    %v4408 = vld [vmem:[%s3 + $0x78] sm:$0xf]
    %v4409 = vld [vmem:[%s3 + $0x7c] sm:$0xf]
    %v4410 = vld [vmem:[%s3 + $0x80] sm:$0xf]
    %v4411 = vld [vmem:[%s3 + $0x84] sm:$0xf]
    %v4412 = vld [vmem:[%s3 + $0x88] sm:$0xf]
    %v4413 = vld [vmem:[%s3 + $0x8c] sm:$0xf]
    %v4414 = vld [vmem:[%s4] sm:$0x1]
    %v4416 = vlaneseq
    %v4417 = vshrl.u32 %v4416, 7
    %v4418 = vsub.s32 0, %v4417
    %v4419 = vrot.slane %v4414, %v4418
    %v4457 = vunpack.c.l.b16 %v4378
    %v4458 = vunpack.c.l.b16 %v4379
    %v4459 = vunpack.c.l.b16 %v4380
    %v4460 = vunpack.c.l.b16 %v4381
    %v4461 = vunpack.c.l.b16 %v4382
    %v4462 = vunpack.c.l.b16 %v4383
    %v4463 = vunpack.c.l.b16 %v4384
    %v4464 = vunpack.c.l.b16 %v4385
    %v4465 = vunpack.c.l.b16 %v4386
    %v4466 = vunpack.c.l.b16 %v4387
    %v4467 = vunpack.c.l.b16 %v4388
    %v4468 = vunpack.c.l.b16 %v4389
    %v4469 = vunpack.c.l.b16 %v4390
    %v4470 = vunpack.c.l.b16 %v4391
    %v4471 = vunpack.c.l.b16 %v4392
    %v4472 = vunpack.c.l.b16 %v4393
    %v4473 = vunpack.c.l.b16 %v4394
    %v4474 = vunpack.c.l.b16 %v4395
    %v4475 = vunpack.c.l.b16 %v4396
    %v4476 = vunpack.c.l.b16 %v4397
    %v4477 = vunpack.c.l.b16 %v4398
    %v4478 = vunpack.c.l.b16 %v4399
    %v4479 = vunpack.c.l.b16 %v4400
    %v4480 = vunpack.c.l.b16 %v4401
    %v4481 = vunpack.c.l.b16 %v4402
    %v4482 = vunpack.c.l.b16 %v4403
    %v4483 = vunpack.c.l.b16 %v4404
    %v4484 = vunpack.c.l.b16 %v4405
    %v4485 = vunpack.c.l.b16 %v4406
    %v4486 = vunpack.c.l.b16 %v4407
    %v4487 = vunpack.c.l.b16 %v4408
    %v4488 = vunpack.c.l.b16 %v4409
    %v4489 = vunpack.c.l.b16 %v4410
    %v4490 = vunpack.c.l.b16 %v4411
    %v4491 = vunpack.c.l.b16 %v4412
    %v4492 = vunpack.c.l.b16 %v4413
    %v4493 = vpack.c.b16 %v4458, %v4457
    %v4494 = vpack.c.b16 %v4460, %v4459
    %v4495 = vpack.c.b16 %v4462, %v4461
    %v4496 = vpack.c.b16 %v4464, %v4463
    %v4497 = vpack.c.b16 %v4466, %v4465
    %v4498 = vpack.c.b16 %v4468, %v4467
    %v4499 = vpack.c.b16 %v4470, %v4469
    %v4500 = vpack.c.b16 %v4472, %v4471
    %v4501 = vpack.c.b16 %v4474, %v4473
    %v4502 = vpack.c.b16 %v4476, %v4475
    %v4503 = vpack.c.b16 %v4478, %v4477
    %v4504 = vpack.c.b16 %v4480, %v4479
    %v4505 = vpack.c.b16 %v4482, %v4481
    %v4506 = vpack.c.b16 %v4484, %v4483
    %v4507 = vpack.c.b16 %v4486, %v4485
    %v4508 = vpack.c.b16 %v4488, %v4487
    %v4509 = vpack.c.b16 %v4490, %v4489
    %v4510 = vpack.c.b16 %v4492, %v4491
    %v4530 = vsel %vm2709, %v4356, 0
    %v4533 = vsel %vm2709, %v4359, 0
    %v4536 = vsel %vm2709, %v4362, 0
    %v4539 = vsel %vm2709, %v4365, 0
    %v4542 = vsel %vm2709, %v4368, 0
    %v4545 = vsel %vm2709, %v4371, 0
    %v4548 = vsel %vm2709, %v4374, 0
    %v4551 = vsel %vm2709, %v4377, 0
    %4553 = vmatprep.subr.bf16.mxu0 0
    %4554 = vmatpush1.bf16.msra.mxu0 %v4493
    %4555 = vmatprep.subr.bf16.mxu0 0
    %4556 = vmatpush1.bf16.msra.mxu0 %v4494
    %4557 = vmatprep.subr.bf16.mxu0 0
    %4558 = vmatpush1.bf16.msra.mxu0 %v4495
    %4559 = vmatprep.subr.bf16.mxu0 0
    %4560 = vmatpush1.bf16.msra.mxu0 %v4496
    %4561 = vmatprep.subr.bf16.mxu0 0
    %4562 = vmatpush1.bf16.msra.mxu0 %v4497
    %4563 = vmatprep.subr.bf16.mxu0 0
    %4564 = vmatpush1.bf16.msra.mxu0 %v4498
    %4565 = vmatprep.subr.bf16.mxu0 0
    %4566 = vmatpush1.bf16.msra.mxu0 %v4499
    %4567 = vmatprep.subr.bf16.mxu0 0
    %4568 = vmatpush1.bf16.msra.mxu0 %v4500
    %4569 = vmatprep.subr.bf16.mxu0 0
    %4570 = vmatpush1.bf16.msra.mxu0 %v4501
    %4571 = vmatprep.subr.bf16.mxu0 0
    %4572 = vmatpush1.bf16.msra.mxu0 %v4502
    %4573 = vmatprep.subr.bf16.mxu0 0
    %4574 = vmatpush1.bf16.msra.mxu0 %v4503
    %4575 = vmatprep.subr.bf16.mxu0 0
    %4576 = vmatpush1.bf16.msra.mxu0 %v4504
    %4577 = vmatprep.subr.bf16.mxu0 0
    %4578 = vmatpush1.bf16.msra.mxu0 %v4505
    %4579 = vmatprep.subr.bf16.mxu0 0
    %4580 = vmatpush1.bf16.msra.mxu0 %v4506
    %4581 = vmatprep.subr.bf16.mxu0 0
    %4582 = vmatpush1.bf16.msra.mxu0 %v4507
    %4583 = vmatprep.subr.bf16.mxu0 0
    %4584 = vmatpush1.bf16.msra.mxu0 %v4508
    %4585 = vmatprep.mubr.bf16.mxu0 %v4355
    %4586 = vmatmul.mubr.bf16.gmra.mrb[0].mxu0 %v4354
    %v4587 = vpop.f32.mrb[0].mxu0
    %v4588 = vadd.f32 %v4419, %v4587
    %v4589 = vpop.f32.mrb[0].mxu0
    %v4590 = vpop.f32.mrb[0].mxu0
    %v4591 = vadd.f32 %v4419, %v4590
    %v4592 = vpop.f32.mrb[0].mxu0
    %4593 = vmatprep.mubr.bf16.mxu0 %v4358
    %4594 = vmatmul.mubr.bf16.gmra.mrb[0].mxu0 %v4357
    %v4595 = vpop.f32.mrb[0].mxu0
    %v4596 = vadd.f32 %v4419, %v4595
    %v4597 = vpop.f32.mrb[0].mxu0
    %v4598 = vpop.f32.mrb[0].mxu0
    %v4599 = vadd.f32 %v4419, %v4598
    %v4600 = vpop.f32.mrb[0].mxu0
    %4601 = vmatprep.mubr.bf16.mxu0 %v4361
    %4602 = vmatmul.mubr.bf16.gmra.mrb[0].mxu0 %v4360
    %v4603 = vpop.f32.mrb[0].mxu0
    %v4604 = vadd.f32 %v4419, %v4603
    %v4605 = vpop.f32.mrb[0].mxu0
    %v4606 = vpop.f32.mrb[0].mxu0
    %v4607 = vadd.f32 %v4419, %v4606
    %v4608 = vpop.f32.mrb[0].mxu0
    %4609 = vmatprep.mubr.bf16.mxu0 %v4364
    %4610 = vmatmul.mubr.bf16.gmra.mrb[0].mxu0 %v4363
    %v4611 = vpop.f32.mrb[0].mxu0
    %v4612 = vadd.f32 %v4419, %v4611
    %v4613 = vpop.f32.mrb[0].mxu0
    %v4614 = vpop.f32.mrb[0].mxu0
    %v4615 = vadd.f32 %v4419, %v4614
    %v4616 = vpop.f32.mrb[0].mxu0
    %4617 = vmatprep.mubr.bf16.mxu0 %v4367
    %4618 = vmatmul.mubr.bf16.gmra.mrb[0].mxu0 %v4366
    %v4619 = vpop.f32.mrb[0].mxu0
    %v4620 = vadd.f32 %v4419, %v4619
    %v4621 = vpop.f32.mrb[0].mxu0
    %v4622 = vpop.f32.mrb[0].mxu0
    %v4623 = vadd.f32 %v4419, %v4622
    %v4624 = vpop.f32.mrb[0].mxu0
    %4625 = vmatprep.mubr.bf16.mxu0 %v4370
    %4626 = vmatmul.mubr.bf16.gmra.mrb[0].mxu0 %v4369
    %v4627 = vpop.f32.mrb[0].mxu0
    %v4628 = vadd.f32 %v4419, %v4627
    %v4629 = vpop.f32.mrb[0].mxu0
    %v4630 = vpop.f32.mrb[0].mxu0
    %v4631 = vadd.f32 %v4419, %v4630
    %v4632 = vpop.f32.mrb[0].mxu0
    %4633 = vmatprep.mubr.bf16.mxu0 %v4373
    %4634 = vmatmul.mubr.bf16.gmra.mrb[0].mxu0 %v4372
    %v4635 = vpop.f32.mrb[0].mxu0
    %v4636 = vadd.f32 %v4419, %v4635
    %v4637 = vpop.f32.mrb[0].mxu0
    %v4638 = vpop.f32.mrb[0].mxu0
    %v4639 = vadd.f32 %v4419, %v4638
    %v4640 = vpop.f32.mrb[0].mxu0
    %4641 = vmatprep.mubr.bf16.mxu0 %v4376
    %4642 = vmatmul.mubr.bf16.gmra.mrb[0].mxu0 %v4375
    %v4643 = vpop.f32.mrb[0].mxu0
    %v4644 = vadd.f32 %v4419, %v4643
    %v4645 = vpop.f32.mrb[0].mxu0
    %v4646 = vpop.f32.mrb[0].mxu0
    %v4647 = vadd.f32 %v4419, %v4646
    %v4648 = vpop.f32.mrb[0].mxu0
    %4649 = vdwg.mxu0
    %4650 = vmatprep.subr.bf16.mxu0 0
    %4651 = vmatpush1.bf16.msra.mxu0 %v4509
    %4652 = vmatprep.subr.bf16.mxu0 0
    %4653 = vmatpush1.bf16.msra.mxu0 %v4510
    %4654 = vmatprep.subr.bf16.mxu0 0
    %4655 = vmatpush1.bf16.msra.mxu0 0
    %4656 = vmatprep.subr.bf16.mxu0 0
    %4657 = vmatpush1.bf16.msra.mxu0 0
    %4658 = vmatprep.subr.bf16.mxu0 0
    %4659 = vmatpush1.bf16.msra.mxu0 0
    %4660 = vmatprep.subr.bf16.mxu0 0
    %4661 = vmatpush1.bf16.msra.mxu0 0
    %4662 = vmatprep.subr.bf16.mxu0 0
    %4663 = vmatpush1.bf16.msra.mxu0 0
    %4664 = vmatprep.subr.bf16.mxu0 0
    %4665 = vmatpush1.bf16.msra.mxu0 0
    %4666 = vmatprep.subr.bf16.mxu0 0
    %4667 = vmatpush1.bf16.msra.mxu0 0
    %4668 = vmatprep.subr.bf16.mxu0 0
    %4669 = vmatpush1.bf16.msra.mxu0 0
    %4670 = vmatprep.subr.bf16.mxu0 0
    %4671 = vmatpush1.bf16.msra.mxu0 0
    %4672 = vmatprep.subr.bf16.mxu0 0
    %4673 = vmatpush1.bf16.msra.mxu0 0
    %4674 = vmatprep.subr.bf16.mxu0 0
    %4675 = vmatpush1.bf16.msra.mxu0 0
    %4676 = vmatprep.subr.bf16.mxu0 0
    %4677 = vmatpush1.bf16.msra.mxu0 0
    %4678 = vmatprep.subr.bf16.mxu0 0
    %4679 = vmatpush1.bf16.msra.mxu0 0
    %4680 = vmatprep.subr.bf16.mxu0 0
    %4681 = vmatpush1.bf16.msra.mxu0 0
    %4682 = vmatprep.mubr.bf16.mxu0 0
    %4683 = vmatmul.mubr.bf16.gmra.mrb[0].mxu0 %v4530
    %v4684 = vpop.f32.mrb[0].mxu0
    %v4685 = vadd.f32 %v4588, %v4684
    %v4686 = vpop.f32.mrb[0].mxu0
    %v4687 = vpop.f32.mrb[0].mxu0
    %v4688 = vadd.f32 %v4591, %v4687
    %v4689 = vpop.f32.mrb[0].mxu0
    %4690 = vmatprep.mubr.bf16.mxu0 0
    %4691 = vmatmul.mubr.bf16.gmra.mrb[0].mxu0 %v4533
    %v4692 = vpop.f32.mrb[0].mxu0
    %v4693 = vadd.f32 %v4596, %v4692
    %v4694 = vpop.f32.mrb[0].mxu0
    %v4695 = vpop.f32.mrb[0].mxu0
    %v4696 = vadd.f32 %v4599, %v4695
    %v4697 = vpop.f32.mrb[0].mxu0
    %4698 = vmatprep.mubr.bf16.mxu0 0
    %4699 = vmatmul.mubr.bf16.gmra.mrb[0].mxu0 %v4536
    %v4700 = vpop.f32.mrb[0].mxu0
    %v4701 = vadd.f32 %v4604, %v4700
    %v4702 = vpop.f32.mrb[0].mxu0
    %v4703 = vpop.f32.mrb[0].mxu0
    %v4704 = vadd.f32 %v4607, %v4703
    %v4705 = vpop.f32.mrb[0].mxu0
    %4706 = vmatprep.mubr.bf16.mxu0 0
    %4707 = vmatmul.mubr.bf16.gmra.mrb[0].mxu0 %v4539
    %v4708 = vpop.f32.mrb[0].mxu0
    %v4709 = vadd.f32 %v4612, %v4708
    %v4710 = vpop.f32.mrb[0].mxu0
    %v4711 = vpop.f32.mrb[0].mxu0
    %v4712 = vadd.f32 %v4615, %v4711
    %v4713 = vpop.f32.mrb[0].mxu0
    %4714 = vmatprep.mubr.bf16.mxu0 0
    %4715 = vmatmul.mubr.bf16.gmra.mrb[0].mxu0 %v4542
    %v4716 = vpop.f32.mrb[0].mxu0
    %v4717 = vadd.f32 %v4620, %v4716
    %v4718 = vpop.f32.mrb[0].mxu0
    %v4719 = vpop.f32.mrb[0].mxu0
    %v4720 = vadd.f32 %v4623, %v4719
    %v4721 = vpop.f32.mrb[0].mxu0
    %4722 = vmatprep.mubr.bf16.mxu0 0
    %4723 = vmatmul.mubr.bf16.gmra.mrb[0].mxu0 %v4545
    %v4724 = vpop.f32.mrb[0].mxu0
    %v4725 = vadd.f32 %v4628, %v4724
    %v4726 = vpop.f32.mrb[0].mxu0
    %v4727 = vpop.f32.mrb[0].mxu0
    %v4728 = vadd.f32 %v4631, %v4727
    %v4729 = vpop.f32.mrb[0].mxu0
    %4730 = vmatprep.mubr.bf16.mxu0 0
    %4731 = vmatmul.mubr.bf16.gmra.mrb[0].mxu0 %v4548
    %v4732 = vpop.f32.mrb[0].mxu0
    %v4733 = vadd.f32 %v4636, %v4732
    %v4734 = vpop.f32.mrb[0].mxu0
    %v4735 = vpop.f32.mrb[0].mxu0
    %v4736 = vadd.f32 %v4639, %v4735
    %v4737 = vpop.f32.mrb[0].mxu0
    %4738 = vmatprep.mubr.bf16.mxu0 0
    %4739 = vmatmul.mubr.bf16.gmra.mrb[0].mxu0 %v4551
    %v4740 = vpop.f32.mrb[0].mxu0
    %v4741 = vadd.f32 %v4644, %v4740
    %v4742 = vpop.f32.mrb[0].mxu0
    %v4743 = vpop.f32.mrb[0].mxu0
    %v4744 = vadd.f32 %v4647, %v4743
    %v4745 = vpop.f32.mrb[0].mxu0
    %4746 = vdwg.mxu0
    %v4747 = vmax.f32 %v4685, 0.0
    %v4748 = vmax.f32 %v4688, 0.0
    %v4749 = vmax.f32 %v4693, 0.0
    %v4750 = vmax.f32 %v4696, 0.0
    %v4751 = vmax.f32 %v4701, 0.0
    %v4752 = vmax.f32 %v4704, 0.0
    %v4753 = vmax.f32 %v4709, 0.0
    %v4754 = vmax.f32 %v4712, 0.0
    %v4755 = vmax.f32 %v4717, 0.0
    %v4756 = vmax.f32 %v4720, 0.0
    %v4757 = vmax.f32 %v4725, 0.0
    %v4758 = vmax.f32 %v4728, 0.0
    %v4759 = vmax.f32 %v4733, 0.0
    %v4760 = vmax.f32 %v4736, 0.0
    %v4761 = vmax.f32 %v4741, 0.0
    %v4762 = vmax.f32 %v4744, 0.0
    %v4763 = vpack.c.bf16 %v4747, %v4747
    %v4764 = vpack.c.bf16 %v4748, %v4748
    %v4765 = vpack.c.bf16 %v4749, %v4749
    %v4766 = vpack.c.bf16 %v4750, %v4750
    %v4767 = vpack.c.bf16 %v4751, %v4751
    %v4768 = vpack.c.bf16 %v4752, %v4752
    %v4769 = vpack.c.bf16 %v4753, %v4753
    %v4770 = vpack.c.bf16 %v4754, %v4754
    %v4771 = vpack.c.bf16 %v4755, %v4755
    %v4772 = vpack.c.bf16 %v4756, %v4756
    %v4773 = vpack.c.bf16 %v4757, %v4757
    %v4774 = vpack.c.bf16 %v4758, %v4758
    %v4775 = vpack.c.bf16 %v4759, %v4759
    %v4776 = vpack.c.bf16 %v4760, %v4760
    %v4777 = vpack.c.bf16 %v4761, %v4761
    %v4778 = vpack.c.bf16 %v4762, %v4762
    %4779 = vst.msk [vmem:[#allocation6] sm:$0xf] %vm2278, %v4763
    %4780 = vst.msk [vmem:[#allocation6 + $0x4] sm:$0xf] %vm2278, %v4764
    %4781 = vst.msk [vmem:[#allocation6 + $0x8] sm:$0xf] %vm2278, %v4765
    %4782 = vst.msk [vmem:[#allocation6 + $0xc] sm:$0xf] %vm2278, %v4766
    %4783 = vst.msk [vmem:[#allocation6 + $0x10] sm:$0xf] %vm2278, %v4767
    %4784 = vst.msk [vmem:[#allocation6 + $0x14] sm:$0xf] %vm2278, %v4768
    %4785 = vst.msk [vmem:[#allocation6 + $0x18] sm:$0xf] %vm2278, %v4769
    %4786 = vst.msk [vmem:[#allocation6 + $0x1c] sm:$0xf] %vm2278, %v4770
    %4787 = vst.msk [vmem:[#allocation6 + $0x20] sm:$0xf] %vm2278, %v4771
    %4788 = vst.msk [vmem:[#allocation6 + $0x24] sm:$0xf] %vm2278, %v4772
    %4789 = vst.msk [vmem:[#allocation6 + $0x28] sm:$0xf] %vm2278, %v4773
    %4790 = vst.msk [vmem:[#allocation6 + $0x2c] sm:$0xf] %vm2278, %v4774
    %4791 = vst.msk [vmem:[#allocation6 + $0x30] sm:$0xf] %vm2278, %v4775
    %4792 = vst.msk [vmem:[#allocation6 + $0x34] sm:$0xf] %vm2278, %v4776
    %4793 = vst.msk [vmem:[#allocation6 + $0x38] sm:$0xf] %vm2278, %v4777
    %4794 = vst.msk [vmem:[#allocation6 + $0x3c] sm:$0xf] %vm2278, %v4778
    %v4795 = vld [vmem:[#allocation6] sm:$0x1]
    %v4796 = vld [vmem:[#allocation6 + $0x20] sm:$0x1]
    %v4800 = vunpack.c.l.s4 1966171168
    %v4801 = vunpack.c.0.s8 %v4800
    %v4802 = vlaneseq
    %v4803 = vshrl.u32 %v4802, 7
    %v4804 = vsub.s32 %v4801, %v4803
    %v4805 = vrot.slane %v4795, %v4804
    %v4807 = vunpack.c.l.s4 1966171168
    %v4808 = vunpack.c.0.s8 %v4807
    %v4809 = vlaneseq
    %v4810 = vshrl.u32 %v4809, 7
    %v4811 = vsub.s32 %v4808, %v4810
    %v4812 = vrot.slane %v4805, %v4811
    %v4814 = vunpack.c.l.s4 1966171168
    %v4815 = vunpack.c.0.s8 %v4814
    %v4816 = vlaneseq
    %v4817 = vshrl.u32 %v4816, 7
    %v4818 = vsub.s32 %v4815, %v4817
    %v4819 = vrot.slane %v4796, %v4818
    %v4821 = vunpack.c.l.s4 1966171168
    %v4822 = vunpack.c.0.s8 %v4821
    %v4823 = vlaneseq
    %v4824 = vshrl.u32 %v4823, 7
    %v4825 = vsub.s32 %v4822, %v4824
    %v4826 = vrot.slane %v4819, %v4825
    %v4828 = vunpack.c.l.s4 1935823168
    %v4829 = vunpack.c.0.s8 %v4828
    %v4830 = vlaneseq
    %v4831 = vshrl.u32 %v4830, 7
    %v4832 = vsub.s32 %v4829, %v4831
    %v4833 = vrot.slane %v4812, %v4832
    %v4835 = vunpack.c.l.s4 1935823168
    %v4836 = vunpack.c.0.s8 %v4835
    %v4837 = vlaneseq
    %v4838 = vshrl.u32 %v4837, 7
    %v4839 = vsub.s32 %v4836, %v4838
    %v4840 = vrot.slane %v4833, %v4839
    %v4842 = vunpack.c.l.s4 1935823168
    %v4843 = vunpack.c.0.s8 %v4842
    %v4844 = vlaneseq
    %v4845 = vshrl.u32 %v4844, 7
    %v4846 = vsub.s32 %v4843, %v4845
    %v4847 = vrot.slane %v4826, %v4846
    %v4849 = vunpack.c.l.s4 1935823168
    %v4850 = vunpack.c.0.s8 %v4849
    %v4851 = vlaneseq
    %v4852 = vshrl.u32 %v4851, 7
    %v4853 = vsub.s32 %v4850, %v4852
    %v4854 = vrot.slane %v4847, %v4853
    %v4855 = vunpack.c.l.b16 %v4840
    %v4856 = vunpack.c.l.b16 %v4854
    %v4857 = vrot.slane %v4856, 7
    %vm4858 = vcmask 1041409
    %v4859 = vsel %vm4858, %v4857, %v4855
    %v4860 = vpack.c.b16 %v4859, %v4859
    %v4862 = vunpack.c.l.s4 1966171168
    %v4863 = vunpack.c.0.s8 %v4862
    %v4864 = vlaneseq
    %v4865 = vshrl.u32 %v4864, 7
    %v4866 = vsub.s32 %v4863, %v4865
    %v4867 = vrot.slane %v4860, %v4866
    %v4869 = vunpack.c.l.s4 1966171168
    %v4870 = vunpack.c.0.s8 %v4869
    %v4871 = vlaneseq
    %v4872 = vshrl.u32 %v4871, 7
    %v4873 = vsub.s32 %v4870, %v4872
    %v4874 = vrot.slane %v4867, %v4873
    %4876 = vst.msk [vmem:[#allocation7] sm:$0x1] %vm2280, %v4874
    %v4877 = vld [vmem:[#allocation6] sm:$0x1]
    %v4878 = vld [vmem:[#allocation6 + $0x20] sm:$0x1]
    %v4882 = vunpack.c.l.s4 1966171168
    %v4883 = vunpack.c.0.s8 %v4882
    %v4884 = vlaneseq
    %v4885 = vshrl.u32 %v4884, 7
    %v4886 = vsub.s32 %v4883, %v4885
    %v4887 = vrot.slane %v4877, %v4886
    %v4889 = vunpack.c.l.s4 1966171168
    %v4890 = vunpack.c.0.s8 %v4889
    %v4891 = vlaneseq
    %v4892 = vshrl.u32 %v4891, 7
    %v4893 = vsub.s32 %v4890, %v4892
    %v4894 = vrot.slane %v4887, %v4893
    %v4896 = vunpack.c.l.s4 1966171168
    %v4897 = vunpack.c.0.s8 %v4896
    %v4898 = vlaneseq
    %v4899 = vshrl.u32 %v4898, 7
    %v4900 = vsub.s32 %v4897, %v4899
    %v4901 = vrot.slane %v4878, %v4900
    %v4903 = vunpack.c.l.s4 1966171168
    %v4904 = vunpack.c.0.s8 %v4903
    %v4905 = vlaneseq
    %v4906 = vshrl.u32 %v4905, 7
    %v4907 = vsub.s32 %v4904, %v4906
    %v4908 = vrot.slane %v4901, %v4907
    %v4910 = vunpack.c.l.s4 1935823168
    %v4911 = vunpack.c.0.s8 %v4910
    %v4912 = vlaneseq
    %v4913 = vshrl.u32 %v4912, 7
    %v4914 = vsub.s32 %v4911, %v4913
    %v4915 = vrot.slane %v4894, %v4914
    %v4917 = vunpack.c.l.s4 1935823168
    %v4918 = vunpack.c.0.s8 %v4917
    %v4919 = vlaneseq
    %v4920 = vshrl.u32 %v4919, 7
    %v4921 = vsub.s32 %v4918, %v4920
    %v4922 = vrot.slane %v4915, %v4921
    %v4924 = vunpack.c.l.s4 1935823168
    %v4925 = vunpack.c.0.s8 %v4924
    %v4926 = vlaneseq
    %v4927 = vshrl.u32 %v4926, 7
    %v4928 = vsub.s32 %v4925, %v4927
    %v4929 = vrot.slane %v4908, %v4928
    %v4931 = vunpack.c.l.s4 1935823168
    %v4932 = vunpack.c.0.s8 %v4931
    %v4933 = vlaneseq
    %v4934 = vshrl.u32 %v4933, 7
    %v4935 = vsub.s32 %v4932, %v4934
    %v4936 = vrot.slane %v4929, %v4935
    %v4937 = vunpack.c.l.b16 %v4922
    %v4938 = vunpack.c.l.b16 %v4936
    %v4939 = vrot.slane %v4937, 1
    %v4940 = vsel %vm4858, %v4938, %v4939
    %v4941 = vpack.c.b16 %v4940, %v4940
    %v4943 = vunpack.c.l.s4 1966171168
    %v4944 = vunpack.c.0.s8 %v4943
    %v4945 = vlaneseq
    %v4946 = vshrl.u32 %v4945, 7
    %v4947 = vsub.s32 %v4944, %v4946
    %v4948 = vrot.slane %v4941, %v4947
    %v4950 = vunpack.c.l.s4 1966171168
    %v4951 = vunpack.c.0.s8 %v4950
    %v4952 = vlaneseq
    %v4953 = vshrl.u32 %v4952, 7
    %v4954 = vsub.s32 %v4951, %v4953
    %v4955 = vrot.slane %v4948, %v4954
    %4956 = vrot.lane.b32.xlu0 %v4955, 32
    %v4957 = vpop.permute.xlu0 %4956
    %vm4959 = vcmask 516352
    %4960 = vst.msk [vmem:[#allocation7] sm:$0x1] %vm4959, %v4957
    %v4961 = vld [vmem:[#allocation6] sm:$0x2]
    %v4962 = vld [vmem:[#allocation6 + $0x20] sm:$0x2]
    %v4966 = vunpack.c.l.s4 1966171168
    %v4967 = vunpack.c.0.s8 %v4966
    %v4968 = vlaneseq
    %v4969 = vshrl.u32 %v4968, 7
    %v4970 = vsub.s32 %v4967, %v4969
    %v4971 = vrot.slane %v4961, %v4970
    %v4972 = vcombine.high %v4971, %v4971
    %v4974 = vunpack.c.l.s4 1966171168
    %v4975 = vunpack.c.0.s8 %v4974
    %v4976 = vlaneseq
    %v4977 = vshrl.u32 %v4976, 7
    %v4978 = vsub.s32 %v4975, %v4977
    %v4979 = vrot.slane %v4972, %v4978
    %v4981 = vunpack.c.l.s4 1966171168
    %v4982 = vunpack.c.0.s8 %v4981
    %v4983 = vlaneseq
    %v4984 = vshrl.u32 %v4983, 7
    %v4985 = vsub.s32 %v4982, %v4984
    %v4986 = vrot.slane %v4962, %v4985
    %v4987 = vcombine.high %v4986, %v4986
    %v4989 = vunpack.c.l.s4 1966171168
    %v4990 = vunpack.c.0.s8 %v4989
    %v4991 = vlaneseq
    %v4992 = vshrl.u32 %v4991, 7
    %v4993 = vsub.s32 %v4990, %v4992
    %v4994 = vrot.slane %v4987, %v4993
    %v4996 = vunpack.c.l.s4 1935823168
    %v4997 = vunpack.c.0.s8 %v4996
    %v4998 = vlaneseq
    %v4999 = vshrl.u32 %v4998, 7
    %v5000 = vsub.s32 %v4997, %v4999
    %v5001 = vrot.slane %v4979, %v5000
    %v5003 = vunpack.c.l.s4 1935823168
    %v5004 = vunpack.c.0.s8 %v5003
    %v5005 = vlaneseq
    %v5006 = vshrl.u32 %v5005, 7
    %v5007 = vsub.s32 %v5004, %v5006
    %v5008 = vrot.slane %v5001, %v5007
    %v5010 = vunpack.c.l.s4 1935823168
    %v5011 = vunpack.c.0.s8 %v5010
    %v5012 = vlaneseq
    %v5013 = vshrl.u32 %v5012, 7
    %v5014 = vsub.s32 %v5011, %v5013
    %v5015 = vrot.slane %v4994, %v5014
    %v5017 = vunpack.c.l.s4 1935823168
    %v5018 = vunpack.c.0.s8 %v5017
    %v5019 = vlaneseq
    %v5020 = vshrl.u32 %v5019, 7
    %v5021 = vsub.s32 %v5018, %v5020
    %v5022 = vrot.slane %v5015, %v5021
    %v5023 = vunpack.c.l.b16 %v5008
    %v5024 = vunpack.c.l.b16 %v5022
    %v5025 = vrot.slane %v5024, 7
    %v5026 = vsel %vm4858, %v5025, %v5023
    %v5027 = vpack.c.b16 %v5026, %v5026
    %v5029 = vunpack.c.l.s4 1966171168
    %v5030 = vunpack.c.0.s8 %v5029
    %v5031 = vlaneseq
    %v5032 = vshrl.u32 %v5031, 7
    %v5033 = vsub.s32 %v5030, %v5032
    %v5034 = vrot.slane %v5027, %v5033
    %v5036 = vunpack.c.l.s4 1966171168
    %v5037 = vunpack.c.0.s8 %v5036
    %v5038 = vlaneseq
    %v5039 = vshrl.u32 %v5038, 7
    %v5040 = vsub.s32 %v5037, %v5039
    %v5041 = vrot.slane %v5034, %v5040
    %5042 = vrot.lane.b32.xlu0 %v5041, 64
    %v5043 = vpop.permute.xlu0 %5042
    %vm5045 = vcmask 778752
    %5046 = vst.msk [vmem:[#allocation7] sm:$0x1] %vm5045, %v5043
    %v5047 = vld [vmem:[#allocation6] sm:$0x2]
    %v5048 = vld [vmem:[#allocation6 + $0x20] sm:$0x2]
    %v5052 = vunpack.c.l.s4 1966171168
    %v5053 = vunpack.c.0.s8 %v5052
    %v5054 = vlaneseq
    %v5055 = vshrl.u32 %v5054, 7
    %v5056 = vsub.s32 %v5053, %v5055
    %v5057 = vrot.slane %v5047, %v5056
    %v5058 = vcombine.high %v5057, %v5057
    %v5060 = vunpack.c.l.s4 1966171168
    %v5061 = vunpack.c.0.s8 %v5060
    %v5062 = vlaneseq
    %v5063 = vshrl.u32 %v5062, 7
    %v5064 = vsub.s32 %v5061, %v5063
    %v5065 = vrot.slane %v5058, %v5064
    %v5067 = vunpack.c.l.s4 1966171168
    %v5068 = vunpack.c.0.s8 %v5067
    %v5069 = vlaneseq
    %v5070 = vshrl.u32 %v5069, 7
    %v5071 = vsub.s32 %v5068, %v5070
    %v5072 = vrot.slane %v5048, %v5071
    %v5073 = vcombine.high %v5072, %v5072
    %v5075 = vunpack.c.l.s4 1966171168
    %v5076 = vunpack.c.0.s8 %v5075
    %v5077 = vlaneseq
    %v5078 = vshrl.u32 %v5077, 7
    %v5079 = vsub.s32 %v5076, %v5078
    %v5080 = vrot.slane %v5073, %v5079
    %v5082 = vunpack.c.l.s4 1935823168
    %v5083 = vunpack.c.0.s8 %v5082
    %v5084 = vlaneseq
    %v5085 = vshrl.u32 %v5084, 7
    %v5086 = vsub.s32 %v5083, %v5085
    %v5087 = vrot.slane %v5065, %v5086
    %v5089 = vunpack.c.l.s4 1935823168
    %v5090 = vunpack.c.0.s8 %v5089
    %v5091 = vlaneseq
    %v5092 = vshrl.u32 %v5091, 7
    %v5093 = vsub.s32 %v5090, %v5092
    %v5094 = vrot.slane %v5087, %v5093
    %v5096 = vunpack.c.l.s4 1935823168
    %v5097 = vunpack.c.0.s8 %v5096
    %v5098 = vlaneseq
    %v5099 = vshrl.u32 %v5098, 7
    %v5100 = vsub.s32 %v5097, %v5099
    %v5101 = vrot.slane %v5080, %v5100
    %v5103 = vunpack.c.l.s4 1935823168
    %v5104 = vunpack.c.0.s8 %v5103
    %v5105 = vlaneseq
    %v5106 = vshrl.u32 %v5105, 7
    %v5107 = vsub.s32 %v5104, %v5106
    %v5108 = vrot.slane %v5101, %v5107
    %v5109 = vunpack.c.l.b16 %v5094
    %v5110 = vunpack.c.l.b16 %v5108
    %v5111 = vrot.slane %v5109, 1
    %v5112 = vsel %vm4858, %v5110, %v5111
    %v5113 = vpack.c.b16 %v5112, %v5112
    %v5115 = vunpack.c.l.s4 1966171168
    %v5116 = vunpack.c.0.s8 %v5115
    %v5117 = vlaneseq
    %v5118 = vshrl.u32 %v5117, 7
    %v5119 = vsub.s32 %v5116, %v5118
    %v5120 = vrot.slane %v5113, %v5119
    %v5122 = vunpack.c.l.s4 1966171168
    %v5123 = vunpack.c.0.s8 %v5122
    %v5124 = vlaneseq
    %v5125 = vshrl.u32 %v5124, 7
    %v5126 = vsub.s32 %v5123, %v5125
    %v5127 = vrot.slane %v5120, %v5126
    %5128 = vrot.lane.b32.xlu0 %v5127, 96
    %v5129 = vpop.permute.xlu0 %5128
    %vm5131 = vcmask 1041152
    %5132 = vst.msk [vmem:[#allocation7] sm:$0x1] %vm5131, %v5129
    %v5133 = vld [vmem:[#allocation6] sm:$0x4]
    %v5134 = vld [vmem:[#allocation6 + $0x20] sm:$0x4]
    %v5138 = vunpack.c.l.s4 1966171168
    %v5139 = vunpack.c.0.s8 %v5138
    %v5140 = vlaneseq
    %v5141 = vshrl.u32 %v5140, 7
    %v5142 = vsub.s32 %v5139, %v5141
    %v5143 = vrot.slane %v5133, %v5142
    %v5145 = vunpack.c.l.s4 1966171168
    %v5146 = vunpack.c.0.s8 %v5145
    %v5147 = vlaneseq
    %v5148 = vshrl.u32 %v5147, 7
    %v5149 = vsub.s32 %v5146, %v5148
    %v5150 = vrot.slane %v5143, %v5149
    %v5151 = vcombine.high %v5150, %v5150
    %v5153 = vunpack.c.l.s4 1966171168
    %v5154 = vunpack.c.0.s8 %v5153
    %v5155 = vlaneseq
    %v5156 = vshrl.u32 %v5155, 7
    %v5157 = vsub.s32 %v5154, %v5156
    %v5158 = vrot.slane %v5134, %v5157
    %v5160 = vunpack.c.l.s4 1966171168
    %v5161 = vunpack.c.0.s8 %v5160
    %v5162 = vlaneseq
    %v5163 = vshrl.u32 %v5162, 7
    %v5164 = vsub.s32 %v5161, %v5163
    %v5165 = vrot.slane %v5158, %v5164
    %v5166 = vcombine.high %v5165, %v5165
    %v5168 = vunpack.c.l.s4 1935823168
    %v5169 = vunpack.c.0.s8 %v5168
    %v5170 = vlaneseq
    %v5171 = vshrl.u32 %v5170, 7
    %v5172 = vsub.s32 %v5169, %v5171
    %v5173 = vrot.slane %v5151, %v5172
    %v5175 = vunpack.c.l.s4 1935823168
    %v5176 = vunpack.c.0.s8 %v5175
    %v5177 = vlaneseq
    %v5178 = vshrl.u32 %v5177, 7
    %v5179 = vsub.s32 %v5176, %v5178
    %v5180 = vrot.slane %v5173, %v5179
    %v5182 = vunpack.c.l.s4 1935823168
    %v5183 = vunpack.c.0.s8 %v5182
    %v5184 = vlaneseq
    %v5185 = vshrl.u32 %v5184, 7
    %v5186 = vsub.s32 %v5183, %v5185
    %v5187 = vrot.slane %v5166, %v5186
    %v5189 = vunpack.c.l.s4 1935823168
    %v5190 = vunpack.c.0.s8 %v5189
    %v5191 = vlaneseq
    %v5192 = vshrl.u32 %v5191, 7
    %v5193 = vsub.s32 %v5190, %v5192
    %v5194 = vrot.slane %v5187, %v5193
    %v5195 = vunpack.c.l.b16 %v5180
    %v5196 = vunpack.c.l.b16 %v5194
    %v5197 = vrot.slane %v5196, 7
    %v5198 = vsel %vm4858, %v5197, %v5195
    %v5199 = vpack.c.b16 %v5198, %v5198
    %v5201 = vunpack.c.l.s4 1966171168
    %v5202 = vunpack.c.0.s8 %v5201
    %v5203 = vlaneseq
    %v5204 = vshrl.u32 %v5203, 7
    %v5205 = vsub.s32 %v5202, %v5204
    %v5206 = vrot.slane %v5199, %v5205
    %v5208 = vunpack.c.l.s4 1966171168
    %v5209 = vunpack.c.0.s8 %v5208
    %v5210 = vlaneseq
    %v5211 = vshrl.u32 %v5210, 7
    %v5212 = vsub.s32 %v5209, %v5211
    %v5213 = vrot.slane %v5206, %v5212
    %5215 = vst.msk [vmem:[#allocation7 + $0x1] sm:$0x1] %vm2280, %v5213
    %v5216 = vld [vmem:[#allocation6] sm:$0x4]
    %v5217 = vld [vmem:[#allocation6 + $0x20] sm:$0x4]
    %v5221 = vunpack.c.l.s4 1966171168
    %v5222 = vunpack.c.0.s8 %v5221
    %v5223 = vlaneseq
    %v5224 = vshrl.u32 %v5223, 7
    %v5225 = vsub.s32 %v5222, %v5224
    %v5226 = vrot.slane %v5216, %v5225
    %v5228 = vunpack.c.l.s4 1966171168
    %v5229 = vunpack.c.0.s8 %v5228
    %v5230 = vlaneseq
    %v5231 = vshrl.u32 %v5230, 7
    %v5232 = vsub.s32 %v5229, %v5231
    %v5233 = vrot.slane %v5226, %v5232
    %v5234 = vcombine.high %v5233, %v5233
    %v5236 = vunpack.c.l.s4 1966171168
    %v5237 = vunpack.c.0.s8 %v5236
    %v5238 = vlaneseq
    %v5239 = vshrl.u32 %v5238, 7
    %v5240 = vsub.s32 %v5237, %v5239
    %v5241 = vrot.slane %v5217, %v5240
    %v5243 = vunpack.c.l.s4 1966171168
    %v5244 = vunpack.c.0.s8 %v5243
    %v5245 = vlaneseq
    %v5246 = vshrl.u32 %v5245, 7
    %v5247 = vsub.s32 %v5244, %v5246
    %v5248 = vrot.slane %v5241, %v5247
    %v5249 = vcombine.high %v5248, %v5248
    %v5251 = vunpack.c.l.s4 1935823168
    %v5252 = vunpack.c.0.s8 %v5251
    %v5253 = vlaneseq
    %v5254 = vshrl.u32 %v5253, 7
    %v5255 = vsub.s32 %v5252, %v5254
    %v5256 = vrot.slane %v5234, %v5255
    %v5258 = vunpack.c.l.s4 1935823168
    %v5259 = vunpack.c.0.s8 %v5258
    %v5260 = vlaneseq
    %v5261 = vshrl.u32 %v5260, 7
    %v5262 = vsub.s32 %v5259, %v5261
    %v5263 = vrot.slane %v5256, %v5262
    %v5265 = vunpack.c.l.s4 1935823168
    %v5266 = vunpack.c.0.s8 %v5265
    %v5267 = vlaneseq
    %v5268 = vshrl.u32 %v5267, 7
    %v5269 = vsub.s32 %v5266, %v5268
    %v5270 = vrot.slane %v5249, %v5269
    %v5272 = vunpack.c.l.s4 1935823168
    %v5273 = vunpack.c.0.s8 %v5272
    %v5274 = vlaneseq
    %v5275 = vshrl.u32 %v5274, 7
    %v5276 = vsub.s32 %v5273, %v5275
    %v5277 = vrot.slane %v5270, %v5276
    %v5278 = vunpack.c.l.b16 %v5263
    %v5279 = vunpack.c.l.b16 %v5277
    %v5280 = vrot.slane %v5278, 1
    %v5281 = vsel %vm4858, %v5279, %v5280
    %v5282 = vpack.c.b16 %v5281, %v5281
    %v5284 = vunpack.c.l.s4 1966171168
    %v5285 = vunpack.c.0.s8 %v5284
    %v5286 = vlaneseq
    %v5287 = vshrl.u32 %v5286, 7
    %v5288 = vsub.s32 %v5285, %v5287
    %v5289 = vrot.slane %v5282, %v5288
    %v5291 = vunpack.c.l.s4 1966171168
    %v5292 = vunpack.c.0.s8 %v5291
    %v5293 = vlaneseq
    %v5294 = vshrl.u32 %v5293, 7
    %v5295 = vsub.s32 %v5292, %v5294
    %v5296 = vrot.slane %v5289, %v5295
    %5297 = vrot.lane.b32.xlu0 %v5296, 32
    %v5298 = vpop.permute.xlu0 %5297
    %5300 = vst.msk [vmem:[#allocation7 + $0x1] sm:$0x1] %vm4959, %v5298
    %v5301 = vld [vmem:[#allocation6] sm:$0x8]
    %v5302 = vld [vmem:[#allocation6 + $0x20] sm:$0x8]
    %v5306 = vunpack.c.l.s4 1966171168
    %v5307 = vunpack.c.0.s8 %v5306
    %v5308 = vlaneseq
    %v5309 = vshrl.u32 %v5308, 7
    %v5310 = vsub.s32 %v5307, %v5309
    %v5311 = vrot.slane %v5301, %v5310
    %v5312 = vcombine.high %v5311, %v5311
    %v5314 = vunpack.c.l.s4 1966171168
    %v5315 = vunpack.c.0.s8 %v5314
    %v5316 = vlaneseq
    %v5317 = vshrl.u32 %v5316, 7
    %v5318 = vsub.s32 %v5315, %v5317
    %v5319 = vrot.slane %v5312, %v5318
    %v5320 = vcombine.high %v5319, %v5319
    %v5322 = vunpack.c.l.s4 1966171168
    %v5323 = vunpack.c.0.s8 %v5322
    %v5324 = vlaneseq
    %v5325 = vshrl.u32 %v5324, 7
    %v5326 = vsub.s32 %v5323, %v5325
    %v5327 = vrot.slane %v5302, %v5326
    %v5328 = vcombine.high %v5327, %v5327
    %v5330 = vunpack.c.l.s4 1966171168
    %v5331 = vunpack.c.0.s8 %v5330
    %v5332 = vlaneseq
    %v5333 = vshrl.u32 %v5332, 7
    %v5334 = vsub.s32 %v5331, %v5333
    %v5335 = vrot.slane %v5328, %v5334
    %v5336 = vcombine.high %v5335, %v5335
    %v5338 = vunpack.c.l.s4 1935823168
    %v5339 = vunpack.c.0.s8 %v5338
    %v5340 = vlaneseq
    %v5341 = vshrl.u32 %v5340, 7
    %v5342 = vsub.s32 %v5339, %v5341
    %v5343 = vrot.slane %v5320, %v5342
    %v5345 = vunpack.c.l.s4 1935823168
    %v5346 = vunpack.c.0.s8 %v5345
    %v5347 = vlaneseq
    %v5348 = vshrl.u32 %v5347, 7
    %v5349 = vsub.s32 %v5346, %v5348
    %v5350 = vrot.slane %v5343, %v5349
    %v5352 = vunpack.c.l.s4 1935823168
    %v5353 = vunpack.c.0.s8 %v5352
    %v5354 = vlaneseq
    %v5355 = vshrl.u32 %v5354, 7
    %v5356 = vsub.s32 %v5353, %v5355
    %v5357 = vrot.slane %v5336, %v5356
    %v5359 = vunpack.c.l.s4 1935823168
    %v5360 = vunpack.c.0.s8 %v5359
    %v5361 = vlaneseq
    %v5362 = vshrl.u32 %v5361, 7
    %v5363 = vsub.s32 %v5360, %v5362
    %v5364 = vrot.slane %v5357, %v5363
    %v5365 = vunpack.c.l.b16 %v5350
    %v5366 = vunpack.c.l.b16 %v5364
    %v5367 = vrot.slane %v5366, 7
    %v5368 = vsel %vm4858, %v5367, %v5365
    %v5369 = vpack.c.b16 %v5368, %v5368
    %v5371 = vunpack.c.l.s4 1966171168
    %v5372 = vunpack.c.0.s8 %v5371
    %v5373 = vlaneseq
    %v5374 = vshrl.u32 %v5373, 7
    %v5375 = vsub.s32 %v5372, %v5374
    %v5376 = vrot.slane %v5369, %v5375
    %v5378 = vunpack.c.l.s4 1966171168
    %v5379 = vunpack.c.0.s8 %v5378
    %v5380 = vlaneseq
    %v5381 = vshrl.u32 %v5380, 7
    %v5382 = vsub.s32 %v5379, %v5381
    %v5383 = vrot.slane %v5376, %v5382
    %5384 = vrot.lane.b32.xlu0 %v5383, 64
    %v5385 = vpop.permute.xlu0 %5384
    %5387 = vst.msk [vmem:[#allocation7 + $0x1] sm:$0x1] %vm5045, %v5385
    %v5388 = vld [vmem:[#allocation6] sm:$0x8]
    %v5389 = vld [vmem:[#allocation6 + $0x20] sm:$0x8]
    %v5393 = vunpack.c.l.s4 1966171168
    %v5394 = vunpack.c.0.s8 %v5393
    %v5395 = vlaneseq
    %v5396 = vshrl.u32 %v5395, 7
    %v5397 = vsub.s32 %v5394, %v5396
    %v5398 = vrot.slane %v5388, %v5397
    %v5399 = vcombine.high %v5398, %v5398
    %v5401 = vunpack.c.l.s4 1966171168
    %v5402 = vunpack.c.0.s8 %v5401
    %v5403 = vlaneseq
    %v5404 = vshrl.u32 %v5403, 7
    %v5405 = vsub.s32 %v5402, %v5404
    %v5406 = vrot.slane %v5399, %v5405
    %v5407 = vcombine.high %v5406, %v5406
    %v5409 = vunpack.c.l.s4 1966171168
    %v5410 = vunpack.c.0.s8 %v5409
    %v5411 = vlaneseq
    %v5412 = vshrl.u32 %v5411, 7
    %v5413 = vsub.s32 %v5410, %v5412
    %v5414 = vrot.slane %v5389, %v5413
    %v5415 = vcombine.high %v5414, %v5414
    %v5417 = vunpack.c.l.s4 1966171168
    %v5418 = vunpack.c.0.s8 %v5417
    %v5419 = vlaneseq
    %v5420 = vshrl.u32 %v5419, 7
    %v5421 = vsub.s32 %v5418, %v5420
    %v5422 = vrot.slane %v5415, %v5421
    %v5423 = vcombine.high %v5422, %v5422
    %v5425 = vunpack.c.l.s4 1935823168
    %v5426 = vunpack.c.0.s8 %v5425
    %v5427 = vlaneseq
    %v5428 = vshrl.u32 %v5427, 7
    %v5429 = vsub.s32 %v5426, %v5428
    %v5430 = vrot.slane %v5407, %v5429
    %v5432 = vunpack.c.l.s4 1935823168
    %v5433 = vunpack.c.0.s8 %v5432
    %v5434 = vlaneseq
    %v5435 = vshrl.u32 %v5434, 7
    %v5436 = vsub.s32 %v5433, %v5435
    %v5437 = vrot.slane %v5430, %v5436
    %v5439 = vunpack.c.l.s4 1935823168
    %v5440 = vunpack.c.0.s8 %v5439
    %v5441 = vlaneseq
    %v5442 = vshrl.u32 %v5441, 7
    %v5443 = vsub.s32 %v5440, %v5442
    %v5444 = vrot.slane %v5423, %v5443
    %v5446 = vunpack.c.l.s4 1935823168
    %v5447 = vunpack.c.0.s8 %v5446
    %v5448 = vlaneseq
    %v5449 = vshrl.u32 %v5448, 7
    %v5450 = vsub.s32 %v5447, %v5449
    %v5451 = vrot.slane %v5444, %v5450
    %v5452 = vunpack.c.l.b16 %v5437
    %v5453 = vunpack.c.l.b16 %v5451
    %v5454 = vrot.slane %v5452, 1
    %v5455 = vsel %vm4858, %v5453, %v5454
    %v5456 = vpack.c.b16 %v5455, %v5455
    %v5458 = vunpack.c.l.s4 1966171168
    %v5459 = vunpack.c.0.s8 %v5458
    %v5460 = vlaneseq
    %v5461 = vshrl.u32 %v5460, 7
    %v5462 = vsub.s32 %v5459, %v5461
    %v5463 = vrot.slane %v5456, %v5462
    %v5465 = vunpack.c.l.s4 1966171168
    %v5466 = vunpack.c.0.s8 %v5465
    %v5467 = vlaneseq
    %v5468 = vshrl.u32 %v5467, 7
    %v5469 = vsub.s32 %v5466, %v5468
    %v5470 = vrot.slane %v5463, %v5469
    %5471 = vrot.lane.b32.xlu0 %v5470, 96
    %v5472 = vpop.permute.xlu0 %5471
    %5474 = vst.msk [vmem:[#allocation7 + $0x1] sm:$0x1] %vm5131, %v5472
    %s5475 = scalar_lea.vmem [#allocation6], 4
    %v5476 = vld [vmem:[%s5475] sm:$0x1]
    %v5477 = vld [vmem:[%s5475 + $0x20] sm:$0x1]
    %v5481 = vunpack.c.l.s4 1966171168
    %v5482 = vunpack.c.0.s8 %v5481
    %v5483 = vlaneseq
    %v5484 = vshrl.u32 %v5483, 7
    %v5485 = vsub.s32 %v5482, %v5484
    %v5486 = vrot.slane %v5476, %v5485
    %v5488 = vunpack.c.l.s4 1966171168
    %v5489 = vunpack.c.0.s8 %v5488
    %v5490 = vlaneseq
    %v5491 = vshrl.u32 %v5490, 7
    %v5492 = vsub.s32 %v5489, %v5491
    %v5493 = vrot.slane %v5486, %v5492
    %v5495 = vunpack.c.l.s4 1966171168
    %v5496 = vunpack.c.0.s8 %v5495
    %v5497 = vlaneseq
    %v5498 = vshrl.u32 %v5497, 7
    %v5499 = vsub.s32 %v5496, %v5498
    %v5500 = vrot.slane %v5477, %v5499
    %v5502 = vunpack.c.l.s4 1966171168
    %v5503 = vunpack.c.0.s8 %v5502
    %v5504 = vlaneseq
    %v5505 = vshrl.u32 %v5504, 7
    %v5506 = vsub.s32 %v5503, %v5505
    %v5507 = vrot.slane %v5500, %v5506
    %v5509 = vunpack.c.l.s4 1935823168
    %v5510 = vunpack.c.0.s8 %v5509
    %v5511 = vlaneseq
    %v5512 = vshrl.u32 %v5511, 7
    %v5513 = vsub.s32 %v5510, %v5512
    %v5514 = vrot.slane %v5493, %v5513
    %v5516 = vunpack.c.l.s4 1935823168
    %v5517 = vunpack.c.0.s8 %v5516
    %v5518 = vlaneseq
    %v5519 = vshrl.u32 %v5518, 7
    %v5520 = vsub.s32 %v5517, %v5519
    %v5521 = vrot.slane %v5514, %v5520
    %v5523 = vunpack.c.l.s4 1935823168
    %v5524 = vunpack.c.0.s8 %v5523
    %v5525 = vlaneseq
    %v5526 = vshrl.u32 %v5525, 7
    %v5527 = vsub.s32 %v5524, %v5526
    %v5528 = vrot.slane %v5507, %v5527
    %v5530 = vunpack.c.l.s4 1935823168
    %v5531 = vunpack.c.0.s8 %v5530
    %v5532 = vlaneseq
    %v5533 = vshrl.u32 %v5532, 7
    %v5534 = vsub.s32 %v5531, %v5533
    %v5535 = vrot.slane %v5528, %v5534
    %v5536 = vunpack.c.l.b16 %v5521
    %v5537 = vunpack.c.l.b16 %v5535
    %v5538 = vrot.slane %v5537, 7
    %v5539 = vsel %vm4858, %v5538, %v5536
    %v5540 = vpack.c.b16 %v5539, %v5539
    %v5542 = vunpack.c.l.s4 1966171168
    %v5543 = vunpack.c.0.s8 %v5542
    %v5544 = vlaneseq
    %v5545 = vshrl.u32 %v5544, 7
    %v5546 = vsub.s32 %v5543, %v5545
    %v5547 = vrot.slane %v5540, %v5546
    %v5549 = vunpack.c.l.s4 1966171168
    %v5550 = vunpack.c.0.s8 %v5549
    %v5551 = vlaneseq
    %v5552 = vshrl.u32 %v5551, 7
    %v5553 = vsub.s32 %v5550, %v5552
    %v5554 = vrot.slane %v5547, %v5553
    %5556 = vst.msk [vmem:[#allocation7 + $0x2] sm:$0x1] %vm2280, %v5554
    %v5557 = vld [vmem:[%s5475] sm:$0x1]
    %v5558 = vld [vmem:[%s5475 + $0x20] sm:$0x1]
    %v5562 = vunpack.c.l.s4 1966171168
    %v5563 = vunpack.c.0.s8 %v5562
    %v5564 = vlaneseq
    %v5565 = vshrl.u32 %v5564, 7
    %v5566 = vsub.s32 %v5563, %v5565
    %v5567 = vrot.slane %v5557, %v5566
    %v5569 = vunpack.c.l.s4 1966171168
    %v5570 = vunpack.c.0.s8 %v5569
    %v5571 = vlaneseq
    %v5572 = vshrl.u32 %v5571, 7
    %v5573 = vsub.s32 %v5570, %v5572
    %v5574 = vrot.slane %v5567, %v5573
    %v5576 = vunpack.c.l.s4 1966171168
    %v5577 = vunpack.c.0.s8 %v5576
    %v5578 = vlaneseq
    %v5579 = vshrl.u32 %v5578, 7
    %v5580 = vsub.s32 %v5577, %v5579
    %v5581 = vrot.slane %v5558, %v5580
    %v5583 = vunpack.c.l.s4 1966171168
    %v5584 = vunpack.c.0.s8 %v5583
    %v5585 = vlaneseq
    %v5586 = vshrl.u32 %v5585, 7
    %v5587 = vsub.s32 %v5584, %v5586
    %v5588 = vrot.slane %v5581, %v5587
    %v5590 = vunpack.c.l.s4 1935823168
    %v5591 = vunpack.c.0.s8 %v5590
    %v5592 = vlaneseq
    %v5593 = vshrl.u32 %v5592, 7
    %v5594 = vsub.s32 %v5591, %v5593
    %v5595 = vrot.slane %v5574, %v5594
    %v5597 = vunpack.c.l.s4 1935823168
    %v5598 = vunpack.c.0.s8 %v5597
    %v5599 = vlaneseq
    %v5600 = vshrl.u32 %v5599, 7
    %v5601 = vsub.s32 %v5598, %v5600
    %v5602 = vrot.slane %v5595, %v5601
    %v5604 = vunpack.c.l.s4 1935823168
    %v5605 = vunpack.c.0.s8 %v5604
    %v5606 = vlaneseq
    %v5607 = vshrl.u32 %v5606, 7
    %v5608 = vsub.s32 %v5605, %v5607
    %v5609 = vrot.slane %v5588, %v5608
    %v5611 = vunpack.c.l.s4 1935823168
    %v5612 = vunpack.c.0.s8 %v5611
    %v5613 = vlaneseq
    %v5614 = vshrl.u32 %v5613, 7
    %v5615 = vsub.s32 %v5612, %v5614
    %v5616 = vrot.slane %v5609, %v5615
    %v5617 = vunpack.c.l.b16 %v5602
    %v5618 = vunpack.c.l.b16 %v5616
    %v5619 = vrot.slane %v5617, 1
    %v5620 = vsel %vm4858, %v5618, %v5619
    %v5621 = vpack.c.b16 %v5620, %v5620
    %v5623 = vunpack.c.l.s4 1966171168
    %v5624 = vunpack.c.0.s8 %v5623
    %v5625 = vlaneseq
    %v5626 = vshrl.u32 %v5625, 7
    %v5627 = vsub.s32 %v5624, %v5626
    %v5628 = vrot.slane %v5621, %v5627
    %v5630 = vunpack.c.l.s4 1966171168
    %v5631 = vunpack.c.0.s8 %v5630
    %v5632 = vlaneseq
    %v5633 = vshrl.u32 %v5632, 7
    %v5634 = vsub.s32 %v5631, %v5633
    %v5635 = vrot.slane %v5628, %v5634
    %5636 = vrot.lane.b32.xlu0 %v5635, 32
    %v5637 = vpop.permute.xlu0 %5636
    %5639 = vst.msk [vmem:[#allocation7 + $0x2] sm:$0x1] %vm4959, %v5637
    %v5640 = vld [vmem:[%s5475] sm:$0x2]
    %v5641 = vld [vmem:[%s5475 + $0x20] sm:$0x2]
    %v5645 = vunpack.c.l.s4 1966171168
    %v5646 = vunpack.c.0.s8 %v5645
    %v5647 = vlaneseq
    %v5648 = vshrl.u32 %v5647, 7
    %v5649 = vsub.s32 %v5646, %v5648
    %v5650 = vrot.slane %v5640, %v5649
    %v5651 = vcombine.high %v5650, %v5650
    %v5653 = vunpack.c.l.s4 1966171168
    %v5654 = vunpack.c.0.s8 %v5653
    %v5655 = vlaneseq
    %v5656 = vshrl.u32 %v5655, 7
    %v5657 = vsub.s32 %v5654, %v5656
    %v5658 = vrot.slane %v5651, %v5657
    %v5660 = vunpack.c.l.s4 1966171168
    %v5661 = vunpack.c.0.s8 %v5660
    %v5662 = vlaneseq
    %v5663 = vshrl.u32 %v5662, 7
    %v5664 = vsub.s32 %v5661, %v5663
    %v5665 = vrot.slane %v5641, %v5664
    %v5666 = vcombine.high %v5665, %v5665
    %v5668 = vunpack.c.l.s4 1966171168
    %v5669 = vunpack.c.0.s8 %v5668
    %v5670 = vlaneseq
    %v5671 = vshrl.u32 %v5670, 7
    %v5672 = vsub.s32 %v5669, %v5671
    %v5673 = vrot.slane %v5666, %v5672
    %v5675 = vunpack.c.l.s4 1935823168
    %v5676 = vunpack.c.0.s8 %v5675
    %v5677 = vlaneseq
    %v5678 = vshrl.u32 %v5677, 7
    %v5679 = vsub.s32 %v5676, %v5678
    %v5680 = vrot.slane %v5658, %v5679
    %v5682 = vunpack.c.l.s4 1935823168
    %v5683 = vunpack.c.0.s8 %v5682
    %v5684 = vlaneseq
    %v5685 = vshrl.u32 %v5684, 7
    %v5686 = vsub.s32 %v5683, %v5685
    %v5687 = vrot.slane %v5680, %v5686
    %v5689 = vunpack.c.l.s4 1935823168
    %v5690 = vunpack.c.0.s8 %v5689
    %v5691 = vlaneseq
    %v5692 = vshrl.u32 %v5691, 7
    %v5693 = vsub.s32 %v5690, %v5692
    %v5694 = vrot.slane %v5673, %v5693
    %v5696 = vunpack.c.l.s4 1935823168
    %v5697 = vunpack.c.0.s8 %v5696
    %v5698 = vlaneseq
    %v5699 = vshrl.u32 %v5698, 7
    %v5700 = vsub.s32 %v5697, %v5699
    %v5701 = vrot.slane %v5694, %v5700
    %v5702 = vunpack.c.l.b16 %v5687
    %v5703 = vunpack.c.l.b16 %v5701
    %v5704 = vrot.slane %v5703, 7
    %v5705 = vsel %vm4858, %v5704, %v5702
    %v5706 = vpack.c.b16 %v5705, %v5705
    %v5708 = vunpack.c.l.s4 1966171168
    %v5709 = vunpack.c.0.s8 %v5708
    %v5710 = vlaneseq
    %v5711 = vshrl.u32 %v5710, 7
    %v5712 = vsub.s32 %v5709, %v5711
    %v5713 = vrot.slane %v5706, %v5712
    %v5715 = vunpack.c.l.s4 1966171168
    %v5716 = vunpack.c.0.s8 %v5715
    %v5717 = vlaneseq
    %v5718 = vshrl.u32 %v5717, 7
    %v5719 = vsub.s32 %v5716, %v5718
    %v5720 = vrot.slane %v5713, %v5719
    %5721 = vrot.lane.b32.xlu0 %v5720, 64
    %v5722 = vpop.permute.xlu0 %5721
    %5724 = vst.msk [vmem:[#allocation7 + $0x2] sm:$0x1] %vm5045, %v5722
    %v5725 = vld [vmem:[%s5475] sm:$0x2]
    %v5726 = vld [vmem:[%s5475 + $0x20] sm:$0x2]
    %v5730 = vunpack.c.l.s4 1966171168
    %v5731 = vunpack.c.0.s8 %v5730
    %v5732 = vlaneseq
    %v5733 = vshrl.u32 %v5732, 7
    %v5734 = vsub.s32 %v5731, %v5733
    %v5735 = vrot.slane %v5725, %v5734
    %v5736 = vcombine.high %v5735, %v5735
    %v5738 = vunpack.c.l.s4 1966171168
    %v5739 = vunpack.c.0.s8 %v5738
    %v5740 = vlaneseq
    %v5741 = vshrl.u32 %v5740, 7
    %v5742 = vsub.s32 %v5739, %v5741
    %v5743 = vrot.slane %v5736, %v5742
    %v5745 = vunpack.c.l.s4 1966171168
    %v5746 = vunpack.c.0.s8 %v5745
    %v5747 = vlaneseq
    %v5748 = vshrl.u32 %v5747, 7
    %v5749 = vsub.s32 %v5746, %v5748
    %v5750 = vrot.slane %v5726, %v5749
    %v5751 = vcombine.high %v5750, %v5750
    %v5753 = vunpack.c.l.s4 1966171168
    %v5754 = vunpack.c.0.s8 %v5753
    %v5755 = vlaneseq
    %v5756 = vshrl.u32 %v5755, 7
    %v5757 = vsub.s32 %v5754, %v5756
    %v5758 = vrot.slane %v5751, %v5757
    %v5760 = vunpack.c.l.s4 1935823168
    %v5761 = vunpack.c.0.s8 %v5760
    %v5762 = vlaneseq
    %v5763 = vshrl.u32 %v5762, 7
    %v5764 = vsub.s32 %v5761, %v5763
    %v5765 = vrot.slane %v5743, %v5764
    %v5767 = vunpack.c.l.s4 1935823168
    %v5768 = vunpack.c.0.s8 %v5767
    %v5769 = vlaneseq
    %v5770 = vshrl.u32 %v5769, 7
    %v5771 = vsub.s32 %v5768, %v5770
    %v5772 = vrot.slane %v5765, %v5771
    %v5774 = vunpack.c.l.s4 1935823168
    %v5775 = vunpack.c.0.s8 %v5774
    %v5776 = vlaneseq
    %v5777 = vshrl.u32 %v5776, 7
    %v5778 = vsub.s32 %v5775, %v5777
    %v5779 = vrot.slane %v5758, %v5778
    %v5781 = vunpack.c.l.s4 1935823168
    %v5782 = vunpack.c.0.s8 %v5781
    %v5783 = vlaneseq
    %v5784 = vshrl.u32 %v5783, 7
    %v5785 = vsub.s32 %v5782, %v5784
    %v5786 = vrot.slane %v5779, %v5785
    %v5787 = vunpack.c.l.b16 %v5772
    %v5788 = vunpack.c.l.b16 %v5786
    %v5789 = vrot.slane %v5787, 1
    %v5790 = vsel %vm4858, %v5788, %v5789
    %v5791 = vpack.c.b16 %v5790, %v5790
    %v5793 = vunpack.c.l.s4 1966171168
    %v5794 = vunpack.c.0.s8 %v5793
    %v5795 = vlaneseq
    %v5796 = vshrl.u32 %v5795, 7
    %v5797 = vsub.s32 %v5794, %v5796
    %v5798 = vrot.slane %v5791, %v5797
    %v5800 = vunpack.c.l.s4 1966171168
    %v5801 = vunpack.c.0.s8 %v5800
    %v5802 = vlaneseq
    %v5803 = vshrl.u32 %v5802, 7
    %v5804 = vsub.s32 %v5801, %v5803
    %v5805 = vrot.slane %v5798, %v5804
    %5806 = vrot.lane.b32.xlu0 %v5805, 96
    %v5807 = vpop.permute.xlu0 %5806
    %5809 = vst.msk [vmem:[#allocation7 + $0x2] sm:$0x1] %vm5131, %v5807
    %v5810 = vld [vmem:[%s5475] sm:$0x4]
    %v5811 = vld [vmem:[%s5475 + $0x20] sm:$0x4]
    %v5815 = vunpack.c.l.s4 1966171168
    %v5816 = vunpack.c.0.s8 %v5815
    %v5817 = vlaneseq
    %v5818 = vshrl.u32 %v5817, 7
    %v5819 = vsub.s32 %v5816, %v5818
    %v5820 = vrot.slane %v5810, %v5819
    %v5822 = vunpack.c.l.s4 1966171168
    %v5823 = vunpack.c.0.s8 %v5822
    %v5824 = vlaneseq
    %v5825 = vshrl.u32 %v5824, 7
    %v5826 = vsub.s32 %v5823, %v5825
    %v5827 = vrot.slane %v5820, %v5826
    %v5828 = vcombine.high %v5827, %v5827
    %v5830 = vunpack.c.l.s4 1966171168
    %v5831 = vunpack.c.0.s8 %v5830
    %v5832 = vlaneseq
    %v5833 = vshrl.u32 %v5832, 7
    %v5834 = vsub.s32 %v5831, %v5833
    %v5835 = vrot.slane %v5811, %v5834
    %v5837 = vunpack.c.l.s4 1966171168
    %v5838 = vunpack.c.0.s8 %v5837
    %v5839 = vlaneseq
    %v5840 = vshrl.u32 %v5839, 7
    %v5841 = vsub.s32 %v5838, %v5840
    %v5842 = vrot.slane %v5835, %v5841
    %v5843 = vcombine.high %v5842, %v5842
    %v5845 = vunpack.c.l.s4 1935823168
    %v5846 = vunpack.c.0.s8 %v5845
    %v5847 = vlaneseq
    %v5848 = vshrl.u32 %v5847, 7
    %v5849 = vsub.s32 %v5846, %v5848
    %v5850 = vrot.slane %v5828, %v5849
    %v5852 = vunpack.c.l.s4 1935823168
    %v5853 = vunpack.c.0.s8 %v5852
    %v5854 = vlaneseq
    %v5855 = vshrl.u32 %v5854, 7
    %v5856 = vsub.s32 %v5853, %v5855
    %v5857 = vrot.slane %v5850, %v5856
    %v5859 = vunpack.c.l.s4 1935823168
    %v5860 = vunpack.c.0.s8 %v5859
    %v5861 = vlaneseq
    %v5862 = vshrl.u32 %v5861, 7
    %v5863 = vsub.s32 %v5860, %v5862
    %v5864 = vrot.slane %v5843, %v5863
    %v5866 = vunpack.c.l.s4 1935823168
    %v5867 = vunpack.c.0.s8 %v5866
    %v5868 = vlaneseq
    %v5869 = vshrl.u32 %v5868, 7
    %v5870 = vsub.s32 %v5867, %v5869
    %v5871 = vrot.slane %v5864, %v5870
    %v5872 = vunpack.c.l.b16 %v5857
    %v5873 = vunpack.c.l.b16 %v5871
    %v5874 = vrot.slane %v5873, 7
    %v5875 = vsel %vm4858, %v5874, %v5872
    %v5876 = vpack.c.b16 %v5875, %v5875
    %v5878 = vunpack.c.l.s4 1966171168
    %v5879 = vunpack.c.0.s8 %v5878
    %v5880 = vlaneseq
    %v5881 = vshrl.u32 %v5880, 7
    %v5882 = vsub.s32 %v5879, %v5881
    %v5883 = vrot.slane %v5876, %v5882
    %v5885 = vunpack.c.l.s4 1966171168
    %v5886 = vunpack.c.0.s8 %v5885
    %v5887 = vlaneseq
    %v5888 = vshrl.u32 %v5887, 7
    %v5889 = vsub.s32 %v5886, %v5888
    %v5890 = vrot.slane %v5883, %v5889
    %5892 = vst.msk [vmem:[#allocation7 + $0x3] sm:$0x1] %vm2280, %v5890
    %v5893 = vld [vmem:[%s5475] sm:$0x4]
    %v5894 = vld [vmem:[%s5475 + $0x20] sm:$0x4]
    %v5898 = vunpack.c.l.s4 1966171168
    %v5899 = vunpack.c.0.s8 %v5898
    %v5900 = vlaneseq
    %v5901 = vshrl.u32 %v5900, 7
    %v5902 = vsub.s32 %v5899, %v5901
    %v5903 = vrot.slane %v5893, %v5902
    %v5905 = vunpack.c.l.s4 1966171168
    %v5906 = vunpack.c.0.s8 %v5905
    %v5907 = vlaneseq
    %v5908 = vshrl.u32 %v5907, 7
    %v5909 = vsub.s32 %v5906, %v5908
    %v5910 = vrot.slane %v5903, %v5909
    %v5911 = vcombine.high %v5910, %v5910
    %v5913 = vunpack.c.l.s4 1966171168
    %v5914 = vunpack.c.0.s8 %v5913
    %v5915 = vlaneseq
    %v5916 = vshrl.u32 %v5915, 7
    %v5917 = vsub.s32 %v5914, %v5916
    %v5918 = vrot.slane %v5894, %v5917
    %v5920 = vunpack.c.l.s4 1966171168
    %v5921 = vunpack.c.0.s8 %v5920
    %v5922 = vlaneseq
    %v5923 = vshrl.u32 %v5922, 7
    %v5924 = vsub.s32 %v5921, %v5923
    %v5925 = vrot.slane %v5918, %v5924
    %v5926 = vcombine.high %v5925, %v5925
    %v5928 = vunpack.c.l.s4 1935823168
    %v5929 = vunpack.c.0.s8 %v5928
    %v5930 = vlaneseq
    %v5931 = vshrl.u32 %v5930, 7
    %v5932 = vsub.s32 %v5929, %v5931
    %v5933 = vrot.slane %v5911, %v5932
    %v5935 = vunpack.c.l.s4 1935823168
    %v5936 = vunpack.c.0.s8 %v5935
    %v5937 = vlaneseq
    %v5938 = vshrl.u32 %v5937, 7
    %v5939 = vsub.s32 %v5936, %v5938
    %v5940 = vrot.slane %v5933, %v5939
    %v5942 = vunpack.c.l.s4 1935823168
    %v5943 = vunpack.c.0.s8 %v5942
    %v5944 = vlaneseq
    %v5945 = vshrl.u32 %v5944, 7
    %v5946 = vsub.s32 %v5943, %v5945
    %v5947 = vrot.slane %v5926, %v5946
    %v5949 = vunpack.c.l.s4 1935823168
    %v5950 = vunpack.c.0.s8 %v5949
    %v5951 = vlaneseq
    %v5952 = vshrl.u32 %v5951, 7
    %v5953 = vsub.s32 %v5950, %v5952
    %v5954 = vrot.slane %v5947, %v5953
    %v5955 = vunpack.c.l.b16 %v5940
    %v5956 = vunpack.c.l.b16 %v5954
    %v5957 = vrot.slane %v5955, 1
    %v5958 = vsel %vm4858, %v5956, %v5957
    %v5959 = vpack.c.b16 %v5958, %v5958
    %v5961 = vunpack.c.l.s4 1966171168
    %v5962 = vunpack.c.0.s8 %v5961
    %v5963 = vlaneseq
    %v5964 = vshrl.u32 %v5963, 7
    %v5965 = vsub.s32 %v5962, %v5964
    %v5966 = vrot.slane %v5959, %v5965
    %v5968 = vunpack.c.l.s4 1966171168
    %v5969 = vunpack.c.0.s8 %v5968
    %v5970 = vlaneseq
    %v5971 = vshrl.u32 %v5970, 7
    %v5972 = vsub.s32 %v5969, %v5971
    %v5973 = vrot.slane %v5966, %v5972
    %5974 = vrot.lane.b32.xlu0 %v5973, 32
    %v5975 = vpop.permute.xlu0 %5974
    %5977 = vst.msk [vmem:[#allocation7 + $0x3] sm:$0x1] %vm4959, %v5975
    %v5978 = vld [vmem:[%s5475] sm:$0x8]
    %v5979 = vld [vmem:[%s5475 + $0x20] sm:$0x8]
    %v5983 = vunpack.c.l.s4 1966171168
    %v5984 = vunpack.c.0.s8 %v5983
    %v5985 = vlaneseq
    %v5986 = vshrl.u32 %v5985, 7
    %v5987 = vsub.s32 %v5984, %v5986
    %v5988 = vrot.slane %v5978, %v5987
    %v5989 = vcombine.high %v5988, %v5988
    %v5991 = vunpack.c.l.s4 1966171168
    %v5992 = vunpack.c.0.s8 %v5991
    %v5993 = vlaneseq
    %v5994 = vshrl.u32 %v5993, 7
    %v5995 = vsub.s32 %v5992, %v5994
    %v5996 = vrot.slane %v5989, %v5995
    %v5997 = vcombine.high %v5996, %v5996
    %v5999 = vunpack.c.l.s4 1966171168
    %v6000 = vunpack.c.0.s8 %v5999
    %v6001 = vlaneseq
    %v6002 = vshrl.u32 %v6001, 7
    %v6003 = vsub.s32 %v6000, %v6002
    %v6004 = vrot.slane %v5979, %v6003
    %v6005 = vcombine.high %v6004, %v6004
    %v6007 = vunpack.c.l.s4 1966171168
    %v6008 = vunpack.c.0.s8 %v6007
    %v6009 = vlaneseq
    %v6010 = vshrl.u32 %v6009, 7
    %v6011 = vsub.s32 %v6008, %v6010
    %v6012 = vrot.slane %v6005, %v6011
    %v6013 = vcombine.high %v6012, %v6012
    %v6015 = vunpack.c.l.s4 1935823168
    %v6016 = vunpack.c.0.s8 %v6015
    %v6017 = vlaneseq
    %v6018 = vshrl.u32 %v6017, 7
    %v6019 = vsub.s32 %v6016, %v6018
    %v6020 = vrot.slane %v5997, %v6019
    %v6022 = vunpack.c.l.s4 1935823168
    %v6023 = vunpack.c.0.s8 %v6022
    %v6024 = vlaneseq
    %v6025 = vshrl.u32 %v6024, 7
    %v6026 = vsub.s32 %v6023, %v6025
    %v6027 = vrot.slane %v6020, %v6026
    %v6029 = vunpack.c.l.s4 1935823168
    %v6030 = vunpack.c.0.s8 %v6029
    %v6031 = vlaneseq
    %v6032 = vshrl.u32 %v6031, 7
    %v6033 = vsub.s32 %v6030, %v6032
    %v6034 = vrot.slane %v6013, %v6033
    %v6036 = vunpack.c.l.s4 1935823168
    %v6037 = vunpack.c.0.s8 %v6036
    %v6038 = vlaneseq
    %v6039 = vshrl.u32 %v6038, 7
    %v6040 = vsub.s32 %v6037, %v6039
    %v6041 = vrot.slane %v6034, %v6040
    %v6042 = vunpack.c.l.b16 %v6027
    %v6043 = vunpack.c.l.b16 %v6041
    %v6044 = vrot.slane %v6043, 7
    %v6045 = vsel %vm4858, %v6044, %v6042
    %v6046 = vpack.c.b16 %v6045, %v6045
    %v6048 = vunpack.c.l.s4 1966171168
    %v6049 = vunpack.c.0.s8 %v6048
    %v6050 = vlaneseq
    %v6051 = vshrl.u32 %v6050, 7
    %v6052 = vsub.s32 %v6049, %v6051
    %v6053 = vrot.slane %v6046, %v6052
    %v6055 = vunpack.c.l.s4 1966171168
    %v6056 = vunpack.c.0.s8 %v6055
    %v6057 = vlaneseq
    %v6058 = vshrl.u32 %v6057, 7
    %v6059 = vsub.s32 %v6056, %v6058
    %v6060 = vrot.slane %v6053, %v6059
    %6061 = vrot.lane.b32.xlu0 %v6060, 64
    %v6062 = vpop.permute.xlu0 %6061
    %6064 = vst.msk [vmem:[#allocation7 + $0x3] sm:$0x1] %vm5045, %v6062
    %v6065 = vld [vmem:[%s5475] sm:$0x8]
    %v6066 = vld [vmem:[%s5475 + $0x20] sm:$0x8]
    %v6070 = vunpack.c.l.s4 1966171168
    %v6071 = vunpack.c.0.s8 %v6070
    %v6072 = vlaneseq
    %v6073 = vshrl.u32 %v6072, 7
    %v6074 = vsub.s32 %v6071, %v6073
    %v6075 = vrot.slane %v6065, %v6074
    %v6076 = vcombine.high %v6075, %v6075
    %v6078 = vunpack.c.l.s4 1966171168
    %v6079 = vunpack.c.0.s8 %v6078
    %v6080 = vlaneseq
    %v6081 = vshrl.u32 %v6080, 7
    %v6082 = vsub.s32 %v6079, %v6081
    %v6083 = vrot.slane %v6076, %v6082
    %v6084 = vcombine.high %v6083, %v6083
    %v6086 = vunpack.c.l.s4 1966171168
    %v6087 = vunpack.c.0.s8 %v6086
    %v6088 = vlaneseq
    %v6089 = vshrl.u32 %v6088, 7
    %v6090 = vsub.s32 %v6087, %v6089
    %v6091 = vrot.slane %v6066, %v6090
    %v6092 = vcombine.high %v6091, %v6091
    %v6094 = vunpack.c.l.s4 1966171168
    %v6095 = vunpack.c.0.s8 %v6094
    %v6096 = vlaneseq
    %v6097 = vshrl.u32 %v6096, 7
    %v6098 = vsub.s32 %v6095, %v6097
    %v6099 = vrot.slane %v6092, %v6098
    %v6100 = vcombine.high %v6099, %v6099
    %v6102 = vunpack.c.l.s4 1935823168
    %v6103 = vunpack.c.0.s8 %v6102
    %v6104 = vlaneseq
    %v6105 = vshrl.u32 %v6104, 7
    %v6106 = vsub.s32 %v6103, %v6105
    %v6107 = vrot.slane %v6084, %v6106
    %v6109 = vunpack.c.l.s4 1935823168
    %v6110 = vunpack.c.0.s8 %v6109
    %v6111 = vlaneseq
    %v6112 = vshrl.u32 %v6111, 7
    %v6113 = vsub.s32 %v6110, %v6112
    %v6114 = vrot.slane %v6107, %v6113
    %v6116 = vunpack.c.l.s4 1935823168
    %v6117 = vunpack.c.0.s8 %v6116
    %v6118 = vlaneseq
    %v6119 = vshrl.u32 %v6118, 7
    %v6120 = vsub.s32 %v6117, %v6119
    %v6121 = vrot.slane %v6100, %v6120
    %v6123 = vunpack.c.l.s4 1935823168
    %v6124 = vunpack.c.0.s8 %v6123
    %v6125 = vlaneseq
    %v6126 = vshrl.u32 %v6125, 7
    %v6127 = vsub.s32 %v6124, %v6126
    %v6128 = vrot.slane %v6121, %v6127
    %v6129 = vunpack.c.l.b16 %v6114
    %v6130 = vunpack.c.l.b16 %v6128
    %v6131 = vrot.slane %v6129, 1
    %v6132 = vsel %vm4858, %v6130, %v6131
    %v6133 = vpack.c.b16 %v6132, %v6132
    %v6135 = vunpack.c.l.s4 1966171168
    %v6136 = vunpack.c.0.s8 %v6135
    %v6137 = vlaneseq
    %v6138 = vshrl.u32 %v6137, 7
    %v6139 = vsub.s32 %v6136, %v6138
    %v6140 = vrot.slane %v6133, %v6139
    %v6142 = vunpack.c.l.s4 1966171168
    %v6143 = vunpack.c.0.s8 %v6142
    %v6144 = vlaneseq
    %v6145 = vshrl.u32 %v6144, 7
    %v6146 = vsub.s32 %v6143, %v6145
    %v6147 = vrot.slane %v6140, %v6146
    %6148 = vrot.lane.b32.xlu0 %v6147, 96
    %v6149 = vpop.permute.xlu0 %6148
    %6151 = vst.msk [vmem:[#allocation7 + $0x3] sm:$0x1] %vm5131, %v6149
    %s6152 = scalar_lea.vmem [#allocation6], 8
    %v6153 = vld [vmem:[%s6152] sm:$0x1]
    %v6154 = vld [vmem:[%s6152 + $0x20] sm:$0x1]
    %v6158 = vunpack.c.l.s4 1966171168
    %v6159 = vunpack.c.0.s8 %v6158
    %v6160 = vlaneseq
    %v6161 = vshrl.u32 %v6160, 7
    %v6162 = vsub.s32 %v6159, %v6161
    %v6163 = vrot.slane %v6153, %v6162
    %v6165 = vunpack.c.l.s4 1966171168
    %v6166 = vunpack.c.0.s8 %v6165
    %v6167 = vlaneseq
    %v6168 = vshrl.u32 %v6167, 7
    %v6169 = vsub.s32 %v6166, %v6168
    %v6170 = vrot.slane %v6163, %v6169
    %v6172 = vunpack.c.l.s4 1966171168
    %v6173 = vunpack.c.0.s8 %v6172
    %v6174 = vlaneseq
    %v6175 = vshrl.u32 %v6174, 7
    %v6176 = vsub.s32 %v6173, %v6175
    %v6177 = vrot.slane %v6154, %v6176
    %v6179 = vunpack.c.l.s4 1966171168
    %v6180 = vunpack.c.0.s8 %v6179
    %v6181 = vlaneseq
    %v6182 = vshrl.u32 %v6181, 7
    %v6183 = vsub.s32 %v6180, %v6182
    %v6184 = vrot.slane %v6177, %v6183
    %v6186 = vunpack.c.l.s4 1935823168
    %v6187 = vunpack.c.0.s8 %v6186
    %v6188 = vlaneseq
    %v6189 = vshrl.u32 %v6188, 7
    %v6190 = vsub.s32 %v6187, %v6189
    %v6191 = vrot.slane %v6170, %v6190
    %v6193 = vunpack.c.l.s4 1935823168
    %v6194 = vunpack.c.0.s8 %v6193
    %v6195 = vlaneseq
    %v6196 = vshrl.u32 %v6195, 7
    %v6197 = vsub.s32 %v6194, %v6196
    %v6198 = vrot.slane %v6191, %v6197
    %v6200 = vunpack.c.l.s4 1935823168
    %v6201 = vunpack.c.0.s8 %v6200
    %v6202 = vlaneseq
    %v6203 = vshrl.u32 %v6202, 7
    %v6204 = vsub.s32 %v6201, %v6203
    %v6205 = vrot.slane %v6184, %v6204
    %v6207 = vunpack.c.l.s4 1935823168
    %v6208 = vunpack.c.0.s8 %v6207
    %v6209 = vlaneseq
    %v6210 = vshrl.u32 %v6209, 7
    %v6211 = vsub.s32 %v6208, %v6210
    %v6212 = vrot.slane %v6205, %v6211
    %v6213 = vunpack.c.l.b16 %v6198
    %v6214 = vunpack.c.l.b16 %v6212
    %v6215 = vrot.slane %v6214, 7
    %v6216 = vsel %vm4858, %v6215, %v6213
    %v6217 = vpack.c.b16 %v6216, %v6216
    %v6219 = vunpack.c.l.s4 1966171168
    %v6220 = vunpack.c.0.s8 %v6219
    %v6221 = vlaneseq
    %v6222 = vshrl.u32 %v6221, 7
    %v6223 = vsub.s32 %v6220, %v6222
    %v6224 = vrot.slane %v6217, %v6223
    %v6226 = vunpack.c.l.s4 1966171168
    %v6227 = vunpack.c.0.s8 %v6226
    %v6228 = vlaneseq
    %v6229 = vshrl.u32 %v6228, 7
    %v6230 = vsub.s32 %v6227, %v6229
    %v6231 = vrot.slane %v6224, %v6230
    %6233 = vst.msk [vmem:[#allocation7 + $0x4] sm:$0x1] %vm2280, %v6231
    %v6234 = vld [vmem:[%s6152] sm:$0x1]
    %v6235 = vld [vmem:[%s6152 + $0x20] sm:$0x1]
    %v6239 = vunpack.c.l.s4 1966171168
    %v6240 = vunpack.c.0.s8 %v6239
    %v6241 = vlaneseq
    %v6242 = vshrl.u32 %v6241, 7
    %v6243 = vsub.s32 %v6240, %v6242
    %v6244 = vrot.slane %v6234, %v6243
    %v6246 = vunpack.c.l.s4 1966171168
    %v6247 = vunpack.c.0.s8 %v6246
    %v6248 = vlaneseq
    %v6249 = vshrl.u32 %v6248, 7
    %v6250 = vsub.s32 %v6247, %v6249
    %v6251 = vrot.slane %v6244, %v6250
    %v6253 = vunpack.c.l.s4 1966171168
    %v6254 = vunpack.c.0.s8 %v6253
    %v6255 = vlaneseq
    %v6256 = vshrl.u32 %v6255, 7
    %v6257 = vsub.s32 %v6254, %v6256
    %v6258 = vrot.slane %v6235, %v6257
    %v6260 = vunpack.c.l.s4 1966171168
    %v6261 = vunpack.c.0.s8 %v6260
    %v6262 = vlaneseq
    %v6263 = vshrl.u32 %v6262, 7
    %v6264 = vsub.s32 %v6261, %v6263
    %v6265 = vrot.slane %v6258, %v6264
    %v6267 = vunpack.c.l.s4 1935823168
    %v6268 = vunpack.c.0.s8 %v6267
    %v6269 = vlaneseq
    %v6270 = vshrl.u32 %v6269, 7
    %v6271 = vsub.s32 %v6268, %v6270
    %v6272 = vrot.slane %v6251, %v6271
    %v6274 = vunpack.c.l.s4 1935823168
    %v6275 = vunpack.c.0.s8 %v6274
    %v6276 = vlaneseq
    %v6277 = vshrl.u32 %v6276, 7
    %v6278 = vsub.s32 %v6275, %v6277
    %v6279 = vrot.slane %v6272, %v6278
    %v6281 = vunpack.c.l.s4 1935823168
    %v6282 = vunpack.c.0.s8 %v6281
    %v6283 = vlaneseq
    %v6284 = vshrl.u32 %v6283, 7
    %v6285 = vsub.s32 %v6282, %v6284
    %v6286 = vrot.slane %v6265, %v6285
    %v6288 = vunpack.c.l.s4 1935823168
    %v6289 = vunpack.c.0.s8 %v6288
    %v6290 = vlaneseq
    %v6291 = vshrl.u32 %v6290, 7
    %v6292 = vsub.s32 %v6289, %v6291
    %v6293 = vrot.slane %v6286, %v6292
    %v6294 = vunpack.c.l.b16 %v6279
    %v6295 = vunpack.c.l.b16 %v6293
    %v6296 = vrot.slane %v6294, 1
    %v6297 = vsel %vm4858, %v6295, %v6296
    %v6298 = vpack.c.b16 %v6297, %v6297
    %v6300 = vunpack.c.l.s4 1966171168
    %v6301 = vunpack.c.0.s8 %v6300
    %v6302 = vlaneseq
    %v6303 = vshrl.u32 %v6302, 7
    %v6304 = vsub.s32 %v6301, %v6303
    %v6305 = vrot.slane %v6298, %v6304
    %v6307 = vunpack.c.l.s4 1966171168
    %v6308 = vunpack.c.0.s8 %v6307
    %v6309 = vlaneseq
    %v6310 = vshrl.u32 %v6309, 7
    %v6311 = vsub.s32 %v6308, %v6310
    %v6312 = vrot.slane %v6305, %v6311
    %6313 = vrot.lane.b32.xlu0 %v6312, 32
    %v6314 = vpop.permute.xlu0 %6313
    %6316 = vst.msk [vmem:[#allocation7 + $0x4] sm:$0x1] %vm4959, %v6314
    %v6317 = vld [vmem:[%s6152] sm:$0x2]
    %v6318 = vld [vmem:[%s6152 + $0x20] sm:$0x2]
    %v6322 = vunpack.c.l.s4 1966171168
    %v6323 = vunpack.c.0.s8 %v6322
    %v6324 = vlaneseq
    %v6325 = vshrl.u32 %v6324, 7
    %v6326 = vsub.s32 %v6323, %v6325
    %v6327 = vrot.slane %v6317, %v6326
    %v6328 = vcombine.high %v6327, %v6327
    %v6330 = vunpack.c.l.s4 1966171168
    %v6331 = vunpack.c.0.s8 %v6330
    %v6332 = vlaneseq
    %v6333 = vshrl.u32 %v6332, 7
    %v6334 = vsub.s32 %v6331, %v6333
    %v6335 = vrot.slane %v6328, %v6334
    %v6337 = vunpack.c.l.s4 1966171168
    %v6338 = vunpack.c.0.s8 %v6337
    %v6339 = vlaneseq
    %v6340 = vshrl.u32 %v6339, 7
    %v6341 = vsub.s32 %v6338, %v6340
    %v6342 = vrot.slane %v6318, %v6341
    %v6343 = vcombine.high %v6342, %v6342
    %v6345 = vunpack.c.l.s4 1966171168
    %v6346 = vunpack.c.0.s8 %v6345
    %v6347 = vlaneseq
    %v6348 = vshrl.u32 %v6347, 7
    %v6349 = vsub.s32 %v6346, %v6348
    %v6350 = vrot.slane %v6343, %v6349
    %v6352 = vunpack.c.l.s4 1935823168
    %v6353 = vunpack.c.0.s8 %v6352
    %v6354 = vlaneseq
    %v6355 = vshrl.u32 %v6354, 7
    %v6356 = vsub.s32 %v6353, %v6355
    %v6357 = vrot.slane %v6335, %v6356
    %v6359 = vunpack.c.l.s4 1935823168
    %v6360 = vunpack.c.0.s8 %v6359
    %v6361 = vlaneseq
    %v6362 = vshrl.u32 %v6361, 7
    %v6363 = vsub.s32 %v6360, %v6362
    %v6364 = vrot.slane %v6357, %v6363
    %v6366 = vunpack.c.l.s4 1935823168
    %v6367 = vunpack.c.0.s8 %v6366
    %v6368 = vlaneseq
    %v6369 = vshrl.u32 %v6368, 7
    %v6370 = vsub.s32 %v6367, %v6369
    %v6371 = vrot.slane %v6350, %v6370
    %v6373 = vunpack.c.l.s4 1935823168
    %v6374 = vunpack.c.0.s8 %v6373
    %v6375 = vlaneseq
    %v6376 = vshrl.u32 %v6375, 7
    %v6377 = vsub.s32 %v6374, %v6376
    %v6378 = vrot.slane %v6371, %v6377
    %v6379 = vunpack.c.l.b16 %v6364
    %v6380 = vunpack.c.l.b16 %v6378
    %v6381 = vrot.slane %v6380, 7
    %v6382 = vsel %vm4858, %v6381, %v6379
    %v6383 = vpack.c.b16 %v6382, %v6382
    %v6385 = vunpack.c.l.s4 1966171168
    %v6386 = vunpack.c.0.s8 %v6385
    %v6387 = vlaneseq
    %v6388 = vshrl.u32 %v6387, 7
    %v6389 = vsub.s32 %v6386, %v6388
    %v6390 = vrot.slane %v6383, %v6389
    %v6392 = vunpack.c.l.s4 1966171168
    %v6393 = vunpack.c.0.s8 %v6392
    %v6394 = vlaneseq
    %v6395 = vshrl.u32 %v6394, 7
    %v6396 = vsub.s32 %v6393, %v6395
    %v6397 = vrot.slane %v6390, %v6396
    %6398 = vrot.lane.b32.xlu0 %v6397, 64
    %v6399 = vpop.permute.xlu0 %6398
    %6401 = vst.msk [vmem:[#allocation7 + $0x4] sm:$0x1] %vm5045, %v6399
    %v6402 = vld [vmem:[%s6152] sm:$0x2]
    %v6403 = vld [vmem:[%s6152 + $0x20] sm:$0x2]
    %v6407 = vunpack.c.l.s4 1966171168
    %v6408 = vunpack.c.0.s8 %v6407
    %v6409 = vlaneseq
    %v6410 = vshrl.u32 %v6409, 7
    %v6411 = vsub.s32 %v6408, %v6410
    %v6412 = vrot.slane %v6402, %v6411
    %v6413 = vcombine.high %v6412, %v6412
    %v6415 = vunpack.c.l.s4 1966171168
    %v6416 = vunpack.c.0.s8 %v6415
    %v6417 = vlaneseq
    %v6418 = vshrl.u32 %v6417, 7
    %v6419 = vsub.s32 %v6416, %v6418
    %v6420 = vrot.slane %v6413, %v6419
    %v6422 = vunpack.c.l.s4 1966171168
    %v6423 = vunpack.c.0.s8 %v6422
    %v6424 = vlaneseq
    %v6425 = vshrl.u32 %v6424, 7
    %v6426 = vsub.s32 %v6423, %v6425
    %v6427 = vrot.slane %v6403, %v6426
    %v6428 = vcombine.high %v6427, %v6427
    %v6430 = vunpack.c.l.s4 1966171168
    %v6431 = vunpack.c.0.s8 %v6430
    %v6432 = vlaneseq
    %v6433 = vshrl.u32 %v6432, 7
    %v6434 = vsub.s32 %v6431, %v6433
    %v6435 = vrot.slane %v6428, %v6434
    %v6437 = vunpack.c.l.s4 1935823168
    %v6438 = vunpack.c.0.s8 %v6437
    %v6439 = vlaneseq
    %v6440 = vshrl.u32 %v6439, 7
    %v6441 = vsub.s32 %v6438, %v6440
    %v6442 = vrot.slane %v6420, %v6441
    %v6444 = vunpack.c.l.s4 1935823168
    %v6445 = vunpack.c.0.s8 %v6444
    %v6446 = vlaneseq
    %v6447 = vshrl.u32 %v6446, 7
    %v6448 = vsub.s32 %v6445, %v6447
    %v6449 = vrot.slane %v6442, %v6448
    %v6451 = vunpack.c.l.s4 1935823168
    %v6452 = vunpack.c.0.s8 %v6451
    %v6453 = vlaneseq
    %v6454 = vshrl.u32 %v6453, 7
    %v6455 = vsub.s32 %v6452, %v6454
    %v6456 = vrot.slane %v6435, %v6455
    %v6458 = vunpack.c.l.s4 1935823168
    %v6459 = vunpack.c.0.s8 %v6458
    %v6460 = vlaneseq
    %v6461 = vshrl.u32 %v6460, 7
    %v6462 = vsub.s32 %v6459, %v6461
    %v6463 = vrot.slane %v6456, %v6462
    %v6464 = vunpack.c.l.b16 %v6449
    %v6465 = vunpack.c.l.b16 %v6463
    %v6466 = vrot.slane %v6464, 1
    %v6467 = vsel %vm4858, %v6465, %v6466
    %v6468 = vpack.c.b16 %v6467, %v6467
    %v6470 = vunpack.c.l.s4 1966171168
    %v6471 = vunpack.c.0.s8 %v6470
    %v6472 = vlaneseq
    %v6473 = vshrl.u32 %v6472, 7
    %v6474 = vsub.s32 %v6471, %v6473
    %v6475 = vrot.slane %v6468, %v6474
    %v6477 = vunpack.c.l.s4 1966171168
    %v6478 = vunpack.c.0.s8 %v6477
    %v6479 = vlaneseq
    %v6480 = vshrl.u32 %v6479, 7
    %v6481 = vsub.s32 %v6478, %v6480
    %v6482 = vrot.slane %v6475, %v6481
    %6483 = vrot.lane.b32.xlu0 %v6482, 96
    %v6484 = vpop.permute.xlu0 %6483
    %6486 = vst.msk [vmem:[#allocation7 + $0x4] sm:$0x1] %vm5131, %v6484
    %v6487 = vld [vmem:[%s6152] sm:$0x4]
    %v6488 = vld [vmem:[%s6152 + $0x20] sm:$0x4]
    %v6492 = vunpack.c.l.s4 1966171168
    %v6493 = vunpack.c.0.s8 %v6492
    %v6494 = vlaneseq
    %v6495 = vshrl.u32 %v6494, 7
    %v6496 = vsub.s32 %v6493, %v6495
    %v6497 = vrot.slane %v6487, %v6496
    %v6499 = vunpack.c.l.s4 1966171168
    %v6500 = vunpack.c.0.s8 %v6499
    %v6501 = vlaneseq
    %v6502 = vshrl.u32 %v6501, 7
    %v6503 = vsub.s32 %v6500, %v6502
    %v6504 = vrot.slane %v6497, %v6503
    %v6505 = vcombine.high %v6504, %v6504
    %v6507 = vunpack.c.l.s4 1966171168
    %v6508 = vunpack.c.0.s8 %v6507
    %v6509 = vlaneseq
    %v6510 = vshrl.u32 %v6509, 7
    %v6511 = vsub.s32 %v6508, %v6510
    %v6512 = vrot.slane %v6488, %v6511
    %v6514 = vunpack.c.l.s4 1966171168
    %v6515 = vunpack.c.0.s8 %v6514
    %v6516 = vlaneseq
    %v6517 = vshrl.u32 %v6516, 7
    %v6518 = vsub.s32 %v6515, %v6517
    %v6519 = vrot.slane %v6512, %v6518
    %v6520 = vcombine.high %v6519, %v6519
    %v6522 = vunpack.c.l.s4 1935823168
    %v6523 = vunpack.c.0.s8 %v6522
    %v6524 = vlaneseq
    %v6525 = vshrl.u32 %v6524, 7
    %v6526 = vsub.s32 %v6523, %v6525
    %v6527 = vrot.slane %v6505, %v6526
    %v6529 = vunpack.c.l.s4 1935823168
    %v6530 = vunpack.c.0.s8 %v6529
    %v6531 = vlaneseq
    %v6532 = vshrl.u32 %v6531, 7
    %v6533 = vsub.s32 %v6530, %v6532
    %v6534 = vrot.slane %v6527, %v6533
    %v6536 = vunpack.c.l.s4 1935823168
    %v6537 = vunpack.c.0.s8 %v6536
    %v6538 = vlaneseq
    %v6539 = vshrl.u32 %v6538, 7
    %v6540 = vsub.s32 %v6537, %v6539
    %v6541 = vrot.slane %v6520, %v6540
    %v6543 = vunpack.c.l.s4 1935823168
    %v6544 = vunpack.c.0.s8 %v6543
    %v6545 = vlaneseq
    %v6546 = vshrl.u32 %v6545, 7
    %v6547 = vsub.s32 %v6544, %v6546
    %v6548 = vrot.slane %v6541, %v6547
    %v6549 = vunpack.c.l.b16 %v6534
    %v6550 = vunpack.c.l.b16 %v6548
    %v6551 = vrot.slane %v6550, 7
    %v6552 = vsel %vm4858, %v6551, %v6549
    %v6553 = vpack.c.b16 %v6552, %v6552
    %v6555 = vunpack.c.l.s4 1966171168
    %v6556 = vunpack.c.0.s8 %v6555
    %v6557 = vlaneseq
    %v6558 = vshrl.u32 %v6557, 7
    %v6559 = vsub.s32 %v6556, %v6558
    %v6560 = vrot.slane %v6553, %v6559
    %v6562 = vunpack.c.l.s4 1966171168
    %v6563 = vunpack.c.0.s8 %v6562
    %v6564 = vlaneseq
    %v6565 = vshrl.u32 %v6564, 7
    %v6566 = vsub.s32 %v6563, %v6565
    %v6567 = vrot.slane %v6560, %v6566
    %6569 = vst.msk [vmem:[#allocation7 + $0x5] sm:$0x1] %vm2280, %v6567
    %v6570 = vld [vmem:[%s6152] sm:$0x4]
    %v6571 = vld [vmem:[%s6152 + $0x20] sm:$0x4]
    %v6575 = vunpack.c.l.s4 1966171168
    %v6576 = vunpack.c.0.s8 %v6575
    %v6577 = vlaneseq
    %v6578 = vshrl.u32 %v6577, 7
    %v6579 = vsub.s32 %v6576, %v6578
    %v6580 = vrot.slane %v6570, %v6579
    %v6582 = vunpack.c.l.s4 1966171168
    %v6583 = vunpack.c.0.s8 %v6582
    %v6584 = vlaneseq
    %v6585 = vshrl.u32 %v6584, 7
    %v6586 = vsub.s32 %v6583, %v6585
    %v6587 = vrot.slane %v6580, %v6586
    %v6588 = vcombine.high %v6587, %v6587
    %v6590 = vunpack.c.l.s4 1966171168
    %v6591 = vunpack.c.0.s8 %v6590
    %v6592 = vlaneseq
    %v6593 = vshrl.u32 %v6592, 7
    %v6594 = vsub.s32 %v6591, %v6593
    %v6595 = vrot.slane %v6571, %v6594
    %v6597 = vunpack.c.l.s4 1966171168
    %v6598 = vunpack.c.0.s8 %v6597
    %v6599 = vlaneseq
    %v6600 = vshrl.u32 %v6599, 7
    %v6601 = vsub.s32 %v6598, %v6600
    %v6602 = vrot.slane %v6595, %v6601
    %v6603 = vcombine.high %v6602, %v6602
    %v6605 = vunpack.c.l.s4 1935823168
    %v6606 = vunpack.c.0.s8 %v6605
    %v6607 = vlaneseq
    %v6608 = vshrl.u32 %v6607, 7
    %v6609 = vsub.s32 %v6606, %v6608
    %v6610 = vrot.slane %v6588, %v6609
    %v6612 = vunpack.c.l.s4 1935823168
    %v6613 = vunpack.c.0.s8 %v6612
    %v6614 = vlaneseq
    %v6615 = vshrl.u32 %v6614, 7
    %v6616 = vsub.s32 %v6613, %v6615
    %v6617 = vrot.slane %v6610, %v6616
    %v6619 = vunpack.c.l.s4 1935823168
    %v6620 = vunpack.c.0.s8 %v6619
    %v6621 = vlaneseq
    %v6622 = vshrl.u32 %v6621, 7
    %v6623 = vsub.s32 %v6620, %v6622
    %v6624 = vrot.slane %v6603, %v6623
    %v6626 = vunpack.c.l.s4 1935823168
    %v6627 = vunpack.c.0.s8 %v6626
    %v6628 = vlaneseq
    %v6629 = vshrl.u32 %v6628, 7
    %v6630 = vsub.s32 %v6627, %v6629
    %v6631 = vrot.slane %v6624, %v6630
    %v6632 = vunpack.c.l.b16 %v6617
    %v6633 = vunpack.c.l.b16 %v6631
    %v6634 = vrot.slane %v6632, 1
    %v6635 = vsel %vm4858, %v6633, %v6634
    %v6636 = vpack.c.b16 %v6635, %v6635
    %v6638 = vunpack.c.l.s4 1966171168
    %v6639 = vunpack.c.0.s8 %v6638
    %v6640 = vlaneseq
    %v6641 = vshrl.u32 %v6640, 7
    %v6642 = vsub.s32 %v6639, %v6641
    %v6643 = vrot.slane %v6636, %v6642
    %v6645 = vunpack.c.l.s4 1966171168
    %v6646 = vunpack.c.0.s8 %v6645
    %v6647 = vlaneseq
    %v6648 = vshrl.u32 %v6647, 7
    %v6649 = vsub.s32 %v6646, %v6648
    %v6650 = vrot.slane %v6643, %v6649
    %6651 = vrot.lane.b32.xlu0 %v6650, 32
    %v6652 = vpop.permute.xlu0 %6651
    %6654 = vst.msk [vmem:[#allocation7 + $0x5] sm:$0x1] %vm4959, %v6652
    %v6655 = vld [vmem:[%s6152] sm:$0x8]
    %v6656 = vld [vmem:[%s6152 + $0x20] sm:$0x8]
    %v6660 = vunpack.c.l.s4 1966171168
    %v6661 = vunpack.c.0.s8 %v6660
    %v6662 = vlaneseq
    %v6663 = vshrl.u32 %v6662, 7
    %v6664 = vsub.s32 %v6661, %v6663
    %v6665 = vrot.slane %v6655, %v6664
    %v6666 = vcombine.high %v6665, %v6665
    %v6668 = vunpack.c.l.s4 1966171168
    %v6669 = vunpack.c.0.s8 %v6668
    %v6670 = vlaneseq
    %v6671 = vshrl.u32 %v6670, 7
    %v6672 = vsub.s32 %v6669, %v6671
    %v6673 = vrot.slane %v6666, %v6672
    %v6674 = vcombine.high %v6673, %v6673
    %v6676 = vunpack.c.l.s4 1966171168
    %v6677 = vunpack.c.0.s8 %v6676
    %v6678 = vlaneseq
    %v6679 = vshrl.u32 %v6678, 7
    %v6680 = vsub.s32 %v6677, %v6679
    %v6681 = vrot.slane %v6656, %v6680
    %v6682 = vcombine.high %v6681, %v6681
    %v6684 = vunpack.c.l.s4 1966171168
    %v6685 = vunpack.c.0.s8 %v6684
    %v6686 = vlaneseq
    %v6687 = vshrl.u32 %v6686, 7
    %v6688 = vsub.s32 %v6685, %v6687
    %v6689 = vrot.slane %v6682, %v6688
    %v6690 = vcombine.high %v6689, %v6689
    %v6692 = vunpack.c.l.s4 1935823168
    %v6693 = vunpack.c.0.s8 %v6692
    %v6694 = vlaneseq
    %v6695 = vshrl.u32 %v6694, 7
    %v6696 = vsub.s32 %v6693, %v6695
    %v6697 = vrot.slane %v6674, %v6696
    %v6699 = vunpack.c.l.s4 1935823168
    %v6700 = vunpack.c.0.s8 %v6699
    %v6701 = vlaneseq
    %v6702 = vshrl.u32 %v6701, 7
    %v6703 = vsub.s32 %v6700, %v6702
    %v6704 = vrot.slane %v6697, %v6703
    %v6706 = vunpack.c.l.s4 1935823168
    %v6707 = vunpack.c.0.s8 %v6706
    %v6708 = vlaneseq
    %v6709 = vshrl.u32 %v6708, 7
    %v6710 = vsub.s32 %v6707, %v6709
    %v6711 = vrot.slane %v6690, %v6710
    %v6713 = vunpack.c.l.s4 1935823168
    %v6714 = vunpack.c.0.s8 %v6713
    %v6715 = vlaneseq
    %v6716 = vshrl.u32 %v6715, 7
    %v6717 = vsub.s32 %v6714, %v6716
    %v6718 = vrot.slane %v6711, %v6717
    %v6719 = vunpack.c.l.b16 %v6704
    %v6720 = vunpack.c.l.b16 %v6718
    %v6721 = vrot.slane %v6720, 7
    %v6722 = vsel %vm4858, %v6721, %v6719
    %v6723 = vpack.c.b16 %v6722, %v6722
    %v6725 = vunpack.c.l.s4 1966171168
    %v6726 = vunpack.c.0.s8 %v6725
    %v6727 = vlaneseq
    %v6728 = vshrl.u32 %v6727, 7
    %v6729 = vsub.s32 %v6726, %v6728
    %v6730 = vrot.slane %v6723, %v6729
    %v6732 = vunpack.c.l.s4 1966171168
    %v6733 = vunpack.c.0.s8 %v6732
    %v6734 = vlaneseq
    %v6735 = vshrl.u32 %v6734, 7
    %v6736 = vsub.s32 %v6733, %v6735
    %v6737 = vrot.slane %v6730, %v6736
    %6738 = vrot.lane.b32.xlu0 %v6737, 64
    %v6739 = vpop.permute.xlu0 %6738
    %6741 = vst.msk [vmem:[#allocation7 + $0x5] sm:$0x1] %vm5045, %v6739
    %v6742 = vld [vmem:[%s6152] sm:$0x8]
    %v6743 = vld [vmem:[%s6152 + $0x20] sm:$0x8]
    %v6747 = vunpack.c.l.s4 1966171168
    %v6748 = vunpack.c.0.s8 %v6747
    %v6749 = vlaneseq
    %v6750 = vshrl.u32 %v6749, 7
    %v6751 = vsub.s32 %v6748, %v6750
    %v6752 = vrot.slane %v6742, %v6751
    %v6753 = vcombine.high %v6752, %v6752
    %v6755 = vunpack.c.l.s4 1966171168
    %v6756 = vunpack.c.0.s8 %v6755
    %v6757 = vlaneseq
    %v6758 = vshrl.u32 %v6757, 7
    %v6759 = vsub.s32 %v6756, %v6758
    %v6760 = vrot.slane %v6753, %v6759
    %v6761 = vcombine.high %v6760, %v6760
    %v6763 = vunpack.c.l.s4 1966171168
    %v6764 = vunpack.c.0.s8 %v6763
    %v6765 = vlaneseq
    %v6766 = vshrl.u32 %v6765, 7
    %v6767 = vsub.s32 %v6764, %v6766
    %v6768 = vrot.slane %v6743, %v6767
    %v6769 = vcombine.high %v6768, %v6768
    %v6771 = vunpack.c.l.s4 1966171168
    %v6772 = vunpack.c.0.s8 %v6771
    %v6773 = vlaneseq
    %v6774 = vshrl.u32 %v6773, 7
    %v6775 = vsub.s32 %v6772, %v6774
    %v6776 = vrot.slane %v6769, %v6775
    %v6777 = vcombine.high %v6776, %v6776
    %v6779 = vunpack.c.l.s4 1935823168
    %v6780 = vunpack.c.0.s8 %v6779
    %v6781 = vlaneseq
    %v6782 = vshrl.u32 %v6781, 7
    %v6783 = vsub.s32 %v6780, %v6782
    %v6784 = vrot.slane %v6761, %v6783
    %v6786 = vunpack.c.l.s4 1935823168
    %v6787 = vunpack.c.0.s8 %v6786
    %v6788 = vlaneseq
    %v6789 = vshrl.u32 %v6788, 7
    %v6790 = vsub.s32 %v6787, %v6789
    %v6791 = vrot.slane %v6784, %v6790
    %v6793 = vunpack.c.l.s4 1935823168
    %v6794 = vunpack.c.0.s8 %v6793
    %v6795 = vlaneseq
    %v6796 = vshrl.u32 %v6795, 7
    %v6797 = vsub.s32 %v6794, %v6796
    %v6798 = vrot.slane %v6777, %v6797
    %v6800 = vunpack.c.l.s4 1935823168
    %v6801 = vunpack.c.0.s8 %v6800
    %v6802 = vlaneseq
    %v6803 = vshrl.u32 %v6802, 7
    %v6804 = vsub.s32 %v6801, %v6803
    %v6805 = vrot.slane %v6798, %v6804
    %v6806 = vunpack.c.l.b16 %v6791
    %v6807 = vunpack.c.l.b16 %v6805
    %v6808 = vrot.slane %v6806, 1
    %v6809 = vsel %vm4858, %v6807, %v6808
    %v6810 = vpack.c.b16 %v6809, %v6809
    %v6812 = vunpack.c.l.s4 1966171168
    %v6813 = vunpack.c.0.s8 %v6812
    %v6814 = vlaneseq
    %v6815 = vshrl.u32 %v6814, 7
    %v6816 = vsub.s32 %v6813, %v6815
    %v6817 = vrot.slane %v6810, %v6816
    %v6819 = vunpack.c.l.s4 1966171168
    %v6820 = vunpack.c.0.s8 %v6819
    %v6821 = vlaneseq
    %v6822 = vshrl.u32 %v6821, 7
    %v6823 = vsub.s32 %v6820, %v6822
    %v6824 = vrot.slane %v6817, %v6823
    %6825 = vrot.lane.b32.xlu0 %v6824, 96
    %v6826 = vpop.permute.xlu0 %6825
    %6828 = vst.msk [vmem:[#allocation7 + $0x5] sm:$0x1] %vm5131, %v6826
    %s6829 = scalar_lea.vmem [#allocation6], 12
    %v6830 = vld [vmem:[%s6829] sm:$0x1]
    %v6831 = vld [vmem:[%s6829 + $0x20] sm:$0x1]
    %v6835 = vunpack.c.l.s4 1966171168
    %v6836 = vunpack.c.0.s8 %v6835
    %v6837 = vlaneseq
    %v6838 = vshrl.u32 %v6837, 7
    %v6839 = vsub.s32 %v6836, %v6838
    %v6840 = vrot.slane %v6830, %v6839
    %v6842 = vunpack.c.l.s4 1966171168
    %v6843 = vunpack.c.0.s8 %v6842
    %v6844 = vlaneseq
    %v6845 = vshrl.u32 %v6844, 7
    %v6846 = vsub.s32 %v6843, %v6845
    %v6847 = vrot.slane %v6840, %v6846
    %v6849 = vunpack.c.l.s4 1966171168
    %v6850 = vunpack.c.0.s8 %v6849
    %v6851 = vlaneseq
    %v6852 = vshrl.u32 %v6851, 7
    %v6853 = vsub.s32 %v6850, %v6852
    %v6854 = vrot.slane %v6831, %v6853
    %v6856 = vunpack.c.l.s4 1966171168
    %v6857 = vunpack.c.0.s8 %v6856
    %v6858 = vlaneseq
    %v6859 = vshrl.u32 %v6858, 7
    %v6860 = vsub.s32 %v6857, %v6859
    %v6861 = vrot.slane %v6854, %v6860
    %v6863 = vunpack.c.l.s4 1935823168
    %v6864 = vunpack.c.0.s8 %v6863
    %v6865 = vlaneseq
    %v6866 = vshrl.u32 %v6865, 7
    %v6867 = vsub.s32 %v6864, %v6866
    %v6868 = vrot.slane %v6847, %v6867
    %v6870 = vunpack.c.l.s4 1935823168
    %v6871 = vunpack.c.0.s8 %v6870
    %v6872 = vlaneseq
    %v6873 = vshrl.u32 %v6872, 7
    %v6874 = vsub.s32 %v6871, %v6873
    %v6875 = vrot.slane %v6868, %v6874
    %v6877 = vunpack.c.l.s4 1935823168
    %v6878 = vunpack.c.0.s8 %v6877
    %v6879 = vlaneseq
    %v6880 = vshrl.u32 %v6879, 7
    %v6881 = vsub.s32 %v6878, %v6880
    %v6882 = vrot.slane %v6861, %v6881
    %v6884 = vunpack.c.l.s4 1935823168
    %v6885 = vunpack.c.0.s8 %v6884
    %v6886 = vlaneseq
    %v6887 = vshrl.u32 %v6886, 7
    %v6888 = vsub.s32 %v6885, %v6887
    %v6889 = vrot.slane %v6882, %v6888
    %v6890 = vunpack.c.l.b16 %v6875
    %v6891 = vunpack.c.l.b16 %v6889
    %v6892 = vrot.slane %v6891, 7
    %v6893 = vsel %vm4858, %v6892, %v6890
    %v6894 = vpack.c.b16 %v6893, %v6893
    %v6896 = vunpack.c.l.s4 1966171168
    %v6897 = vunpack.c.0.s8 %v6896
    %v6898 = vlaneseq
    %v6899 = vshrl.u32 %v6898, 7
    %v6900 = vsub.s32 %v6897, %v6899
    %v6901 = vrot.slane %v6894, %v6900
    %v6903 = vunpack.c.l.s4 1966171168
    %v6904 = vunpack.c.0.s8 %v6903
    %v6905 = vlaneseq
    %v6906 = vshrl.u32 %v6905, 7
    %v6907 = vsub.s32 %v6904, %v6906
    %v6908 = vrot.slane %v6901, %v6907
    %6910 = vst.msk [vmem:[#allocation7 + $0x6] sm:$0x1] %vm2280, %v6908
    %v6911 = vld [vmem:[%s6829] sm:$0x1]
    %v6912 = vld [vmem:[%s6829 + $0x20] sm:$0x1]
    %v6916 = vunpack.c.l.s4 1966171168
    %v6917 = vunpack.c.0.s8 %v6916
    %v6918 = vlaneseq
    %v6919 = vshrl.u32 %v6918, 7
    %v6920 = vsub.s32 %v6917, %v6919
    %v6921 = vrot.slane %v6911, %v6920
    %v6923 = vunpack.c.l.s4 1966171168
    %v6924 = vunpack.c.0.s8 %v6923
    %v6925 = vlaneseq
    %v6926 = vshrl.u32 %v6925, 7
    %v6927 = vsub.s32 %v6924, %v6926
    %v6928 = vrot.slane %v6921, %v6927
    %v6930 = vunpack.c.l.s4 1966171168
    %v6931 = vunpack.c.0.s8 %v6930
    %v6932 = vlaneseq
    %v6933 = vshrl.u32 %v6932, 7
    %v6934 = vsub.s32 %v6931, %v6933
    %v6935 = vrot.slane %v6912, %v6934
    %v6937 = vunpack.c.l.s4 1966171168
    %v6938 = vunpack.c.0.s8 %v6937
    %v6939 = vlaneseq
    %v6940 = vshrl.u32 %v6939, 7
    %v6941 = vsub.s32 %v6938, %v6940
    %v6942 = vrot.slane %v6935, %v6941
    %v6944 = vunpack.c.l.s4 1935823168
    %v6945 = vunpack.c.0.s8 %v6944
    %v6946 = vlaneseq
    %v6947 = vshrl.u32 %v6946, 7
    %v6948 = vsub.s32 %v6945, %v6947
    %v6949 = vrot.slane %v6928, %v6948
    %v6951 = vunpack.c.l.s4 1935823168
    %v6952 = vunpack.c.0.s8 %v6951
    %v6953 = vlaneseq
    %v6954 = vshrl.u32 %v6953, 7
    %v6955 = vsub.s32 %v6952, %v6954
    %v6956 = vrot.slane %v6949, %v6955
    %v6958 = vunpack.c.l.s4 1935823168
    %v6959 = vunpack.c.0.s8 %v6958
    %v6960 = vlaneseq
    %v6961 = vshrl.u32 %v6960, 7
    %v6962 = vsub.s32 %v6959, %v6961
    %v6963 = vrot.slane %v6942, %v6962
    %v6965 = vunpack.c.l.s4 1935823168
    %v6966 = vunpack.c.0.s8 %v6965
    %v6967 = vlaneseq
    %v6968 = vshrl.u32 %v6967, 7
    %v6969 = vsub.s32 %v6966, %v6968
    %v6970 = vrot.slane %v6963, %v6969
    %v6971 = vunpack.c.l.b16 %v6956
    %v6972 = vunpack.c.l.b16 %v6970
    %v6973 = vrot.slane %v6971, 1
    %v6974 = vsel %vm4858, %v6972, %v6973
    %v6975 = vpack.c.b16 %v6974, %v6974
    %v6977 = vunpack.c.l.s4 1966171168
    %v6978 = vunpack.c.0.s8 %v6977
    %v6979 = vlaneseq
    %v6980 = vshrl.u32 %v6979, 7
    %v6981 = vsub.s32 %v6978, %v6980
    %v6982 = vrot.slane %v6975, %v6981
    %v6984 = vunpack.c.l.s4 1966171168
    %v6985 = vunpack.c.0.s8 %v6984
    %v6986 = vlaneseq
    %v6987 = vshrl.u32 %v6986, 7
    %v6988 = vsub.s32 %v6985, %v6987
    %v6989 = vrot.slane %v6982, %v6988
    %6990 = vrot.lane.b32.xlu0 %v6989, 32
    %v6991 = vpop.permute.xlu0 %6990
    %6993 = vst.msk [vmem:[#allocation7 + $0x6] sm:$0x1] %vm4959, %v6991
    %v6994 = vld [vmem:[%s6829] sm:$0x2]
    %v6995 = vld [vmem:[%s6829 + $0x20] sm:$0x2]
    %v6999 = vunpack.c.l.s4 1966171168
    %v7000 = vunpack.c.0.s8 %v6999
    %v7001 = vlaneseq
    %v7002 = vshrl.u32 %v7001, 7
    %v7003 = vsub.s32 %v7000, %v7002
    %v7004 = vrot.slane %v6994, %v7003
    %v7005 = vcombine.high %v7004, %v7004
    %v7007 = vunpack.c.l.s4 1966171168
    %v7008 = vunpack.c.0.s8 %v7007
    %v7009 = vlaneseq
    %v7010 = vshrl.u32 %v7009, 7
    %v7011 = vsub.s32 %v7008, %v7010
    %v7012 = vrot.slane %v7005, %v7011
    %v7014 = vunpack.c.l.s4 1966171168
    %v7015 = vunpack.c.0.s8 %v7014
    %v7016 = vlaneseq
    %v7017 = vshrl.u32 %v7016, 7
    %v7018 = vsub.s32 %v7015, %v7017
    %v7019 = vrot.slane %v6995, %v7018
    %v7020 = vcombine.high %v7019, %v7019
    %v7022 = vunpack.c.l.s4 1966171168
    %v7023 = vunpack.c.0.s8 %v7022
    %v7024 = vlaneseq
    %v7025 = vshrl.u32 %v7024, 7
    %v7026 = vsub.s32 %v7023, %v7025
    %v7027 = vrot.slane %v7020, %v7026
    %v7029 = vunpack.c.l.s4 1935823168
    %v7030 = vunpack.c.0.s8 %v7029
    %v7031 = vlaneseq
    %v7032 = vshrl.u32 %v7031, 7
    %v7033 = vsub.s32 %v7030, %v7032
    %v7034 = vrot.slane %v7012, %v7033
    %v7036 = vunpack.c.l.s4 1935823168
    %v7037 = vunpack.c.0.s8 %v7036
    %v7038 = vlaneseq
    %v7039 = vshrl.u32 %v7038, 7
    %v7040 = vsub.s32 %v7037, %v7039
    %v7041 = vrot.slane %v7034, %v7040
    %v7043 = vunpack.c.l.s4 1935823168
    %v7044 = vunpack.c.0.s8 %v7043
    %v7045 = vlaneseq
    %v7046 = vshrl.u32 %v7045, 7
    %v7047 = vsub.s32 %v7044, %v7046
    %v7048 = vrot.slane %v7027, %v7047
    %v7050 = vunpack.c.l.s4 1935823168
    %v7051 = vunpack.c.0.s8 %v7050
    %v7052 = vlaneseq
    %v7053 = vshrl.u32 %v7052, 7
    %v7054 = vsub.s32 %v7051, %v7053
    %v7055 = vrot.slane %v7048, %v7054
    %v7056 = vunpack.c.l.b16 %v7041
    %v7057 = vunpack.c.l.b16 %v7055
    %v7058 = vrot.slane %v7057, 7
    %v7059 = vsel %vm4858, %v7058, %v7056
    %v7060 = vpack.c.b16 %v7059, %v7059
    %v7062 = vunpack.c.l.s4 1966171168
    %v7063 = vunpack.c.0.s8 %v7062
    %v7064 = vlaneseq
    %v7065 = vshrl.u32 %v7064, 7
    %v7066 = vsub.s32 %v7063, %v7065
    %v7067 = vrot.slane %v7060, %v7066
    %v7069 = vunpack.c.l.s4 1966171168
    %v7070 = vunpack.c.0.s8 %v7069
    %v7071 = vlaneseq
    %v7072 = vshrl.u32 %v7071, 7
    %v7073 = vsub.s32 %v7070, %v7072
    %v7074 = vrot.slane %v7067, %v7073
    %7075 = vrot.lane.b32.xlu0 %v7074, 64
    %v7076 = vpop.permute.xlu0 %7075
    %7078 = vst.msk [vmem:[#allocation7 + $0x6] sm:$0x1] %vm5045, %v7076
    %v7079 = vld [vmem:[%s6829] sm:$0x2]
    %v7080 = vld [vmem:[%s6829 + $0x20] sm:$0x2]
    %v7084 = vunpack.c.l.s4 1966171168
    %v7085 = vunpack.c.0.s8 %v7084
    %v7086 = vlaneseq
    %v7087 = vshrl.u32 %v7086, 7
    %v7088 = vsub.s32 %v7085, %v7087
    %v7089 = vrot.slane %v7079, %v7088
    %v7090 = vcombine.high %v7089, %v7089
    %v7092 = vunpack.c.l.s4 1966171168
    %v7093 = vunpack.c.0.s8 %v7092
    %v7094 = vlaneseq
    %v7095 = vshrl.u32 %v7094, 7
    %v7096 = vsub.s32 %v7093, %v7095
    %v7097 = vrot.slane %v7090, %v7096
    %v7099 = vunpack.c.l.s4 1966171168
    %v7100 = vunpack.c.0.s8 %v7099
    %v7101 = vlaneseq
    %v7102 = vshrl.u32 %v7101, 7
    %v7103 = vsub.s32 %v7100, %v7102
    %v7104 = vrot.slane %v7080, %v7103
    %v7105 = vcombine.high %v7104, %v7104
    %v7107 = vunpack.c.l.s4 1966171168
    %v7108 = vunpack.c.0.s8 %v7107
    %v7109 = vlaneseq
    %v7110 = vshrl.u32 %v7109, 7
    %v7111 = vsub.s32 %v7108, %v7110
    %v7112 = vrot.slane %v7105, %v7111
    %v7114 = vunpack.c.l.s4 1935823168
    %v7115 = vunpack.c.0.s8 %v7114
    %v7116 = vlaneseq
    %v7117 = vshrl.u32 %v7116, 7
    %v7118 = vsub.s32 %v7115, %v7117
    %v7119 = vrot.slane %v7097, %v7118
    %v7121 = vunpack.c.l.s4 1935823168
    %v7122 = vunpack.c.0.s8 %v7121
    %v7123 = vlaneseq
    %v7124 = vshrl.u32 %v7123, 7
    %v7125 = vsub.s32 %v7122, %v7124
    %v7126 = vrot.slane %v7119, %v7125
    %v7128 = vunpack.c.l.s4 1935823168
    %v7129 = vunpack.c.0.s8 %v7128
    %v7130 = vlaneseq
    %v7131 = vshrl.u32 %v7130, 7
    %v7132 = vsub.s32 %v7129, %v7131
    %v7133 = vrot.slane %v7112, %v7132
    %v7135 = vunpack.c.l.s4 1935823168
    %v7136 = vunpack.c.0.s8 %v7135
    %v7137 = vlaneseq
    %v7138 = vshrl.u32 %v7137, 7
    %v7139 = vsub.s32 %v7136, %v7138
    %v7140 = vrot.slane %v7133, %v7139
    %v7141 = vunpack.c.l.b16 %v7126
    %v7142 = vunpack.c.l.b16 %v7140
    %v7143 = vrot.slane %v7141, 1
    %v7144 = vsel %vm4858, %v7142, %v7143
    %v7145 = vpack.c.b16 %v7144, %v7144
    %v7147 = vunpack.c.l.s4 1966171168
    %v7148 = vunpack.c.0.s8 %v7147
    %v7149 = vlaneseq
    %v7150 = vshrl.u32 %v7149, 7
    %v7151 = vsub.s32 %v7148, %v7150
    %v7152 = vrot.slane %v7145, %v7151
    %v7154 = vunpack.c.l.s4 1966171168
    %v7155 = vunpack.c.0.s8 %v7154
    %v7156 = vlaneseq
    %v7157 = vshrl.u32 %v7156, 7
    %v7158 = vsub.s32 %v7155, %v7157
    %v7159 = vrot.slane %v7152, %v7158
    %7160 = vrot.lane.b32.xlu0 %v7159, 96
    %v7161 = vpop.permute.xlu0 %7160
    %7163 = vst.msk [vmem:[#allocation7 + $0x6] sm:$0x1] %vm5131, %v7161
    %v7164 = vld [vmem:[%s6829] sm:$0x4]
    %v7165 = vld [vmem:[%s6829 + $0x20] sm:$0x4]
    %v7169 = vunpack.c.l.s4 1966171168
    %v7170 = vunpack.c.0.s8 %v7169
    %v7171 = vlaneseq
    %v7172 = vshrl.u32 %v7171, 7
    %v7173 = vsub.s32 %v7170, %v7172
    %v7174 = vrot.slane %v7164, %v7173
    %v7176 = vunpack.c.l.s4 1966171168
    %v7177 = vunpack.c.0.s8 %v7176
    %v7178 = vlaneseq
    %v7179 = vshrl.u32 %v7178, 7
    %v7180 = vsub.s32 %v7177, %v7179
    %v7181 = vrot.slane %v7174, %v7180
    %v7182 = vcombine.high %v7181, %v7181
    %v7184 = vunpack.c.l.s4 1966171168
    %v7185 = vunpack.c.0.s8 %v7184
    %v7186 = vlaneseq
    %v7187 = vshrl.u32 %v7186, 7
    %v7188 = vsub.s32 %v7185, %v7187
    %v7189 = vrot.slane %v7165, %v7188
    %v7191 = vunpack.c.l.s4 1966171168
    %v7192 = vunpack.c.0.s8 %v7191
    %v7193 = vlaneseq
    %v7194 = vshrl.u32 %v7193, 7
    %v7195 = vsub.s32 %v7192, %v7194
    %v7196 = vrot.slane %v7189, %v7195
    %v7197 = vcombine.high %v7196, %v7196
    %v7199 = vunpack.c.l.s4 1935823168
    %v7200 = vunpack.c.0.s8 %v7199
    %v7201 = vlaneseq
    %v7202 = vshrl.u32 %v7201, 7
    %v7203 = vsub.s32 %v7200, %v7202
    %v7204 = vrot.slane %v7182, %v7203
    %v7206 = vunpack.c.l.s4 1935823168
    %v7207 = vunpack.c.0.s8 %v7206
    %v7208 = vlaneseq
    %v7209 = vshrl.u32 %v7208, 7
    %v7210 = vsub.s32 %v7207, %v7209
    %v7211 = vrot.slane %v7204, %v7210
    %v7213 = vunpack.c.l.s4 1935823168
    %v7214 = vunpack.c.0.s8 %v7213
    %v7215 = vlaneseq
    %v7216 = vshrl.u32 %v7215, 7
    %v7217 = vsub.s32 %v7214, %v7216
    %v7218 = vrot.slane %v7197, %v7217
    %v7220 = vunpack.c.l.s4 1935823168
    %v7221 = vunpack.c.0.s8 %v7220
    %v7222 = vlaneseq
    %v7223 = vshrl.u32 %v7222, 7
    %v7224 = vsub.s32 %v7221, %v7223
    %v7225 = vrot.slane %v7218, %v7224
    %v7226 = vunpack.c.l.b16 %v7211
    %v7227 = vunpack.c.l.b16 %v7225
    %v7228 = vrot.slane %v7227, 7
    %v7229 = vsel %vm4858, %v7228, %v7226
    %v7230 = vpack.c.b16 %v7229, %v7229
    %v7232 = vunpack.c.l.s4 1966171168
    %v7233 = vunpack.c.0.s8 %v7232
    %v7234 = vlaneseq
    %v7235 = vshrl.u32 %v7234, 7
    %v7236 = vsub.s32 %v7233, %v7235
    %v7237 = vrot.slane %v7230, %v7236
    %v7239 = vunpack.c.l.s4 1966171168
    %v7240 = vunpack.c.0.s8 %v7239
    %v7241 = vlaneseq
    %v7242 = vshrl.u32 %v7241, 7
    %v7243 = vsub.s32 %v7240, %v7242
    %v7244 = vrot.slane %v7237, %v7243
    %7246 = vst.msk [vmem:[#allocation7 + $0x7] sm:$0x1] %vm2280, %v7244
    %v7247 = vld [vmem:[%s6829] sm:$0x4]
    %v7248 = vld [vmem:[%s6829 + $0x20] sm:$0x4]
    %v7252 = vunpack.c.l.s4 1966171168
    %v7253 = vunpack.c.0.s8 %v7252
    %v7254 = vlaneseq
    %v7255 = vshrl.u32 %v7254, 7
    %v7256 = vsub.s32 %v7253, %v7255
    %v7257 = vrot.slane %v7247, %v7256
    %v7259 = vunpack.c.l.s4 1966171168
    %v7260 = vunpack.c.0.s8 %v7259
    %v7261 = vlaneseq
    %v7262 = vshrl.u32 %v7261, 7
    %v7263 = vsub.s32 %v7260, %v7262
    %v7264 = vrot.slane %v7257, %v7263
    %v7265 = vcombine.high %v7264, %v7264
    %v7267 = vunpack.c.l.s4 1966171168
    %v7268 = vunpack.c.0.s8 %v7267
    %v7269 = vlaneseq
    %v7270 = vshrl.u32 %v7269, 7
    %v7271 = vsub.s32 %v7268, %v7270
    %v7272 = vrot.slane %v7248, %v7271
    %v7274 = vunpack.c.l.s4 1966171168
    %v7275 = vunpack.c.0.s8 %v7274
    %v7276 = vlaneseq
    %v7277 = vshrl.u32 %v7276, 7
    %v7278 = vsub.s32 %v7275, %v7277
    %v7279 = vrot.slane %v7272, %v7278
    %v7280 = vcombine.high %v7279, %v7279
    %v7282 = vunpack.c.l.s4 1935823168
    %v7283 = vunpack.c.0.s8 %v7282
    %v7284 = vlaneseq
    %v7285 = vshrl.u32 %v7284, 7
    %v7286 = vsub.s32 %v7283, %v7285
    %v7287 = vrot.slane %v7265, %v7286
    %v7289 = vunpack.c.l.s4 1935823168
    %v7290 = vunpack.c.0.s8 %v7289
    %v7291 = vlaneseq
    %v7292 = vshrl.u32 %v7291, 7
    %v7293 = vsub.s32 %v7290, %v7292
    %v7294 = vrot.slane %v7287, %v7293
    %v7296 = vunpack.c.l.s4 1935823168
    %v7297 = vunpack.c.0.s8 %v7296
    %v7298 = vlaneseq
    %v7299 = vshrl.u32 %v7298, 7
    %v7300 = vsub.s32 %v7297, %v7299
    %v7301 = vrot.slane %v7280, %v7300
    %v7303 = vunpack.c.l.s4 1935823168
    %v7304 = vunpack.c.0.s8 %v7303
    %v7305 = vlaneseq
    %v7306 = vshrl.u32 %v7305, 7
    %v7307 = vsub.s32 %v7304, %v7306
    %v7308 = vrot.slane %v7301, %v7307
    %v7309 = vunpack.c.l.b16 %v7294
    %v7310 = vunpack.c.l.b16 %v7308
    %v7311 = vrot.slane %v7309, 1
    %v7312 = vsel %vm4858, %v7310, %v7311
    %v7313 = vpack.c.b16 %v7312, %v7312
    %v7315 = vunpack.c.l.s4 1966171168
    %v7316 = vunpack.c.0.s8 %v7315
    %v7317 = vlaneseq
    %v7318 = vshrl.u32 %v7317, 7
    %v7319 = vsub.s32 %v7316, %v7318
    %v7320 = vrot.slane %v7313, %v7319
    %v7322 = vunpack.c.l.s4 1966171168
    %v7323 = vunpack.c.0.s8 %v7322
    %v7324 = vlaneseq
    %v7325 = vshrl.u32 %v7324, 7
    %v7326 = vsub.s32 %v7323, %v7325
    %v7327 = vrot.slane %v7320, %v7326
    %7328 = vrot.lane.b32.xlu0 %v7327, 32
    %v7329 = vpop.permute.xlu0 %7328
    %7331 = vst.msk [vmem:[#allocation7 + $0x7] sm:$0x1] %vm4959, %v7329
    %v7332 = vld [vmem:[%s6829] sm:$0x8]
    %v7333 = vld [vmem:[%s6829 + $0x20] sm:$0x8]
    %v7337 = vunpack.c.l.s4 1966171168
    %v7338 = vunpack.c.0.s8 %v7337
    %v7339 = vlaneseq
    %v7340 = vshrl.u32 %v7339, 7
    %v7341 = vsub.s32 %v7338, %v7340
    %v7342 = vrot.slane %v7332, %v7341
    %v7343 = vcombine.high %v7342, %v7342
    %v7345 = vunpack.c.l.s4 1966171168
    %v7346 = vunpack.c.0.s8 %v7345
    %v7347 = vlaneseq
    %v7348 = vshrl.u32 %v7347, 7
    %v7349 = vsub.s32 %v7346, %v7348
    %v7350 = vrot.slane %v7343, %v7349
    %v7351 = vcombine.high %v7350, %v7350
    %v7353 = vunpack.c.l.s4 1966171168
    %v7354 = vunpack.c.0.s8 %v7353
    %v7355 = vlaneseq
    %v7356 = vshrl.u32 %v7355, 7
    %v7357 = vsub.s32 %v7354, %v7356
    %v7358 = vrot.slane %v7333, %v7357
    %v7359 = vcombine.high %v7358, %v7358
    %v7361 = vunpack.c.l.s4 1966171168
    %v7362 = vunpack.c.0.s8 %v7361
    %v7363 = vlaneseq
    %v7364 = vshrl.u32 %v7363, 7
    %v7365 = vsub.s32 %v7362, %v7364
    %v7366 = vrot.slane %v7359, %v7365
    %v7367 = vcombine.high %v7366, %v7366
    %v7369 = vunpack.c.l.s4 1935823168
    %v7370 = vunpack.c.0.s8 %v7369
    %v7371 = vlaneseq
    %v7372 = vshrl.u32 %v7371, 7
    %v7373 = vsub.s32 %v7370, %v7372
    %v7374 = vrot.slane %v7351, %v7373
    %v7376 = vunpack.c.l.s4 1935823168
    %v7377 = vunpack.c.0.s8 %v7376
    %v7378 = vlaneseq
    %v7379 = vshrl.u32 %v7378, 7
    %v7380 = vsub.s32 %v7377, %v7379
    %v7381 = vrot.slane %v7374, %v7380
    %v7383 = vunpack.c.l.s4 1935823168
    %v7384 = vunpack.c.0.s8 %v7383
    %v7385 = vlaneseq
    %v7386 = vshrl.u32 %v7385, 7
    %v7387 = vsub.s32 %v7384, %v7386
    %v7388 = vrot.slane %v7367, %v7387
    %v7390 = vunpack.c.l.s4 1935823168
    %v7391 = vunpack.c.0.s8 %v7390
    %v7392 = vlaneseq
    %v7393 = vshrl.u32 %v7392, 7
    %v7394 = vsub.s32 %v7391, %v7393
    %v7395 = vrot.slane %v7388, %v7394
    %v7396 = vunpack.c.l.b16 %v7381
    %v7397 = vunpack.c.l.b16 %v7395
    %v7398 = vrot.slane %v7397, 7
    %v7399 = vsel %vm4858, %v7398, %v7396
    %v7400 = vpack.c.b16 %v7399, %v7399
    %v7402 = vunpack.c.l.s4 1966171168
    %v7403 = vunpack.c.0.s8 %v7402
    %v7404 = vlaneseq
    %v7405 = vshrl.u32 %v7404, 7
    %v7406 = vsub.s32 %v7403, %v7405
    %v7407 = vrot.slane %v7400, %v7406
    %v7409 = vunpack.c.l.s4 1966171168
    %v7410 = vunpack.c.0.s8 %v7409
    %v7411 = vlaneseq
    %v7412 = vshrl.u32 %v7411, 7
    %v7413 = vsub.s32 %v7410, %v7412
    %v7414 = vrot.slane %v7407, %v7413
    %7415 = vrot.lane.b32.xlu0 %v7414, 64
    %v7416 = vpop.permute.xlu0 %7415
    %7418 = vst.msk [vmem:[#allocation7 + $0x7] sm:$0x1] %vm5045, %v7416
    %v7419 = vld [vmem:[%s6829] sm:$0x8]
    %v7420 = vld [vmem:[%s6829 + $0x20] sm:$0x8]
    %v7424 = vunpack.c.l.s4 1966171168
    %v7425 = vunpack.c.0.s8 %v7424
    %v7426 = vlaneseq
    %v7427 = vshrl.u32 %v7426, 7
    %v7428 = vsub.s32 %v7425, %v7427
    %v7429 = vrot.slane %v7419, %v7428
    %v7430 = vcombine.high %v7429, %v7429
    %v7432 = vunpack.c.l.s4 1966171168
    %v7433 = vunpack.c.0.s8 %v7432
    %v7434 = vlaneseq
    %v7435 = vshrl.u32 %v7434, 7
    %v7436 = vsub.s32 %v7433, %v7435
    %v7437 = vrot.slane %v7430, %v7436
    %v7438 = vcombine.high %v7437, %v7437
    %v7440 = vunpack.c.l.s4 1966171168
    %v7441 = vunpack.c.0.s8 %v7440
    %v7442 = vlaneseq
    %v7443 = vshrl.u32 %v7442, 7
    %v7444 = vsub.s32 %v7441, %v7443
    %v7445 = vrot.slane %v7420, %v7444
    %v7446 = vcombine.high %v7445, %v7445
    %v7448 = vunpack.c.l.s4 1966171168
    %v7449 = vunpack.c.0.s8 %v7448
    %v7450 = vlaneseq
    %v7451 = vshrl.u32 %v7450, 7
    %v7452 = vsub.s32 %v7449, %v7451
    %v7453 = vrot.slane %v7446, %v7452
    %v7454 = vcombine.high %v7453, %v7453
    %v7456 = vunpack.c.l.s4 1935823168
    %v7457 = vunpack.c.0.s8 %v7456
    %v7458 = vlaneseq
    %v7459 = vshrl.u32 %v7458, 7
    %v7460 = vsub.s32 %v7457, %v7459
    %v7461 = vrot.slane %v7438, %v7460
    %v7463 = vunpack.c.l.s4 1935823168
    %v7464 = vunpack.c.0.s8 %v7463
    %v7465 = vlaneseq
    %v7466 = vshrl.u32 %v7465, 7
    %v7467 = vsub.s32 %v7464, %v7466
    %v7468 = vrot.slane %v7461, %v7467
    %v7470 = vunpack.c.l.s4 1935823168
    %v7471 = vunpack.c.0.s8 %v7470
    %v7472 = vlaneseq
    %v7473 = vshrl.u32 %v7472, 7
    %v7474 = vsub.s32 %v7471, %v7473
    %v7475 = vrot.slane %v7454, %v7474
    %v7477 = vunpack.c.l.s4 1935823168
    %v7478 = vunpack.c.0.s8 %v7477
    %v7479 = vlaneseq
    %v7480 = vshrl.u32 %v7479, 7
    %v7481 = vsub.s32 %v7478, %v7480
    %v7482 = vrot.slane %v7475, %v7481
    %v7483 = vunpack.c.l.b16 %v7468
    %v7484 = vunpack.c.l.b16 %v7482
    %v7485 = vrot.slane %v7483, 1
    %v7486 = vsel %vm4858, %v7484, %v7485
    %v7487 = vpack.c.b16 %v7486, %v7486
    %v7489 = vunpack.c.l.s4 1966171168
    %v7490 = vunpack.c.0.s8 %v7489
    %v7491 = vlaneseq
    %v7492 = vshrl.u32 %v7491, 7
    %v7493 = vsub.s32 %v7490, %v7492
    %v7494 = vrot.slane %v7487, %v7493
    %v7496 = vunpack.c.l.s4 1966171168
    %v7497 = vunpack.c.0.s8 %v7496
    %v7498 = vlaneseq
    %v7499 = vshrl.u32 %v7498, 7
    %v7500 = vsub.s32 %v7497, %v7499
    %v7501 = vrot.slane %v7494, %v7500
    %7502 = vrot.lane.b32.xlu0 %v7501, 96
    %v7503 = vpop.permute.xlu0 %7502
    %7505 = vst.msk [vmem:[#allocation7 + $0x7] sm:$0x1] %vm5131, %v7503
    %s7506 = scalar_lea.vmem [#allocation6], 16
    %v7507 = vld [vmem:[%s7506] sm:$0x1]
    %v7508 = vld [vmem:[%s7506 + $0x20] sm:$0x1]
    %v7512 = vunpack.c.l.s4 1966171168
    %v7513 = vunpack.c.0.s8 %v7512
    %v7514 = vlaneseq
    %v7515 = vshrl.u32 %v7514, 7
    %v7516 = vsub.s32 %v7513, %v7515
    %v7517 = vrot.slane %v7507, %v7516
    %v7519 = vunpack.c.l.s4 1966171168
    %v7520 = vunpack.c.0.s8 %v7519
    %v7521 = vlaneseq
    %v7522 = vshrl.u32 %v7521, 7
    %v7523 = vsub.s32 %v7520, %v7522
    %v7524 = vrot.slane %v7517, %v7523
    %v7526 = vunpack.c.l.s4 1966171168
    %v7527 = vunpack.c.0.s8 %v7526
    %v7528 = vlaneseq
    %v7529 = vshrl.u32 %v7528, 7
    %v7530 = vsub.s32 %v7527, %v7529
    %v7531 = vrot.slane %v7508, %v7530
    %v7533 = vunpack.c.l.s4 1966171168
    %v7534 = vunpack.c.0.s8 %v7533
    %v7535 = vlaneseq
    %v7536 = vshrl.u32 %v7535, 7
    %v7537 = vsub.s32 %v7534, %v7536
    %v7538 = vrot.slane %v7531, %v7537
    %v7540 = vunpack.c.l.s4 1935823168
    %v7541 = vunpack.c.0.s8 %v7540
    %v7542 = vlaneseq
    %v7543 = vshrl.u32 %v7542, 7
    %v7544 = vsub.s32 %v7541, %v7543
    %v7545 = vrot.slane %v7524, %v7544
    %v7547 = vunpack.c.l.s4 1935823168
    %v7548 = vunpack.c.0.s8 %v7547
    %v7549 = vlaneseq
    %v7550 = vshrl.u32 %v7549, 7
    %v7551 = vsub.s32 %v7548, %v7550
    %v7552 = vrot.slane %v7545, %v7551
    %v7554 = vunpack.c.l.s4 1935823168
    %v7555 = vunpack.c.0.s8 %v7554
    %v7556 = vlaneseq
    %v7557 = vshrl.u32 %v7556, 7
    %v7558 = vsub.s32 %v7555, %v7557
    %v7559 = vrot.slane %v7538, %v7558
    %v7561 = vunpack.c.l.s4 1935823168
    %v7562 = vunpack.c.0.s8 %v7561
    %v7563 = vlaneseq
    %v7564 = vshrl.u32 %v7563, 7
    %v7565 = vsub.s32 %v7562, %v7564
    %v7566 = vrot.slane %v7559, %v7565
    %v7567 = vunpack.c.l.b16 %v7552
    %v7568 = vunpack.c.l.b16 %v7566
    %v7569 = vrot.slane %v7568, 7
    %v7570 = vsel %vm4858, %v7569, %v7567
    %v7571 = vpack.c.b16 %v7570, %v7570
    %v7573 = vunpack.c.l.s4 1966171168
    %v7574 = vunpack.c.0.s8 %v7573
    %v7575 = vlaneseq
    %v7576 = vshrl.u32 %v7575, 7
    %v7577 = vsub.s32 %v7574, %v7576
    %v7578 = vrot.slane %v7571, %v7577
    %v7580 = vunpack.c.l.s4 1966171168
    %v7581 = vunpack.c.0.s8 %v7580
    %v7582 = vlaneseq
    %v7583 = vshrl.u32 %v7582, 7
    %v7584 = vsub.s32 %v7581, %v7583
    %v7585 = vrot.slane %v7578, %v7584
    %7587 = vst.msk [vmem:[#allocation7 + $0x8] sm:$0x1] %vm2280, %v7585
    %v7588 = vld [vmem:[%s7506] sm:$0x1]
    %v7589 = vld [vmem:[%s7506 + $0x20] sm:$0x1]
    %v7593 = vunpack.c.l.s4 1966171168
    %v7594 = vunpack.c.0.s8 %v7593
    %v7595 = vlaneseq
    %v7596 = vshrl.u32 %v7595, 7
    %v7597 = vsub.s32 %v7594, %v7596
    %v7598 = vrot.slane %v7588, %v7597
    %v7600 = vunpack.c.l.s4 1966171168
    %v7601 = vunpack.c.0.s8 %v7600
    %v7602 = vlaneseq
    %v7603 = vshrl.u32 %v7602, 7
    %v7604 = vsub.s32 %v7601, %v7603
    %v7605 = vrot.slane %v7598, %v7604
    %v7607 = vunpack.c.l.s4 1966171168
    %v7608 = vunpack.c.0.s8 %v7607
    %v7609 = vlaneseq
    %v7610 = vshrl.u32 %v7609, 7
    %v7611 = vsub.s32 %v7608, %v7610
    %v7612 = vrot.slane %v7589, %v7611
    %v7614 = vunpack.c.l.s4 1966171168
    %v7615 = vunpack.c.0.s8 %v7614
    %v7616 = vlaneseq
    %v7617 = vshrl.u32 %v7616, 7
    %v7618 = vsub.s32 %v7615, %v7617
    %v7619 = vrot.slane %v7612, %v7618
    %v7621 = vunpack.c.l.s4 1935823168
    %v7622 = vunpack.c.0.s8 %v7621
    %v7623 = vlaneseq
    %v7624 = vshrl.u32 %v7623, 7
    %v7625 = vsub.s32 %v7622, %v7624
    %v7626 = vrot.slane %v7605, %v7625
    %v7628 = vunpack.c.l.s4 1935823168
    %v7629 = vunpack.c.0.s8 %v7628
    %v7630 = vlaneseq
    %v7631 = vshrl.u32 %v7630, 7
    %v7632 = vsub.s32 %v7629, %v7631
    %v7633 = vrot.slane %v7626, %v7632
    %v7635 = vunpack.c.l.s4 1935823168
    %v7636 = vunpack.c.0.s8 %v7635
    %v7637 = vlaneseq
    %v7638 = vshrl.u32 %v7637, 7
    %v7639 = vsub.s32 %v7636, %v7638
    %v7640 = vrot.slane %v7619, %v7639
    %v7642 = vunpack.c.l.s4 1935823168
    %v7643 = vunpack.c.0.s8 %v7642
    %v7644 = vlaneseq
    %v7645 = vshrl.u32 %v7644, 7
    %v7646 = vsub.s32 %v7643, %v7645
    %v7647 = vrot.slane %v7640, %v7646
    %v7648 = vunpack.c.l.b16 %v7633
    %v7649 = vunpack.c.l.b16 %v7647
    %v7650 = vrot.slane %v7648, 1
    %v7651 = vsel %vm4858, %v7649, %v7650
    %v7652 = vpack.c.b16 %v7651, %v7651
    %v7654 = vunpack.c.l.s4 1966171168
    %v7655 = vunpack.c.0.s8 %v7654
    %v7656 = vlaneseq
    %v7657 = vshrl.u32 %v7656, 7
    %v7658 = vsub.s32 %v7655, %v7657
    %v7659 = vrot.slane %v7652, %v7658
    %v7661 = vunpack.c.l.s4 1966171168
    %v7662 = vunpack.c.0.s8 %v7661
    %v7663 = vlaneseq
    %v7664 = vshrl.u32 %v7663, 7
    %v7665 = vsub.s32 %v7662, %v7664
    %v7666 = vrot.slane %v7659, %v7665
    %7667 = vrot.lane.b32.xlu0 %v7666, 32
    %v7668 = vpop.permute.xlu0 %7667
    %7670 = vst.msk [vmem:[#allocation7 + $0x8] sm:$0x1] %vm4959, %v7668
    %v7671 = vld [vmem:[%s7506] sm:$0x2]
    %v7672 = vld [vmem:[%s7506 + $0x20] sm:$0x2]
    %v7676 = vunpack.c.l.s4 1966171168
    %v7677 = vunpack.c.0.s8 %v7676
    %v7678 = vlaneseq
    %v7679 = vshrl.u32 %v7678, 7
    %v7680 = vsub.s32 %v7677, %v7679
    %v7681 = vrot.slane %v7671, %v7680
    %v7682 = vcombine.high %v7681, %v7681
    %v7684 = vunpack.c.l.s4 1966171168
    %v7685 = vunpack.c.0.s8 %v7684
    %v7686 = vlaneseq
    %v7687 = vshrl.u32 %v7686, 7
    %v7688 = vsub.s32 %v7685, %v7687
    %v7689 = vrot.slane %v7682, %v7688
    %v7691 = vunpack.c.l.s4 1966171168
    %v7692 = vunpack.c.0.s8 %v7691
    %v7693 = vlaneseq
    %v7694 = vshrl.u32 %v7693, 7
    %v7695 = vsub.s32 %v7692, %v7694
    %v7696 = vrot.slane %v7672, %v7695
    %v7697 = vcombine.high %v7696, %v7696
    %v7699 = vunpack.c.l.s4 1966171168
    %v7700 = vunpack.c.0.s8 %v7699
    %v7701 = vlaneseq
    %v7702 = vshrl.u32 %v7701, 7
    %v7703 = vsub.s32 %v7700, %v7702
    %v7704 = vrot.slane %v7697, %v7703
    %v7706 = vunpack.c.l.s4 1935823168
    %v7707 = vunpack.c.0.s8 %v7706
    %v7708 = vlaneseq
    %v7709 = vshrl.u32 %v7708, 7
    %v7710 = vsub.s32 %v7707, %v7709
    %v7711 = vrot.slane %v7689, %v7710
    %v7713 = vunpack.c.l.s4 1935823168
    %v7714 = vunpack.c.0.s8 %v7713
    %v7715 = vlaneseq
    %v7716 = vshrl.u32 %v7715, 7
    %v7717 = vsub.s32 %v7714, %v7716
    %v7718 = vrot.slane %v7711, %v7717
    %v7720 = vunpack.c.l.s4 1935823168
    %v7721 = vunpack.c.0.s8 %v7720
    %v7722 = vlaneseq
    %v7723 = vshrl.u32 %v7722, 7
    %v7724 = vsub.s32 %v7721, %v7723
    %v7725 = vrot.slane %v7704, %v7724
    %v7727 = vunpack.c.l.s4 1935823168
    %v7728 = vunpack.c.0.s8 %v7727
    %v7729 = vlaneseq
    %v7730 = vshrl.u32 %v7729, 7
    %v7731 = vsub.s32 %v7728, %v7730
    %v7732 = vrot.slane %v7725, %v7731
    %v7733 = vunpack.c.l.b16 %v7718
    %v7734 = vunpack.c.l.b16 %v7732
    %v7735 = vrot.slane %v7734, 7
    %v7736 = vsel %vm4858, %v7735, %v7733
    %v7737 = vpack.c.b16 %v7736, %v7736
    %v7739 = vunpack.c.l.s4 1966171168
    %v7740 = vunpack.c.0.s8 %v7739
    %v7741 = vlaneseq
    %v7742 = vshrl.u32 %v7741, 7
    %v7743 = vsub.s32 %v7740, %v7742
    %v7744 = vrot.slane %v7737, %v7743
    %v7746 = vunpack.c.l.s4 1966171168
    %v7747 = vunpack.c.0.s8 %v7746
    %v7748 = vlaneseq
    %v7749 = vshrl.u32 %v7748, 7
    %v7750 = vsub.s32 %v7747, %v7749
    %v7751 = vrot.slane %v7744, %v7750
    %7752 = vrot.lane.b32.xlu0 %v7751, 64
    %v7753 = vpop.permute.xlu0 %7752
    %7755 = vst.msk [vmem:[#allocation7 + $0x8] sm:$0x1] %vm5045, %v7753
    %v7756 = vld [vmem:[%s7506] sm:$0x2]
    %v7757 = vld [vmem:[%s7506 + $0x20] sm:$0x2]
    %v7761 = vunpack.c.l.s4 1966171168
    %v7762 = vunpack.c.0.s8 %v7761
    %v7763 = vlaneseq
    %v7764 = vshrl.u32 %v7763, 7
    %v7765 = vsub.s32 %v7762, %v7764
    %v7766 = vrot.slane %v7756, %v7765
    %v7767 = vcombine.high %v7766, %v7766
    %v7769 = vunpack.c.l.s4 1966171168
    %v7770 = vunpack.c.0.s8 %v7769
    %v7771 = vlaneseq
    %v7772 = vshrl.u32 %v7771, 7
    %v7773 = vsub.s32 %v7770, %v7772
    %v7774 = vrot.slane %v7767, %v7773
    %v7776 = vunpack.c.l.s4 1966171168
    %v7777 = vunpack.c.0.s8 %v7776
    %v7778 = vlaneseq
    %v7779 = vshrl.u32 %v7778, 7
    %v7780 = vsub.s32 %v7777, %v7779
    %v7781 = vrot.slane %v7757, %v7780
    %v7782 = vcombine.high %v7781, %v7781
    %v7784 = vunpack.c.l.s4 1966171168
    %v7785 = vunpack.c.0.s8 %v7784
    %v7786 = vlaneseq
    %v7787 = vshrl.u32 %v7786, 7
    %v7788 = vsub.s32 %v7785, %v7787
    %v7789 = vrot.slane %v7782, %v7788
    %v7791 = vunpack.c.l.s4 1935823168
    %v7792 = vunpack.c.0.s8 %v7791
    %v7793 = vlaneseq
    %v7794 = vshrl.u32 %v7793, 7
    %v7795 = vsub.s32 %v7792, %v7794
    %v7796 = vrot.slane %v7774, %v7795
    %v7798 = vunpack.c.l.s4 1935823168
    %v7799 = vunpack.c.0.s8 %v7798
    %v7800 = vlaneseq
    %v7801 = vshrl.u32 %v7800, 7
    %v7802 = vsub.s32 %v7799, %v7801
    %v7803 = vrot.slane %v7796, %v7802
    %v7805 = vunpack.c.l.s4 1935823168
    %v7806 = vunpack.c.0.s8 %v7805
    %v7807 = vlaneseq
    %v7808 = vshrl.u32 %v7807, 7
    %v7809 = vsub.s32 %v7806, %v7808
    %v7810 = vrot.slane %v7789, %v7809
    %v7812 = vunpack.c.l.s4 1935823168
    %v7813 = vunpack.c.0.s8 %v7812
    %v7814 = vlaneseq
    %v7815 = vshrl.u32 %v7814, 7
    %v7816 = vsub.s32 %v7813, %v7815
    %v7817 = vrot.slane %v7810, %v7816
    %v7818 = vunpack.c.l.b16 %v7803
    %v7819 = vunpack.c.l.b16 %v7817
    %v7820 = vrot.slane %v7818, 1
    %v7821 = vsel %vm4858, %v7819, %v7820
    %v7822 = vpack.c.b16 %v7821, %v7821
    %v7824 = vunpack.c.l.s4 1966171168
    %v7825 = vunpack.c.0.s8 %v7824
    %v7826 = vlaneseq
    %v7827 = vshrl.u32 %v7826, 7
    %v7828 = vsub.s32 %v7825, %v7827
    %v7829 = vrot.slane %v7822, %v7828
    %v7831 = vunpack.c.l.s4 1966171168
    %v7832 = vunpack.c.0.s8 %v7831
    %v7833 = vlaneseq
    %v7834 = vshrl.u32 %v7833, 7
    %v7835 = vsub.s32 %v7832, %v7834
    %v7836 = vrot.slane %v7829, %v7835
    %7837 = vrot.lane.b32.xlu0 %v7836, 96
    %v7838 = vpop.permute.xlu0 %7837
    %7840 = vst.msk [vmem:[#allocation7 + $0x8] sm:$0x1] %vm5131, %v7838
    %v7841 = vld [vmem:[%s7506] sm:$0x4]
    %v7842 = vld [vmem:[%s7506 + $0x20] sm:$0x4]
    %v7846 = vunpack.c.l.s4 1966171168
    %v7847 = vunpack.c.0.s8 %v7846
    %v7848 = vlaneseq
    %v7849 = vshrl.u32 %v7848, 7
    %v7850 = vsub.s32 %v7847, %v7849
    %v7851 = vrot.slane %v7841, %v7850
    %v7853 = vunpack.c.l.s4 1966171168
    %v7854 = vunpack.c.0.s8 %v7853
    %v7855 = vlaneseq
    %v7856 = vshrl.u32 %v7855, 7
    %v7857 = vsub.s32 %v7854, %v7856
    %v7858 = vrot.slane %v7851, %v7857
    %v7859 = vcombine.high %v7858, %v7858
    %v7861 = vunpack.c.l.s4 1966171168
    %v7862 = vunpack.c.0.s8 %v7861
    %v7863 = vlaneseq
    %v7864 = vshrl.u32 %v7863, 7
    %v7865 = vsub.s32 %v7862, %v7864
    %v7866 = vrot.slane %v7842, %v7865
    %v7868 = vunpack.c.l.s4 1966171168
    %v7869 = vunpack.c.0.s8 %v7868
    %v7870 = vlaneseq
    %v7871 = vshrl.u32 %v7870, 7
    %v7872 = vsub.s32 %v7869, %v7871
    %v7873 = vrot.slane %v7866, %v7872
    %v7874 = vcombine.high %v7873, %v7873
    %v7876 = vunpack.c.l.s4 1935823168
    %v7877 = vunpack.c.0.s8 %v7876
    %v7878 = vlaneseq
    %v7879 = vshrl.u32 %v7878, 7
    %v7880 = vsub.s32 %v7877, %v7879
    %v7881 = vrot.slane %v7859, %v7880
    %v7883 = vunpack.c.l.s4 1935823168
    %v7884 = vunpack.c.0.s8 %v7883
    %v7885 = vlaneseq
    %v7886 = vshrl.u32 %v7885, 7
    %v7887 = vsub.s32 %v7884, %v7886
    %v7888 = vrot.slane %v7881, %v7887
    %v7890 = vunpack.c.l.s4 1935823168
    %v7891 = vunpack.c.0.s8 %v7890
    %v7892 = vlaneseq
    %v7893 = vshrl.u32 %v7892, 7
    %v7894 = vsub.s32 %v7891, %v7893
    %v7895 = vrot.slane %v7874, %v7894
    %v7897 = vunpack.c.l.s4 1935823168
    %v7898 = vunpack.c.0.s8 %v7897
    %v7899 = vlaneseq
    %v7900 = vshrl.u32 %v7899, 7
    %v7901 = vsub.s32 %v7898, %v7900
    %v7902 = vrot.slane %v7895, %v7901
    %v7903 = vunpack.c.l.b16 %v7888
    %v7904 = vunpack.c.l.b16 %v7902
    %v7905 = vrot.slane %v7904, 7
    %v7906 = vsel %vm4858, %v7905, %v7903
    %v7907 = vpack.c.b16 %v7906, %v7906
    %v7909 = vunpack.c.l.s4 1966171168
    %v7910 = vunpack.c.0.s8 %v7909
    %v7911 = vlaneseq
    %v7912 = vshrl.u32 %v7911, 7
    %v7913 = vsub.s32 %v7910, %v7912
    %v7914 = vrot.slane %v7907, %v7913
    %v7916 = vunpack.c.l.s4 1966171168
    %v7917 = vunpack.c.0.s8 %v7916
    %v7918 = vlaneseq
    %v7919 = vshrl.u32 %v7918, 7
    %v7920 = vsub.s32 %v7917, %v7919
    %v7921 = vrot.slane %v7914, %v7920
    %7923 = vst.msk [vmem:[#allocation7 + $0x9] sm:$0x1] %vm2280, %v7921
    %v7924 = vld [vmem:[%s7506] sm:$0x4]
    %v7925 = vld [vmem:[%s7506 + $0x20] sm:$0x4]
    %v7929 = vunpack.c.l.s4 1966171168
    %v7930 = vunpack.c.0.s8 %v7929
    %v7931 = vlaneseq
    %v7932 = vshrl.u32 %v7931, 7
    %v7933 = vsub.s32 %v7930, %v7932
    %v7934 = vrot.slane %v7924, %v7933
    %v7936 = vunpack.c.l.s4 1966171168
    %v7937 = vunpack.c.0.s8 %v7936
    %v7938 = vlaneseq
    %v7939 = vshrl.u32 %v7938, 7
    %v7940 = vsub.s32 %v7937, %v7939
    %v7941 = vrot.slane %v7934, %v7940
    %v7942 = vcombine.high %v7941, %v7941
    %v7944 = vunpack.c.l.s4 1966171168
    %v7945 = vunpack.c.0.s8 %v7944
    %v7946 = vlaneseq
    %v7947 = vshrl.u32 %v7946, 7
    %v7948 = vsub.s32 %v7945, %v7947
    %v7949 = vrot.slane %v7925, %v7948
    %v7951 = vunpack.c.l.s4 1966171168
    %v7952 = vunpack.c.0.s8 %v7951
    %v7953 = vlaneseq
    %v7954 = vshrl.u32 %v7953, 7
    %v7955 = vsub.s32 %v7952, %v7954
    %v7956 = vrot.slane %v7949, %v7955
    %v7957 = vcombine.high %v7956, %v7956
    %v7959 = vunpack.c.l.s4 1935823168
    %v7960 = vunpack.c.0.s8 %v7959
    %v7961 = vlaneseq
    %v7962 = vshrl.u32 %v7961, 7
    %v7963 = vsub.s32 %v7960, %v7962
    %v7964 = vrot.slane %v7942, %v7963
    %v7966 = vunpack.c.l.s4 1935823168
    %v7967 = vunpack.c.0.s8 %v7966
    %v7968 = vlaneseq
    %v7969 = vshrl.u32 %v7968, 7
    %v7970 = vsub.s32 %v7967, %v7969
    %v7971 = vrot.slane %v7964, %v7970
    %v7973 = vunpack.c.l.s4 1935823168
    %v7974 = vunpack.c.0.s8 %v7973
    %v7975 = vlaneseq
    %v7976 = vshrl.u32 %v7975, 7
    %v7977 = vsub.s32 %v7974, %v7976
    %v7978 = vrot.slane %v7957, %v7977
    %v7980 = vunpack.c.l.s4 1935823168
    %v7981 = vunpack.c.0.s8 %v7980
    %v7982 = vlaneseq
    %v7983 = vshrl.u32 %v7982, 7
    %v7984 = vsub.s32 %v7981, %v7983
    %v7985 = vrot.slane %v7978, %v7984
    %v7986 = vunpack.c.l.b16 %v7971
    %v7987 = vunpack.c.l.b16 %v7985
    %v7988 = vrot.slane %v7986, 1
    %v7989 = vsel %vm4858, %v7987, %v7988
    %v7990 = vpack.c.b16 %v7989, %v7989
    %v7992 = vunpack.c.l.s4 1966171168
    %v7993 = vunpack.c.0.s8 %v7992
    %v7994 = vlaneseq
    %v7995 = vshrl.u32 %v7994, 7
    %v7996 = vsub.s32 %v7993, %v7995
    %v7997 = vrot.slane %v7990, %v7996
    %v7999 = vunpack.c.l.s4 1966171168
    %v8000 = vunpack.c.0.s8 %v7999
    %v8001 = vlaneseq
    %v8002 = vshrl.u32 %v8001, 7
    %v8003 = vsub.s32 %v8000, %v8002
    %v8004 = vrot.slane %v7997, %v8003
    %8005 = vrot.lane.b32.xlu0 %v8004, 32
    %v8006 = vpop.permute.xlu0 %8005
    %8008 = vst.msk [vmem:[#allocation7 + $0x9] sm:$0x1] %vm4959, %v8006
    %v8009 = vld [vmem:[%s7506] sm:$0x8]
    %v8010 = vld [vmem:[%s7506 + $0x20] sm:$0x8]
    %v8014 = vunpack.c.l.s4 1966171168
    %v8015 = vunpack.c.0.s8 %v8014
    %v8016 = vlaneseq
    %v8017 = vshrl.u32 %v8016, 7
    %v8018 = vsub.s32 %v8015, %v8017
    %v8019 = vrot.slane %v8009, %v8018
    %v8020 = vcombine.high %v8019, %v8019
    %v8022 = vunpack.c.l.s4 1966171168
    %v8023 = vunpack.c.0.s8 %v8022
    %v8024 = vlaneseq
    %v8025 = vshrl.u32 %v8024, 7
    %v8026 = vsub.s32 %v8023, %v8025
    %v8027 = vrot.slane %v8020, %v8026
    %v8028 = vcombine.high %v8027, %v8027
    %v8030 = vunpack.c.l.s4 1966171168
    %v8031 = vunpack.c.0.s8 %v8030
    %v8032 = vlaneseq
    %v8033 = vshrl.u32 %v8032, 7
    %v8034 = vsub.s32 %v8031, %v8033
    %v8035 = vrot.slane %v8010, %v8034
    %v8036 = vcombine.high %v8035, %v8035
    %v8038 = vunpack.c.l.s4 1966171168
    %v8039 = vunpack.c.0.s8 %v8038
    %v8040 = vlaneseq
    %v8041 = vshrl.u32 %v8040, 7
    %v8042 = vsub.s32 %v8039, %v8041
    %v8043 = vrot.slane %v8036, %v8042
    %v8044 = vcombine.high %v8043, %v8043
    %v8046 = vunpack.c.l.s4 1935823168
    %v8047 = vunpack.c.0.s8 %v8046
    %v8048 = vlaneseq
    %v8049 = vshrl.u32 %v8048, 7
    %v8050 = vsub.s32 %v8047, %v8049
    %v8051 = vrot.slane %v8028, %v8050
    %v8053 = vunpack.c.l.s4 1935823168
    %v8054 = vunpack.c.0.s8 %v8053
    %v8055 = vlaneseq
    %v8056 = vshrl.u32 %v8055, 7
    %v8057 = vsub.s32 %v8054, %v8056
    %v8058 = vrot.slane %v8051, %v8057
    %v8060 = vunpack.c.l.s4 1935823168
    %v8061 = vunpack.c.0.s8 %v8060
    %v8062 = vlaneseq
    %v8063 = vshrl.u32 %v8062, 7
    %v8064 = vsub.s32 %v8061, %v8063
    %v8065 = vrot.slane %v8044, %v8064
    %v8067 = vunpack.c.l.s4 1935823168
    %v8068 = vunpack.c.0.s8 %v8067
    %v8069 = vlaneseq
    %v8070 = vshrl.u32 %v8069, 7
    %v8071 = vsub.s32 %v8068, %v8070
    %v8072 = vrot.slane %v8065, %v8071
    %v8073 = vunpack.c.l.b16 %v8058
    %v8074 = vunpack.c.l.b16 %v8072
    %v8075 = vrot.slane %v8074, 7
    %v8076 = vsel %vm4858, %v8075, %v8073
    %v8077 = vpack.c.b16 %v8076, %v8076
    %v8079 = vunpack.c.l.s4 1966171168
    %v8080 = vunpack.c.0.s8 %v8079
    %v8081 = vlaneseq
    %v8082 = vshrl.u32 %v8081, 7
    %v8083 = vsub.s32 %v8080, %v8082
    %v8084 = vrot.slane %v8077, %v8083
    %v8086 = vunpack.c.l.s4 1966171168
    %v8087 = vunpack.c.0.s8 %v8086
    %v8088 = vlaneseq
    %v8089 = vshrl.u32 %v8088, 7
    %v8090 = vsub.s32 %v8087, %v8089
    %v8091 = vrot.slane %v8084, %v8090
    %8092 = vrot.lane.b32.xlu0 %v8091, 64
    %v8093 = vpop.permute.xlu0 %8092
    %8095 = vst.msk [vmem:[#allocation7 + $0x9] sm:$0x1] %vm5045, %v8093
    %v8096 = vld [vmem:[%s7506] sm:$0x8]
    %v8097 = vld [vmem:[%s7506 + $0x20] sm:$0x8]
    %v8101 = vunpack.c.l.s4 1966171168
    %v8102 = vunpack.c.0.s8 %v8101
    %v8103 = vlaneseq
    %v8104 = vshrl.u32 %v8103, 7
    %v8105 = vsub.s32 %v8102, %v8104
    %v8106 = vrot.slane %v8096, %v8105
    %v8107 = vcombine.high %v8106, %v8106
    %v8109 = vunpack.c.l.s4 1966171168
    %v8110 = vunpack.c.0.s8 %v8109
    %v8111 = vlaneseq
    %v8112 = vshrl.u32 %v8111, 7
    %v8113 = vsub.s32 %v8110, %v8112
    %v8114 = vrot.slane %v8107, %v8113
    %v8115 = vcombine.high %v8114, %v8114
    %v8117 = vunpack.c.l.s4 1966171168
    %v8118 = vunpack.c.0.s8 %v8117
    %v8119 = vlaneseq
    %v8120 = vshrl.u32 %v8119, 7
    %v8121 = vsub.s32 %v8118, %v8120
    %v8122 = vrot.slane %v8097, %v8121
    %v8123 = vcombine.high %v8122, %v8122
    %v8125 = vunpack.c.l.s4 1966171168
    %v8126 = vunpack.c.0.s8 %v8125
    %v8127 = vlaneseq
    %v8128 = vshrl.u32 %v8127, 7
    %v8129 = vsub.s32 %v8126, %v8128
    %v8130 = vrot.slane %v8123, %v8129
    %v8131 = vcombine.high %v8130, %v8130
    %v8133 = vunpack.c.l.s4 1935823168
    %v8134 = vunpack.c.0.s8 %v8133
    %v8135 = vlaneseq
    %v8136 = vshrl.u32 %v8135, 7
    %v8137 = vsub.s32 %v8134, %v8136
    %v8138 = vrot.slane %v8115, %v8137
    %v8140 = vunpack.c.l.s4 1935823168
    %v8141 = vunpack.c.0.s8 %v8140
    %v8142 = vlaneseq
    %v8143 = vshrl.u32 %v8142, 7
    %v8144 = vsub.s32 %v8141, %v8143
    %v8145 = vrot.slane %v8138, %v8144
    %v8147 = vunpack.c.l.s4 1935823168
    %v8148 = vunpack.c.0.s8 %v8147
    %v8149 = vlaneseq
    %v8150 = vshrl.u32 %v8149, 7
    %v8151 = vsub.s32 %v8148, %v8150
    %v8152 = vrot.slane %v8131, %v8151
    %v8154 = vunpack.c.l.s4 1935823168
    %v8155 = vunpack.c.0.s8 %v8154
    %v8156 = vlaneseq
    %v8157 = vshrl.u32 %v8156, 7
    %v8158 = vsub.s32 %v8155, %v8157
    %v8159 = vrot.slane %v8152, %v8158
    %v8160 = vunpack.c.l.b16 %v8145
    %v8161 = vunpack.c.l.b16 %v8159
    %v8162 = vrot.slane %v8160, 1
    %v8163 = vsel %vm4858, %v8161, %v8162
    %v8164 = vpack.c.b16 %v8163, %v8163
    %v8166 = vunpack.c.l.s4 1966171168
    %v8167 = vunpack.c.0.s8 %v8166
    %v8168 = vlaneseq
    %v8169 = vshrl.u32 %v8168, 7
    %v8170 = vsub.s32 %v8167, %v8169
    %v8171 = vrot.slane %v8164, %v8170
    %v8173 = vunpack.c.l.s4 1966171168
    %v8174 = vunpack.c.0.s8 %v8173
    %v8175 = vlaneseq
    %v8176 = vshrl.u32 %v8175, 7
    %v8177 = vsub.s32 %v8174, %v8176
    %v8178 = vrot.slane %v8171, %v8177
    %8179 = vrot.lane.b32.xlu0 %v8178, 96
    %v8180 = vpop.permute.xlu0 %8179
    %8182 = vst.msk [vmem:[#allocation7 + $0x9] sm:$0x1] %vm5131, %v8180
    %s8183 = scalar_lea.vmem [#allocation6], 20
    %v8184 = vld [vmem:[%s8183] sm:$0x1]
    %v8185 = vld [vmem:[%s8183 + $0x20] sm:$0x1]
    %v8189 = vunpack.c.l.s4 1966171168
    %v8190 = vunpack.c.0.s8 %v8189
    %v8191 = vlaneseq
    %v8192 = vshrl.u32 %v8191, 7
    %v8193 = vsub.s32 %v8190, %v8192
    %v8194 = vrot.slane %v8184, %v8193
    %v8196 = vunpack.c.l.s4 1966171168
    %v8197 = vunpack.c.0.s8 %v8196
    %v8198 = vlaneseq
    %v8199 = vshrl.u32 %v8198, 7
    %v8200 = vsub.s32 %v8197, %v8199
    %v8201 = vrot.slane %v8194, %v8200
    %v8203 = vunpack.c.l.s4 1966171168
    %v8204 = vunpack.c.0.s8 %v8203
    %v8205 = vlaneseq
    %v8206 = vshrl.u32 %v8205, 7
    %v8207 = vsub.s32 %v8204, %v8206
    %v8208 = vrot.slane %v8185, %v8207
    %v8210 = vunpack.c.l.s4 1966171168
    %v8211 = vunpack.c.0.s8 %v8210
    %v8212 = vlaneseq
    %v8213 = vshrl.u32 %v8212, 7
    %v8214 = vsub.s32 %v8211, %v8213
    %v8215 = vrot.slane %v8208, %v8214
    %v8217 = vunpack.c.l.s4 1935823168
    %v8218 = vunpack.c.0.s8 %v8217
    %v8219 = vlaneseq
    %v8220 = vshrl.u32 %v8219, 7
    %v8221 = vsub.s32 %v8218, %v8220
    %v8222 = vrot.slane %v8201, %v8221
    %v8224 = vunpack.c.l.s4 1935823168
    %v8225 = vunpack.c.0.s8 %v8224
    %v8226 = vlaneseq
    %v8227 = vshrl.u32 %v8226, 7
    %v8228 = vsub.s32 %v8225, %v8227
    %v8229 = vrot.slane %v8222, %v8228
    %v8231 = vunpack.c.l.s4 1935823168
    %v8232 = vunpack.c.0.s8 %v8231
    %v8233 = vlaneseq
    %v8234 = vshrl.u32 %v8233, 7
    %v8235 = vsub.s32 %v8232, %v8234
    %v8236 = vrot.slane %v8215, %v8235
    %v8238 = vunpack.c.l.s4 1935823168
    %v8239 = vunpack.c.0.s8 %v8238
    %v8240 = vlaneseq
    %v8241 = vshrl.u32 %v8240, 7
    %v8242 = vsub.s32 %v8239, %v8241
    %v8243 = vrot.slane %v8236, %v8242
    %v8244 = vunpack.c.l.b16 %v8229
    %v8245 = vunpack.c.l.b16 %v8243
    %v8246 = vrot.slane %v8245, 7
    %v8247 = vsel %vm4858, %v8246, %v8244
    %v8248 = vpack.c.b16 %v8247, %v8247
    %v8250 = vunpack.c.l.s4 1966171168
    %v8251 = vunpack.c.0.s8 %v8250
    %v8252 = vlaneseq
    %v8253 = vshrl.u32 %v8252, 7
    %v8254 = vsub.s32 %v8251, %v8253
    %v8255 = vrot.slane %v8248, %v8254
    %v8257 = vunpack.c.l.s4 1966171168
    %v8258 = vunpack.c.0.s8 %v8257
    %v8259 = vlaneseq
    %v8260 = vshrl.u32 %v8259, 7
    %v8261 = vsub.s32 %v8258, %v8260
    %v8262 = vrot.slane %v8255, %v8261
    %8264 = vst.msk [vmem:[#allocation7 + $0xa] sm:$0x1] %vm2280, %v8262
    %v8265 = vld [vmem:[%s8183] sm:$0x1]
    %v8266 = vld [vmem:[%s8183 + $0x20] sm:$0x1]
    %v8270 = vunpack.c.l.s4 1966171168
    %v8271 = vunpack.c.0.s8 %v8270
    %v8272 = vlaneseq
    %v8273 = vshrl.u32 %v8272, 7
    %v8274 = vsub.s32 %v8271, %v8273
    %v8275 = vrot.slane %v8265, %v8274
    %v8277 = vunpack.c.l.s4 1966171168
    %v8278 = vunpack.c.0.s8 %v8277
    %v8279 = vlaneseq
    %v8280 = vshrl.u32 %v8279, 7
    %v8281 = vsub.s32 %v8278, %v8280
    %v8282 = vrot.slane %v8275, %v8281
    %v8284 = vunpack.c.l.s4 1966171168
    %v8285 = vunpack.c.0.s8 %v8284
    %v8286 = vlaneseq
    %v8287 = vshrl.u32 %v8286, 7
    %v8288 = vsub.s32 %v8285, %v8287
    %v8289 = vrot.slane %v8266, %v8288
    %v8291 = vunpack.c.l.s4 1966171168
    %v8292 = vunpack.c.0.s8 %v8291
    %v8293 = vlaneseq
    %v8294 = vshrl.u32 %v8293, 7
    %v8295 = vsub.s32 %v8292, %v8294
    %v8296 = vrot.slane %v8289, %v8295
    %v8298 = vunpack.c.l.s4 1935823168
    %v8299 = vunpack.c.0.s8 %v8298
    %v8300 = vlaneseq
    %v8301 = vshrl.u32 %v8300, 7
    %v8302 = vsub.s32 %v8299, %v8301
    %v8303 = vrot.slane %v8282, %v8302
    %v8305 = vunpack.c.l.s4 1935823168
    %v8306 = vunpack.c.0.s8 %v8305
    %v8307 = vlaneseq
    %v8308 = vshrl.u32 %v8307, 7
    %v8309 = vsub.s32 %v8306, %v8308
    %v8310 = vrot.slane %v8303, %v8309
    %v8312 = vunpack.c.l.s4 1935823168
    %v8313 = vunpack.c.0.s8 %v8312
    %v8314 = vlaneseq
    %v8315 = vshrl.u32 %v8314, 7
    %v8316 = vsub.s32 %v8313, %v8315
    %v8317 = vrot.slane %v8296, %v8316
    %v8319 = vunpack.c.l.s4 1935823168
    %v8320 = vunpack.c.0.s8 %v8319
    %v8321 = vlaneseq
    %v8322 = vshrl.u32 %v8321, 7
    %v8323 = vsub.s32 %v8320, %v8322
    %v8324 = vrot.slane %v8317, %v8323
    %v8325 = vunpack.c.l.b16 %v8310
    %v8326 = vunpack.c.l.b16 %v8324
    %v8327 = vrot.slane %v8325, 1
    %v8328 = vsel %vm4858, %v8326, %v8327
    %v8329 = vpack.c.b16 %v8328, %v8328
    %v8331 = vunpack.c.l.s4 1966171168
    %v8332 = vunpack.c.0.s8 %v8331
    %v8333 = vlaneseq
    %v8334 = vshrl.u32 %v8333, 7
    %v8335 = vsub.s32 %v8332, %v8334
    %v8336 = vrot.slane %v8329, %v8335
    %v8338 = vunpack.c.l.s4 1966171168
    %v8339 = vunpack.c.0.s8 %v8338
    %v8340 = vlaneseq
    %v8341 = vshrl.u32 %v8340, 7
    %v8342 = vsub.s32 %v8339, %v8341
    %v8343 = vrot.slane %v8336, %v8342
    %8344 = vrot.lane.b32.xlu0 %v8343, 32
    %v8345 = vpop.permute.xlu0 %8344
    %8347 = vst.msk [vmem:[#allocation7 + $0xa] sm:$0x1] %vm4959, %v8345
    %v8348 = vld [vmem:[%s8183] sm:$0x2]
    %v8349 = vld [vmem:[%s8183 + $0x20] sm:$0x2]
    %v8353 = vunpack.c.l.s4 1966171168
    %v8354 = vunpack.c.0.s8 %v8353
    %v8355 = vlaneseq
    %v8356 = vshrl.u32 %v8355, 7
    %v8357 = vsub.s32 %v8354, %v8356
    %v8358 = vrot.slane %v8348, %v8357
    %v8359 = vcombine.high %v8358, %v8358
    %v8361 = vunpack.c.l.s4 1966171168
    %v8362 = vunpack.c.0.s8 %v8361
    %v8363 = vlaneseq
    %v8364 = vshrl.u32 %v8363, 7
    %v8365 = vsub.s32 %v8362, %v8364
    %v8366 = vrot.slane %v8359, %v8365
    %v8368 = vunpack.c.l.s4 1966171168
    %v8369 = vunpack.c.0.s8 %v8368
    %v8370 = vlaneseq
    %v8371 = vshrl.u32 %v8370, 7
    %v8372 = vsub.s32 %v8369, %v8371
    %v8373 = vrot.slane %v8349, %v8372
    %v8374 = vcombine.high %v8373, %v8373
    %v8376 = vunpack.c.l.s4 1966171168
    %v8377 = vunpack.c.0.s8 %v8376
    %v8378 = vlaneseq
    %v8379 = vshrl.u32 %v8378, 7
    %v8380 = vsub.s32 %v8377, %v8379
    %v8381 = vrot.slane %v8374, %v8380
    %v8383 = vunpack.c.l.s4 1935823168
    %v8384 = vunpack.c.0.s8 %v8383
    %v8385 = vlaneseq
    %v8386 = vshrl.u32 %v8385, 7
    %v8387 = vsub.s32 %v8384, %v8386
    %v8388 = vrot.slane %v8366, %v8387
    %v8390 = vunpack.c.l.s4 1935823168
    %v8391 = vunpack.c.0.s8 %v8390
    %v8392 = vlaneseq
    %v8393 = vshrl.u32 %v8392, 7
    %v8394 = vsub.s32 %v8391, %v8393
    %v8395 = vrot.slane %v8388, %v8394
    %v8397 = vunpack.c.l.s4 1935823168
    %v8398 = vunpack.c.0.s8 %v8397
    %v8399 = vlaneseq
    %v8400 = vshrl.u32 %v8399, 7
    %v8401 = vsub.s32 %v8398, %v8400
    %v8402 = vrot.slane %v8381, %v8401
    %v8404 = vunpack.c.l.s4 1935823168
    %v8405 = vunpack.c.0.s8 %v8404
    %v8406 = vlaneseq
    %v8407 = vshrl.u32 %v8406, 7
    %v8408 = vsub.s32 %v8405, %v8407
    %v8409 = vrot.slane %v8402, %v8408
    %v8410 = vunpack.c.l.b16 %v8395
    %v8411 = vunpack.c.l.b16 %v8409
    %v8412 = vrot.slane %v8411, 7
    %v8413 = vsel %vm4858, %v8412, %v8410
    %v8414 = vpack.c.b16 %v8413, %v8413
    %v8416 = vunpack.c.l.s4 1966171168
    %v8417 = vunpack.c.0.s8 %v8416
    %v8418 = vlaneseq
    %v8419 = vshrl.u32 %v8418, 7
    %v8420 = vsub.s32 %v8417, %v8419
    %v8421 = vrot.slane %v8414, %v8420
    %v8423 = vunpack.c.l.s4 1966171168
    %v8424 = vunpack.c.0.s8 %v8423
    %v8425 = vlaneseq
    %v8426 = vshrl.u32 %v8425, 7
    %v8427 = vsub.s32 %v8424, %v8426
    %v8428 = vrot.slane %v8421, %v8427
    %8429 = vrot.lane.b32.xlu0 %v8428, 64
    %v8430 = vpop.permute.xlu0 %8429
    %8432 = vst.msk [vmem:[#allocation7 + $0xa] sm:$0x1] %vm5045, %v8430
    %v8433 = vld [vmem:[%s8183] sm:$0x2]
    %v8434 = vld [vmem:[%s8183 + $0x20] sm:$0x2]
    %v8438 = vunpack.c.l.s4 1966171168
    %v8439 = vunpack.c.0.s8 %v8438
    %v8440 = vlaneseq
    %v8441 = vshrl.u32 %v8440, 7
    %v8442 = vsub.s32 %v8439, %v8441
    %v8443 = vrot.slane %v8433, %v8442
    %v8444 = vcombine.high %v8443, %v8443
    %v8446 = vunpack.c.l.s4 1966171168
    %v8447 = vunpack.c.0.s8 %v8446
    %v8448 = vlaneseq
    %v8449 = vshrl.u32 %v8448, 7
    %v8450 = vsub.s32 %v8447, %v8449
    %v8451 = vrot.slane %v8444, %v8450
    %v8453 = vunpack.c.l.s4 1966171168
    %v8454 = vunpack.c.0.s8 %v8453
    %v8455 = vlaneseq
    %v8456 = vshrl.u32 %v8455, 7
    %v8457 = vsub.s32 %v8454, %v8456
    %v8458 = vrot.slane %v8434, %v8457
    %v8459 = vcombine.high %v8458, %v8458
    %v8461 = vunpack.c.l.s4 1966171168
    %v8462 = vunpack.c.0.s8 %v8461
    %v8463 = vlaneseq
    %v8464 = vshrl.u32 %v8463, 7
    %v8465 = vsub.s32 %v8462, %v8464
    %v8466 = vrot.slane %v8459, %v8465
    %v8468 = vunpack.c.l.s4 1935823168
    %v8469 = vunpack.c.0.s8 %v8468
    %v8470 = vlaneseq
    %v8471 = vshrl.u32 %v8470, 7
    %v8472 = vsub.s32 %v8469, %v8471
    %v8473 = vrot.slane %v8451, %v8472
    %v8475 = vunpack.c.l.s4 1935823168
    %v8476 = vunpack.c.0.s8 %v8475
    %v8477 = vlaneseq
    %v8478 = vshrl.u32 %v8477, 7
    %v8479 = vsub.s32 %v8476, %v8478
    %v8480 = vrot.slane %v8473, %v8479
    %v8482 = vunpack.c.l.s4 1935823168
    %v8483 = vunpack.c.0.s8 %v8482
    %v8484 = vlaneseq
    %v8485 = vshrl.u32 %v8484, 7
    %v8486 = vsub.s32 %v8483, %v8485
    %v8487 = vrot.slane %v8466, %v8486
    %v8489 = vunpack.c.l.s4 1935823168
    %v8490 = vunpack.c.0.s8 %v8489
    %v8491 = vlaneseq
    %v8492 = vshrl.u32 %v8491, 7
    %v8493 = vsub.s32 %v8490, %v8492
    %v8494 = vrot.slane %v8487, %v8493
    %v8495 = vunpack.c.l.b16 %v8480
    %v8496 = vunpack.c.l.b16 %v8494
    %v8497 = vrot.slane %v8495, 1
    %v8498 = vsel %vm4858, %v8496, %v8497
    %v8499 = vpack.c.b16 %v8498, %v8498
    %v8501 = vunpack.c.l.s4 1966171168
    %v8502 = vunpack.c.0.s8 %v8501
    %v8503 = vlaneseq
    %v8504 = vshrl.u32 %v8503, 7
    %v8505 = vsub.s32 %v8502, %v8504
    %v8506 = vrot.slane %v8499, %v8505
    %v8508 = vunpack.c.l.s4 1966171168
    %v8509 = vunpack.c.0.s8 %v8508
    %v8510 = vlaneseq
    %v8511 = vshrl.u32 %v8510, 7
    %v8512 = vsub.s32 %v8509, %v8511
    %v8513 = vrot.slane %v8506, %v8512
    %8514 = vrot.lane.b32.xlu0 %v8513, 96
    %v8515 = vpop.permute.xlu0 %8514
    %8517 = vst.msk [vmem:[#allocation7 + $0xa] sm:$0x1] %vm5131, %v8515
    %v8518 = vld [vmem:[%s8183] sm:$0x4]
    %v8519 = vld [vmem:[%s8183 + $0x20] sm:$0x4]
    %v8523 = vunpack.c.l.s4 1966171168
    %v8524 = vunpack.c.0.s8 %v8523
    %v8525 = vlaneseq
    %v8526 = vshrl.u32 %v8525, 7
    %v8527 = vsub.s32 %v8524, %v8526
    %v8528 = vrot.slane %v8518, %v8527
    %v8530 = vunpack.c.l.s4 1966171168
    %v8531 = vunpack.c.0.s8 %v8530
    %v8532 = vlaneseq
    %v8533 = vshrl.u32 %v8532, 7
    %v8534 = vsub.s32 %v8531, %v8533
    %v8535 = vrot.slane %v8528, %v8534
    %v8536 = vcombine.high %v8535, %v8535
    %v8538 = vunpack.c.l.s4 1966171168
    %v8539 = vunpack.c.0.s8 %v8538
    %v8540 = vlaneseq
    %v8541 = vshrl.u32 %v8540, 7
    %v8542 = vsub.s32 %v8539, %v8541
    %v8543 = vrot.slane %v8519, %v8542
    %v8545 = vunpack.c.l.s4 1966171168
    %v8546 = vunpack.c.0.s8 %v8545
    %v8547 = vlaneseq
    %v8548 = vshrl.u32 %v8547, 7
    %v8549 = vsub.s32 %v8546, %v8548
    %v8550 = vrot.slane %v8543, %v8549
    %v8551 = vcombine.high %v8550, %v8550
    %v8553 = vunpack.c.l.s4 1935823168
    %v8554 = vunpack.c.0.s8 %v8553
    %v8555 = vlaneseq
    %v8556 = vshrl.u32 %v8555, 7
    %v8557 = vsub.s32 %v8554, %v8556
    %v8558 = vrot.slane %v8536, %v8557
    %v8560 = vunpack.c.l.s4 1935823168
    %v8561 = vunpack.c.0.s8 %v8560
    %v8562 = vlaneseq
    %v8563 = vshrl.u32 %v8562, 7
    %v8564 = vsub.s32 %v8561, %v8563
    %v8565 = vrot.slane %v8558, %v8564
    %v8567 = vunpack.c.l.s4 1935823168
    %v8568 = vunpack.c.0.s8 %v8567
    %v8569 = vlaneseq
    %v8570 = vshrl.u32 %v8569, 7
    %v8571 = vsub.s32 %v8568, %v8570
    %v8572 = vrot.slane %v8551, %v8571
    %v8574 = vunpack.c.l.s4 1935823168
    %v8575 = vunpack.c.0.s8 %v8574
    %v8576 = vlaneseq
    %v8577 = vshrl.u32 %v8576, 7
    %v8578 = vsub.s32 %v8575, %v8577
    %v8579 = vrot.slane %v8572, %v8578
    %v8580 = vunpack.c.l.b16 %v8565
    %v8581 = vunpack.c.l.b16 %v8579
    %v8582 = vrot.slane %v8581, 7
    %v8583 = vsel %vm4858, %v8582, %v8580
    %v8584 = vpack.c.b16 %v8583, %v8583
    %v8586 = vunpack.c.l.s4 1966171168
    %v8587 = vunpack.c.0.s8 %v8586
    %v8588 = vlaneseq
    %v8589 = vshrl.u32 %v8588, 7
    %v8590 = vsub.s32 %v8587, %v8589
    %v8591 = vrot.slane %v8584, %v8590
    %v8593 = vunpack.c.l.s4 1966171168
    %v8594 = vunpack.c.0.s8 %v8593
    %v8595 = vlaneseq
    %v8596 = vshrl.u32 %v8595, 7
    %v8597 = vsub.s32 %v8594, %v8596
    %v8598 = vrot.slane %v8591, %v8597
    %8600 = vst.msk [vmem:[#allocation7 + $0xb] sm:$0x1] %vm2280, %v8598
    %v8601 = vld [vmem:[%s8183] sm:$0x4]
    %v8602 = vld [vmem:[%s8183 + $0x20] sm:$0x4]
    %v8606 = vunpack.c.l.s4 1966171168
    %v8607 = vunpack.c.0.s8 %v8606
    %v8608 = vlaneseq
    %v8609 = vshrl.u32 %v8608, 7
    %v8610 = vsub.s32 %v8607, %v8609
    %v8611 = vrot.slane %v8601, %v8610
    %v8613 = vunpack.c.l.s4 1966171168
    %v8614 = vunpack.c.0.s8 %v8613
    %v8615 = vlaneseq
    %v8616 = vshrl.u32 %v8615, 7
    %v8617 = vsub.s32 %v8614, %v8616
    %v8618 = vrot.slane %v8611, %v8617
    %v8619 = vcombine.high %v8618, %v8618
    %v8621 = vunpack.c.l.s4 1966171168
    %v8622 = vunpack.c.0.s8 %v8621
    %v8623 = vlaneseq
    %v8624 = vshrl.u32 %v8623, 7
    %v8625 = vsub.s32 %v8622, %v8624
    %v8626 = vrot.slane %v8602, %v8625
    %v8628 = vunpack.c.l.s4 1966171168
    %v8629 = vunpack.c.0.s8 %v8628
    %v8630 = vlaneseq
    %v8631 = vshrl.u32 %v8630, 7
    %v8632 = vsub.s32 %v8629, %v8631
    %v8633 = vrot.slane %v8626, %v8632
    %v8634 = vcombine.high %v8633, %v8633
    %v8636 = vunpack.c.l.s4 1935823168
    %v8637 = vunpack.c.0.s8 %v8636
    %v8638 = vlaneseq
    %v8639 = vshrl.u32 %v8638, 7
    %v8640 = vsub.s32 %v8637, %v8639
    %v8641 = vrot.slane %v8619, %v8640
    %v8643 = vunpack.c.l.s4 1935823168
    %v8644 = vunpack.c.0.s8 %v8643
    %v8645 = vlaneseq
    %v8646 = vshrl.u32 %v8645, 7
    %v8647 = vsub.s32 %v8644, %v8646
    %v8648 = vrot.slane %v8641, %v8647
    %v8650 = vunpack.c.l.s4 1935823168
    %v8651 = vunpack.c.0.s8 %v8650
    %v8652 = vlaneseq
    %v8653 = vshrl.u32 %v8652, 7
    %v8654 = vsub.s32 %v8651, %v8653
    %v8655 = vrot.slane %v8634, %v8654
    %v8657 = vunpack.c.l.s4 1935823168
    %v8658 = vunpack.c.0.s8 %v8657
    %v8659 = vlaneseq
    %v8660 = vshrl.u32 %v8659, 7
    %v8661 = vsub.s32 %v8658, %v8660
    %v8662 = vrot.slane %v8655, %v8661
    %v8663 = vunpack.c.l.b16 %v8648
    %v8664 = vunpack.c.l.b16 %v8662
    %v8665 = vrot.slane %v8663, 1
    %v8666 = vsel %vm4858, %v8664, %v8665
    %v8667 = vpack.c.b16 %v8666, %v8666
    %v8669 = vunpack.c.l.s4 1966171168
    %v8670 = vunpack.c.0.s8 %v8669
    %v8671 = vlaneseq
    %v8672 = vshrl.u32 %v8671, 7
    %v8673 = vsub.s32 %v8670, %v8672
    %v8674 = vrot.slane %v8667, %v8673
    %v8676 = vunpack.c.l.s4 1966171168
    %v8677 = vunpack.c.0.s8 %v8676
    %v8678 = vlaneseq
    %v8679 = vshrl.u32 %v8678, 7
    %v8680 = vsub.s32 %v8677, %v8679
    %v8681 = vrot.slane %v8674, %v8680
    %8682 = vrot.lane.b32.xlu0 %v8681, 32
    %v8683 = vpop.permute.xlu0 %8682
    %8685 = vst.msk [vmem:[#allocation7 + $0xb] sm:$0x1] %vm4959, %v8683
    %v8686 = vld [vmem:[%s8183] sm:$0x8]
    %v8687 = vld [vmem:[%s8183 + $0x20] sm:$0x8]
    %v8691 = vunpack.c.l.s4 1966171168
    %v8692 = vunpack.c.0.s8 %v8691
    %v8693 = vlaneseq
    %v8694 = vshrl.u32 %v8693, 7
    %v8695 = vsub.s32 %v8692, %v8694
    %v8696 = vrot.slane %v8686, %v8695
    %v8697 = vcombine.high %v8696, %v8696
    %v8699 = vunpack.c.l.s4 1966171168
    %v8700 = vunpack.c.0.s8 %v8699
    %v8701 = vlaneseq
    %v8702 = vshrl.u32 %v8701, 7
    %v8703 = vsub.s32 %v8700, %v8702
    %v8704 = vrot.slane %v8697, %v8703
    %v8705 = vcombine.high %v8704, %v8704
    %v8707 = vunpack.c.l.s4 1966171168
    %v8708 = vunpack.c.0.s8 %v8707
    %v8709 = vlaneseq
    %v8710 = vshrl.u32 %v8709, 7
    %v8711 = vsub.s32 %v8708, %v8710
    %v8712 = vrot.slane %v8687, %v8711
    %v8713 = vcombine.high %v8712, %v8712
    %v8715 = vunpack.c.l.s4 1966171168
    %v8716 = vunpack.c.0.s8 %v8715
    %v8717 = vlaneseq
    %v8718 = vshrl.u32 %v8717, 7
    %v8719 = vsub.s32 %v8716, %v8718
    %v8720 = vrot.slane %v8713, %v8719
    %v8721 = vcombine.high %v8720, %v8720
    %v8723 = vunpack.c.l.s4 1935823168
    %v8724 = vunpack.c.0.s8 %v8723
    %v8725 = vlaneseq
    %v8726 = vshrl.u32 %v8725, 7
    %v8727 = vsub.s32 %v8724, %v8726
    %v8728 = vrot.slane %v8705, %v8727
    %v8730 = vunpack.c.l.s4 1935823168
    %v8731 = vunpack.c.0.s8 %v8730
    %v8732 = vlaneseq
    %v8733 = vshrl.u32 %v8732, 7
    %v8734 = vsub.s32 %v8731, %v8733
    %v8735 = vrot.slane %v8728, %v8734
    %v8737 = vunpack.c.l.s4 1935823168
    %v8738 = vunpack.c.0.s8 %v8737
    %v8739 = vlaneseq
    %v8740 = vshrl.u32 %v8739, 7
    %v8741 = vsub.s32 %v8738, %v8740
    %v8742 = vrot.slane %v8721, %v8741
    %v8744 = vunpack.c.l.s4 1935823168
    %v8745 = vunpack.c.0.s8 %v8744
    %v8746 = vlaneseq
    %v8747 = vshrl.u32 %v8746, 7
    %v8748 = vsub.s32 %v8745, %v8747
    %v8749 = vrot.slane %v8742, %v8748
    %v8750 = vunpack.c.l.b16 %v8735
    %v8751 = vunpack.c.l.b16 %v8749
    %v8752 = vrot.slane %v8751, 7
    %v8753 = vsel %vm4858, %v8752, %v8750
    %v8754 = vpack.c.b16 %v8753, %v8753
    %v8756 = vunpack.c.l.s4 1966171168
    %v8757 = vunpack.c.0.s8 %v8756
    %v8758 = vlaneseq
    %v8759 = vshrl.u32 %v8758, 7
    %v8760 = vsub.s32 %v8757, %v8759
    %v8761 = vrot.slane %v8754, %v8760
    %v8763 = vunpack.c.l.s4 1966171168
    %v8764 = vunpack.c.0.s8 %v8763
    %v8765 = vlaneseq
    %v8766 = vshrl.u32 %v8765, 7
    %v8767 = vsub.s32 %v8764, %v8766
    %v8768 = vrot.slane %v8761, %v8767
    %8769 = vrot.lane.b32.xlu0 %v8768, 64
    %v8770 = vpop.permute.xlu0 %8769
    %8772 = vst.msk [vmem:[#allocation7 + $0xb] sm:$0x1] %vm5045, %v8770
    %v8773 = vld [vmem:[%s8183] sm:$0x8]
    %v8774 = vld [vmem:[%s8183 + $0x20] sm:$0x8]
    %v8778 = vunpack.c.l.s4 1966171168
    %v8779 = vunpack.c.0.s8 %v8778
    %v8780 = vlaneseq
    %v8781 = vshrl.u32 %v8780, 7
    %v8782 = vsub.s32 %v8779, %v8781
    %v8783 = vrot.slane %v8773, %v8782
    %v8784 = vcombine.high %v8783, %v8783
    %v8786 = vunpack.c.l.s4 1966171168
    %v8787 = vunpack.c.0.s8 %v8786
    %v8788 = vlaneseq
    %v8789 = vshrl.u32 %v8788, 7
    %v8790 = vsub.s32 %v8787, %v8789
    %v8791 = vrot.slane %v8784, %v8790
    %v8792 = vcombine.high %v8791, %v8791
    %v8794 = vunpack.c.l.s4 1966171168
    %v8795 = vunpack.c.0.s8 %v8794
    %v8796 = vlaneseq
    %v8797 = vshrl.u32 %v8796, 7
    %v8798 = vsub.s32 %v8795, %v8797
    %v8799 = vrot.slane %v8774, %v8798
    %v8800 = vcombine.high %v8799, %v8799
    %v8802 = vunpack.c.l.s4 1966171168
    %v8803 = vunpack.c.0.s8 %v8802
    %v8804 = vlaneseq
    %v8805 = vshrl.u32 %v8804, 7
    %v8806 = vsub.s32 %v8803, %v8805
    %v8807 = vrot.slane %v8800, %v8806
    %v8808 = vcombine.high %v8807, %v8807
    %v8810 = vunpack.c.l.s4 1935823168
    %v8811 = vunpack.c.0.s8 %v8810
    %v8812 = vlaneseq
    %v8813 = vshrl.u32 %v8812, 7
    %v8814 = vsub.s32 %v8811, %v8813
    %v8815 = vrot.slane %v8792, %v8814
    %v8817 = vunpack.c.l.s4 1935823168
    %v8818 = vunpack.c.0.s8 %v8817
    %v8819 = vlaneseq
    %v8820 = vshrl.u32 %v8819, 7
    %v8821 = vsub.s32 %v8818, %v8820
    %v8822 = vrot.slane %v8815, %v8821
    %v8824 = vunpack.c.l.s4 1935823168
    %v8825 = vunpack.c.0.s8 %v8824
    %v8826 = vlaneseq
    %v8827 = vshrl.u32 %v8826, 7
    %v8828 = vsub.s32 %v8825, %v8827
    %v8829 = vrot.slane %v8808, %v8828
    %v8831 = vunpack.c.l.s4 1935823168
    %v8832 = vunpack.c.0.s8 %v8831
    %v8833 = vlaneseq
    %v8834 = vshrl.u32 %v8833, 7
    %v8835 = vsub.s32 %v8832, %v8834
    %v8836 = vrot.slane %v8829, %v8835
    %v8837 = vunpack.c.l.b16 %v8822
    %v8838 = vunpack.c.l.b16 %v8836
    %v8839 = vrot.slane %v8837, 1
    %v8840 = vsel %vm4858, %v8838, %v8839
    %v8841 = vpack.c.b16 %v8840, %v8840
    %v8843 = vunpack.c.l.s4 1966171168
    %v8844 = vunpack.c.0.s8 %v8843
    %v8845 = vlaneseq
    %v8846 = vshrl.u32 %v8845, 7
    %v8847 = vsub.s32 %v8844, %v8846
    %v8848 = vrot.slane %v8841, %v8847
    %v8850 = vunpack.c.l.s4 1966171168
    %v8851 = vunpack.c.0.s8 %v8850
    %v8852 = vlaneseq
    %v8853 = vshrl.u32 %v8852, 7
    %v8854 = vsub.s32 %v8851, %v8853
    %v8855 = vrot.slane %v8848, %v8854
    %8856 = vrot.lane.b32.xlu0 %v8855, 96
    %v8857 = vpop.permute.xlu0 %8856
    %8859 = vst.msk [vmem:[#allocation7 + $0xb] sm:$0x1] %vm5131, %v8857
    %s8860 = scalar_lea.vmem [#allocation6], 24
    %v8861 = vld [vmem:[%s8860] sm:$0x1]
    %v8862 = vld [vmem:[%s8860 + $0x20] sm:$0x1]
    %v8866 = vunpack.c.l.s4 1966171168
    %v8867 = vunpack.c.0.s8 %v8866
    %v8868 = vlaneseq
    %v8869 = vshrl.u32 %v8868, 7
    %v8870 = vsub.s32 %v8867, %v8869
    %v8871 = vrot.slane %v8861, %v8870
    %v8873 = vunpack.c.l.s4 1966171168
    %v8874 = vunpack.c.0.s8 %v8873
    %v8875 = vlaneseq
    %v8876 = vshrl.u32 %v8875, 7
    %v8877 = vsub.s32 %v8874, %v8876
    %v8878 = vrot.slane %v8871, %v8877
    %v8880 = vunpack.c.l.s4 1966171168
    %v8881 = vunpack.c.0.s8 %v8880
    %v8882 = vlaneseq
    %v8883 = vshrl.u32 %v8882, 7
    %v8884 = vsub.s32 %v8881, %v8883
    %v8885 = vrot.slane %v8862, %v8884
    %v8887 = vunpack.c.l.s4 1966171168
    %v8888 = vunpack.c.0.s8 %v8887
    %v8889 = vlaneseq
    %v8890 = vshrl.u32 %v8889, 7
    %v8891 = vsub.s32 %v8888, %v8890
    %v8892 = vrot.slane %v8885, %v8891
    %v8894 = vunpack.c.l.s4 1935823168
    %v8895 = vunpack.c.0.s8 %v8894
    %v8896 = vlaneseq
    %v8897 = vshrl.u32 %v8896, 7
    %v8898 = vsub.s32 %v8895, %v8897
    %v8899 = vrot.slane %v8878, %v8898
    %v8901 = vunpack.c.l.s4 1935823168
    %v8902 = vunpack.c.0.s8 %v8901
    %v8903 = vlaneseq
    %v8904 = vshrl.u32 %v8903, 7
    %v8905 = vsub.s32 %v8902, %v8904
    %v8906 = vrot.slane %v8899, %v8905
    %v8908 = vunpack.c.l.s4 1935823168
    %v8909 = vunpack.c.0.s8 %v8908
    %v8910 = vlaneseq
    %v8911 = vshrl.u32 %v8910, 7
    %v8912 = vsub.s32 %v8909, %v8911
    %v8913 = vrot.slane %v8892, %v8912
    %v8915 = vunpack.c.l.s4 1935823168
    %v8916 = vunpack.c.0.s8 %v8915
    %v8917 = vlaneseq
    %v8918 = vshrl.u32 %v8917, 7
    %v8919 = vsub.s32 %v8916, %v8918
    %v8920 = vrot.slane %v8913, %v8919
    %v8921 = vunpack.c.l.b16 %v8906
    %v8922 = vunpack.c.l.b16 %v8920
    %v8923 = vrot.slane %v8922, 7
    %v8924 = vsel %vm4858, %v8923, %v8921
    %v8925 = vpack.c.b16 %v8924, %v8924
    %v8927 = vunpack.c.l.s4 1966171168
    %v8928 = vunpack.c.0.s8 %v8927
    %v8929 = vlaneseq
    %v8930 = vshrl.u32 %v8929, 7
    %v8931 = vsub.s32 %v8928, %v8930
    %v8932 = vrot.slane %v8925, %v8931
    %v8934 = vunpack.c.l.s4 1966171168
    %v8935 = vunpack.c.0.s8 %v8934
    %v8936 = vlaneseq
    %v8937 = vshrl.u32 %v8936, 7
    %v8938 = vsub.s32 %v8935, %v8937
    %v8939 = vrot.slane %v8932, %v8938
    %8941 = vst.msk [vmem:[#allocation7 + $0xc] sm:$0x1] %vm2280, %v8939
    %v8942 = vld [vmem:[%s8860] sm:$0x1]
    %v8943 = vld [vmem:[%s8860 + $0x20] sm:$0x1]
    %v8947 = vunpack.c.l.s4 1966171168
    %v8948 = vunpack.c.0.s8 %v8947
    %v8949 = vlaneseq
    %v8950 = vshrl.u32 %v8949, 7
    %v8951 = vsub.s32 %v8948, %v8950
    %v8952 = vrot.slane %v8942, %v8951
    %v8954 = vunpack.c.l.s4 1966171168
    %v8955 = vunpack.c.0.s8 %v8954
    %v8956 = vlaneseq
    %v8957 = vshrl.u32 %v8956, 7
    %v8958 = vsub.s32 %v8955, %v8957
    %v8959 = vrot.slane %v8952, %v8958
    %v8961 = vunpack.c.l.s4 1966171168
    %v8962 = vunpack.c.0.s8 %v8961
    %v8963 = vlaneseq
    %v8964 = vshrl.u32 %v8963, 7
    %v8965 = vsub.s32 %v8962, %v8964
    %v8966 = vrot.slane %v8943, %v8965
    %v8968 = vunpack.c.l.s4 1966171168
    %v8969 = vunpack.c.0.s8 %v8968
    %v8970 = vlaneseq
    %v8971 = vshrl.u32 %v8970, 7
    %v8972 = vsub.s32 %v8969, %v8971
    %v8973 = vrot.slane %v8966, %v8972
    %v8975 = vunpack.c.l.s4 1935823168
    %v8976 = vunpack.c.0.s8 %v8975
    %v8977 = vlaneseq
    %v8978 = vshrl.u32 %v8977, 7
    %v8979 = vsub.s32 %v8976, %v8978
    %v8980 = vrot.slane %v8959, %v8979
    %v8982 = vunpack.c.l.s4 1935823168
    %v8983 = vunpack.c.0.s8 %v8982
    %v8984 = vlaneseq
    %v8985 = vshrl.u32 %v8984, 7
    %v8986 = vsub.s32 %v8983, %v8985
    %v8987 = vrot.slane %v8980, %v8986
    %v8989 = vunpack.c.l.s4 1935823168
    %v8990 = vunpack.c.0.s8 %v8989
    %v8991 = vlaneseq
    %v8992 = vshrl.u32 %v8991, 7
    %v8993 = vsub.s32 %v8990, %v8992
    %v8994 = vrot.slane %v8973, %v8993
    %v8996 = vunpack.c.l.s4 1935823168
    %v8997 = vunpack.c.0.s8 %v8996
    %v8998 = vlaneseq
    %v8999 = vshrl.u32 %v8998, 7
    %v9000 = vsub.s32 %v8997, %v8999
    %v9001 = vrot.slane %v8994, %v9000
    %v9002 = vunpack.c.l.b16 %v8987
    %v9003 = vunpack.c.l.b16 %v9001
    %v9004 = vrot.slane %v9002, 1
    %v9005 = vsel %vm4858, %v9003, %v9004
    %v9006 = vpack.c.b16 %v9005, %v9005
    %v9008 = vunpack.c.l.s4 1966171168
    %v9009 = vunpack.c.0.s8 %v9008
    %v9010 = vlaneseq
    %v9011 = vshrl.u32 %v9010, 7
    %v9012 = vsub.s32 %v9009, %v9011
    %v9013 = vrot.slane %v9006, %v9012
    %v9015 = vunpack.c.l.s4 1966171168
    %v9016 = vunpack.c.0.s8 %v9015
    %v9017 = vlaneseq
    %v9018 = vshrl.u32 %v9017, 7
    %v9019 = vsub.s32 %v9016, %v9018
    %v9020 = vrot.slane %v9013, %v9019
    %9021 = vrot.lane.b32.xlu0 %v9020, 32
    %v9022 = vpop.permute.xlu0 %9021
    %9024 = vst.msk [vmem:[#allocation7 + $0xc] sm:$0x1] %vm4959, %v9022
    %v9025 = vld [vmem:[%s8860] sm:$0x2]
    %v9026 = vld [vmem:[%s8860 + $0x20] sm:$0x2]
    %v9030 = vunpack.c.l.s4 1966171168
    %v9031 = vunpack.c.0.s8 %v9030
    %v9032 = vlaneseq
    %v9033 = vshrl.u32 %v9032, 7
    %v9034 = vsub.s32 %v9031, %v9033
    %v9035 = vrot.slane %v9025, %v9034
    %v9036 = vcombine.high %v9035, %v9035
    %v9038 = vunpack.c.l.s4 1966171168
    %v9039 = vunpack.c.0.s8 %v9038
    %v9040 = vlaneseq
    %v9041 = vshrl.u32 %v9040, 7
    %v9042 = vsub.s32 %v9039, %v9041
    %v9043 = vrot.slane %v9036, %v9042
    %v9045 = vunpack.c.l.s4 1966171168
    %v9046 = vunpack.c.0.s8 %v9045
    %v9047 = vlaneseq
    %v9048 = vshrl.u32 %v9047, 7
    %v9049 = vsub.s32 %v9046, %v9048
    %v9050 = vrot.slane %v9026, %v9049
    %v9051 = vcombine.high %v9050, %v9050
    %v9053 = vunpack.c.l.s4 1966171168
    %v9054 = vunpack.c.0.s8 %v9053
    %v9055 = vlaneseq
    %v9056 = vshrl.u32 %v9055, 7
    %v9057 = vsub.s32 %v9054, %v9056
    %v9058 = vrot.slane %v9051, %v9057
    %v9060 = vunpack.c.l.s4 1935823168
    %v9061 = vunpack.c.0.s8 %v9060
    %v9062 = vlaneseq
    %v9063 = vshrl.u32 %v9062, 7
    %v9064 = vsub.s32 %v9061, %v9063
    %v9065 = vrot.slane %v9043, %v9064
    %v9067 = vunpack.c.l.s4 1935823168
    %v9068 = vunpack.c.0.s8 %v9067
    %v9069 = vlaneseq
    %v9070 = vshrl.u32 %v9069, 7
    %v9071 = vsub.s32 %v9068, %v9070
    %v9072 = vrot.slane %v9065, %v9071
    %v9074 = vunpack.c.l.s4 1935823168
    %v9075 = vunpack.c.0.s8 %v9074
    %v9076 = vlaneseq
    %v9077 = vshrl.u32 %v9076, 7
    %v9078 = vsub.s32 %v9075, %v9077
    %v9079 = vrot.slane %v9058, %v9078
    %v9081 = vunpack.c.l.s4 1935823168
    %v9082 = vunpack.c.0.s8 %v9081
    %v9083 = vlaneseq
    %v9084 = vshrl.u32 %v9083, 7
    %v9085 = vsub.s32 %v9082, %v9084
    %v9086 = vrot.slane %v9079, %v9085
    %v9087 = vunpack.c.l.b16 %v9072
    %v9088 = vunpack.c.l.b16 %v9086
    %v9089 = vrot.slane %v9088, 7
    %v9090 = vsel %vm4858, %v9089, %v9087
    %v9091 = vpack.c.b16 %v9090, %v9090
    %v9093 = vunpack.c.l.s4 1966171168
    %v9094 = vunpack.c.0.s8 %v9093
    %v9095 = vlaneseq
    %v9096 = vshrl.u32 %v9095, 7
    %v9097 = vsub.s32 %v9094, %v9096
    %v9098 = vrot.slane %v9091, %v9097
    %v9100 = vunpack.c.l.s4 1966171168
    %v9101 = vunpack.c.0.s8 %v9100
    %v9102 = vlaneseq
    %v9103 = vshrl.u32 %v9102, 7
    %v9104 = vsub.s32 %v9101, %v9103
    %v9105 = vrot.slane %v9098, %v9104
    %9106 = vrot.lane.b32.xlu0 %v9105, 64
    %v9107 = vpop.permute.xlu0 %9106
    %9109 = vst.msk [vmem:[#allocation7 + $0xc] sm:$0x1] %vm5045, %v9107
    %v9110 = vld [vmem:[%s8860] sm:$0x2]
    %v9111 = vld [vmem:[%s8860 + $0x20] sm:$0x2]
    %v9115 = vunpack.c.l.s4 1966171168
    %v9116 = vunpack.c.0.s8 %v9115
    %v9117 = vlaneseq
    %v9118 = vshrl.u32 %v9117, 7
    %v9119 = vsub.s32 %v9116, %v9118
    %v9120 = vrot.slane %v9110, %v9119
    %v9121 = vcombine.high %v9120, %v9120
    %v9123 = vunpack.c.l.s4 1966171168
    %v9124 = vunpack.c.0.s8 %v9123
    %v9125 = vlaneseq
    %v9126 = vshrl.u32 %v9125, 7
    %v9127 = vsub.s32 %v9124, %v9126
    %v9128 = vrot.slane %v9121, %v9127
    %v9130 = vunpack.c.l.s4 1966171168
    %v9131 = vunpack.c.0.s8 %v9130
    %v9132 = vlaneseq
    %v9133 = vshrl.u32 %v9132, 7
    %v9134 = vsub.s32 %v9131, %v9133
    %v9135 = vrot.slane %v9111, %v9134
    %v9136 = vcombine.high %v9135, %v9135
    %v9138 = vunpack.c.l.s4 1966171168
    %v9139 = vunpack.c.0.s8 %v9138
    %v9140 = vlaneseq
    %v9141 = vshrl.u32 %v9140, 7
    %v9142 = vsub.s32 %v9139, %v9141
    %v9143 = vrot.slane %v9136, %v9142
    %v9145 = vunpack.c.l.s4 1935823168
    %v9146 = vunpack.c.0.s8 %v9145
    %v9147 = vlaneseq
    %v9148 = vshrl.u32 %v9147, 7
    %v9149 = vsub.s32 %v9146, %v9148
    %v9150 = vrot.slane %v9128, %v9149
    %v9152 = vunpack.c.l.s4 1935823168
    %v9153 = vunpack.c.0.s8 %v9152
    %v9154 = vlaneseq
    %v9155 = vshrl.u32 %v9154, 7
    %v9156 = vsub.s32 %v9153, %v9155
    %v9157 = vrot.slane %v9150, %v9156
    %v9159 = vunpack.c.l.s4 1935823168
    %v9160 = vunpack.c.0.s8 %v9159
    %v9161 = vlaneseq
    %v9162 = vshrl.u32 %v9161, 7
    %v9163 = vsub.s32 %v9160, %v9162
    %v9164 = vrot.slane %v9143, %v9163
    %v9166 = vunpack.c.l.s4 1935823168
    %v9167 = vunpack.c.0.s8 %v9166
    %v9168 = vlaneseq
    %v9169 = vshrl.u32 %v9168, 7
    %v9170 = vsub.s32 %v9167, %v9169
    %v9171 = vrot.slane %v9164, %v9170
    %v9172 = vunpack.c.l.b16 %v9157
    %v9173 = vunpack.c.l.b16 %v9171
    %v9174 = vrot.slane %v9172, 1
    %v9175 = vsel %vm4858, %v9173, %v9174
    %v9176 = vpack.c.b16 %v9175, %v9175
    %v9178 = vunpack.c.l.s4 1966171168
    %v9179 = vunpack.c.0.s8 %v9178
    %v9180 = vlaneseq
    %v9181 = vshrl.u32 %v9180, 7
    %v9182 = vsub.s32 %v9179, %v9181
    %v9183 = vrot.slane %v9176, %v9182
    %v9185 = vunpack.c.l.s4 1966171168
    %v9186 = vunpack.c.0.s8 %v9185
    %v9187 = vlaneseq
    %v9188 = vshrl.u32 %v9187, 7
    %v9189 = vsub.s32 %v9186, %v9188
    %v9190 = vrot.slane %v9183, %v9189
    %9191 = vrot.lane.b32.xlu0 %v9190, 96
    %v9192 = vpop.permute.xlu0 %9191
    %9194 = vst.msk [vmem:[#allocation7 + $0xc] sm:$0x1] %vm5131, %v9192
    %v9195 = vld [vmem:[%s8860] sm:$0x4]
    %v9196 = vld [vmem:[%s8860 + $0x20] sm:$0x4]
    %v9200 = vunpack.c.l.s4 1966171168
    %v9201 = vunpack.c.0.s8 %v9200
    %v9202 = vlaneseq
    %v9203 = vshrl.u32 %v9202, 7
    %v9204 = vsub.s32 %v9201, %v9203
    %v9205 = vrot.slane %v9195, %v9204
    %v9207 = vunpack.c.l.s4 1966171168
    %v9208 = vunpack.c.0.s8 %v9207
    %v9209 = vlaneseq
    %v9210 = vshrl.u32 %v9209, 7
    %v9211 = vsub.s32 %v9208, %v9210
    %v9212 = vrot.slane %v9205, %v9211
    %v9213 = vcombine.high %v9212, %v9212
    %v9215 = vunpack.c.l.s4 1966171168
    %v9216 = vunpack.c.0.s8 %v9215
    %v9217 = vlaneseq
    %v9218 = vshrl.u32 %v9217, 7
    %v9219 = vsub.s32 %v9216, %v9218
    %v9220 = vrot.slane %v9196, %v9219
    %v9222 = vunpack.c.l.s4 1966171168
    %v9223 = vunpack.c.0.s8 %v9222
    %v9224 = vlaneseq
    %v9225 = vshrl.u32 %v9224, 7
    %v9226 = vsub.s32 %v9223, %v9225
    %v9227 = vrot.slane %v9220, %v9226
    %v9228 = vcombine.high %v9227, %v9227
    %v9230 = vunpack.c.l.s4 1935823168
    %v9231 = vunpack.c.0.s8 %v9230
    %v9232 = vlaneseq
    %v9233 = vshrl.u32 %v9232, 7
    %v9234 = vsub.s32 %v9231, %v9233
    %v9235 = vrot.slane %v9213, %v9234
    %v9237 = vunpack.c.l.s4 1935823168
    %v9238 = vunpack.c.0.s8 %v9237
    %v9239 = vlaneseq
    %v9240 = vshrl.u32 %v9239, 7
    %v9241 = vsub.s32 %v9238, %v9240
    %v9242 = vrot.slane %v9235, %v9241
    %v9244 = vunpack.c.l.s4 1935823168
    %v9245 = vunpack.c.0.s8 %v9244
    %v9246 = vlaneseq
    %v9247 = vshrl.u32 %v9246, 7
    %v9248 = vsub.s32 %v9245, %v9247
    %v9249 = vrot.slane %v9228, %v9248
    %v9251 = vunpack.c.l.s4 1935823168
    %v9252 = vunpack.c.0.s8 %v9251
    %v9253 = vlaneseq
    %v9254 = vshrl.u32 %v9253, 7
    %v9255 = vsub.s32 %v9252, %v9254
    %v9256 = vrot.slane %v9249, %v9255
    %v9257 = vunpack.c.l.b16 %v9242
    %v9258 = vunpack.c.l.b16 %v9256
    %v9259 = vrot.slane %v9258, 7
    %v9260 = vsel %vm4858, %v9259, %v9257
    %v9261 = vpack.c.b16 %v9260, %v9260
    %v9263 = vunpack.c.l.s4 1966171168
    %v9264 = vunpack.c.0.s8 %v9263
    %v9265 = vlaneseq
    %v9266 = vshrl.u32 %v9265, 7
    %v9267 = vsub.s32 %v9264, %v9266
    %v9268 = vrot.slane %v9261, %v9267
    %v9270 = vunpack.c.l.s4 1966171168
    %v9271 = vunpack.c.0.s8 %v9270
    %v9272 = vlaneseq
    %v9273 = vshrl.u32 %v9272, 7
    %v9274 = vsub.s32 %v9271, %v9273
    %v9275 = vrot.slane %v9268, %v9274
    %9277 = vst.msk [vmem:[#allocation7 + $0xd] sm:$0x1] %vm2280, %v9275
    %v9278 = vld [vmem:[%s8860] sm:$0x4]
    %v9279 = vld [vmem:[%s8860 + $0x20] sm:$0x4]
    %v9283 = vunpack.c.l.s4 1966171168
    %v9284 = vunpack.c.0.s8 %v9283
    %v9285 = vlaneseq
    %v9286 = vshrl.u32 %v9285, 7
    %v9287 = vsub.s32 %v9284, %v9286
    %v9288 = vrot.slane %v9278, %v9287
    %v9290 = vunpack.c.l.s4 1966171168
    %v9291 = vunpack.c.0.s8 %v9290
    %v9292 = vlaneseq
    %v9293 = vshrl.u32 %v9292, 7
    %v9294 = vsub.s32 %v9291, %v9293
    %v9295 = vrot.slane %v9288, %v9294
    %v9296 = vcombine.high %v9295, %v9295
    %v9298 = vunpack.c.l.s4 1966171168
    %v9299 = vunpack.c.0.s8 %v9298
    %v9300 = vlaneseq
    %v9301 = vshrl.u32 %v9300, 7
    %v9302 = vsub.s32 %v9299, %v9301
    %v9303 = vrot.slane %v9279, %v9302
    %v9305 = vunpack.c.l.s4 1966171168
    %v9306 = vunpack.c.0.s8 %v9305
    %v9307 = vlaneseq
    %v9308 = vshrl.u32 %v9307, 7
    %v9309 = vsub.s32 %v9306, %v9308
    %v9310 = vrot.slane %v9303, %v9309
    %v9311 = vcombine.high %v9310, %v9310
    %v9313 = vunpack.c.l.s4 1935823168
    %v9314 = vunpack.c.0.s8 %v9313
    %v9315 = vlaneseq
    %v9316 = vshrl.u32 %v9315, 7
    %v9317 = vsub.s32 %v9314, %v9316
    %v9318 = vrot.slane %v9296, %v9317
    %v9320 = vunpack.c.l.s4 1935823168
    %v9321 = vunpack.c.0.s8 %v9320
    %v9322 = vlaneseq
    %v9323 = vshrl.u32 %v9322, 7
    %v9324 = vsub.s32 %v9321, %v9323
    %v9325 = vrot.slane %v9318, %v9324
    %v9327 = vunpack.c.l.s4 1935823168
    %v9328 = vunpack.c.0.s8 %v9327
    %v9329 = vlaneseq
    %v9330 = vshrl.u32 %v9329, 7
    %v9331 = vsub.s32 %v9328, %v9330
    %v9332 = vrot.slane %v9311, %v9331
    %v9334 = vunpack.c.l.s4 1935823168
    %v9335 = vunpack.c.0.s8 %v9334
    %v9336 = vlaneseq
    %v9337 = vshrl.u32 %v9336, 7
    %v9338 = vsub.s32 %v9335, %v9337
    %v9339 = vrot.slane %v9332, %v9338
    %v9340 = vunpack.c.l.b16 %v9325
    %v9341 = vunpack.c.l.b16 %v9339
    %v9342 = vrot.slane %v9340, 1
    %v9343 = vsel %vm4858, %v9341, %v9342
    %v9344 = vpack.c.b16 %v9343, %v9343
    %v9346 = vunpack.c.l.s4 1966171168
    %v9347 = vunpack.c.0.s8 %v9346
    %v9348 = vlaneseq
    %v9349 = vshrl.u32 %v9348, 7
    %v9350 = vsub.s32 %v9347, %v9349
    %v9351 = vrot.slane %v9344, %v9350
    %v9353 = vunpack.c.l.s4 1966171168
    %v9354 = vunpack.c.0.s8 %v9353
    %v9355 = vlaneseq
    %v9356 = vshrl.u32 %v9355, 7
    %v9357 = vsub.s32 %v9354, %v9356
    %v9358 = vrot.slane %v9351, %v9357
    %9359 = vrot.lane.b32.xlu0 %v9358, 32
    %v9360 = vpop.permute.xlu0 %9359
    %9362 = vst.msk [vmem:[#allocation7 + $0xd] sm:$0x1] %vm4959, %v9360
    %v9363 = vld [vmem:[%s8860] sm:$0x8]
    %v9364 = vld [vmem:[%s8860 + $0x20] sm:$0x8]
    %v9368 = vunpack.c.l.s4 1966171168
    %v9369 = vunpack.c.0.s8 %v9368
    %v9370 = vlaneseq
    %v9371 = vshrl.u32 %v9370, 7
    %v9372 = vsub.s32 %v9369, %v9371
    %v9373 = vrot.slane %v9363, %v9372
    %v9374 = vcombine.high %v9373, %v9373
    %v9376 = vunpack.c.l.s4 1966171168
    %v9377 = vunpack.c.0.s8 %v9376
    %v9378 = vlaneseq
    %v9379 = vshrl.u32 %v9378, 7
    %v9380 = vsub.s32 %v9377, %v9379
    %v9381 = vrot.slane %v9374, %v9380
    %v9382 = vcombine.high %v9381, %v9381
    %v9384 = vunpack.c.l.s4 1966171168
    %v9385 = vunpack.c.0.s8 %v9384
    %v9386 = vlaneseq
    %v9387 = vshrl.u32 %v9386, 7
    %v9388 = vsub.s32 %v9385, %v9387
    %v9389 = vrot.slane %v9364, %v9388
    %v9390 = vcombine.high %v9389, %v9389
    %v9392 = vunpack.c.l.s4 1966171168
    %v9393 = vunpack.c.0.s8 %v9392
    %v9394 = vlaneseq
    %v9395 = vshrl.u32 %v9394, 7
    %v9396 = vsub.s32 %v9393, %v9395
    %v9397 = vrot.slane %v9390, %v9396
    %v9398 = vcombine.high %v9397, %v9397
    %v9400 = vunpack.c.l.s4 1935823168
    %v9401 = vunpack.c.0.s8 %v9400
    %v9402 = vlaneseq
    %v9403 = vshrl.u32 %v9402, 7
    %v9404 = vsub.s32 %v9401, %v9403
    %v9405 = vrot.slane %v9382, %v9404
    %v9407 = vunpack.c.l.s4 1935823168
    %v9408 = vunpack.c.0.s8 %v9407
    %v9409 = vlaneseq
    %v9410 = vshrl.u32 %v9409, 7
    %v9411 = vsub.s32 %v9408, %v9410
    %v9412 = vrot.slane %v9405, %v9411
    %v9414 = vunpack.c.l.s4 1935823168
    %v9415 = vunpack.c.0.s8 %v9414
    %v9416 = vlaneseq
    %v9417 = vshrl.u32 %v9416, 7
    %v9418 = vsub.s32 %v9415, %v9417
    %v9419 = vrot.slane %v9398, %v9418
    %v9421 = vunpack.c.l.s4 1935823168
    %v9422 = vunpack.c.0.s8 %v9421
    %v9423 = vlaneseq
    %v9424 = vshrl.u32 %v9423, 7
    %v9425 = vsub.s32 %v9422, %v9424
    %v9426 = vrot.slane %v9419, %v9425
    %v9427 = vunpack.c.l.b16 %v9412
    %v9428 = vunpack.c.l.b16 %v9426
    %v9429 = vrot.slane %v9428, 7
    %v9430 = vsel %vm4858, %v9429, %v9427
    %v9431 = vpack.c.b16 %v9430, %v9430
    %v9433 = vunpack.c.l.s4 1966171168
    %v9434 = vunpack.c.0.s8 %v9433
    %v9435 = vlaneseq
    %v9436 = vshrl.u32 %v9435, 7
    %v9437 = vsub.s32 %v9434, %v9436
    %v9438 = vrot.slane %v9431, %v9437
    %v9440 = vunpack.c.l.s4 1966171168
    %v9441 = vunpack.c.0.s8 %v9440
    %v9442 = vlaneseq
    %v9443 = vshrl.u32 %v9442, 7
    %v9444 = vsub.s32 %v9441, %v9443
    %v9445 = vrot.slane %v9438, %v9444
    %9446 = vrot.lane.b32.xlu0 %v9445, 64
    %v9447 = vpop.permute.xlu0 %9446
    %9449 = vst.msk [vmem:[#allocation7 + $0xd] sm:$0x1] %vm5045, %v9447
    %v9450 = vld [vmem:[%s8860] sm:$0x8]
    %v9451 = vld [vmem:[%s8860 + $0x20] sm:$0x8]
    %v9455 = vunpack.c.l.s4 1966171168
    %v9456 = vunpack.c.0.s8 %v9455
    %v9457 = vlaneseq
    %v9458 = vshrl.u32 %v9457, 7
    %v9459 = vsub.s32 %v9456, %v9458
    %v9460 = vrot.slane %v9450, %v9459
    %v9461 = vcombine.high %v9460, %v9460
    %v9463 = vunpack.c.l.s4 1966171168
    %v9464 = vunpack.c.0.s8 %v9463
    %v9465 = vlaneseq
    %v9466 = vshrl.u32 %v9465, 7
    %v9467 = vsub.s32 %v9464, %v9466
    %v9468 = vrot.slane %v9461, %v9467
    %v9469 = vcombine.high %v9468, %v9468
    %v9471 = vunpack.c.l.s4 1966171168
    %v9472 = vunpack.c.0.s8 %v9471
    %v9473 = vlaneseq
    %v9474 = vshrl.u32 %v9473, 7
    %v9475 = vsub.s32 %v9472, %v9474
    %v9476 = vrot.slane %v9451, %v9475
    %v9477 = vcombine.high %v9476, %v9476
    %v9479 = vunpack.c.l.s4 1966171168
    %v9480 = vunpack.c.0.s8 %v9479
    %v9481 = vlaneseq
    %v9482 = vshrl.u32 %v9481, 7
    %v9483 = vsub.s32 %v9480, %v9482
    %v9484 = vrot.slane %v9477, %v9483
    %v9485 = vcombine.high %v9484, %v9484
    %v9487 = vunpack.c.l.s4 1935823168
    %v9488 = vunpack.c.0.s8 %v9487
    %v9489 = vlaneseq
    %v9490 = vshrl.u32 %v9489, 7
    %v9491 = vsub.s32 %v9488, %v9490
    %v9492 = vrot.slane %v9469, %v9491
    %v9494 = vunpack.c.l.s4 1935823168
    %v9495 = vunpack.c.0.s8 %v9494
    %v9496 = vlaneseq
    %v9497 = vshrl.u32 %v9496, 7
    %v9498 = vsub.s32 %v9495, %v9497
    %v9499 = vrot.slane %v9492, %v9498
    %v9501 = vunpack.c.l.s4 1935823168
    %v9502 = vunpack.c.0.s8 %v9501
    %v9503 = vlaneseq
    %v9504 = vshrl.u32 %v9503, 7
    %v9505 = vsub.s32 %v9502, %v9504
    %v9506 = vrot.slane %v9485, %v9505
    %v9508 = vunpack.c.l.s4 1935823168
    %v9509 = vunpack.c.0.s8 %v9508
    %v9510 = vlaneseq
    %v9511 = vshrl.u32 %v9510, 7
    %v9512 = vsub.s32 %v9509, %v9511
    %v9513 = vrot.slane %v9506, %v9512
    %v9514 = vunpack.c.l.b16 %v9499
    %v9515 = vunpack.c.l.b16 %v9513
    %v9516 = vrot.slane %v9514, 1
    %v9517 = vsel %vm4858, %v9515, %v9516
    %v9518 = vpack.c.b16 %v9517, %v9517
    %v9520 = vunpack.c.l.s4 1966171168
    %v9521 = vunpack.c.0.s8 %v9520
    %v9522 = vlaneseq
    %v9523 = vshrl.u32 %v9522, 7
    %v9524 = vsub.s32 %v9521, %v9523
    %v9525 = vrot.slane %v9518, %v9524
    %v9527 = vunpack.c.l.s4 1966171168
    %v9528 = vunpack.c.0.s8 %v9527
    %v9529 = vlaneseq
    %v9530 = vshrl.u32 %v9529, 7
    %v9531 = vsub.s32 %v9528, %v9530
    %v9532 = vrot.slane %v9525, %v9531
    %9533 = vrot.lane.b32.xlu0 %v9532, 96
    %v9534 = vpop.permute.xlu0 %9533
    %9536 = vst.msk [vmem:[#allocation7 + $0xd] sm:$0x1] %vm5131, %v9534
    %s9537 = scalar_lea.vmem [#allocation6], 28
    %v9538 = vld [vmem:[%s9537] sm:$0x1]
    %v9539 = vld [vmem:[%s9537 + $0x20] sm:$0x1]
    %v9543 = vunpack.c.l.s4 1966171168
    %v9544 = vunpack.c.0.s8 %v9543
    %v9545 = vlaneseq
    %v9546 = vshrl.u32 %v9545, 7
    %v9547 = vsub.s32 %v9544, %v9546
    %v9548 = vrot.slane %v9538, %v9547
    %v9550 = vunpack.c.l.s4 1966171168
    %v9551 = vunpack.c.0.s8 %v9550
    %v9552 = vlaneseq
    %v9553 = vshrl.u32 %v9552, 7
    %v9554 = vsub.s32 %v9551, %v9553
    %v9555 = vrot.slane %v9548, %v9554
    %v9557 = vunpack.c.l.s4 1966171168
    %v9558 = vunpack.c.0.s8 %v9557
    %v9559 = vlaneseq
    %v9560 = vshrl.u32 %v9559, 7
    %v9561 = vsub.s32 %v9558, %v9560
    %v9562 = vrot.slane %v9539, %v9561
    %v9564 = vunpack.c.l.s4 1966171168
    %v9565 = vunpack.c.0.s8 %v9564
    %v9566 = vlaneseq
    %v9567 = vshrl.u32 %v9566, 7
    %v9568 = vsub.s32 %v9565, %v9567
    %v9569 = vrot.slane %v9562, %v9568
    %v9571 = vunpack.c.l.s4 1935823168
    %v9572 = vunpack.c.0.s8 %v9571
    %v9573 = vlaneseq
    %v9574 = vshrl.u32 %v9573, 7
    %v9575 = vsub.s32 %v9572, %v9574
    %v9576 = vrot.slane %v9555, %v9575
    %v9578 = vunpack.c.l.s4 1935823168
    %v9579 = vunpack.c.0.s8 %v9578
    %v9580 = vlaneseq
    %v9581 = vshrl.u32 %v9580, 7
    %v9582 = vsub.s32 %v9579, %v9581
    %v9583 = vrot.slane %v9576, %v9582
    %v9585 = vunpack.c.l.s4 1935823168
    %v9586 = vunpack.c.0.s8 %v9585
    %v9587 = vlaneseq
    %v9588 = vshrl.u32 %v9587, 7
    %v9589 = vsub.s32 %v9586, %v9588
    %v9590 = vrot.slane %v9569, %v9589
    %v9592 = vunpack.c.l.s4 1935823168
    %v9593 = vunpack.c.0.s8 %v9592
    %v9594 = vlaneseq
    %v9595 = vshrl.u32 %v9594, 7
    %v9596 = vsub.s32 %v9593, %v9595
    %v9597 = vrot.slane %v9590, %v9596
    %v9598 = vunpack.c.l.b16 %v9583
    %v9599 = vunpack.c.l.b16 %v9597
    %v9600 = vrot.slane %v9599, 7
    %v9601 = vsel %vm4858, %v9600, %v9598
    %v9602 = vpack.c.b16 %v9601, %v9601
    %v9604 = vunpack.c.l.s4 1966171168
    %v9605 = vunpack.c.0.s8 %v9604
    %v9606 = vlaneseq
    %v9607 = vshrl.u32 %v9606, 7
    %v9608 = vsub.s32 %v9605, %v9607
    %v9609 = vrot.slane %v9602, %v9608
    %v9611 = vunpack.c.l.s4 1966171168
    %v9612 = vunpack.c.0.s8 %v9611
    %v9613 = vlaneseq
    %v9614 = vshrl.u32 %v9613, 7
    %v9615 = vsub.s32 %v9612, %v9614
    %v9616 = vrot.slane %v9609, %v9615
    %9618 = vst.msk [vmem:[#allocation7 + $0xe] sm:$0x1] %vm2280, %v9616
    %v9619 = vld [vmem:[%s9537] sm:$0x1]
    %v9620 = vld [vmem:[%s9537 + $0x20] sm:$0x1]
    %v9624 = vunpack.c.l.s4 1966171168
    %v9625 = vunpack.c.0.s8 %v9624
    %v9626 = vlaneseq
    %v9627 = vshrl.u32 %v9626, 7
    %v9628 = vsub.s32 %v9625, %v9627
    %v9629 = vrot.slane %v9619, %v9628
    %v9631 = vunpack.c.l.s4 1966171168
    %v9632 = vunpack.c.0.s8 %v9631
    %v9633 = vlaneseq
    %v9634 = vshrl.u32 %v9633, 7
    %v9635 = vsub.s32 %v9632, %v9634
    %v9636 = vrot.slane %v9629, %v9635
    %v9638 = vunpack.c.l.s4 1966171168
    %v9639 = vunpack.c.0.s8 %v9638
    %v9640 = vlaneseq
    %v9641 = vshrl.u32 %v9640, 7
    %v9642 = vsub.s32 %v9639, %v9641
    %v9643 = vrot.slane %v9620, %v9642
    %v9645 = vunpack.c.l.s4 1966171168
    %v9646 = vunpack.c.0.s8 %v9645
    %v9647 = vlaneseq
    %v9648 = vshrl.u32 %v9647, 7
    %v9649 = vsub.s32 %v9646, %v9648
    %v9650 = vrot.slane %v9643, %v9649
    %v9652 = vunpack.c.l.s4 1935823168
    %v9653 = vunpack.c.0.s8 %v9652
    %v9654 = vlaneseq
    %v9655 = vshrl.u32 %v9654, 7
    %v9656 = vsub.s32 %v9653, %v9655
    %v9657 = vrot.slane %v9636, %v9656
    %v9659 = vunpack.c.l.s4 1935823168
    %v9660 = vunpack.c.0.s8 %v9659
    %v9661 = vlaneseq
    %v9662 = vshrl.u32 %v9661, 7
    %v9663 = vsub.s32 %v9660, %v9662
    %v9664 = vrot.slane %v9657, %v9663
    %v9666 = vunpack.c.l.s4 1935823168
    %v9667 = vunpack.c.0.s8 %v9666
    %v9668 = vlaneseq
    %v9669 = vshrl.u32 %v9668, 7
    %v9670 = vsub.s32 %v9667, %v9669
    %v9671 = vrot.slane %v9650, %v9670
    %v9673 = vunpack.c.l.s4 1935823168
    %v9674 = vunpack.c.0.s8 %v9673
    %v9675 = vlaneseq
    %v9676 = vshrl.u32 %v9675, 7
    %v9677 = vsub.s32 %v9674, %v9676
    %v9678 = vrot.slane %v9671, %v9677
    %v9679 = vunpack.c.l.b16 %v9664
    %v9680 = vunpack.c.l.b16 %v9678
    %v9681 = vrot.slane %v9679, 1
    %v9682 = vsel %vm4858, %v9680, %v9681
    %v9683 = vpack.c.b16 %v9682, %v9682
    %v9685 = vunpack.c.l.s4 1966171168
    %v9686 = vunpack.c.0.s8 %v9685
    %v9687 = vlaneseq
    %v9688 = vshrl.u32 %v9687, 7
    %v9689 = vsub.s32 %v9686, %v9688
    %v9690 = vrot.slane %v9683, %v9689
    %v9692 = vunpack.c.l.s4 1966171168
    %v9693 = vunpack.c.0.s8 %v9692
    %v9694 = vlaneseq
    %v9695 = vshrl.u32 %v9694, 7
    %v9696 = vsub.s32 %v9693, %v9695
    %v9697 = vrot.slane %v9690, %v9696
    %9698 = vrot.lane.b32.xlu0 %v9697, 32
    %v9699 = vpop.permute.xlu0 %9698
    %9701 = vst.msk [vmem:[#allocation7 + $0xe] sm:$0x1] %vm4959, %v9699
    %v9702 = vld [vmem:[%s9537] sm:$0x2]
    %v9703 = vld [vmem:[%s9537 + $0x20] sm:$0x2]
    %v9707 = vunpack.c.l.s4 1966171168
    %v9708 = vunpack.c.0.s8 %v9707
    %v9709 = vlaneseq
    %v9710 = vshrl.u32 %v9709, 7
    %v9711 = vsub.s32 %v9708, %v9710
    %v9712 = vrot.slane %v9702, %v9711
    %v9713 = vcombine.high %v9712, %v9712
    %v9715 = vunpack.c.l.s4 1966171168
    %v9716 = vunpack.c.0.s8 %v9715
    %v9717 = vlaneseq
    %v9718 = vshrl.u32 %v9717, 7
    %v9719 = vsub.s32 %v9716, %v9718
    %v9720 = vrot.slane %v9713, %v9719
    %v9722 = vunpack.c.l.s4 1966171168
    %v9723 = vunpack.c.0.s8 %v9722
    %v9724 = vlaneseq
    %v9725 = vshrl.u32 %v9724, 7
    %v9726 = vsub.s32 %v9723, %v9725
    %v9727 = vrot.slane %v9703, %v9726
    %v9728 = vcombine.high %v9727, %v9727
    %v9730 = vunpack.c.l.s4 1966171168
    %v9731 = vunpack.c.0.s8 %v9730
    %v9732 = vlaneseq
    %v9733 = vshrl.u32 %v9732, 7
    %v9734 = vsub.s32 %v9731, %v9733
    %v9735 = vrot.slane %v9728, %v9734
    %v9737 = vunpack.c.l.s4 1935823168
    %v9738 = vunpack.c.0.s8 %v9737
    %v9739 = vlaneseq
    %v9740 = vshrl.u32 %v9739, 7
    %v9741 = vsub.s32 %v9738, %v9740
    %v9742 = vrot.slane %v9720, %v9741
    %v9744 = vunpack.c.l.s4 1935823168
    %v9745 = vunpack.c.0.s8 %v9744
    %v9746 = vlaneseq
    %v9747 = vshrl.u32 %v9746, 7
    %v9748 = vsub.s32 %v9745, %v9747
    %v9749 = vrot.slane %v9742, %v9748
    %v9751 = vunpack.c.l.s4 1935823168
    %v9752 = vunpack.c.0.s8 %v9751
    %v9753 = vlaneseq
    %v9754 = vshrl.u32 %v9753, 7
    %v9755 = vsub.s32 %v9752, %v9754
    %v9756 = vrot.slane %v9735, %v9755
    %v9758 = vunpack.c.l.s4 1935823168
    %v9759 = vunpack.c.0.s8 %v9758
    %v9760 = vlaneseq
    %v9761 = vshrl.u32 %v9760, 7
    %v9762 = vsub.s32 %v9759, %v9761
    %v9763 = vrot.slane %v9756, %v9762
    %v9764 = vunpack.c.l.b16 %v9749
    %v9765 = vunpack.c.l.b16 %v9763
    %v9766 = vrot.slane %v9765, 7
    %v9767 = vsel %vm4858, %v9766, %v9764
    %v9768 = vpack.c.b16 %v9767, %v9767
    %v9770 = vunpack.c.l.s4 1966171168
    %v9771 = vunpack.c.0.s8 %v9770
    %v9772 = vlaneseq
    %v9773 = vshrl.u32 %v9772, 7
    %v9774 = vsub.s32 %v9771, %v9773
    %v9775 = vrot.slane %v9768, %v9774
    %v9777 = vunpack.c.l.s4 1966171168
    %v9778 = vunpack.c.0.s8 %v9777
    %v9779 = vlaneseq
    %v9780 = vshrl.u32 %v9779, 7
    %v9781 = vsub.s32 %v9778, %v9780
    %v9782 = vrot.slane %v9775, %v9781
    %9783 = vrot.lane.b32.xlu0 %v9782, 64
    %v9784 = vpop.permute.xlu0 %9783
    %9786 = vst.msk [vmem:[#allocation7 + $0xe] sm:$0x1] %vm5045, %v9784
    %v9787 = vld [vmem:[%s9537] sm:$0x2]
    %v9788 = vld [vmem:[%s9537 + $0x20] sm:$0x2]
    %v9792 = vunpack.c.l.s4 1966171168
    %v9793 = vunpack.c.0.s8 %v9792
    %v9794 = vlaneseq
    %v9795 = vshrl.u32 %v9794, 7
    %v9796 = vsub.s32 %v9793, %v9795
    %v9797 = vrot.slane %v9787, %v9796
    %v9798 = vcombine.high %v9797, %v9797
    %v9800 = vunpack.c.l.s4 1966171168
    %v9801 = vunpack.c.0.s8 %v9800
    %v9802 = vlaneseq
    %v9803 = vshrl.u32 %v9802, 7
    %v9804 = vsub.s32 %v9801, %v9803
    %v9805 = vrot.slane %v9798, %v9804
    %v9807 = vunpack.c.l.s4 1966171168
    %v9808 = vunpack.c.0.s8 %v9807
    %v9809 = vlaneseq
    %v9810 = vshrl.u32 %v9809, 7
    %v9811 = vsub.s32 %v9808, %v9810
    %v9812 = vrot.slane %v9788, %v9811
    %v9813 = vcombine.high %v9812, %v9812
    %v9815 = vunpack.c.l.s4 1966171168
    %v9816 = vunpack.c.0.s8 %v9815
    %v9817 = vlaneseq
    %v9818 = vshrl.u32 %v9817, 7
    %v9819 = vsub.s32 %v9816, %v9818
    %v9820 = vrot.slane %v9813, %v9819
    %v9822 = vunpack.c.l.s4 1935823168
    %v9823 = vunpack.c.0.s8 %v9822
    %v9824 = vlaneseq
    %v9825 = vshrl.u32 %v9824, 7
    %v9826 = vsub.s32 %v9823, %v9825
    %v9827 = vrot.slane %v9805, %v9826
    %v9829 = vunpack.c.l.s4 1935823168
    %v9830 = vunpack.c.0.s8 %v9829
    %v9831 = vlaneseq
    %v9832 = vshrl.u32 %v9831, 7
    %v9833 = vsub.s32 %v9830, %v9832
    %v9834 = vrot.slane %v9827, %v9833
    %v9836 = vunpack.c.l.s4 1935823168
    %v9837 = vunpack.c.0.s8 %v9836
    %v9838 = vlaneseq
    %v9839 = vshrl.u32 %v9838, 7
    %v9840 = vsub.s32 %v9837, %v9839
    %v9841 = vrot.slane %v9820, %v9840
    %v9843 = vunpack.c.l.s4 1935823168
    %v9844 = vunpack.c.0.s8 %v9843
    %v9845 = vlaneseq
    %v9846 = vshrl.u32 %v9845, 7
    %v9847 = vsub.s32 %v9844, %v9846
    %v9848 = vrot.slane %v9841, %v9847
    %v9849 = vunpack.c.l.b16 %v9834
    %v9850 = vunpack.c.l.b16 %v9848
    %v9851 = vrot.slane %v9849, 1
    %v9852 = vsel %vm4858, %v9850, %v9851
    %v9853 = vpack.c.b16 %v9852, %v9852
    %v9855 = vunpack.c.l.s4 1966171168
    %v9856 = vunpack.c.0.s8 %v9855
    %v9857 = vlaneseq
    %v9858 = vshrl.u32 %v9857, 7
    %v9859 = vsub.s32 %v9856, %v9858
    %v9860 = vrot.slane %v9853, %v9859
    %v9862 = vunpack.c.l.s4 1966171168
    %v9863 = vunpack.c.0.s8 %v9862
    %v9864 = vlaneseq
    %v9865 = vshrl.u32 %v9864, 7
    %v9866 = vsub.s32 %v9863, %v9865
    %v9867 = vrot.slane %v9860, %v9866
    %9868 = vrot.lane.b32.xlu0 %v9867, 96
    %v9869 = vpop.permute.xlu0 %9868
    %9871 = vst.msk [vmem:[#allocation7 + $0xe] sm:$0x1] %vm5131, %v9869
    %v9872 = vld [vmem:[%s9537] sm:$0x4]
    %v9873 = vld [vmem:[%s9537 + $0x20] sm:$0x4]
    %v9877 = vunpack.c.l.s4 1966171168
    %v9878 = vunpack.c.0.s8 %v9877
    %v9879 = vlaneseq
    %v9880 = vshrl.u32 %v9879, 7
    %v9881 = vsub.s32 %v9878, %v9880
    %v9882 = vrot.slane %v9872, %v9881
    %v9884 = vunpack.c.l.s4 1966171168
    %v9885 = vunpack.c.0.s8 %v9884
    %v9886 = vlaneseq
    %v9887 = vshrl.u32 %v9886, 7
    %v9888 = vsub.s32 %v9885, %v9887
    %v9889 = vrot.slane %v9882, %v9888
    %v9890 = vcombine.high %v9889, %v9889
    %v9892 = vunpack.c.l.s4 1966171168
    %v9893 = vunpack.c.0.s8 %v9892
    %v9894 = vlaneseq
    %v9895 = vshrl.u32 %v9894, 7
    %v9896 = vsub.s32 %v9893, %v9895
    %v9897 = vrot.slane %v9873, %v9896
    %v9899 = vunpack.c.l.s4 1966171168
    %v9900 = vunpack.c.0.s8 %v9899
    %v9901 = vlaneseq
    %v9902 = vshrl.u32 %v9901, 7
    %v9903 = vsub.s32 %v9900, %v9902
    %v9904 = vrot.slane %v9897, %v9903
    %v9905 = vcombine.high %v9904, %v9904
    %v9907 = vunpack.c.l.s4 1935823168
    %v9908 = vunpack.c.0.s8 %v9907
    %v9909 = vlaneseq
    %v9910 = vshrl.u32 %v9909, 7
    %v9911 = vsub.s32 %v9908, %v9910
    %v9912 = vrot.slane %v9890, %v9911
    %v9914 = vunpack.c.l.s4 1935823168
    %v9915 = vunpack.c.0.s8 %v9914
    %v9916 = vlaneseq
    %v9917 = vshrl.u32 %v9916, 7
    %v9918 = vsub.s32 %v9915, %v9917
    %v9919 = vrot.slane %v9912, %v9918
    %v9921 = vunpack.c.l.s4 1935823168
    %v9922 = vunpack.c.0.s8 %v9921
    %v9923 = vlaneseq
    %v9924 = vshrl.u32 %v9923, 7
    %v9925 = vsub.s32 %v9922, %v9924
    %v9926 = vrot.slane %v9905, %v9925
    %v9928 = vunpack.c.l.s4 1935823168
    %v9929 = vunpack.c.0.s8 %v9928
    %v9930 = vlaneseq
    %v9931 = vshrl.u32 %v9930, 7
    %v9932 = vsub.s32 %v9929, %v9931
    %v9933 = vrot.slane %v9926, %v9932
    %v9934 = vunpack.c.l.b16 %v9919
    %v9935 = vunpack.c.l.b16 %v9933
    %v9936 = vrot.slane %v9935, 7
    %v9937 = vsel %vm4858, %v9936, %v9934
    %v9938 = vpack.c.b16 %v9937, %v9937
    %v9940 = vunpack.c.l.s4 1966171168
    %v9941 = vunpack.c.0.s8 %v9940
    %v9942 = vlaneseq
    %v9943 = vshrl.u32 %v9942, 7
    %v9944 = vsub.s32 %v9941, %v9943
    %v9945 = vrot.slane %v9938, %v9944
    %v9947 = vunpack.c.l.s4 1966171168
    %v9948 = vunpack.c.0.s8 %v9947
    %v9949 = vlaneseq
    %v9950 = vshrl.u32 %v9949, 7
    %v9951 = vsub.s32 %v9948, %v9950
    %v9952 = vrot.slane %v9945, %v9951
    %9954 = vst.msk [vmem:[#allocation7 + $0xf] sm:$0x1] %vm2280, %v9952
    %v9955 = vld [vmem:[%s9537] sm:$0x4]
    %v9956 = vld [vmem:[%s9537 + $0x20] sm:$0x4]
    %v9960 = vunpack.c.l.s4 1966171168
    %v9961 = vunpack.c.0.s8 %v9960
    %v9962 = vlaneseq
    %v9963 = vshrl.u32 %v9962, 7
    %v9964 = vsub.s32 %v9961, %v9963
    %v9965 = vrot.slane %v9955, %v9964
    %v9967 = vunpack.c.l.s4 1966171168
    %v9968 = vunpack.c.0.s8 %v9967
    %v9969 = vlaneseq
    %v9970 = vshrl.u32 %v9969, 7
    %v9971 = vsub.s32 %v9968, %v9970
    %v9972 = vrot.slane %v9965, %v9971
    %v9973 = vcombine.high %v9972, %v9972
    %v9975 = vunpack.c.l.s4 1966171168
    %v9976 = vunpack.c.0.s8 %v9975
    %v9977 = vlaneseq
    %v9978 = vshrl.u32 %v9977, 7
    %v9979 = vsub.s32 %v9976, %v9978
    %v9980 = vrot.slane %v9956, %v9979
    %v9982 = vunpack.c.l.s4 1966171168
    %v9983 = vunpack.c.0.s8 %v9982
    %v9984 = vlaneseq
    %v9985 = vshrl.u32 %v9984, 7
    %v9986 = vsub.s32 %v9983, %v9985
    %v9987 = vrot.slane %v9980, %v9986
    %v9988 = vcombine.high %v9987, %v9987
    %v9990 = vunpack.c.l.s4 1935823168
    %v9991 = vunpack.c.0.s8 %v9990
    %v9992 = vlaneseq
    %v9993 = vshrl.u32 %v9992, 7
    %v9994 = vsub.s32 %v9991, %v9993
    %v9995 = vrot.slane %v9973, %v9994
    %v9997 = vunpack.c.l.s4 1935823168
    %v9998 = vunpack.c.0.s8 %v9997
    %v9999 = vlaneseq
    %v10000 = vshrl.u32 %v9999, 7
    %v10001 = vsub.s32 %v9998, %v10000
    %v10002 = vrot.slane %v9995, %v10001
    %v10004 = vunpack.c.l.s4 1935823168
    %v10005 = vunpack.c.0.s8 %v10004
    %v10006 = vlaneseq
    %v10007 = vshrl.u32 %v10006, 7
    %v10008 = vsub.s32 %v10005, %v10007
    %v10009 = vrot.slane %v9988, %v10008
    %v10011 = vunpack.c.l.s4 1935823168
    %v10012 = vunpack.c.0.s8 %v10011
    %v10013 = vlaneseq
    %v10014 = vshrl.u32 %v10013, 7
    %v10015 = vsub.s32 %v10012, %v10014
    %v10016 = vrot.slane %v10009, %v10015
    %v10017 = vunpack.c.l.b16 %v10002
    %v10018 = vunpack.c.l.b16 %v10016
    %v10019 = vrot.slane %v10017, 1
    %v10020 = vsel %vm4858, %v10018, %v10019
    %v10021 = vpack.c.b16 %v10020, %v10020
    %v10023 = vunpack.c.l.s4 1966171168
    %v10024 = vunpack.c.0.s8 %v10023
    %v10025 = vlaneseq
    %v10026 = vshrl.u32 %v10025, 7
    %v10027 = vsub.s32 %v10024, %v10026
    %v10028 = vrot.slane %v10021, %v10027
    %v10030 = vunpack.c.l.s4 1966171168
    %v10031 = vunpack.c.0.s8 %v10030
    %v10032 = vlaneseq
    %v10033 = vshrl.u32 %v10032, 7
    %v10034 = vsub.s32 %v10031, %v10033
    %v10035 = vrot.slane %v10028, %v10034
    %10036 = vrot.lane.b32.xlu0 %v10035, 32
    %v10037 = vpop.permute.xlu0 %10036
    %10039 = vst.msk [vmem:[#allocation7 + $0xf] sm:$0x1] %vm4959, %v10037
    %v10040 = vld [vmem:[%s9537] sm:$0x8]
    %v10041 = vld [vmem:[%s9537 + $0x20] sm:$0x8]
    %v10045 = vunpack.c.l.s4 1966171168
    %v10046 = vunpack.c.0.s8 %v10045
    %v10047 = vlaneseq
    %v10048 = vshrl.u32 %v10047, 7
    %v10049 = vsub.s32 %v10046, %v10048
    %v10050 = vrot.slane %v10040, %v10049
    %v10051 = vcombine.high %v10050, %v10050
    %v10053 = vunpack.c.l.s4 1966171168
    %v10054 = vunpack.c.0.s8 %v10053
    %v10055 = vlaneseq
    %v10056 = vshrl.u32 %v10055, 7
    %v10057 = vsub.s32 %v10054, %v10056
    %v10058 = vrot.slane %v10051, %v10057
    %v10059 = vcombine.high %v10058, %v10058
    %v10061 = vunpack.c.l.s4 1966171168
    %v10062 = vunpack.c.0.s8 %v10061
    %v10063 = vlaneseq
    %v10064 = vshrl.u32 %v10063, 7
    %v10065 = vsub.s32 %v10062, %v10064
    %v10066 = vrot.slane %v10041, %v10065
    %v10067 = vcombine.high %v10066, %v10066
    %v10069 = vunpack.c.l.s4 1966171168
    %v10070 = vunpack.c.0.s8 %v10069
    %v10071 = vlaneseq
    %v10072 = vshrl.u32 %v10071, 7
    %v10073 = vsub.s32 %v10070, %v10072
    %v10074 = vrot.slane %v10067, %v10073
    %v10075 = vcombine.high %v10074, %v10074
    %v10077 = vunpack.c.l.s4 1935823168
    %v10078 = vunpack.c.0.s8 %v10077
    %v10079 = vlaneseq
    %v10080 = vshrl.u32 %v10079, 7
    %v10081 = vsub.s32 %v10078, %v10080
    %v10082 = vrot.slane %v10059, %v10081
    %v10084 = vunpack.c.l.s4 1935823168
    %v10085 = vunpack.c.0.s8 %v10084
    %v10086 = vlaneseq
    %v10087 = vshrl.u32 %v10086, 7
    %v10088 = vsub.s32 %v10085, %v10087
    %v10089 = vrot.slane %v10082, %v10088
    %v10091 = vunpack.c.l.s4 1935823168
    %v10092 = vunpack.c.0.s8 %v10091
    %v10093 = vlaneseq
    %v10094 = vshrl.u32 %v10093, 7
    %v10095 = vsub.s32 %v10092, %v10094
    %v10096 = vrot.slane %v10075, %v10095
    %v10098 = vunpack.c.l.s4 1935823168
    %v10099 = vunpack.c.0.s8 %v10098
    %v10100 = vlaneseq
    %v10101 = vshrl.u32 %v10100, 7
    %v10102 = vsub.s32 %v10099, %v10101
    %v10103 = vrot.slane %v10096, %v10102
    %v10104 = vunpack.c.l.b16 %v10089
    %v10105 = vunpack.c.l.b16 %v10103
    %v10106 = vrot.slane %v10105, 7
    %v10107 = vsel %vm4858, %v10106, %v10104
    %v10108 = vpack.c.b16 %v10107, %v10107
    %v10110 = vunpack.c.l.s4 1966171168
    %v10111 = vunpack.c.0.s8 %v10110
    %v10112 = vlaneseq
    %v10113 = vshrl.u32 %v10112, 7
    %v10114 = vsub.s32 %v10111, %v10113
    %v10115 = vrot.slane %v10108, %v10114
    %v10117 = vunpack.c.l.s4 1966171168
    %v10118 = vunpack.c.0.s8 %v10117
    %v10119 = vlaneseq
    %v10120 = vshrl.u32 %v10119, 7
    %v10121 = vsub.s32 %v10118, %v10120
    %v10122 = vrot.slane %v10115, %v10121
    %10123 = vrot.lane.b32.xlu0 %v10122, 64
    %v10124 = vpop.permute.xlu0 %10123
    %10126 = vst.msk [vmem:[#allocation7 + $0xf] sm:$0x1] %vm5045, %v10124
    %v10127 = vld [vmem:[%s9537] sm:$0x8]
    %v10128 = vld [vmem:[%s9537 + $0x20] sm:$0x8]
    %v10132 = vunpack.c.l.s4 1966171168
    %v10133 = vunpack.c.0.s8 %v10132
    %v10134 = vlaneseq
    %v10135 = vshrl.u32 %v10134, 7
    %v10136 = vsub.s32 %v10133, %v10135
    %v10137 = vrot.slane %v10127, %v10136
    %v10138 = vcombine.high %v10137, %v10137
    %v10140 = vunpack.c.l.s4 1966171168
    %v10141 = vunpack.c.0.s8 %v10140
    %v10142 = vlaneseq
    %v10143 = vshrl.u32 %v10142, 7
    %v10144 = vsub.s32 %v10141, %v10143
    %v10145 = vrot.slane %v10138, %v10144
    %v10146 = vcombine.high %v10145, %v10145
    %v10148 = vunpack.c.l.s4 1966171168
    %v10149 = vunpack.c.0.s8 %v10148
    %v10150 = vlaneseq
    %v10151 = vshrl.u32 %v10150, 7
    %v10152 = vsub.s32 %v10149, %v10151
    %v10153 = vrot.slane %v10128, %v10152
    %v10154 = vcombine.high %v10153, %v10153
    %v10156 = vunpack.c.l.s4 1966171168
    %v10157 = vunpack.c.0.s8 %v10156
    %v10158 = vlaneseq
    %v10159 = vshrl.u32 %v10158, 7
    %v10160 = vsub.s32 %v10157, %v10159
    %v10161 = vrot.slane %v10154, %v10160
    %v10162 = vcombine.high %v10161, %v10161
    %v10164 = vunpack.c.l.s4 1935823168
    %v10165 = vunpack.c.0.s8 %v10164
    %v10166 = vlaneseq
    %v10167 = vshrl.u32 %v10166, 7
    %v10168 = vsub.s32 %v10165, %v10167
    %v10169 = vrot.slane %v10146, %v10168
    %v10171 = vunpack.c.l.s4 1935823168
    %v10172 = vunpack.c.0.s8 %v10171
    %v10173 = vlaneseq
    %v10174 = vshrl.u32 %v10173, 7
    %v10175 = vsub.s32 %v10172, %v10174
    %v10176 = vrot.slane %v10169, %v10175
    %v10178 = vunpack.c.l.s4 1935823168
    %v10179 = vunpack.c.0.s8 %v10178
    %v10180 = vlaneseq
    %v10181 = vshrl.u32 %v10180, 7
    %v10182 = vsub.s32 %v10179, %v10181
    %v10183 = vrot.slane %v10162, %v10182
    %v10185 = vunpack.c.l.s4 1935823168
    %v10186 = vunpack.c.0.s8 %v10185
    %v10187 = vlaneseq
    %v10188 = vshrl.u32 %v10187, 7
    %v10189 = vsub.s32 %v10186, %v10188
    %v10190 = vrot.slane %v10183, %v10189
    %v10191 = vunpack.c.l.b16 %v10176
    %v10192 = vunpack.c.l.b16 %v10190
    %v10193 = vrot.slane %v10191, 1
    %v10194 = vsel %vm4858, %v10192, %v10193
    %v10195 = vpack.c.b16 %v10194, %v10194
    %v10197 = vunpack.c.l.s4 1966171168
    %v10198 = vunpack.c.0.s8 %v10197
    %v10199 = vlaneseq
    %v10200 = vshrl.u32 %v10199, 7
    %v10201 = vsub.s32 %v10198, %v10200
    %v10202 = vrot.slane %v10195, %v10201
    %v10204 = vunpack.c.l.s4 1966171168
    %v10205 = vunpack.c.0.s8 %v10204
    %v10206 = vlaneseq
    %v10207 = vshrl.u32 %v10206, 7
    %v10208 = vsub.s32 %v10205, %v10207
    %v10209 = vrot.slane %v10202, %v10208
    %10210 = vrot.lane.b32.xlu0 %v10209, 96
    %v10211 = vpop.permute.xlu0 %10210
    %10213 = vst.msk [vmem:[#allocation7 + $0xf] sm:$0x1] %vm5131, %v10211
    %v10214 = vld [vmem:[#allocation7] sm:$0xff]
    %v10215 = vld [vmem:[#allocation7 + $0x8] sm:$0xff]
    %v10216 = vld [vmem:[%s5] sm:$0xf]
    %v10217 = vld [vmem:[%s5 + $0x4] sm:$0xf]
    %v10218 = vld [vmem:[%s5 + $0x8] sm:$0xf]
    %v10219 = vld [vmem:[%s5 + $0xc] sm:$0xf]
    %v10220 = vld [vmem:[%s5 + $0x10] sm:$0xf]
    %v10221 = vld [vmem:[%s5 + $0x14] sm:$0xf]
    %v10222 = vld [vmem:[%s5 + $0x18] sm:$0xf]
    %v10223 = vld [vmem:[%s5 + $0x1c] sm:$0xf]
    %v10224 = vld [vmem:[%s5 + $0x20] sm:$0xf]
    %v10225 = vld [vmem:[%s5 + $0x24] sm:$0xf]
    %v10226 = vld [vmem:[%s5 + $0x28] sm:$0xf]
    %v10227 = vld [vmem:[%s5 + $0x2c] sm:$0xf]
    %v10228 = vld [vmem:[%s5 + $0x30] sm:$0xf]
    %v10229 = vld [vmem:[%s5 + $0x34] sm:$0xf]
    %v10230 = vld [vmem:[%s5 + $0x38] sm:$0xf]
    %v10231 = vld [vmem:[%s5 + $0x3c] sm:$0xf]
    %v10232 = vld [vmem:[%s5 + $0x40] sm:$0xf]
    %v10233 = vld [vmem:[%s5 + $0x44] sm:$0xf]
    %v10234 = vld [vmem:[%s5 + $0x48] sm:$0xf]
    %v10235 = vld [vmem:[%s5 + $0x4c] sm:$0xf]
    %v10236 = vld [vmem:[%s5 + $0x50] sm:$0xf]
    %v10237 = vld [vmem:[%s5 + $0x54] sm:$0xf]
    %v10238 = vld [vmem:[%s5 + $0x58] sm:$0xf]
    %v10239 = vld [vmem:[%s5 + $0x5c] sm:$0xf]
    %v10240 = vld [vmem:[%s5 + $0x60] sm:$0xf]
    %v10241 = vld [vmem:[%s5 + $0x64] sm:$0xf]
    %v10242 = vld [vmem:[%s5 + $0x68] sm:$0xf]
    %v10243 = vld [vmem:[%s5 + $0x6c] sm:$0xf]
    %v10244 = vld [vmem:[%s5 + $0x70] sm:$0xf]
    %v10245 = vld [vmem:[%s5 + $0x74] sm:$0xf]
    %v10246 = vld [vmem:[%s5 + $0x78] sm:$0xf]
    %v10247 = vld [vmem:[%s5 + $0x7c] sm:$0xf]
    %v10248 = vld [vmem:[%s5 + $0x80] sm:$0xf]
    %v10249 = vld [vmem:[%s5 + $0x84] sm:$0xf]
    %v10250 = vld [vmem:[%s5 + $0x88] sm:$0xf]
    %v10251 = vld [vmem:[%s5 + $0x8c] sm:$0xf]
    %v10252 = vld [vmem:[%s5 + $0x90] sm:$0xf]
    %v10253 = vld [vmem:[%s5 + $0x94] sm:$0xf]
    %v10254 = vld [vmem:[%s5 + $0x98] sm:$0xf]
    %v10255 = vld [vmem:[%s5 + $0x9c] sm:$0xf]
    %v10256 = vld [vmem:[%s5 + $0xa0] sm:$0xf]
    %v10257 = vld [vmem:[%s5 + $0xa4] sm:$0xf]
    %v10258 = vld [vmem:[%s5 + $0xa8] sm:$0xf]
    %v10259 = vld [vmem:[%s5 + $0xac] sm:$0xf]
    %v10260 = vld [vmem:[%s5 + $0xb0] sm:$0xf]
    %v10261 = vld [vmem:[%s5 + $0xb4] sm:$0xf]
    %v10262 = vld [vmem:[%s5 + $0xb8] sm:$0xf]
    %v10263 = vld [vmem:[%s5 + $0xbc] sm:$0xf]
    %v10264 = vld [vmem:[%s5 + $0xc0] sm:$0xf]
    %v10265 = vld [vmem:[%s5 + $0xc4] sm:$0xf]
    %v10266 = vld [vmem:[%s5 + $0xc8] sm:$0xf]
    %v10267 = vld [vmem:[%s5 + $0xcc] sm:$0xf]
    %v10268 = vld [vmem:[%s5 + $0xd0] sm:$0xf]
    %v10269 = vld [vmem:[%s5 + $0xd4] sm:$0xf]
    %v10270 = vld [vmem:[%s5 + $0xd8] sm:$0xf]
    %v10271 = vld [vmem:[%s5 + $0xdc] sm:$0xf]
    %v10272 = vld [vmem:[%s5 + $0xe0] sm:$0xf]
    %v10273 = vld [vmem:[%s5 + $0xe4] sm:$0xf]
    %v10274 = vld [vmem:[%s5 + $0xe8] sm:$0xf]
    %v10275 = vld [vmem:[%s5 + $0xec] sm:$0xf]
    %v10276 = vld [vmem:[%s5 + $0xf0] sm:$0xf]
    %v10277 = vld [vmem:[%s5 + $0xf4] sm:$0xf]
    %v10278 = vld [vmem:[%s5 + $0xf8] sm:$0xf]
    %v10279 = vld [vmem:[%s5 + $0xfc] sm:$0xf]
    %v10280 = vld [vmem:[%s5 + $0x100] sm:$0xf]
    %v10281 = vld [vmem:[%s5 + $0x104] sm:$0xf]
    %v10282 = vld [vmem:[%s5 + $0x108] sm:$0xf]
    %v10283 = vld [vmem:[%s5 + $0x10c] sm:$0xf]
    %v10284 = vld [vmem:[%s5 + $0x110] sm:$0xf]
    %v10285 = vld [vmem:[%s5 + $0x114] sm:$0xf]
    %v10286 = vld [vmem:[%s5 + $0x118] sm:$0xf]
    %v10287 = vld [vmem:[%s5 + $0x11c] sm:$0xf]
    %v10288 = vld [vmem:[%s5 + $0x120] sm:$0xf]
    %v10289 = vld [vmem:[%s5 + $0x124] sm:$0xf]
    %v10290 = vld [vmem:[%s5 + $0x128] sm:$0xf]
    %v10291 = vld [vmem:[%s5 + $0x12c] sm:$0xf]
    %v10292 = vld [vmem:[%s5 + $0x130] sm:$0xf]
    %v10293 = vld [vmem:[%s5 + $0x134] sm:$0xf]
    %v10294 = vld [vmem:[%s5 + $0x138] sm:$0xf]
    %v10295 = vld [vmem:[%s5 + $0x13c] sm:$0xf]
    %v10296 = vld [vmem:[%s5 + $0x140] sm:$0xf]
    %v10297 = vld [vmem:[%s5 + $0x144] sm:$0xf]
    %v10298 = vld [vmem:[%s5 + $0x148] sm:$0xf]
    %v10299 = vld [vmem:[%s5 + $0x14c] sm:$0xf]
    %v10300 = vld [vmem:[%s5 + $0x150] sm:$0xf]
    %v10301 = vld [vmem:[%s5 + $0x154] sm:$0xf]
    %v10302 = vld [vmem:[%s5 + $0x158] sm:$0xf]
    %v10303 = vld [vmem:[%s5 + $0x15c] sm:$0xf]
    %v10304 = vld [vmem:[%s5 + $0x160] sm:$0xf]
    %v10305 = vld [vmem:[%s5 + $0x164] sm:$0xf]
    %v10306 = vld [vmem:[%s5 + $0x168] sm:$0xf]
    %v10307 = vld [vmem:[%s5 + $0x16c] sm:$0xf]
    %v10308 = vld [vmem:[%s5 + $0x170] sm:$0xf]
    %v10309 = vld [vmem:[%s5 + $0x174] sm:$0xf]
    %v10310 = vld [vmem:[%s5 + $0x178] sm:$0xf]
    %v10311 = vld [vmem:[%s5 + $0x17c] sm:$0xf]
    %v10312 = vld [vmem:[%s5 + $0x180] sm:$0xf]
    %v10313 = vld [vmem:[%s5 + $0x184] sm:$0xf]
    %v10314 = vld [vmem:[%s5 + $0x188] sm:$0xf]
    %v10315 = vld [vmem:[%s5 + $0x18c] sm:$0xf]
    %v10316 = vld [vmem:[%s5 + $0x190] sm:$0xf]
    %v10317 = vld [vmem:[%s5 + $0x194] sm:$0xf]
    %v10318 = vld [vmem:[%s5 + $0x198] sm:$0xf]
    %v10319 = vld [vmem:[%s5 + $0x19c] sm:$0xf]
    %v10320 = vld [vmem:[%s5 + $0x1a0] sm:$0xf]
    %v10321 = vld [vmem:[%s5 + $0x1a4] sm:$0xf]
    %v10322 = vld [vmem:[%s5 + $0x1a8] sm:$0xf]
    %v10323 = vld [vmem:[%s5 + $0x1ac] sm:$0xf]
    %v10324 = vld [vmem:[%s5 + $0x1b0] sm:$0xf]
    %v10325 = vld [vmem:[%s5 + $0x1b4] sm:$0xf]
    %v10326 = vld [vmem:[%s5 + $0x1b8] sm:$0xf]
    %v10327 = vld [vmem:[%s5 + $0x1bc] sm:$0xf]
    %v10328 = vld [vmem:[%s5 + $0x1c0] sm:$0xf]
    %v10329 = vld [vmem:[%s5 + $0x1c4] sm:$0xf]
    %v10330 = vld [vmem:[%s5 + $0x1c8] sm:$0xf]
    %v10331 = vld [vmem:[%s5 + $0x1cc] sm:$0xf]
    %v10332 = vld [vmem:[%s5 + $0x1d0] sm:$0xf]
    %v10333 = vld [vmem:[%s5 + $0x1d4] sm:$0xf]
    %v10334 = vld [vmem:[%s5 + $0x1d8] sm:$0xf]
    %v10335 = vld [vmem:[%s5 + $0x1dc] sm:$0xf]
    %v10336 = vld [vmem:[%s5 + $0x1e0] sm:$0xf]
    %v10337 = vld [vmem:[%s5 + $0x1e4] sm:$0xf]
    %v10338 = vld [vmem:[%s5 + $0x1e8] sm:$0xf]
    %v10339 = vld [vmem:[%s5 + $0x1ec] sm:$0xf]
    %v10340 = vld [vmem:[%s5 + $0x1f0] sm:$0xf]
    %v10341 = vld [vmem:[%s5 + $0x1f4] sm:$0xf]
    %v10342 = vld [vmem:[%s5 + $0x1f8] sm:$0xf]
    %v10343 = vld [vmem:[%s5 + $0x1fc] sm:$0xf]
    %v10344 = vld [vmem:[%s5 + $0x200] sm:$0xf]
    %v10345 = vld [vmem:[%s5 + $0x204] sm:$0xf]
    %v10346 = vld [vmem:[%s5 + $0x208] sm:$0xf]
    %v10347 = vld [vmem:[%s5 + $0x20c] sm:$0xf]
    %v10348 = vld [vmem:[%s5 + $0x210] sm:$0xf]
    %v10349 = vld [vmem:[%s5 + $0x214] sm:$0xf]
    %v10350 = vld [vmem:[%s5 + $0x218] sm:$0xf]
    %v10351 = vld [vmem:[%s5 + $0x21c] sm:$0xf]
    %v10352 = vld [vmem:[%s5 + $0x220] sm:$0xf]
    %v10353 = vld [vmem:[%s5 + $0x224] sm:$0xf]
    %v10354 = vld [vmem:[%s5 + $0x228] sm:$0xf]
    %v10355 = vld [vmem:[%s5 + $0x22c] sm:$0xf]
    %v10356 = vld [vmem:[%s5 + $0x230] sm:$0xf]
    %v10357 = vld [vmem:[%s5 + $0x234] sm:$0xf]
    %v10358 = vld [vmem:[%s5 + $0x238] sm:$0xf]
    %v10359 = vld [vmem:[%s5 + $0x23c] sm:$0xf]
    %v10360 = vld [vmem:[%s5 + $0x240] sm:$0xf]
    %v10361 = vld [vmem:[%s5 + $0x244] sm:$0xf]
    %v10362 = vld [vmem:[%s5 + $0x248] sm:$0xf]
    %v10363 = vld [vmem:[%s5 + $0x24c] sm:$0xf]
    %v10364 = vld [vmem:[%s5 + $0x250] sm:$0xf]
    %v10365 = vld [vmem:[%s5 + $0x254] sm:$0xf]
    %v10366 = vld [vmem:[%s5 + $0x258] sm:$0xf]
    %v10367 = vld [vmem:[%s5 + $0x25c] sm:$0xf]
    %v10368 = vld [vmem:[%s5 + $0x260] sm:$0xf]
    %v10369 = vld [vmem:[%s5 + $0x264] sm:$0xf]
    %v10370 = vld [vmem:[%s5 + $0x268] sm:$0xf]
    %v10371 = vld [vmem:[%s5 + $0x26c] sm:$0xf]
    %v10372 = vld [vmem:[%s5 + $0x270] sm:$0xf]
    %v10373 = vld [vmem:[%s5 + $0x274] sm:$0xf]
    %v10374 = vld [vmem:[%s5 + $0x278] sm:$0xf]
    %v10375 = vld [vmem:[%s5 + $0x27c] sm:$0xf]
    %v10376 = vld [vmem:[%s5 + $0x280] sm:$0xf]
    %v10377 = vld [vmem:[%s5 + $0x284] sm:$0xf]
    %v10378 = vld [vmem:[%s5 + $0x288] sm:$0xf]
    %v10379 = vld [vmem:[%s5 + $0x28c] sm:$0xf]
    %v10380 = vld [vmem:[%s5 + $0x290] sm:$0xf]
    %v10381 = vld [vmem:[%s5 + $0x294] sm:$0xf]
    %v10382 = vld [vmem:[%s5 + $0x298] sm:$0xf]
    %v10383 = vld [vmem:[%s5 + $0x29c] sm:$0xf]
    %v10384 = vld [vmem:[%s5 + $0x2a0] sm:$0xf]
    %v10385 = vld [vmem:[%s5 + $0x2a4] sm:$0xf]
    %v10386 = vld [vmem:[%s5 + $0x2a8] sm:$0xf]
    %v10387 = vld [vmem:[%s5 + $0x2ac] sm:$0xf]
    %v10388 = vld [vmem:[%s5 + $0x2b0] sm:$0xf]
    %v10389 = vld [vmem:[%s5 + $0x2b4] sm:$0xf]
    %v10390 = vld [vmem:[%s5 + $0x2b8] sm:$0xf]
    %v10391 = vld [vmem:[%s5 + $0x2bc] sm:$0xf]
    %v10392 = vld [vmem:[%s5 + $0x2c0] sm:$0xf]
    %v10393 = vld [vmem:[%s5 + $0x2c4] sm:$0xf]
    %v10394 = vld [vmem:[%s5 + $0x2c8] sm:$0xf]
    %v10395 = vld [vmem:[%s5 + $0x2cc] sm:$0xf]
    %v10396 = vld [vmem:[%s5 + $0x2d0] sm:$0xf]
    %v10397 = vld [vmem:[%s5 + $0x2d4] sm:$0xf]
    %v10398 = vld [vmem:[%s5 + $0x2d8] sm:$0xf]
    %v10399 = vld [vmem:[%s5 + $0x2dc] sm:$0xf]
    %v10400 = vld [vmem:[%s5 + $0x2e0] sm:$0xf]
    %v10401 = vld [vmem:[%s5 + $0x2e4] sm:$0xf]
    %v10402 = vld [vmem:[%s5 + $0x2e8] sm:$0xf]
    %v10403 = vld [vmem:[%s5 + $0x2ec] sm:$0xf]
    %v10404 = vld [vmem:[%s5 + $0x2f0] sm:$0xf]
    %v10405 = vld [vmem:[%s5 + $0x2f4] sm:$0xf]
    %v10406 = vld [vmem:[%s5 + $0x2f8] sm:$0xf]
    %v10407 = vld [vmem:[%s5 + $0x2fc] sm:$0xf]
    %v10408 = vld [vmem:[%s5 + $0x300] sm:$0xf]
    %v10409 = vld [vmem:[%s5 + $0x304] sm:$0xf]
    %v10410 = vld [vmem:[%s5 + $0x308] sm:$0xf]
    %v10411 = vld [vmem:[%s5 + $0x30c] sm:$0xf]
    %v10412 = vld [vmem:[%s5 + $0x310] sm:$0xf]
    %v10413 = vld [vmem:[%s5 + $0x314] sm:$0xf]
    %v10414 = vld [vmem:[%s5 + $0x318] sm:$0xf]
    %v10415 = vld [vmem:[%s5 + $0x31c] sm:$0xf]
    %v10416 = vld [vmem:[%s5 + $0x320] sm:$0xf]
    %v10417 = vld [vmem:[%s5 + $0x324] sm:$0xf]
    %v10418 = vld [vmem:[%s5 + $0x328] sm:$0xf]
    %v10419 = vld [vmem:[%s5 + $0x32c] sm:$0xf]
    %v10420 = vld [vmem:[%s5 + $0x330] sm:$0xf]
    %v10421 = vld [vmem:[%s5 + $0x334] sm:$0xf]
    %v10422 = vld [vmem:[%s5 + $0x338] sm:$0xf]
    %v10423 = vld [vmem:[%s5 + $0x33c] sm:$0xf]
    %v10424 = vld [vmem:[%s5 + $0x340] sm:$0xf]
    %v10425 = vld [vmem:[%s5 + $0x344] sm:$0xf]
    %v10426 = vld [vmem:[%s5 + $0x348] sm:$0xf]
    %v10427 = vld [vmem:[%s5 + $0x34c] sm:$0xf]
    %v10428 = vld [vmem:[%s5 + $0x350] sm:$0xf]
    %v10429 = vld [vmem:[%s5 + $0x354] sm:$0xf]
    %v10430 = vld [vmem:[%s5 + $0x358] sm:$0xf]
    %v10431 = vld [vmem:[%s5 + $0x35c] sm:$0xf]
    %v10432 = vld [vmem:[%s5 + $0x360] sm:$0xf]
    %v10433 = vld [vmem:[%s5 + $0x364] sm:$0xf]
    %v10434 = vld [vmem:[%s5 + $0x368] sm:$0xf]
    %v10435 = vld [vmem:[%s5 + $0x36c] sm:$0xf]
    %v10436 = vld [vmem:[%s5 + $0x370] sm:$0xf]
    %v10437 = vld [vmem:[%s5 + $0x374] sm:$0xf]
    %v10438 = vld [vmem:[%s5 + $0x378] sm:$0xf]
    %v10439 = vld [vmem:[%s5 + $0x37c] sm:$0xf]
    %v10440 = vld [vmem:[%s5 + $0x380] sm:$0xf]
    %v10441 = vld [vmem:[%s5 + $0x384] sm:$0xf]
    %v10442 = vld [vmem:[%s5 + $0x388] sm:$0xf]
    %v10443 = vld [vmem:[%s5 + $0x38c] sm:$0xf]
    %v10444 = vld [vmem:[%s5 + $0x390] sm:$0xf]
    %v10445 = vld [vmem:[%s5 + $0x394] sm:$0xf]
    %v10446 = vld [vmem:[%s5 + $0x398] sm:$0xf]
    %v10447 = vld [vmem:[%s5 + $0x39c] sm:$0xf]
    %v10448 = vld [vmem:[%s5 + $0x3a0] sm:$0xf]
    %v10449 = vld [vmem:[%s5 + $0x3a4] sm:$0xf]
    %v10450 = vld [vmem:[%s5 + $0x3a8] sm:$0xf]
    %v10451 = vld [vmem:[%s5 + $0x3ac] sm:$0xf]
    %v10452 = vld [vmem:[%s5 + $0x3b0] sm:$0xf]
    %v10453 = vld [vmem:[%s5 + $0x3b4] sm:$0xf]
    %v10454 = vld [vmem:[%s5 + $0x3b8] sm:$0xf]
    %v10455 = vld [vmem:[%s5 + $0x3bc] sm:$0xf]
    %v10456 = vld [vmem:[%s5 + $0x3c0] sm:$0xf]
    %v10457 = vld [vmem:[%s5 + $0x3c4] sm:$0xf]
    %v10458 = vld [vmem:[%s5 + $0x3c8] sm:$0xf]
    %v10459 = vld [vmem:[%s5 + $0x3cc] sm:$0xf]
    %v10460 = vld [vmem:[%s5 + $0x3d0] sm:$0xf]
    %v10461 = vld [vmem:[%s5 + $0x3d4] sm:$0xf]
    %v10462 = vld [vmem:[%s5 + $0x3d8] sm:$0xf]
    %v10463 = vld [vmem:[%s5 + $0x3dc] sm:$0xf]
    %v10464 = vld [vmem:[%s5 + $0x3e0] sm:$0xf]
    %v10465 = vld [vmem:[%s5 + $0x3e4] sm:$0xf]
    %v10466 = vld [vmem:[%s5 + $0x3e8] sm:$0xf]
    %v10467 = vld [vmem:[%s5 + $0x3ec] sm:$0xf]
    %v10468 = vld [vmem:[%s5 + $0x3f0] sm:$0xf]
    %v10469 = vld [vmem:[%s5 + $0x3f4] sm:$0xf]
    %v10470 = vld [vmem:[%s5 + $0x3f8] sm:$0xf]
    %v10471 = vld [vmem:[%s5 + $0x3fc] sm:$0xf]
    %v10472 = vld [vmem:[%s6] sm:$0x1]
    %v10474 = vlaneseq
    %v10475 = vshrl.u32 %v10474, 7
    %v10476 = vsub.s32 0, %v10475
    %v10477 = vrot.slane %v10472, %v10476
    %v10481 = vcombine.high %v10214, %v10214
    %v10483 = vunpack.c.l.s4 1966171168
    %v10484 = vunpack.c.0.s8 %v10483
    %v10485 = vlaneseq
    %v10486 = vshrl.u32 %v10485, 7
    %v10487 = vsub.s32 %v10484, %v10486
    %v10488 = vrot.slane %v10214, %v10487
    %v10490 = vunpack.c.l.s4 1966171168
    %v10491 = vunpack.c.0.s8 %v10490
    %v10492 = vlaneseq
    %v10493 = vshrl.u32 %v10492, 7
    %v10494 = vsub.s32 %v10491, %v10493
    %v10495 = vrot.slane %v10481, %v10494
    %v10496 = vcombine.high %v10488, %v10488
    %v10497 = vcombine.high %v10495, %v10495
    %v10499 = vunpack.c.l.s4 1966171168
    %v10500 = vunpack.c.0.s8 %v10499
    %v10501 = vlaneseq
    %v10502 = vshrl.u32 %v10501, 7
    %v10503 = vsub.s32 %v10500, %v10502
    %v10504 = vrot.slane %v10488, %v10503
    %v10506 = vunpack.c.l.s4 1966171168
    %v10507 = vunpack.c.0.s8 %v10506
    %v10508 = vlaneseq
    %v10509 = vshrl.u32 %v10508, 7
    %v10510 = vsub.s32 %v10507, %v10509
    %v10511 = vrot.slane %v10495, %v10510
    %v10513 = vunpack.c.l.s4 1966171168
    %v10514 = vunpack.c.0.s8 %v10513
    %v10515 = vlaneseq
    %v10516 = vshrl.u32 %v10515, 7
    %v10517 = vsub.s32 %v10514, %v10516
    %v10518 = vrot.slane %v10496, %v10517
    %v10520 = vunpack.c.l.s4 1966171168
    %v10521 = vunpack.c.0.s8 %v10520
    %v10522 = vlaneseq
    %v10523 = vshrl.u32 %v10522, 7
    %v10524 = vsub.s32 %v10521, %v10523
    %v10525 = vrot.slane %v10497, %v10524
    %v10526 = vcombine.high %v10504, %v10504
    %v10527 = vcombine.high %v10511, %v10511
    %v10528 = vcombine.high %v10518, %v10518
    %v10529 = vcombine.high %v10525, %v10525
    %v10530 = vcombine.high %v10215, %v10215
    %v10532 = vunpack.c.l.s4 1966171168
    %v10533 = vunpack.c.0.s8 %v10532
    %v10534 = vlaneseq
    %v10535 = vshrl.u32 %v10534, 7
    %v10536 = vsub.s32 %v10533, %v10535
    %v10537 = vrot.slane %v10215, %v10536
    %v10539 = vunpack.c.l.s4 1966171168
    %v10540 = vunpack.c.0.s8 %v10539
    %v10541 = vlaneseq
    %v10542 = vshrl.u32 %v10541, 7
    %v10543 = vsub.s32 %v10540, %v10542
    %v10544 = vrot.slane %v10530, %v10543
    %v10545 = vcombine.high %v10537, %v10537
    %v10546 = vcombine.high %v10544, %v10544
    %v10548 = vunpack.c.l.s4 1966171168
    %v10549 = vunpack.c.0.s8 %v10548
    %v10550 = vlaneseq
    %v10551 = vshrl.u32 %v10550, 7
    %v10552 = vsub.s32 %v10549, %v10551
    %v10553 = vrot.slane %v10537, %v10552
    %v10555 = vunpack.c.l.s4 1966171168
    %v10556 = vunpack.c.0.s8 %v10555
    %v10557 = vlaneseq
    %v10558 = vshrl.u32 %v10557, 7
    %v10559 = vsub.s32 %v10556, %v10558
    %v10560 = vrot.slane %v10544, %v10559
    %v10562 = vunpack.c.l.s4 1966171168
    %v10563 = vunpack.c.0.s8 %v10562
    %v10564 = vlaneseq
    %v10565 = vshrl.u32 %v10564, 7
    %v10566 = vsub.s32 %v10563, %v10565
    %v10567 = vrot.slane %v10545, %v10566
    %v10569 = vunpack.c.l.s4 1966171168
    %v10570 = vunpack.c.0.s8 %v10569
    %v10571 = vlaneseq
    %v10572 = vshrl.u32 %v10571, 7
    %v10573 = vsub.s32 %v10570, %v10572
    %v10574 = vrot.slane %v10546, %v10573
    %v10575 = vcombine.high %v10553, %v10553
    %v10576 = vcombine.high %v10560, %v10560
    %v10577 = vcombine.high %v10567, %v10567
    %v10578 = vcombine.high %v10574, %v10574
    %v10851 = vunpack.c.l.b16 %v10216
    %v10852 = vunpack.c.l.b16 %v10217
    %v10853 = vunpack.c.l.b16 %v10218
    %v10854 = vunpack.c.l.b16 %v10219
    %v10855 = vunpack.c.l.b16 %v10220
    %v10856 = vunpack.c.l.b16 %v10221
    %v10857 = vunpack.c.l.b16 %v10222
    %v10858 = vunpack.c.l.b16 %v10223
    %v10859 = vunpack.c.l.b16 %v10224
    %v10860 = vunpack.c.l.b16 %v10225
    %v10861 = vunpack.c.l.b16 %v10226
    %v10862 = vunpack.c.l.b16 %v10227
    %v10863 = vunpack.c.l.b16 %v10228
    %v10864 = vunpack.c.l.b16 %v10229
    %v10865 = vunpack.c.l.b16 %v10230
    %v10866 = vunpack.c.l.b16 %v10231
    %v10867 = vunpack.c.l.b16 %v10232
    %v10868 = vunpack.c.l.b16 %v10233
    %v10869 = vunpack.c.l.b16 %v10234
    %v10870 = vunpack.c.l.b16 %v10235
    %v10871 = vunpack.c.l.b16 %v10236
    %v10872 = vunpack.c.l.b16 %v10237
    %v10873 = vunpack.c.l.b16 %v10238
    %v10874 = vunpack.c.l.b16 %v10239
    %v10875 = vunpack.c.l.b16 %v10240
    %v10876 = vunpack.c.l.b16 %v10241
    %v10877 = vunpack.c.l.b16 %v10242
    %v10878 = vunpack.c.l.b16 %v10243
    %v10879 = vunpack.c.l.b16 %v10244
    %v10880 = vunpack.c.l.b16 %v10245
    %v10881 = vunpack.c.l.b16 %v10246
    %v10882 = vunpack.c.l.b16 %v10247
    %v10883 = vunpack.c.l.b16 %v10248
    %v10884 = vunpack.c.l.b16 %v10249
    %v10885 = vunpack.c.l.b16 %v10250
    %v10886 = vunpack.c.l.b16 %v10251
    %v10887 = vunpack.c.l.b16 %v10252
    %v10888 = vunpack.c.l.b16 %v10253
    %v10889 = vunpack.c.l.b16 %v10254
    %v10890 = vunpack.c.l.b16 %v10255
    %v10891 = vunpack.c.l.b16 %v10256
    %v10892 = vunpack.c.l.b16 %v10257
    %v10893 = vunpack.c.l.b16 %v10258
    %v10894 = vunpack.c.l.b16 %v10259
    %v10895 = vunpack.c.l.b16 %v10260
    %v10896 = vunpack.c.l.b16 %v10261
    %v10897 = vunpack.c.l.b16 %v10262
    %v10898 = vunpack.c.l.b16 %v10263
    %v10899 = vunpack.c.l.b16 %v10264
    %v10900 = vunpack.c.l.b16 %v10265
    %v10901 = vunpack.c.l.b16 %v10266
    %v10902 = vunpack.c.l.b16 %v10267
    %v10903 = vunpack.c.l.b16 %v10268
    %v10904 = vunpack.c.l.b16 %v10269
    %v10905 = vunpack.c.l.b16 %v10270
    %v10906 = vunpack.c.l.b16 %v10271
    %v10907 = vunpack.c.l.b16 %v10272
    %v10908 = vunpack.c.l.b16 %v10273
    %v10909 = vunpack.c.l.b16 %v10274
    %v10910 = vunpack.c.l.b16 %v10275
    %v10911 = vunpack.c.l.b16 %v10276
    %v10912 = vunpack.c.l.b16 %v10277
    %v10913 = vunpack.c.l.b16 %v10278
    %v10914 = vunpack.c.l.b16 %v10279
    %v10915 = vunpack.c.l.b16 %v10280
    %v10916 = vunpack.c.l.b16 %v10281
    %v10917 = vunpack.c.l.b16 %v10282
    %v10918 = vunpack.c.l.b16 %v10283
    %v10919 = vunpack.c.l.b16 %v10284
    %v10920 = vunpack.c.l.b16 %v10285
    %v10921 = vunpack.c.l.b16 %v10286
    %v10922 = vunpack.c.l.b16 %v10287
    %v10923 = vunpack.c.l.b16 %v10288
    %v10924 = vunpack.c.l.b16 %v10289
    %v10925 = vunpack.c.l.b16 %v10290
    %v10926 = vunpack.c.l.b16 %v10291
    %v10927 = vunpack.c.l.b16 %v10292
    %v10928 = vunpack.c.l.b16 %v10293
    %v10929 = vunpack.c.l.b16 %v10294
    %v10930 = vunpack.c.l.b16 %v10295
    %v10931 = vunpack.c.l.b16 %v10296
    %v10932 = vunpack.c.l.b16 %v10297
    %v10933 = vunpack.c.l.b16 %v10298
    %v10934 = vunpack.c.l.b16 %v10299
    %v10935 = vunpack.c.l.b16 %v10300
    %v10936 = vunpack.c.l.b16 %v10301
    %v10937 = vunpack.c.l.b16 %v10302
    %v10938 = vunpack.c.l.b16 %v10303
    %v10939 = vunpack.c.l.b16 %v10304
    %v10940 = vunpack.c.l.b16 %v10305
    %v10941 = vunpack.c.l.b16 %v10306
    %v10942 = vunpack.c.l.b16 %v10307
    %v10943 = vunpack.c.l.b16 %v10308
    %v10944 = vunpack.c.l.b16 %v10309
    %v10945 = vunpack.c.l.b16 %v10310
    %v10946 = vunpack.c.l.b16 %v10311
    %v10947 = vunpack.c.l.b16 %v10312
    %v10948 = vunpack.c.l.b16 %v10313
    %v10949 = vunpack.c.l.b16 %v10314
    %v10950 = vunpack.c.l.b16 %v10315
    %v10951 = vunpack.c.l.b16 %v10316
    %v10952 = vunpack.c.l.b16 %v10317
    %v10953 = vunpack.c.l.b16 %v10318
    %v10954 = vunpack.c.l.b16 %v10319
    %v10955 = vunpack.c.l.b16 %v10320
    %v10956 = vunpack.c.l.b16 %v10321
    %v10957 = vunpack.c.l.b16 %v10322
    %v10958 = vunpack.c.l.b16 %v10323
    %v10959 = vunpack.c.l.b16 %v10324
    %v10960 = vunpack.c.l.b16 %v10325
    %v10961 = vunpack.c.l.b16 %v10326
    %v10962 = vunpack.c.l.b16 %v10327
    %v10963 = vunpack.c.l.b16 %v10328
    %v10964 = vunpack.c.l.b16 %v10329
    %v10965 = vunpack.c.l.b16 %v10330
    %v10966 = vunpack.c.l.b16 %v10331
    %v10967 = vunpack.c.l.b16 %v10332
    %v10968 = vunpack.c.l.b16 %v10333
    %v10969 = vunpack.c.l.b16 %v10334
    %v10970 = vunpack.c.l.b16 %v10335
    %v10971 = vunpack.c.l.b16 %v10336
    %v10972 = vunpack.c.l.b16 %v10337
    %v10973 = vunpack.c.l.b16 %v10338
    %v10974 = vunpack.c.l.b16 %v10339
    %v10975 = vunpack.c.l.b16 %v10340
    %v10976 = vunpack.c.l.b16 %v10341
    %v10977 = vunpack.c.l.b16 %v10342
    %v10978 = vunpack.c.l.b16 %v10343
    %v10979 = vunpack.c.l.b16 %v10344
    %v10980 = vunpack.c.l.b16 %v10345
    %v10981 = vunpack.c.l.b16 %v10346
    %v10982 = vunpack.c.l.b16 %v10347
    %v10983 = vunpack.c.l.b16 %v10348
    %v10984 = vunpack.c.l.b16 %v10349
    %v10985 = vunpack.c.l.b16 %v10350
    %v10986 = vunpack.c.l.b16 %v10351
    %v10987 = vunpack.c.l.b16 %v10352
    %v10988 = vunpack.c.l.b16 %v10353
    %v10989 = vunpack.c.l.b16 %v10354
    %v10990 = vunpack.c.l.b16 %v10355
    %v10991 = vunpack.c.l.b16 %v10356
    %v10992 = vunpack.c.l.b16 %v10357
    %v10993 = vunpack.c.l.b16 %v10358
    %v10994 = vunpack.c.l.b16 %v10359
    %v10995 = vunpack.c.l.b16 %v10360
    %v10996 = vunpack.c.l.b16 %v10361
    %v10997 = vunpack.c.l.b16 %v10362
    %v10998 = vunpack.c.l.b16 %v10363
    %v10999 = vunpack.c.l.b16 %v10364
    %v11000 = vunpack.c.l.b16 %v10365
    %v11001 = vunpack.c.l.b16 %v10366
    %v11002 = vunpack.c.l.b16 %v10367
    %v11003 = vunpack.c.l.b16 %v10368
    %v11004 = vunpack.c.l.b16 %v10369
    %v11005 = vunpack.c.l.b16 %v10370
    %v11006 = vunpack.c.l.b16 %v10371
    %v11007 = vunpack.c.l.b16 %v10372
    %v11008 = vunpack.c.l.b16 %v10373
    %v11009 = vunpack.c.l.b16 %v10374
    %v11010 = vunpack.c.l.b16 %v10375
    %v11011 = vunpack.c.l.b16 %v10376
    %v11012 = vunpack.c.l.b16 %v10377
    %v11013 = vunpack.c.l.b16 %v10378
    %v11014 = vunpack.c.l.b16 %v10379
    %v11015 = vunpack.c.l.b16 %v10380
    %v11016 = vunpack.c.l.b16 %v10381
    %v11017 = vunpack.c.l.b16 %v10382
    %v11018 = vunpack.c.l.b16 %v10383
    %v11019 = vunpack.c.l.b16 %v10384
    %v11020 = vunpack.c.l.b16 %v10385
    %v11021 = vunpack.c.l.b16 %v10386
    %v11022 = vunpack.c.l.b16 %v10387
    %v11023 = vunpack.c.l.b16 %v10388
    %v11024 = vunpack.c.l.b16 %v10389
    %v11025 = vunpack.c.l.b16 %v10390
    %v11026 = vunpack.c.l.b16 %v10391
    %v11027 = vunpack.c.l.b16 %v10392
    %v11028 = vunpack.c.l.b16 %v10393
    %v11029 = vunpack.c.l.b16 %v10394
    %v11030 = vunpack.c.l.b16 %v10395
    %v11031 = vunpack.c.l.b16 %v10396
    %v11032 = vunpack.c.l.b16 %v10397
    %v11033 = vunpack.c.l.b16 %v10398
    %v11034 = vunpack.c.l.b16 %v10399
    %v11035 = vunpack.c.l.b16 %v10400
    %v11036 = vunpack.c.l.b16 %v10401
    %v11037 = vunpack.c.l.b16 %v10402
    %v11038 = vunpack.c.l.b16 %v10403
    %v11039 = vunpack.c.l.b16 %v10404
    %v11040 = vunpack.c.l.b16 %v10405
    %v11041 = vunpack.c.l.b16 %v10406
    %v11042 = vunpack.c.l.b16 %v10407
    %v11043 = vunpack.c.l.b16 %v10408
    %v11044 = vunpack.c.l.b16 %v10409
    %v11045 = vunpack.c.l.b16 %v10410
    %v11046 = vunpack.c.l.b16 %v10411
    %v11047 = vunpack.c.l.b16 %v10412
    %v11048 = vunpack.c.l.b16 %v10413
    %v11049 = vunpack.c.l.b16 %v10414
    %v11050 = vunpack.c.l.b16 %v10415
    %v11051 = vunpack.c.l.b16 %v10416
    %v11052 = vunpack.c.l.b16 %v10417
    %v11053 = vunpack.c.l.b16 %v10418
    %v11054 = vunpack.c.l.b16 %v10419
    %v11055 = vunpack.c.l.b16 %v10420
    %v11056 = vunpack.c.l.b16 %v10421
    %v11057 = vunpack.c.l.b16 %v10422
    %v11058 = vunpack.c.l.b16 %v10423
    %v11059 = vunpack.c.l.b16 %v10424
    %v11060 = vunpack.c.l.b16 %v10425
    %v11061 = vunpack.c.l.b16 %v10426
    %v11062 = vunpack.c.l.b16 %v10427
    %v11063 = vunpack.c.l.b16 %v10428
    %v11064 = vunpack.c.l.b16 %v10429
    %v11065 = vunpack.c.l.b16 %v10430
    %v11066 = vunpack.c.l.b16 %v10431
    %v11067 = vunpack.c.l.b16 %v10432
    %v11068 = vunpack.c.l.b16 %v10433
    %v11069 = vunpack.c.l.b16 %v10434
    %v11070 = vunpack.c.l.b16 %v10435
    %v11071 = vunpack.c.l.b16 %v10436
    %v11072 = vunpack.c.l.b16 %v10437
    %v11073 = vunpack.c.l.b16 %v10438
    %v11074 = vunpack.c.l.b16 %v10439
    %v11075 = vunpack.c.l.b16 %v10440
    %v11076 = vunpack.c.l.b16 %v10441
    %v11077 = vunpack.c.l.b16 %v10442
    %v11078 = vunpack.c.l.b16 %v10443
    %v11079 = vunpack.c.l.b16 %v10444
    %v11080 = vunpack.c.l.b16 %v10445
    %v11081 = vunpack.c.l.b16 %v10446
    %v11082 = vunpack.c.l.b16 %v10447
    %v11083 = vunpack.c.l.b16 %v10448
    %v11084 = vunpack.c.l.b16 %v10449
    %v11085 = vunpack.c.l.b16 %v10450
    %v11086 = vunpack.c.l.b16 %v10451
    %v11087 = vunpack.c.l.b16 %v10452
    %v11088 = vunpack.c.l.b16 %v10453
    %v11089 = vunpack.c.l.b16 %v10454
    %v11090 = vunpack.c.l.b16 %v10455
    %v11091 = vunpack.c.l.b16 %v10456
    %v11092 = vunpack.c.l.b16 %v10457
    %v11093 = vunpack.c.l.b16 %v10458
    %v11094 = vunpack.c.l.b16 %v10459
    %v11095 = vunpack.c.l.b16 %v10460
    %v11096 = vunpack.c.l.b16 %v10461
    %v11097 = vunpack.c.l.b16 %v10462
    %v11098 = vunpack.c.l.b16 %v10463
    %v11099 = vunpack.c.l.b16 %v10464
    %v11100 = vunpack.c.l.b16 %v10465
    %v11101 = vunpack.c.l.b16 %v10466
    %v11102 = vunpack.c.l.b16 %v10467
    %v11103 = vunpack.c.l.b16 %v10468
    %v11104 = vunpack.c.l.b16 %v10469
    %v11105 = vunpack.c.l.b16 %v10470
    %v11106 = vunpack.c.l.b16 %v10471
    %v11107 = vpack.c.b16 %v10852, %v10851
    %v11108 = vpack.c.b16 %v10854, %v10853
    %v11109 = vpack.c.b16 %v10856, %v10855
    %v11110 = vpack.c.b16 %v10858, %v10857
    %v11111 = vpack.c.b16 %v10860, %v10859
    %v11112 = vpack.c.b16 %v10862, %v10861
    %v11113 = vpack.c.b16 %v10864, %v10863
    %v11114 = vpack.c.b16 %v10866, %v10865
    %v11115 = vpack.c.b16 %v10868, %v10867
    %v11116 = vpack.c.b16 %v10870, %v10869
    %v11117 = vpack.c.b16 %v10872, %v10871
    %v11118 = vpack.c.b16 %v10874, %v10873
    %v11119 = vpack.c.b16 %v10876, %v10875
    %v11120 = vpack.c.b16 %v10878, %v10877
    %v11121 = vpack.c.b16 %v10880, %v10879
    %v11122 = vpack.c.b16 %v10882, %v10881
    %v11123 = vpack.c.b16 %v10884, %v10883
    %v11124 = vpack.c.b16 %v10886, %v10885
    %v11125 = vpack.c.b16 %v10888, %v10887
    %v11126 = vpack.c.b16 %v10890, %v10889
    %v11127 = vpack.c.b16 %v10892, %v10891
    %v11128 = vpack.c.b16 %v10894, %v10893
    %v11129 = vpack.c.b16 %v10896, %v10895
    %v11130 = vpack.c.b16 %v10898, %v10897
    %v11131 = vpack.c.b16 %v10900, %v10899
    %v11132 = vpack.c.b16 %v10902, %v10901
    %v11133 = vpack.c.b16 %v10904, %v10903
    %v11134 = vpack.c.b16 %v10906, %v10905
    %v11135 = vpack.c.b16 %v10908, %v10907
    %v11136 = vpack.c.b16 %v10910, %v10909
    %v11137 = vpack.c.b16 %v10912, %v10911
    %v11138 = vpack.c.b16 %v10914, %v10913
    %v11139 = vpack.c.b16 %v10916, %v10915
    %v11140 = vpack.c.b16 %v10918, %v10917
    %v11141 = vpack.c.b16 %v10920, %v10919
    %v11142 = vpack.c.b16 %v10922, %v10921
    %v11143 = vpack.c.b16 %v10924, %v10923
    %v11144 = vpack.c.b16 %v10926, %v10925
    %v11145 = vpack.c.b16 %v10928, %v10927
    %v11146 = vpack.c.b16 %v10930, %v10929
    %v11147 = vpack.c.b16 %v10932, %v10931
    %v11148 = vpack.c.b16 %v10934, %v10933
    %v11149 = vpack.c.b16 %v10936, %v10935
    %v11150 = vpack.c.b16 %v10938, %v10937
    %v11151 = vpack.c.b16 %v10940, %v10939
    %v11152 = vpack.c.b16 %v10942, %v10941
    %v11153 = vpack.c.b16 %v10944, %v10943
    %v11154 = vpack.c.b16 %v10946, %v10945
    %v11155 = vpack.c.b16 %v10948, %v10947
    %v11156 = vpack.c.b16 %v10950, %v10949
    %v11157 = vpack.c.b16 %v10952, %v10951
    %v11158 = vpack.c.b16 %v10954, %v10953
    %v11159 = vpack.c.b16 %v10956, %v10955
    %v11160 = vpack.c.b16 %v10958, %v10957
    %v11161 = vpack.c.b16 %v10960, %v10959
    %v11162 = vpack.c.b16 %v10962, %v10961
    %v11163 = vpack.c.b16 %v10964, %v10963
    %v11164 = vpack.c.b16 %v10966, %v10965
    %v11165 = vpack.c.b16 %v10968, %v10967
    %v11166 = vpack.c.b16 %v10970, %v10969
    %v11167 = vpack.c.b16 %v10972, %v10971
    %v11168 = vpack.c.b16 %v10974, %v10973
    %v11169 = vpack.c.b16 %v10976, %v10975
    %v11170 = vpack.c.b16 %v10978, %v10977
    %v11171 = vpack.c.b16 %v10980, %v10979
    %v11172 = vpack.c.b16 %v10982, %v10981
    %v11173 = vpack.c.b16 %v10984, %v10983
    %v11174 = vpack.c.b16 %v10986, %v10985
    %v11175 = vpack.c.b16 %v10988, %v10987
    %v11176 = vpack.c.b16 %v10990, %v10989
    %v11177 = vpack.c.b16 %v10992, %v10991
    %v11178 = vpack.c.b16 %v10994, %v10993
    %v11179 = vpack.c.b16 %v10996, %v10995
    %v11180 = vpack.c.b16 %v10998, %v10997
    %v11181 = vpack.c.b16 %v11000, %v10999
    %v11182 = vpack.c.b16 %v11002, %v11001
    %v11183 = vpack.c.b16 %v11004, %v11003
    %v11184 = vpack.c.b16 %v11006, %v11005
    %v11185 = vpack.c.b16 %v11008, %v11007
    %v11186 = vpack.c.b16 %v11010, %v11009
    %v11187 = vpack.c.b16 %v11012, %v11011
    %v11188 = vpack.c.b16 %v11014, %v11013
    %v11189 = vpack.c.b16 %v11016, %v11015
    %v11190 = vpack.c.b16 %v11018, %v11017
    %v11191 = vpack.c.b16 %v11020, %v11019
    %v11192 = vpack.c.b16 %v11022, %v11021
    %v11193 = vpack.c.b16 %v11024, %v11023
    %v11194 = vpack.c.b16 %v11026, %v11025
    %v11195 = vpack.c.b16 %v11028, %v11027
    %v11196 = vpack.c.b16 %v11030, %v11029
    %v11197 = vpack.c.b16 %v11032, %v11031
    %v11198 = vpack.c.b16 %v11034, %v11033
    %v11199 = vpack.c.b16 %v11036, %v11035
    %v11200 = vpack.c.b16 %v11038, %v11037
    %v11201 = vpack.c.b16 %v11040, %v11039
    %v11202 = vpack.c.b16 %v11042, %v11041
    %v11203 = vpack.c.b16 %v11044, %v11043
    %v11204 = vpack.c.b16 %v11046, %v11045
    %v11205 = vpack.c.b16 %v11048, %v11047
    %v11206 = vpack.c.b16 %v11050, %v11049
    %v11207 = vpack.c.b16 %v11052, %v11051
    %v11208 = vpack.c.b16 %v11054, %v11053
    %v11209 = vpack.c.b16 %v11056, %v11055
    %v11210 = vpack.c.b16 %v11058, %v11057
    %v11211 = vpack.c.b16 %v11060, %v11059
    %v11212 = vpack.c.b16 %v11062, %v11061
    %v11213 = vpack.c.b16 %v11064, %v11063
    %v11214 = vpack.c.b16 %v11066, %v11065
    %v11215 = vpack.c.b16 %v11068, %v11067
    %v11216 = vpack.c.b16 %v11070, %v11069
    %v11217 = vpack.c.b16 %v11072, %v11071
    %v11218 = vpack.c.b16 %v11074, %v11073
    %v11219 = vpack.c.b16 %v11076, %v11075
    %v11220 = vpack.c.b16 %v11078, %v11077
    %v11221 = vpack.c.b16 %v11080, %v11079
    %v11222 = vpack.c.b16 %v11082, %v11081
    %v11223 = vpack.c.b16 %v11084, %v11083
    %v11224 = vpack.c.b16 %v11086, %v11085
    %v11225 = vpack.c.b16 %v11088, %v11087
    %v11226 = vpack.c.b16 %v11090, %v11089
    %v11227 = vpack.c.b16 %v11092, %v11091
    %v11228 = vpack.c.b16 %v11094, %v11093
    %v11229 = vpack.c.b16 %v11096, %v11095
    %v11230 = vpack.c.b16 %v11098, %v11097
    %v11231 = vpack.c.b16 %v11100, %v11099
    %v11232 = vpack.c.b16 %v11102, %v11101
    %v11233 = vpack.c.b16 %v11104, %v11103
    %v11234 = vpack.c.b16 %v11106, %v11105
    %11363 = vmatprep.subr.bf16.mxu0 0
    %11364 = vmatpush1.bf16.msra.mxu0 %v11107
    %11365 = vmatprep.subr.bf16.mxu0 0
    %11366 = vmatpush1.bf16.msra.mxu0 %v11108
    %11367 = vmatprep.subr.bf16.mxu0 0
    %11368 = vmatpush1.bf16.msra.mxu0 %v11109
    %11369 = vmatprep.subr.bf16.mxu0 0
    %11370 = vmatpush1.bf16.msra.mxu0 %v11110
    %11371 = vmatprep.subr.bf16.mxu0 0
    %11372 = vmatpush1.bf16.msra.mxu0 %v11111
    %11373 = vmatprep.subr.bf16.mxu0 0
    %11374 = vmatpush1.bf16.msra.mxu0 %v11112
    %11375 = vmatprep.subr.bf16.mxu0 0
    %11376 = vmatpush1.bf16.msra.mxu0 %v11113
    %11377 = vmatprep.subr.bf16.mxu0 0
    %11378 = vmatpush1.bf16.msra.mxu0 %v11114
    %11379 = vmatprep.subr.bf16.mxu0 0
    %11380 = vmatpush1.bf16.msra.mxu0 %v11115
    %11381 = vmatprep.subr.bf16.mxu0 0
    %11382 = vmatpush1.bf16.msra.mxu0 %v11116
    %11383 = vmatprep.subr.bf16.mxu0 0
    %11384 = vmatpush1.bf16.msra.mxu0 %v11117
    %11385 = vmatprep.subr.bf16.mxu0 0
    %11386 = vmatpush1.bf16.msra.mxu0 %v11118
    %11387 = vmatprep.subr.bf16.mxu0 0
    %11388 = vmatpush1.bf16.msra.mxu0 %v11119
    %11389 = vmatprep.subr.bf16.mxu0 0
    %11390 = vmatpush1.bf16.msra.mxu0 %v11120
    %11391 = vmatprep.subr.bf16.mxu0 0
    %11392 = vmatpush1.bf16.msra.mxu0 %v11121
    %11393 = vmatprep.subr.bf16.mxu0 0
    %11394 = vmatpush1.bf16.msra.mxu0 %v11122
    %11395 = vmatprep.mubr.bf16.mxu0 %v10518
    %11396 = vmatmul.mubr.bf16.gmra.mrb[0].mxu0 %v10504
    %v11397 = vpop.f32.mrb[0].mxu0
    %v11398 = vadd.f32 %v10477, %v11397
    %v11399 = vpop.f32.mrb[0].mxu0
    %v11400 = vpop.f32.mrb[0].mxu0
    %v11401 = vpop.f32.mrb[0].mxu0
    %11402 = vdwg.mxu0
    %11403 = vmatprep.subr.bf16.mxu0 0
    %11404 = vmatpush1.bf16.msra.mxu0 %v11123
    %11405 = vmatprep.subr.bf16.mxu0 0
    %11406 = vmatpush1.bf16.msra.mxu0 %v11124
    %11407 = vmatprep.subr.bf16.mxu0 0
    %11408 = vmatpush1.bf16.msra.mxu0 %v11125
    %11409 = vmatprep.subr.bf16.mxu0 0
    %11410 = vmatpush1.bf16.msra.mxu0 %v11126
    %11411 = vmatprep.subr.bf16.mxu0 0
    %11412 = vmatpush1.bf16.msra.mxu0 %v11127
    %11413 = vmatprep.subr.bf16.mxu0 0
    %11414 = vmatpush1.bf16.msra.mxu0 %v11128
    %11415 = vmatprep.subr.bf16.mxu0 0
    %11416 = vmatpush1.bf16.msra.mxu0 %v11129
    %11417 = vmatprep.subr.bf16.mxu0 0
    %11418 = vmatpush1.bf16.msra.mxu0 %v11130
    %11419 = vmatprep.subr.bf16.mxu0 0
    %11420 = vmatpush1.bf16.msra.mxu0 %v11131
    %11421 = vmatprep.subr.bf16.mxu0 0
    %11422 = vmatpush1.bf16.msra.mxu0 %v11132
    %11423 = vmatprep.subr.bf16.mxu0 0
    %11424 = vmatpush1.bf16.msra.mxu0 %v11133
    %11425 = vmatprep.subr.bf16.mxu0 0
    %11426 = vmatpush1.bf16.msra.mxu0 %v11134
    %11427 = vmatprep.subr.bf16.mxu0 0
    %11428 = vmatpush1.bf16.msra.mxu0 %v11135
    %11429 = vmatprep.subr.bf16.mxu0 0
    %11430 = vmatpush1.bf16.msra.mxu0 %v11136
    %11431 = vmatprep.subr.bf16.mxu0 0
    %11432 = vmatpush1.bf16.msra.mxu0 %v11137
    %11433 = vmatprep.subr.bf16.mxu0 0
    %11434 = vmatpush1.bf16.msra.mxu0 %v11138
    %11435 = vmatprep.mubr.bf16.mxu0 %v10528
    %11436 = vmatmul.mubr.bf16.gmra.mrb[0].mxu0 %v10526
    %v11437 = vpop.f32.mrb[0].mxu0
    %v11438 = vadd.f32 %v11398, %v11437
    %v11439 = vpop.f32.mrb[0].mxu0
    %v11440 = vpop.f32.mrb[0].mxu0
    %v11441 = vpop.f32.mrb[0].mxu0
    %11442 = vdwg.mxu0
    %11443 = vmatprep.subr.bf16.mxu0 0
    %11444 = vmatpush1.bf16.msra.mxu0 %v11139
    %11445 = vmatprep.subr.bf16.mxu0 0
    %11446 = vmatpush1.bf16.msra.mxu0 %v11140
    %11447 = vmatprep.subr.bf16.mxu0 0
    %11448 = vmatpush1.bf16.msra.mxu0 %v11141
    %11449 = vmatprep.subr.bf16.mxu0 0
    %11450 = vmatpush1.bf16.msra.mxu0 %v11142
    %11451 = vmatprep.subr.bf16.mxu0 0
    %11452 = vmatpush1.bf16.msra.mxu0 %v11143
    %11453 = vmatprep.subr.bf16.mxu0 0
    %11454 = vmatpush1.bf16.msra.mxu0 %v11144
    %11455 = vmatprep.subr.bf16.mxu0 0
    %11456 = vmatpush1.bf16.msra.mxu0 %v11145
    %11457 = vmatprep.subr.bf16.mxu0 0
    %11458 = vmatpush1.bf16.msra.mxu0 %v11146
    %11459 = vmatprep.subr.bf16.mxu0 0
    %11460 = vmatpush1.bf16.msra.mxu0 %v11147
    %11461 = vmatprep.subr.bf16.mxu0 0
    %11462 = vmatpush1.bf16.msra.mxu0 %v11148
    %11463 = vmatprep.subr.bf16.mxu0 0
    %11464 = vmatpush1.bf16.msra.mxu0 %v11149
    %11465 = vmatprep.subr.bf16.mxu0 0
    %11466 = vmatpush1.bf16.msra.mxu0 %v11150
    %11467 = vmatprep.subr.bf16.mxu0 0
    %11468 = vmatpush1.bf16.msra.mxu0 %v11151
    %11469 = vmatprep.subr.bf16.mxu0 0
    %11470 = vmatpush1.bf16.msra.mxu0 %v11152
    %11471 = vmatprep.subr.bf16.mxu0 0
    %11472 = vmatpush1.bf16.msra.mxu0 %v11153
    %11473 = vmatprep.subr.bf16.mxu0 0
    %11474 = vmatpush1.bf16.msra.mxu0 %v11154
    %11475 = vmatprep.mubr.bf16.mxu0 %v10525
    %11476 = vmatmul.mubr.bf16.gmra.mrb[0].mxu0 %v10511
    %v11477 = vpop.f32.mrb[0].mxu0
    %v11478 = vadd.f32 %v11438, %v11477
    %v11479 = vpop.f32.mrb[0].mxu0
    %v11480 = vpop.f32.mrb[0].mxu0
    %v11481 = vpop.f32.mrb[0].mxu0
    %11482 = vdwg.mxu0
    %11483 = vmatprep.subr.bf16.mxu0 0
    %11484 = vmatpush1.bf16.msra.mxu0 %v11155
    %11485 = vmatprep.subr.bf16.mxu0 0
    %11486 = vmatpush1.bf16.msra.mxu0 %v11156
    %11487 = vmatprep.subr.bf16.mxu0 0
    %11488 = vmatpush1.bf16.msra.mxu0 %v11157
    %11489 = vmatprep.subr.bf16.mxu0 0
    %11490 = vmatpush1.bf16.msra.mxu0 %v11158
    %11491 = vmatprep.subr.bf16.mxu0 0
    %11492 = vmatpush1.bf16.msra.mxu0 %v11159
    %11493 = vmatprep.subr.bf16.mxu0 0
    %11494 = vmatpush1.bf16.msra.mxu0 %v11160
    %11495 = vmatprep.subr.bf16.mxu0 0
    %11496 = vmatpush1.bf16.msra.mxu0 %v11161
    %11497 = vmatprep.subr.bf16.mxu0 0
    %11498 = vmatpush1.bf16.msra.mxu0 %v11162
    %11499 = vmatprep.subr.bf16.mxu0 0
    %11500 = vmatpush1.bf16.msra.mxu0 %v11163
    %11501 = vmatprep.subr.bf16.mxu0 0
    %11502 = vmatpush1.bf16.msra.mxu0 %v11164
    %11503 = vmatprep.subr.bf16.mxu0 0
    %11504 = vmatpush1.bf16.msra.mxu0 %v11165
    %11505 = vmatprep.subr.bf16.mxu0 0
    %11506 = vmatpush1.bf16.msra.mxu0 %v11166
    %11507 = vmatprep.subr.bf16.mxu0 0
    %11508 = vmatpush1.bf16.msra.mxu0 %v11167
    %11509 = vmatprep.subr.bf16.mxu0 0
    %11510 = vmatpush1.bf16.msra.mxu0 %v11168
    %11511 = vmatprep.subr.bf16.mxu0 0
    %11512 = vmatpush1.bf16.msra.mxu0 %v11169
    %11513 = vmatprep.subr.bf16.mxu0 0
    %11514 = vmatpush1.bf16.msra.mxu0 %v11170
    %11515 = vmatprep.mubr.bf16.mxu0 %v10529
    %11516 = vmatmul.mubr.bf16.gmra.mrb[0].mxu0 %v10527
    %v11517 = vpop.f32.mrb[0].mxu0
    %v11518 = vadd.f32 %v11478, %v11517
    %v11519 = vpop.f32.mrb[0].mxu0
    %v11520 = vpop.f32.mrb[0].mxu0
    %v11521 = vpop.f32.mrb[0].mxu0
    %11522 = vdwg.mxu0
    %11523 = vmatprep.subr.bf16.mxu0 0
    %11524 = vmatpush1.bf16.msra.mxu0 %v11171
    %11525 = vmatprep.subr.bf16.mxu0 0
    %11526 = vmatpush1.bf16.msra.mxu0 %v11172
    %11527 = vmatprep.subr.bf16.mxu0 0
    %11528 = vmatpush1.bf16.msra.mxu0 %v11173
    %11529 = vmatprep.subr.bf16.mxu0 0
    %11530 = vmatpush1.bf16.msra.mxu0 %v11174
    %11531 = vmatprep.subr.bf16.mxu0 0
    %11532 = vmatpush1.bf16.msra.mxu0 %v11175
    %11533 = vmatprep.subr.bf16.mxu0 0
    %11534 = vmatpush1.bf16.msra.mxu0 %v11176
    %11535 = vmatprep.subr.bf16.mxu0 0
    %11536 = vmatpush1.bf16.msra.mxu0 %v11177
    %11537 = vmatprep.subr.bf16.mxu0 0
    %11538 = vmatpush1.bf16.msra.mxu0 %v11178
    %11539 = vmatprep.subr.bf16.mxu0 0
    %11540 = vmatpush1.bf16.msra.mxu0 %v11179
    %11541 = vmatprep.subr.bf16.mxu0 0
    %11542 = vmatpush1.bf16.msra.mxu0 %v11180
    %11543 = vmatprep.subr.bf16.mxu0 0
    %11544 = vmatpush1.bf16.msra.mxu0 %v11181
    %11545 = vmatprep.subr.bf16.mxu0 0
    %11546 = vmatpush1.bf16.msra.mxu0 %v11182
    %11547 = vmatprep.subr.bf16.mxu0 0
    %11548 = vmatpush1.bf16.msra.mxu0 %v11183
    %11549 = vmatprep.subr.bf16.mxu0 0
    %11550 = vmatpush1.bf16.msra.mxu0 %v11184
    %11551 = vmatprep.subr.bf16.mxu0 0
    %11552 = vmatpush1.bf16.msra.mxu0 %v11185
    %11553 = vmatprep.subr.bf16.mxu0 0
    %11554 = vmatpush1.bf16.msra.mxu0 %v11186
    %11555 = vmatprep.mubr.bf16.mxu0 %v10567
    %11556 = vmatmul.mubr.bf16.gmra.mrb[0].mxu0 %v10553
    %v11557 = vpop.f32.mrb[0].mxu0
    %v11558 = vadd.f32 %v11518, %v11557
    %v11559 = vpop.f32.mrb[0].mxu0
    %v11560 = vpop.f32.mrb[0].mxu0
    %v11561 = vpop.f32.mrb[0].mxu0
    %11562 = vdwg.mxu0
    %11563 = vmatprep.subr.bf16.mxu0 0
    %11564 = vmatpush1.bf16.msra.mxu0 %v11187
    %11565 = vmatprep.subr.bf16.mxu0 0
    %11566 = vmatpush1.bf16.msra.mxu0 %v11188
    %11567 = vmatprep.subr.bf16.mxu0 0
    %11568 = vmatpush1.bf16.msra.mxu0 %v11189
    %11569 = vmatprep.subr.bf16.mxu0 0
    %11570 = vmatpush1.bf16.msra.mxu0 %v11190
    %11571 = vmatprep.subr.bf16.mxu0 0
    %11572 = vmatpush1.bf16.msra.mxu0 %v11191
    %11573 = vmatprep.subr.bf16.mxu0 0
    %11574 = vmatpush1.bf16.msra.mxu0 %v11192
    %11575 = vmatprep.subr.bf16.mxu0 0
    %11576 = vmatpush1.bf16.msra.mxu0 %v11193
    %11577 = vmatprep.subr.bf16.mxu0 0
    %11578 = vmatpush1.bf16.msra.mxu0 %v11194
    %11579 = vmatprep.subr.bf16.mxu0 0
    %11580 = vmatpush1.bf16.msra.mxu0 %v11195
    %11581 = vmatprep.subr.bf16.mxu0 0
    %11582 = vmatpush1.bf16.msra.mxu0 %v11196
    %11583 = vmatprep.subr.bf16.mxu0 0
    %11584 = vmatpush1.bf16.msra.mxu0 %v11197
    %11585 = vmatprep.subr.bf16.mxu0 0
    %11586 = vmatpush1.bf16.msra.mxu0 %v11198
    %11587 = vmatprep.subr.bf16.mxu0 0
    %11588 = vmatpush1.bf16.msra.mxu0 %v11199
    %11589 = vmatprep.subr.bf16.mxu0 0
    %11590 = vmatpush1.bf16.msra.mxu0 %v11200
    %11591 = vmatprep.subr.bf16.mxu0 0
    %11592 = vmatpush1.bf16.msra.mxu0 %v11201
    %11593 = vmatprep.subr.bf16.mxu0 0
    %11594 = vmatpush1.bf16.msra.mxu0 %v11202
    %11595 = vmatprep.mubr.bf16.mxu0 %v10577
    %11596 = vmatmul.mubr.bf16.gmra.mrb[0].mxu0 %v10575
    %v11597 = vpop.f32.mrb[0].mxu0
    %v11598 = vadd.f32 %v11558, %v11597
    %v11599 = vpop.f32.mrb[0].mxu0
    %v11600 = vpop.f32.mrb[0].mxu0
    %v11601 = vpop.f32.mrb[0].mxu0
    %11602 = vdwg.mxu0
    %11603 = vmatprep.subr.bf16.mxu0 0
    %11604 = vmatpush1.bf16.msra.mxu0 %v11203
    %11605 = vmatprep.subr.bf16.mxu0 0
    %11606 = vmatpush1.bf16.msra.mxu0 %v11204
    %11607 = vmatprep.subr.bf16.mxu0 0
    %11608 = vmatpush1.bf16.msra.mxu0 %v11205
    %11609 = vmatprep.subr.bf16.mxu0 0
    %11610 = vmatpush1.bf16.msra.mxu0 %v11206
    %11611 = vmatprep.subr.bf16.mxu0 0
    %11612 = vmatpush1.bf16.msra.mxu0 %v11207
    %11613 = vmatprep.subr.bf16.mxu0 0
    %11614 = vmatpush1.bf16.msra.mxu0 %v11208
    %11615 = vmatprep.subr.bf16.mxu0 0
    %11616 = vmatpush1.bf16.msra.mxu0 %v11209
    %11617 = vmatprep.subr.bf16.mxu0 0
    %11618 = vmatpush1.bf16.msra.mxu0 %v11210
    %11619 = vmatprep.subr.bf16.mxu0 0
    %11620 = vmatpush1.bf16.msra.mxu0 %v11211
    %11621 = vmatprep.subr.bf16.mxu0 0
    %11622 = vmatpush1.bf16.msra.mxu0 %v11212
    %11623 = vmatprep.subr.bf16.mxu0 0
    %11624 = vmatpush1.bf16.msra.mxu0 %v11213
    %11625 = vmatprep.subr.bf16.mxu0 0
    %11626 = vmatpush1.bf16.msra.mxu0 %v11214
    %11627 = vmatprep.subr.bf16.mxu0 0
    %11628 = vmatpush1.bf16.msra.mxu0 %v11215
    %11629 = vmatprep.subr.bf16.mxu0 0
    %11630 = vmatpush1.bf16.msra.mxu0 %v11216
    %11631 = vmatprep.subr.bf16.mxu0 0
    %11632 = vmatpush1.bf16.msra.mxu0 %v11217
    %11633 = vmatprep.subr.bf16.mxu0 0
    %11634 = vmatpush1.bf16.msra.mxu0 %v11218
    %11635 = vmatprep.mubr.bf16.mxu0 %v10574
    %11636 = vmatmul.mubr.bf16.gmra.mrb[0].mxu0 %v10560
    %v11637 = vpop.f32.mrb[0].mxu0
    %v11638 = vadd.f32 %v11598, %v11637
    %v11639 = vpop.f32.mrb[0].mxu0
    %v11640 = vpop.f32.mrb[0].mxu0
    %v11641 = vpop.f32.mrb[0].mxu0
    %11642 = vdwg.mxu0
    %11643 = vmatprep.subr.bf16.mxu0 0
    %11644 = vmatpush1.bf16.msra.mxu0 %v11219
    %11645 = vmatprep.subr.bf16.mxu0 0
    %11646 = vmatpush1.bf16.msra.mxu0 %v11220
    %11647 = vmatprep.subr.bf16.mxu0 0
    %11648 = vmatpush1.bf16.msra.mxu0 %v11221
    %11649 = vmatprep.subr.bf16.mxu0 0
    %11650 = vmatpush1.bf16.msra.mxu0 %v11222
    %11651 = vmatprep.subr.bf16.mxu0 0
    %11652 = vmatpush1.bf16.msra.mxu0 %v11223
    %11653 = vmatprep.subr.bf16.mxu0 0
    %11654 = vmatpush1.bf16.msra.mxu0 %v11224
    %11655 = vmatprep.subr.bf16.mxu0 0
    %11656 = vmatpush1.bf16.msra.mxu0 %v11225
    %11657 = vmatprep.subr.bf16.mxu0 0
    %11658 = vmatpush1.bf16.msra.mxu0 %v11226
    %11659 = vmatprep.subr.bf16.mxu0 0
    %11660 = vmatpush1.bf16.msra.mxu0 %v11227
    %11661 = vmatprep.subr.bf16.mxu0 0
    %11662 = vmatpush1.bf16.msra.mxu0 %v11228
    %11663 = vmatprep.subr.bf16.mxu0 0
    %11664 = vmatpush1.bf16.msra.mxu0 %v11229
    %11665 = vmatprep.subr.bf16.mxu0 0
    %11666 = vmatpush1.bf16.msra.mxu0 %v11230
    %11667 = vmatprep.subr.bf16.mxu0 0
    %11668 = vmatpush1.bf16.msra.mxu0 %v11231
    %11669 = vmatprep.subr.bf16.mxu0 0
    %11670 = vmatpush1.bf16.msra.mxu0 %v11232
    %11671 = vmatprep.subr.bf16.mxu0 0
    %11672 = vmatpush1.bf16.msra.mxu0 %v11233
    %11673 = vmatprep.subr.bf16.mxu0 0
    %11674 = vmatpush1.bf16.msra.mxu0 %v11234
    %11675 = vmatprep.mubr.bf16.mxu0 %v10578
    %11676 = vmatmul.mubr.bf16.gmra.mrb[0].mxu0 %v10576
    %v11677 = vpop.f32.mrb[0].mxu0
    %v11678 = vadd.f32 %v11638, %v11677
    %v11679 = vpop.f32.mrb[0].mxu0
    %v11680 = vpop.f32.mrb[0].mxu0
    %v11681 = vpop.f32.mrb[0].mxu0
    %11682 = vdwg.mxu0
    %v11683 = vmax.f32 %v11678, 0.0
    %vm11684 = vcmask 517120
    %11685 = vst.msk [vmem:[#allocation8] sm:$0x3] %vm11684, %v11683
    // Predicated region
    $region30: #{roi_xconv1fc_head_forward.1} parent=1 // pred_check
      _
    $region31: #{roi_xconv1fc_head_forward.1} parent=1 // pred_check_branch
      %11687 = sbr.rel (0) target = $region33
    $region32: #{roi_xconv1fc_head_forward.1} parent=1 // pred_region
      %s11689 = ssub.s32 32, 32
      %11690 = vsyncadd [#allocation9], %s11689
      %s11692 = sshll.u32 [#allocation8], 4
      %s11693 = int_to_ptr.vmem [resolvable:$true] %s11692
      %11695 = dma.vmem_to_hbm [thread:$0]  %s11693, 32, %s7, [#allocation9]
    $region33: #{roi_xconv1fc_head_forward.1} parent=1 // pred_fallthru
      _
    // Predicated region
    $region34: #{roi_xconv1fc_head_forward.1} parent=1 // pred_check
      _
    $region35: #{roi_xconv1fc_head_forward.1} parent=1 // pred_check_branch
      %11697 = sbr.rel (0) target = $region37
    $region36: #{roi_xconv1fc_head_forward.1} parent=1 // pred_region
      %11698 = dma.done [#allocation9], 32
    $region37: #{roi_xconv1fc_head_forward.1} parent=1 // pred_fallthru
      _
    %11699 = vsyncpa [#allocation9], 1

</llo_original>
